<compile_context>
chip_gen: v6e
topology: v6e:2x2x1
jax: 0.10.0
libtpu: 0.0.40
codegen_flags: <defaults>
</compile_context>

<pallas_src>
import math

import jax
import jax.numpy as jnp
import numpy as np
from jax.experimental import pallas as pl
from jax.experimental.pallas import tpu as pltpu

EPS = 1e-5
CFG = [32, "M", 64, "M", 512, "M"]   # features; 8x8 input -> flatten == 512


# ------------------------- trace-time constant builders ----------------------

def _shift_matrices(h, w):
    """9 (h*w, h*w) 0/1 matrices: S_k @ x == x spatially shifted by the k-th
    3x3 tap (zero boundary), with x flattened as (h*w, C)."""
    n = h * w
    mats = np.zeros((9, n, n), np.float32)
    k = 0
    for dy in (-1, 0, 1):
        for dx in (-1, 0, 1):
            for yy in range(h):
                for xx in range(w):
                    sy, sx = yy + dy, xx + dx
                    if 0 <= sy < h and 0 <= sx < w:
                        mats[k, yy * w + xx, sy * w + sx] = 1.0
            k += 1
    return mats


def _pool_matrices(h, w):
    """4 (h*w/4, h*w) 0/1 matrices: max_j (G_j @ x) == 2x2/stride-2 max pool of
    x flattened as (h*w, C)."""
    ho, wo = h // 2, w // 2
    mats = np.zeros((4, ho * wo, h * w), np.float32)
    for j, (dy, dx) in enumerate(((0, 0), (0, 1), (1, 0), (1, 1))):
        for yy in range(ho):
            for xx in range(wo):
                mats[j, yy * wo + xx, (2 * yy + dy) * w + (2 * xx + dx)] = 1.0
    return mats


def _fold_bn(gamma, beta, mean, var):
    s = gamma / jnp.sqrt(var + EPS)
    return s, beta - mean * s


# --------------------------- fused Pallas kernel ------------------------------

def _vgg_fused_kernel(x_ref,
                      sA_ref, wA_ref, tA_ref, gA_ref,
                      sB_ref, wB_ref, tB_ref, gB_ref,
                      sC_ref, wC_ref, tC_ref, gC_ref,
                      bn2s_ref, bn2t_ref, wc_ref, bc_ref,
                      o_ref):
    # One image per grid step; all activations stay on-chip.
    act = x_ref[0]                                          # (H*W, Cin) bf16
    layers = ((sA_ref, wA_ref, tA_ref, gA_ref),
              (sB_ref, wB_ref, tB_ref, gB_ref),
              (sC_ref, wC_ref, tC_ref, gC_ref))
    for s_ref, w_ref, t_ref, g_ref in layers:               # unrolled, 3 blocks
        n = s_ref.shape[1]
        cout = w_ref.shape[2]
        # 3x3 conv as 9 accumulated matmuls: acc += (S_k @ act) @ W_k
        acc = jnp.zeros((n, cout), jnp.float32)
        for k in range(9):
            shifted = jnp.dot(s_ref[k], act, preferred_element_type=jnp.float32)
            acc = acc + jnp.dot(shifted.astype(jnp.bfloat16), w_ref[k],
                                preferred_element_type=jnp.float32)
        # BatchNorm2d (scale folded into W) + Hardtanh
        y = jnp.clip(acc + t_ref[...], -1.0, 1.0).astype(jnp.bfloat16)
        # 2x2 max pool: elementwise max of 4 row-selection matmuls
        pooled = jnp.dot(g_ref[0], y, preferred_element_type=jnp.float32)
        for j in range(1, 4):
            pooled = jnp.maximum(
                pooled, jnp.dot(g_ref[j], y, preferred_element_type=jnp.float32))
        act = pooled.astype(jnp.bfloat16)
    # head: bn2 -> Hardtanh -> Linear (bn3 folded) -> LogSoftmax
    h = act.astype(jnp.float32) * bn2s_ref[...] + bn2t_ref[...]
    h = jnp.clip(h, -1.0, 1.0)
    logits = jnp.dot(h.astype(jnp.bfloat16), wc_ref[...],
                     preferred_element_type=jnp.float32) + bc_ref[...]
    m = jnp.max(logits, axis=-1, keepdims=True)
    z = logits - m
    lse = jnp.log(jnp.sum(jnp.exp(z), axis=-1, keepdims=True))
    o_ref[0] = z - lse


# --------------------------- wrapper ------------------------------------------

def _const_spec(shape):
    # full-array block, constant index_map -> DMA'd once, VMEM-resident.
    return pl.BlockSpec(shape, lambda b: (0,) * len(shape))


@jax.jit
def vgg_forward(params, x_nchw):
    x_nhwc = jnp.transpose(x_nchw, (0, 2, 3, 1))            # NCHW -> NHWC once
    B, H, W, Cin = x_nhwc.shape
    x2 = x_nhwc.reshape(B, H * W, Cin).astype(jnp.bfloat16)

    operands = [x2]
    in_specs = [pl.BlockSpec((1, H * W, Cin), lambda b: (b, 0, 0))]

    h, w = H, W
    for wk, g, be, mu, var in params["convs"]:
        cout, cin = wk.shape[0], wk.shape[1]
        s, t = _fold_bn(g, be, mu, var)
        wst = (jnp.transpose(wk, (2, 3, 1, 0)).reshape(9, cin, cout)
               * s[None, None, :]).astype(jnp.bfloat16)      # BN scale folded
        smat = jnp.asarray(_shift_matrices(h, w), jnp.bfloat16)
        gmat = jnp.asarray(_pool_matrices(h, w), jnp.bfloat16)
        tvec = t.reshape(1, cout).astype(jnp.float32)
        for arr in (smat, wst, tvec, gmat):
            operands.append(arr)
            in_specs.append(_const_spec(arr.shape))
        h, w = h // 2, w // 2

    s2, t2 = _fold_bn(*params["bn2"])
    wl, bl = params["classifier"]                            # (NC, 512), (NC,)
    s3, t3 = _fold_bn(*params["bn3"])
    wc = (wl.T * s3[None, :]).astype(jnp.bfloat16)           # bn3 scale folded
    bc = (bl * s3 + t3).reshape(1, -1).astype(jnp.float32)
    nc = wc.shape[1]
    for arr in (s2.reshape(1, -1).astype(jnp.float32),
                t2.reshape(1, -1).astype(jnp.float32), wc, bc):
        operands.append(arr)
        in_specs.append(_const_spec(arr.shape))

    out = pl.pallas_call(
        _vgg_fused_kernel,
        out_shape=jax.ShapeDtypeStruct((B, 1, nc), jnp.float32),
        grid=(B,),
        in_specs=in_specs,
        out_specs=pl.BlockSpec((1, 1, nc), lambda b: (b, 0, 0)),
        compiler_params=pltpu.CompilerParams(dimension_semantics=("parallel",)),
    )(*operands)
    return out.reshape(B, nc)


# --------------------------- params & reference -------------------------------

def init_params(key, num_classes=10, in_ch=3):
    """Deterministic init matching VGG._initialize_weights (raw PyTorch-style params)."""
    convs = []
    c = in_ch
    n_conv = sum(1 for v in CFG if v != "M")
    keys = jax.random.split(key, n_conv + 1)
    ki = 0
    for v in CFG:
        if v == "M":
            continue
        n = 3 * 3 * v                                        # kh*kw*out_channels
        wk = jax.random.normal(keys[ki], (v, c, 3, 3), jnp.float32) * math.sqrt(2.0 / n)
        ki += 1
        # BatchNorm2d: weight=1, bias=0, running_mean=0, running_var=1
        convs.append((wk, jnp.ones(v), jnp.zeros(v), jnp.zeros(v), jnp.ones(v)))
        c = v
    params = {"convs": convs}
    params["bn2"] = (jnp.ones(512), jnp.zeros(512), jnp.zeros(512), jnp.ones(512))
    wl = jax.random.normal(keys[ki], (num_classes, 512), jnp.float32) * 0.01
    params["classifier"] = (wl, jnp.zeros(num_classes))
    params["bn3"] = (jnp.ones(num_classes), jnp.zeros(num_classes),
                     jnp.zeros(num_classes), jnp.ones(num_classes))
    return params


def _reference_forward(params, x_nchw):
    """Pure-JAX reference mirroring the kernel's bf16 operand rounding."""
    f32 = jnp.float32
    x = jnp.transpose(x_nchw, (0, 2, 3, 1)).astype(jnp.bfloat16).astype(f32)
    for wk, g, be, mu, var in params["convs"]:
        s, t = _fold_bn(g, be, mu, var)
        wf = (jnp.transpose(wk, (2, 3, 1, 0))
              * s[None, None, None, :]).astype(jnp.bfloat16).astype(f32)
        y = jax.lax.conv_general_dilated(
            x, wf, (1, 1), "SAME", dimension_numbers=("NHWC", "HWIO", "NHWC"))
        y = jnp.clip(y + t[None, None, None, :], -1.0, 1.0)
        y = y.astype(jnp.bfloat16).astype(f32)
        B, H, W, C = y.shape
        x = jnp.max(y.reshape(B, H // 2, 2, W // 2, 2, C), axis=(2, 4))
    xf = x.reshape(x.shape[0], -1)                           # (B, 512)
    s2, t2 = _fold_bn(*params["bn2"])
    h = jnp.clip(xf * s2[None, :] + t2[None, :], -1.0, 1.0)
    h = h.astype(jnp.bfloat16).astype(f32)
    wl, bl = params["classifier"]
    s3, t3 = _fold_bn(*params["bn3"])
    wc = (wl.T * s3[None, :]).astype(jnp.bfloat16).astype(f32)
    logits = h @ wc + (bl * s3 + t3)[None, :]
    return jax.nn.log_softmax(logits, axis=-1)


if __name__ == "__main__":
    key = jax.random.PRNGKey(0)
    kp, kx = jax.random.split(key)
    num_classes = 10
    params = init_params(kp, num_classes=num_classes)
    x = jax.random.normal(kx, (2, 3, 8, 8), jnp.float32)     # NCHW like PyTorch
    out = vgg_forward(params, x)
    jax.block_until_ready(out)
    assert out.shape == (2, num_classes)
    # log-softmax rows exponentiate-sum to 1
    assert bool(jnp.allclose(jnp.sum(jnp.exp(out), axis=1), 1.0, atol=1e-3))
    ref = _reference_forward(params, x)
    assert bool(jnp.allclose(out, ref, atol=2e-2, rtol=0.0)), \
        float(jnp.max(jnp.abs(out - ref)))
    print("KERNEL_OK")
</pallas_src>

<mosaic_0001>
module attributes {stable_mosaic.version = 11 : i64} {
  func.func @_vgg_fused_kernel(%arg0: i32, %arg1: memref<1x64x3xbf16, #tpu.memory_space<vmem>>, %arg2: memref<9x64x64xbf16, #tpu.memory_space<vmem>>, %arg3: memref<9x3x32xbf16, #tpu.memory_space<vmem>>, %arg4: memref<1x32xf32, #tpu.memory_space<vmem>>, %arg5: memref<4x16x64xbf16, #tpu.memory_space<vmem>>, %arg6: memref<9x16x16xbf16, #tpu.memory_space<vmem>>, %arg7: memref<9x32x64xbf16, #tpu.memory_space<vmem>>, %arg8: memref<1x64xf32, #tpu.memory_space<vmem>>, %arg9: memref<4x4x16xbf16, #tpu.memory_space<vmem>>, %arg10: memref<9x4x4xbf16, #tpu.memory_space<vmem>>, %arg11: memref<9x64x512xbf16, #tpu.memory_space<vmem>>, %arg12: memref<1x512xf32, #tpu.memory_space<vmem>>, %arg13: memref<4x1x4xbf16, #tpu.memory_space<vmem>>, %arg14: memref<1x512xf32, #tpu.memory_space<vmem>>, %arg15: memref<1x512xf32, #tpu.memory_space<vmem>>, %arg16: memref<512x10xbf16, #tpu.memory_space<vmem>>, %arg17: memref<1x10xf32, #tpu.memory_space<vmem>>, %arg18: memref<1x1x10xf32, #tpu.memory_space<vmem>>) attributes {dimension_semantics = [#tpu.dimension_semantics<parallel>], iteration_bounds = array<i64: 2>, scalar_prefetch = 0 : i64, scratch_operands = 0 : i64, tpu.core_type = #tpu.core_type<tc>, window_params = [{transform_indices = @transform_0, window_bounds = array<i64: 1, 64, 3>}, {pipeline_mode = #tpu.pipeline_mode<synchronous>, transform_indices = @transform_1, window_bounds = array<i64: 9, 64, 64>}, {pipeline_mode = #tpu.pipeline_mode<synchronous>, transform_indices = @transform_2, window_bounds = array<i64: 9, 3, 32>}, {pipeline_mode = #tpu.pipeline_mode<synchronous>, transform_indices = @transform_3, window_bounds = array<i64: 1, 32>}, {pipeline_mode = #tpu.pipeline_mode<synchronous>, transform_indices = @transform_4, window_bounds = array<i64: 4, 16, 64>}, {pipeline_mode = #tpu.pipeline_mode<synchronous>, transform_indices = @transform_5, window_bounds = array<i64: 9, 16, 16>}, {pipeline_mode = #tpu.pipeline_mode<synchronous>, transform_indices = @transform_6, window_bounds = array<i64: 9, 32, 64>}, {pipeline_mode = #tpu.pipeline_mode<synchronous>, transform_indices = @transform_7, window_bounds = array<i64: 1, 64>}, {pipeline_mode = #tpu.pipeline_mode<synchronous>, transform_indices = @transform_8, window_bounds = array<i64: 4, 4, 16>}, {pipeline_mode = #tpu.pipeline_mode<synchronous>, transform_indices = @transform_9, window_bounds = array<i64: 9, 4, 4>}, {pipeline_mode = #tpu.pipeline_mode<synchronous>, transform_indices = @transform_10, window_bounds = array<i64: 9, 64, 512>}, {pipeline_mode = #tpu.pipeline_mode<synchronous>, transform_indices = @transform_11, window_bounds = array<i64: 1, 512>}, {pipeline_mode = #tpu.pipeline_mode<synchronous>, transform_indices = @transform_12, window_bounds = array<i64: 4, 1, 4>}, {pipeline_mode = #tpu.pipeline_mode<synchronous>, transform_indices = @transform_13, window_bounds = array<i64: 1, 512>}, {pipeline_mode = #tpu.pipeline_mode<synchronous>, transform_indices = @transform_14, window_bounds = array<i64: 1, 512>}, {pipeline_mode = #tpu.pipeline_mode<synchronous>, transform_indices = @transform_15, window_bounds = array<i64: 512, 10>}, {pipeline_mode = #tpu.pipeline_mode<synchronous>, transform_indices = @transform_16, window_bounds = array<i64: 1, 10>}, {transform_indices = @transform_17, window_bounds = array<i64: 1, 1, 10>}]} {
    %c0 = arith.constant 0 : index
    %c0_0 = arith.constant 0 : index
    %c0_1 = arith.constant 0 : index
    %0 = vector.load %arg1[%c0, %c0_0, %c0_1] : memref<1x64x3xbf16, #tpu.memory_space<vmem>>, vector<1x64x3xbf16>
    %1 = vector.shape_cast %0 : vector<1x64x3xbf16> to vector<64x3xbf16>
    %cst = arith.constant 0.000000e+00 : f32
    %2 = vector.broadcast %cst : f32 to vector<64x32xf32>
    %c0_2 = arith.constant 0 : index
    %c0_3 = arith.constant 0 : index
    %c0_4 = arith.constant 0 : index
    %3 = vector.load %arg2[%c0_2, %c0_3, %c0_4] : memref<9x64x64xbf16, #tpu.memory_space<vmem>>, vector<1x64x64xbf16>
    %4 = vector.shape_cast %3 : vector<1x64x64xbf16> to vector<64x64xbf16>
    %cst_5 = arith.constant dense<0.000000e+00> : vector<64x3xf32>
    %5 = tpu.matmul %4, %1, %cst_5 {dimension_numbers = #tpu.dot_dimension_numbers<[1], [0], [0], [1], [0, 0, 1, 1], [], []>} : vector<64x64xbf16>, vector<64x3xbf16>, vector<64x3xf32> -> vector<64x3xf32>
    %6 = arith.truncf %5 : vector<64x3xf32> to vector<64x3xbf16>
    %c0_6 = arith.constant 0 : index
    %c0_7 = arith.constant 0 : index
    %c0_8 = arith.constant 0 : index
    %7 = vector.load %arg3[%c0_6, %c0_7, %c0_8] : memref<9x3x32xbf16, #tpu.memory_space<vmem>>, vector<1x3x32xbf16>
    %8 = vector.shape_cast %7 : vector<1x3x32xbf16> to vector<3x32xbf16>
    %cst_9 = arith.constant dense<0.000000e+00> : vector<64x32xf32>
    %9 = tpu.matmul %6, %8, %cst_9 {dimension_numbers = #tpu.dot_dimension_numbers<[1], [0], [0], [1], [0, 0, 1, 1], [], []>} : vector<64x3xbf16>, vector<3x32xbf16>, vector<64x32xf32> -> vector<64x32xf32>
    %10 = arith.addf %2, %9 : vector<64x32xf32>
    %c1 = arith.constant 1 : index
    %c0_10 = arith.constant 0 : index
    %c0_11 = arith.constant 0 : index
    %11 = vector.load %arg2[%c1, %c0_10, %c0_11] : memref<9x64x64xbf16, #tpu.memory_space<vmem>>, vector<1x64x64xbf16>
    %12 = vector.shape_cast %11 : vector<1x64x64xbf16> to vector<64x64xbf16>
    %cst_12 = arith.constant dense<0.000000e+00> : vector<64x3xf32>
    %13 = tpu.matmul %12, %1, %cst_12 {dimension_numbers = #tpu.dot_dimension_numbers<[1], [0], [0], [1], [0, 0, 1, 1], [], []>} : vector<64x64xbf16>, vector<64x3xbf16>, vector<64x3xf32> -> vector<64x3xf32>
    %14 = arith.truncf %13 : vector<64x3xf32> to vector<64x3xbf16>
    %c1_13 = arith.constant 1 : index
    %c0_14 = arith.constant 0 : index
    %c0_15 = arith.constant 0 : index
    %15 = vector.load %arg3[%c1_13, %c0_14, %c0_15] : memref<9x3x32xbf16, #tpu.memory_space<vmem>>, vector<1x3x32xbf16>
    %16 = vector.shape_cast %15 : vector<1x3x32xbf16> to vector<3x32xbf16>
    %cst_16 = arith.constant dense<0.000000e+00> : vector<64x32xf32>
    %17 = tpu.matmul %14, %16, %cst_16 {dimension_numbers = #tpu.dot_dimension_numbers<[1], [0], [0], [1], [0, 0, 1, 1], [], []>} : vector<64x3xbf16>, vector<3x32xbf16>, vector<64x32xf32> -> vector<64x32xf32>
    %18 = arith.addf %10, %17 : vector<64x32xf32>
    %c2 = arith.constant 2 : index
    %c0_17 = arith.constant 0 : index
    %c0_18 = arith.constant 0 : index
    %19 = vector.load %arg2[%c2, %c0_17, %c0_18] : memref<9x64x64xbf16, #tpu.memory_space<vmem>>, vector<1x64x64xbf16>
    %20 = vector.shape_cast %19 : vector<1x64x64xbf16> to vector<64x64xbf16>
    %cst_19 = arith.constant dense<0.000000e+00> : vector<64x3xf32>
    %21 = tpu.matmul %20, %1, %cst_19 {dimension_numbers = #tpu.dot_dimension_numbers<[1], [0], [0], [1], [0, 0, 1, 1], [], []>} : vector<64x64xbf16>, vector<64x3xbf16>, vector<64x3xf32> -> vector<64x3xf32>
    %22 = arith.truncf %21 : vector<64x3xf32> to vector<64x3xbf16>
    %c2_20 = arith.constant 2 : index
    %c0_21 = arith.constant 0 : index
    %c0_22 = arith.constant 0 : index
    %23 = vector.load %arg3[%c2_20, %c0_21, %c0_22] : memref<9x3x32xbf16, #tpu.memory_space<vmem>>, vector<1x3x32xbf16>
    %24 = vector.shape_cast %23 : vector<1x3x32xbf16> to vector<3x32xbf16>
    %cst_23 = arith.constant dense<0.000000e+00> : vector<64x32xf32>
    %25 = tpu.matmul %22, %24, %cst_23 {dimension_numbers = #tpu.dot_dimension_numbers<[1], [0], [0], [1], [0, 0, 1, 1], [], []>} : vector<64x3xbf16>, vector<3x32xbf16>, vector<64x32xf32> -> vector<64x32xf32>
    %26 = arith.addf %18, %25 : vector<64x32xf32>
    %c3 = arith.constant 3 : index
    %c0_24 = arith.constant 0 : index
    %c0_25 = arith.constant 0 : index
    %27 = vector.load %arg2[%c3, %c0_24, %c0_25] : memref<9x64x64xbf16, #tpu.memory_space<vmem>>, vector<1x64x64xbf16>
    %28 = vector.shape_cast %27 : vector<1x64x64xbf16> to vector<64x64xbf16>
    %cst_26 = arith.constant dense<0.000000e+00> : vector<64x3xf32>
    %29 = tpu.matmul %28, %1, %cst_26 {dimension_numbers = #tpu.dot_dimension_numbers<[1], [0], [0], [1], [0, 0, 1, 1], [], []>} : vector<64x64xbf16>, vector<64x3xbf16>, vector<64x3xf32> -> vector<64x3xf32>
    %30 = arith.truncf %29 : vector<64x3xf32> to vector<64x3xbf16>
    %c3_27 = arith.constant 3 : index
    %c0_28 = arith.constant 0 : index
    %c0_29 = arith.constant 0 : index
    %31 = vector.load %arg3[%c3_27, %c0_28, %c0_29] : memref<9x3x32xbf16, #tpu.memory_space<vmem>>, vector<1x3x32xbf16>
    %32 = vector.shape_cast %31 : vector<1x3x32xbf16> to vector<3x32xbf16>
    %cst_30 = arith.constant dense<0.000000e+00> : vector<64x32xf32>
    %33 = tpu.matmul %30, %32, %cst_30 {dimension_numbers = #tpu.dot_dimension_numbers<[1], [0], [0], [1], [0, 0, 1, 1], [], []>} : vector<64x3xbf16>, vector<3x32xbf16>, vector<64x32xf32> -> vector<64x32xf32>
    %34 = arith.addf %26, %33 : vector<64x32xf32>
    %c4 = arith.constant 4 : index
    %c0_31 = arith.constant 0 : index
    %c0_32 = arith.constant 0 : index
    %35 = vector.load %arg2[%c4, %c0_31, %c0_32] : memref<9x64x64xbf16, #tpu.memory_space<vmem>>, vector<1x64x64xbf16>
    %36 = vector.shape_cast %35 : vector<1x64x64xbf16> to vector<64x64xbf16>
    %cst_33 = arith.constant dense<0.000000e+00> : vector<64x3xf32>
    %37 = tpu.matmul %36, %1, %cst_33 {dimension_numbers = #tpu.dot_dimension_numbers<[1], [0], [0], [1], [0, 0, 1, 1], [], []>} : vector<64x64xbf16>, vector<64x3xbf16>, vector<64x3xf32> -> vector<64x3xf32>
    %38 = arith.truncf %37 : vector<64x3xf32> to vector<64x3xbf16>
    %c4_34 = arith.constant 4 : index
    %c0_35 = arith.constant 0 : index
    %c0_36 = arith.constant 0 : index
    %39 = vector.load %arg3[%c4_34, %c0_35, %c0_36] : memref<9x3x32xbf16, #tpu.memory_space<vmem>>, vector<1x3x32xbf16>
    %40 = vector.shape_cast %39 : vector<1x3x32xbf16> to vector<3x32xbf16>
    %cst_37 = arith.constant dense<0.000000e+00> : vector<64x32xf32>
    %41 = tpu.matmul %38, %40, %cst_37 {dimension_numbers = #tpu.dot_dimension_numbers<[1], [0], [0], [1], [0, 0, 1, 1], [], []>} : vector<64x3xbf16>, vector<3x32xbf16>, vector<64x32xf32> -> vector<64x32xf32>
    %42 = arith.addf %34, %41 : vector<64x32xf32>
    %c5 = arith.constant 5 : index
    %c0_38 = arith.constant 0 : index
    %c0_39 = arith.constant 0 : index
    %43 = vector.load %arg2[%c5, %c0_38, %c0_39] : memref<9x64x64xbf16, #tpu.memory_space<vmem>>, vector<1x64x64xbf16>
    %44 = vector.shape_cast %43 : vector<1x64x64xbf16> to vector<64x64xbf16>
    %cst_40 = arith.constant dense<0.000000e+00> : vector<64x3xf32>
    %45 = tpu.matmul %44, %1, %cst_40 {dimension_numbers = #tpu.dot_dimension_numbers<[1], [0], [0], [1], [0, 0, 1, 1], [], []>} : vector<64x64xbf16>, vector<64x3xbf16>, vector<64x3xf32> -> vector<64x3xf32>
    %46 = arith.truncf %45 : vector<64x3xf32> to vector<64x3xbf16>
    %c5_41 = arith.constant 5 : index
    %c0_42 = arith.constant 0 : index
    %c0_43 = arith.constant 0 : index
    %47 = vector.load %arg3[%c5_41, %c0_42, %c0_43] : memref<9x3x32xbf16, #tpu.memory_space<vmem>>, vector<1x3x32xbf16>
    %48 = vector.shape_cast %47 : vector<1x3x32xbf16> to vector<3x32xbf16>
    %cst_44 = arith.constant dense<0.000000e+00> : vector<64x32xf32>
    %49 = tpu.matmul %46, %48, %cst_44 {dimension_numbers = #tpu.dot_dimension_numbers<[1], [0], [0], [1], [0, 0, 1, 1], [], []>} : vector<64x3xbf16>, vector<3x32xbf16>, vector<64x32xf32> -> vector<64x32xf32>
    %50 = arith.addf %42, %49 : vector<64x32xf32>
    %c6 = arith.constant 6 : index
    %c0_45 = arith.constant 0 : index
    %c0_46 = arith.constant 0 : index
    %51 = vector.load %arg2[%c6, %c0_45, %c0_46] : memref<9x64x64xbf16, #tpu.memory_space<vmem>>, vector<1x64x64xbf16>
    %52 = vector.shape_cast %51 : vector<1x64x64xbf16> to vector<64x64xbf16>
    %cst_47 = arith.constant dense<0.000000e+00> : vector<64x3xf32>
    %53 = tpu.matmul %52, %1, %cst_47 {dimension_numbers = #tpu.dot_dimension_numbers<[1], [0], [0], [1], [0, 0, 1, 1], [], []>} : vector<64x64xbf16>, vector<64x3xbf16>, vector<64x3xf32> -> vector<64x3xf32>
    %54 = arith.truncf %53 : vector<64x3xf32> to vector<64x3xbf16>
    %c6_48 = arith.constant 6 : index
    %c0_49 = arith.constant 0 : index
    %c0_50 = arith.constant 0 : index
    %55 = vector.load %arg3[%c6_48, %c0_49, %c0_50] : memref<9x3x32xbf16, #tpu.memory_space<vmem>>, vector<1x3x32xbf16>
    %56 = vector.shape_cast %55 : vector<1x3x32xbf16> to vector<3x32xbf16>
    %cst_51 = arith.constant dense<0.000000e+00> : vector<64x32xf32>
    %57 = tpu.matmul %54, %56, %cst_51 {dimension_numbers = #tpu.dot_dimension_numbers<[1], [0], [0], [1], [0, 0, 1, 1], [], []>} : vector<64x3xbf16>, vector<3x32xbf16>, vector<64x32xf32> -> vector<64x32xf32>
    %58 = arith.addf %50, %57 : vector<64x32xf32>
    %c7 = arith.constant 7 : index
    %c0_52 = arith.constant 0 : index
    %c0_53 = arith.constant 0 : index
    %59 = vector.load %arg2[%c7, %c0_52, %c0_53] : memref<9x64x64xbf16, #tpu.memory_space<vmem>>, vector<1x64x64xbf16>
    %60 = vector.shape_cast %59 : vector<1x64x64xbf16> to vector<64x64xbf16>
    %cst_54 = arith.constant dense<0.000000e+00> : vector<64x3xf32>
    %61 = tpu.matmul %60, %1, %cst_54 {dimension_numbers = #tpu.dot_dimension_numbers<[1], [0], [0], [1], [0, 0, 1, 1], [], []>} : vector<64x64xbf16>, vector<64x3xbf16>, vector<64x3xf32> -> vector<64x3xf32>
    %62 = arith.truncf %61 : vector<64x3xf32> to vector<64x3xbf16>
    %c7_55 = arith.constant 7 : index
    %c0_56 = arith.constant 0 : index
    %c0_57 = arith.constant 0 : index
    %63 = vector.load %arg3[%c7_55, %c0_56, %c0_57] : memref<9x3x32xbf16, #tpu.memory_space<vmem>>, vector<1x3x32xbf16>
    %64 = vector.shape_cast %63 : vector<1x3x32xbf16> to vector<3x32xbf16>
    %cst_58 = arith.constant dense<0.000000e+00> : vector<64x32xf32>
    %65 = tpu.matmul %62, %64, %cst_58 {dimension_numbers = #tpu.dot_dimension_numbers<[1], [0], [0], [1], [0, 0, 1, 1], [], []>} : vector<64x3xbf16>, vector<3x32xbf16>, vector<64x32xf32> -> vector<64x32xf32>
    %66 = arith.addf %58, %65 : vector<64x32xf32>
    %c8 = arith.constant 8 : index
    %c0_59 = arith.constant 0 : index
    %c0_60 = arith.constant 0 : index
    %67 = vector.load %arg2[%c8, %c0_59, %c0_60] : memref<9x64x64xbf16, #tpu.memory_space<vmem>>, vector<1x64x64xbf16>
    %68 = vector.shape_cast %67 : vector<1x64x64xbf16> to vector<64x64xbf16>
    %cst_61 = arith.constant dense<0.000000e+00> : vector<64x3xf32>
    %69 = tpu.matmul %68, %1, %cst_61 {dimension_numbers = #tpu.dot_dimension_numbers<[1], [0], [0], [1], [0, 0, 1, 1], [], []>} : vector<64x64xbf16>, vector<64x3xbf16>, vector<64x3xf32> -> vector<64x3xf32>
    %70 = arith.truncf %69 : vector<64x3xf32> to vector<64x3xbf16>
    %c8_62 = arith.constant 8 : index
    %c0_63 = arith.constant 0 : index
    %c0_64 = arith.constant 0 : index
    %71 = vector.load %arg3[%c8_62, %c0_63, %c0_64] : memref<9x3x32xbf16, #tpu.memory_space<vmem>>, vector<1x3x32xbf16>
    %72 = vector.shape_cast %71 : vector<1x3x32xbf16> to vector<3x32xbf16>
    %cst_65 = arith.constant dense<0.000000e+00> : vector<64x32xf32>
    %73 = tpu.matmul %70, %72, %cst_65 {dimension_numbers = #tpu.dot_dimension_numbers<[1], [0], [0], [1], [0, 0, 1, 1], [], []>} : vector<64x3xbf16>, vector<3x32xbf16>, vector<64x32xf32> -> vector<64x32xf32>
    %74 = arith.addf %66, %73 : vector<64x32xf32>
    %c0_66 = arith.constant 0 : index
    %c0_67 = arith.constant 0 : index
    %75 = vector.load %arg4[%c0_66, %c0_67] : memref<1x32xf32, #tpu.memory_space<vmem>>, vector<1x32xf32>
    %76 = vector.broadcast %75 : vector<1x32xf32> to vector<64x32xf32>
    %77 = arith.addf %74, %76 : vector<64x32xf32>
    %cst_68 = arith.constant -1.000000e+00 : f32
    %cst_69 = arith.constant 1.000000e+00 : f32
    %78 = vector.broadcast %cst_68 : f32 to vector<64x32xf32>
    %79 = arith.maximumf %78, %77 : vector<64x32xf32>
    %80 = vector.broadcast %cst_69 : f32 to vector<64x32xf32>
    %81 = arith.minimumf %80, %79 : vector<64x32xf32>
    %82 = arith.truncf %81 : vector<64x32xf32> to vector<64x32xbf16>
    %c0_70 = arith.constant 0 : index
    %c0_71 = arith.constant 0 : index
    %c0_72 = arith.constant 0 : index
    %83 = vector.load %arg5[%c0_70, %c0_71, %c0_72] : memref<4x16x64xbf16, #tpu.memory_space<vmem>>, vector<1x16x64xbf16>
    %84 = vector.shape_cast %83 : vector<1x16x64xbf16> to vector<16x64xbf16>
    %cst_73 = arith.constant dense<0.000000e+00> : vector<16x32xf32>
    %85 = tpu.matmul %84, %82, %cst_73 {dimension_numbers = #tpu.dot_dimension_numbers<[1], [0], [0], [1], [0, 0, 1, 1], [], []>} : vector<16x64xbf16>, vector<64x32xbf16>, vector<16x32xf32> -> vector<16x32xf32>
    %c1_74 = arith.constant 1 : index
    %c0_75 = arith.constant 0 : index
    %c0_76 = arith.constant 0 : index
    %86 = vector.load %arg5[%c1_74, %c0_75, %c0_76] : memref<4x16x64xbf16, #tpu.memory_space<vmem>>, vector<1x16x64xbf16>
    %87 = vector.shape_cast %86 : vector<1x16x64xbf16> to vector<16x64xbf16>
    %cst_77 = arith.constant dense<0.000000e+00> : vector<16x32xf32>
    %88 = tpu.matmul %87, %82, %cst_77 {dimension_numbers = #tpu.dot_dimension_numbers<[1], [0], [0], [1], [0, 0, 1, 1], [], []>} : vector<16x64xbf16>, vector<64x32xbf16>, vector<16x32xf32> -> vector<16x32xf32>
    %89 = arith.maximumf %85, %88 : vector<16x32xf32>
    %c2_78 = arith.constant 2 : index
    %c0_79 = arith.constant 0 : index
    %c0_80 = arith.constant 0 : index
    %90 = vector.load %arg5[%c2_78, %c0_79, %c0_80] : memref<4x16x64xbf16, #tpu.memory_space<vmem>>, vector<1x16x64xbf16>
    %91 = vector.shape_cast %90 : vector<1x16x64xbf16> to vector<16x64xbf16>
    %cst_81 = arith.constant dense<0.000000e+00> : vector<16x32xf32>
    %92 = tpu.matmul %91, %82, %cst_81 {dimension_numbers = #tpu.dot_dimension_numbers<[1], [0], [0], [1], [0, 0, 1, 1], [], []>} : vector<16x64xbf16>, vector<64x32xbf16>, vector<16x32xf32> -> vector<16x32xf32>
    %93 = arith.maximumf %89, %92 : vector<16x32xf32>
    %c3_82 = arith.constant 3 : index
    %c0_83 = arith.constant 0 : index
    %c0_84 = arith.constant 0 : index
    %94 = vector.load %arg5[%c3_82, %c0_83, %c0_84] : memref<4x16x64xbf16, #tpu.memory_space<vmem>>, vector<1x16x64xbf16>
    %95 = vector.shape_cast %94 : vector<1x16x64xbf16> to vector<16x64xbf16>
    %cst_85 = arith.constant dense<0.000000e+00> : vector<16x32xf32>
    %96 = tpu.matmul %95, %82, %cst_85 {dimension_numbers = #tpu.dot_dimension_numbers<[1], [0], [0], [1], [0, 0, 1, 1], [], []>} : vector<16x64xbf16>, vector<64x32xbf16>, vector<16x32xf32> -> vector<16x32xf32>
    %97 = arith.maximumf %93, %96 : vector<16x32xf32>
    %98 = arith.truncf %97 : vector<16x32xf32> to vector<16x32xbf16>
    %cst_86 = arith.constant 0.000000e+00 : f32
    %99 = vector.broadcast %cst_86 : f32 to vector<16x64xf32>
    %c0_87 = arith.constant 0 : index
    %c0_88 = arith.constant 0 : index
    %c0_89 = arith.constant 0 : index
    %100 = vector.load %arg6[%c0_87, %c0_88, %c0_89] : memref<9x16x16xbf16, #tpu.memory_space<vmem>>, vector<1x16x16xbf16>
    %101 = vector.shape_cast %100 : vector<1x16x16xbf16> to vector<16x16xbf16>
    %cst_90 = arith.constant dense<0.000000e+00> : vector<16x32xf32>
    %102 = tpu.matmul %101, %98, %cst_90 {dimension_numbers = #tpu.dot_dimension_numbers<[1], [0], [0], [1], [0, 0, 1, 1], [], []>} : vector<16x16xbf16>, vector<16x32xbf16>, vector<16x32xf32> -> vector<16x32xf32>
    %103 = arith.truncf %102 : vector<16x32xf32> to vector<16x32xbf16>
    %c0_91 = arith.constant 0 : index
    %c0_92 = arith.constant 0 : index
    %c0_93 = arith.constant 0 : index
    %104 = vector.load %arg7[%c0_91, %c0_92, %c0_93] : memref<9x32x64xbf16, #tpu.memory_space<vmem>>, vector<1x32x64xbf16>
    %105 = vector.shape_cast %104 : vector<1x32x64xbf16> to vector<32x64xbf16>
    %cst_94 = arith.constant dense<0.000000e+00> : vector<16x64xf32>
    %106 = tpu.matmul %103, %105, %cst_94 {dimension_numbers = #tpu.dot_dimension_numbers<[1], [0], [0], [1], [0, 0, 1, 1], [], []>} : vector<16x32xbf16>, vector<32x64xbf16>, vector<16x64xf32> -> vector<16x64xf32>
    %107 = arith.addf %99, %106 : vector<16x64xf32>
    %c1_95 = arith.constant 1 : index
    %c0_96 = arith.constant 0 : index
    %c0_97 = arith.constant 0 : index
    %108 = vector.load %arg6[%c1_95, %c0_96, %c0_97] : memref<9x16x16xbf16, #tpu.memory_space<vmem>>, vector<1x16x16xbf16>
    %109 = vector.shape_cast %108 : vector<1x16x16xbf16> to vector<16x16xbf16>
    %cst_98 = arith.constant dense<0.000000e+00> : vector<16x32xf32>
    %110 = tpu.matmul %109, %98, %cst_98 {dimension_numbers = #tpu.dot_dimension_numbers<[1], [0], [0], [1], [0, 0, 1, 1], [], []>} : vector<16x16xbf16>, vector<16x32xbf16>, vector<16x32xf32> -> vector<16x32xf32>
    %111 = arith.truncf %110 : vector<16x32xf32> to vector<16x32xbf16>
    %c1_99 = arith.constant 1 : index
    %c0_100 = arith.constant 0 : index
    %c0_101 = arith.constant 0 : index
    %112 = vector.load %arg7[%c1_99, %c0_100, %c0_101] : memref<9x32x64xbf16, #tpu.memory_space<vmem>>, vector<1x32x64xbf16>
    %113 = vector.shape_cast %112 : vector<1x32x64xbf16> to vector<32x64xbf16>
    %cst_102 = arith.constant dense<0.000000e+00> : vector<16x64xf32>
    %114 = tpu.matmul %111, %113, %cst_102 {dimension_numbers = #tpu.dot_dimension_numbers<[1], [0], [0], [1], [0, 0, 1, 1], [], []>} : vector<16x32xbf16>, vector<32x64xbf16>, vector<16x64xf32> -> vector<16x64xf32>
    %115 = arith.addf %107, %114 : vector<16x64xf32>
    %c2_103 = arith.constant 2 : index
    %c0_104 = arith.constant 0 : index
    %c0_105 = arith.constant 0 : index
    %116 = vector.load %arg6[%c2_103, %c0_104, %c0_105] : memref<9x16x16xbf16, #tpu.memory_space<vmem>>, vector<1x16x16xbf16>
    %117 = vector.shape_cast %116 : vector<1x16x16xbf16> to vector<16x16xbf16>
    %cst_106 = arith.constant dense<0.000000e+00> : vector<16x32xf32>
    %118 = tpu.matmul %117, %98, %cst_106 {dimension_numbers = #tpu.dot_dimension_numbers<[1], [0], [0], [1], [0, 0, 1, 1], [], []>} : vector<16x16xbf16>, vector<16x32xbf16>, vector<16x32xf32> -> vector<16x32xf32>
    %119 = arith.truncf %118 : vector<16x32xf32> to vector<16x32xbf16>
    %c2_107 = arith.constant 2 : index
    %c0_108 = arith.constant 0 : index
    %c0_109 = arith.constant 0 : index
    %120 = vector.load %arg7[%c2_107, %c0_108, %c0_109] : memref<9x32x64xbf16, #tpu.memory_space<vmem>>, vector<1x32x64xbf16>
    %121 = vector.shape_cast %120 : vector<1x32x64xbf16> to vector<32x64xbf16>
    %cst_110 = arith.constant dense<0.000000e+00> : vector<16x64xf32>
    %122 = tpu.matmul %119, %121, %cst_110 {dimension_numbers = #tpu.dot_dimension_numbers<[1], [0], [0], [1], [0, 0, 1, 1], [], []>} : vector<16x32xbf16>, vector<32x64xbf16>, vector<16x64xf32> -> vector<16x64xf32>
    %123 = arith.addf %115, %122 : vector<16x64xf32>
    %c3_111 = arith.constant 3 : index
    %c0_112 = arith.constant 0 : index
    %c0_113 = arith.constant 0 : index
    %124 = vector.load %arg6[%c3_111, %c0_112, %c0_113] : memref<9x16x16xbf16, #tpu.memory_space<vmem>>, vector<1x16x16xbf16>
    %125 = vector.shape_cast %124 : vector<1x16x16xbf16> to vector<16x16xbf16>
    %cst_114 = arith.constant dense<0.000000e+00> : vector<16x32xf32>
    %126 = tpu.matmul %125, %98, %cst_114 {dimension_numbers = #tpu.dot_dimension_numbers<[1], [0], [0], [1], [0, 0, 1, 1], [], []>} : vector<16x16xbf16>, vector<16x32xbf16>, vector<16x32xf32> -> vector<16x32xf32>
    %127 = arith.truncf %126 : vector<16x32xf32> to vector<16x32xbf16>
    %c3_115 = arith.constant 3 : index
    %c0_116 = arith.constant 0 : index
    %c0_117 = arith.constant 0 : index
    %128 = vector.load %arg7[%c3_115, %c0_116, %c0_117] : memref<9x32x64xbf16, #tpu.memory_space<vmem>>, vector<1x32x64xbf16>
    %129 = vector.shape_cast %128 : vector<1x32x64xbf16> to vector<32x64xbf16>
    %cst_118 = arith.constant dense<0.000000e+00> : vector<16x64xf32>
    %130 = tpu.matmul %127, %129, %cst_118 {dimension_numbers = #tpu.dot_dimension_numbers<[1], [0], [0], [1], [0, 0, 1, 1], [], []>} : vector<16x32xbf16>, vector<32x64xbf16>, vector<16x64xf32> -> vector<16x64xf32>
    %131 = arith.addf %123, %130 : vector<16x64xf32>
    %c4_119 = arith.constant 4 : index
    %c0_120 = arith.constant 0 : index
    %c0_121 = arith.constant 0 : index
    %132 = vector.load %arg6[%c4_119, %c0_120, %c0_121] : memref<9x16x16xbf16, #tpu.memory_space<vmem>>, vector<1x16x16xbf16>
    %133 = vector.shape_cast %132 : vector<1x16x16xbf16> to vector<16x16xbf16>
    %cst_122 = arith.constant dense<0.000000e+00> : vector<16x32xf32>
    %134 = tpu.matmul %133, %98, %cst_122 {dimension_numbers = #tpu.dot_dimension_numbers<[1], [0], [0], [1], [0, 0, 1, 1], [], []>} : vector<16x16xbf16>, vector<16x32xbf16>, vector<16x32xf32> -> vector<16x32xf32>
    %135 = arith.truncf %134 : vector<16x32xf32> to vector<16x32xbf16>
    %c4_123 = arith.constant 4 : index
    %c0_124 = arith.constant 0 : index
    %c0_125 = arith.constant 0 : index
    %136 = vector.load %arg7[%c4_123, %c0_124, %c0_125] : memref<9x32x64xbf16, #tpu.memory_space<vmem>>, vector<1x32x64xbf16>
    %137 = vector.shape_cast %136 : vector<1x32x64xbf16> to vector<32x64xbf16>
    %cst_126 = arith.constant dense<0.000000e+00> : vector<16x64xf32>
    %138 = tpu.matmul %135, %137, %cst_126 {dimension_numbers = #tpu.dot_dimension_numbers<[1], [0], [0], [1], [0, 0, 1, 1], [], []>} : vector<16x32xbf16>, vector<32x64xbf16>, vector<16x64xf32> -> vector<16x64xf32>
    %139 = arith.addf %131, %138 : vector<16x64xf32>
    %c5_127 = arith.constant 5 : index
    %c0_128 = arith.constant 0 : index
    %c0_129 = arith.constant 0 : index
    %140 = vector.load %arg6[%c5_127, %c0_128, %c0_129] : memref<9x16x16xbf16, #tpu.memory_space<vmem>>, vector<1x16x16xbf16>
    %141 = vector.shape_cast %140 : vector<1x16x16xbf16> to vector<16x16xbf16>
    %cst_130 = arith.constant dense<0.000000e+00> : vector<16x32xf32>
    %142 = tpu.matmul %141, %98, %cst_130 {dimension_numbers = #tpu.dot_dimension_numbers<[1], [0], [0], [1], [0, 0, 1, 1], [], []>} : vector<16x16xbf16>, vector<16x32xbf16>, vector<16x32xf32> -> vector<16x32xf32>
    %143 = arith.truncf %142 : vector<16x32xf32> to vector<16x32xbf16>
    %c5_131 = arith.constant 5 : index
    %c0_132 = arith.constant 0 : index
    %c0_133 = arith.constant 0 : index
    %144 = vector.load %arg7[%c5_131, %c0_132, %c0_133] : memref<9x32x64xbf16, #tpu.memory_space<vmem>>, vector<1x32x64xbf16>
    %145 = vector.shape_cast %144 : vector<1x32x64xbf16> to vector<32x64xbf16>
    %cst_134 = arith.constant dense<0.000000e+00> : vector<16x64xf32>
    %146 = tpu.matmul %143, %145, %cst_134 {dimension_numbers = #tpu.dot_dimension_numbers<[1], [0], [0], [1], [0, 0, 1, 1], [], []>} : vector<16x32xbf16>, vector<32x64xbf16>, vector<16x64xf32> -> vector<16x64xf32>
    %147 = arith.addf %139, %146 : vector<16x64xf32>
    %c6_135 = arith.constant 6 : index
    %c0_136 = arith.constant 0 : index
    %c0_137 = arith.constant 0 : index
    %148 = vector.load %arg6[%c6_135, %c0_136, %c0_137] : memref<9x16x16xbf16, #tpu.memory_space<vmem>>, vector<1x16x16xbf16>
    %149 = vector.shape_cast %148 : vector<1x16x16xbf16> to vector<16x16xbf16>
    %cst_138 = arith.constant dense<0.000000e+00> : vector<16x32xf32>
    %150 = tpu.matmul %149, %98, %cst_138 {dimension_numbers = #tpu.dot_dimension_numbers<[1], [0], [0], [1], [0, 0, 1, 1], [], []>} : vector<16x16xbf16>, vector<16x32xbf16>, vector<16x32xf32> -> vector<16x32xf32>
    %151 = arith.truncf %150 : vector<16x32xf32> to vector<16x32xbf16>
    %c6_139 = arith.constant 6 : index
    %c0_140 = arith.constant 0 : index
    %c0_141 = arith.constant 0 : index
    %152 = vector.load %arg7[%c6_139, %c0_140, %c0_141] : memref<9x32x64xbf16, #tpu.memory_space<vmem>>, vector<1x32x64xbf16>
    %153 = vector.shape_cast %152 : vector<1x32x64xbf16> to vector<32x64xbf16>
    %cst_142 = arith.constant dense<0.000000e+00> : vector<16x64xf32>
    %154 = tpu.matmul %151, %153, %cst_142 {dimension_numbers = #tpu.dot_dimension_numbers<[1], [0], [0], [1], [0, 0, 1, 1], [], []>} : vector<16x32xbf16>, vector<32x64xbf16>, vector<16x64xf32> -> vector<16x64xf32>
    %155 = arith.addf %147, %154 : vector<16x64xf32>
    %c7_143 = arith.constant 7 : index
    %c0_144 = arith.constant 0 : index
    %c0_145 = arith.constant 0 : index
    %156 = vector.load %arg6[%c7_143, %c0_144, %c0_145] : memref<9x16x16xbf16, #tpu.memory_space<vmem>>, vector<1x16x16xbf16>
    %157 = vector.shape_cast %156 : vector<1x16x16xbf16> to vector<16x16xbf16>
    %cst_146 = arith.constant dense<0.000000e+00> : vector<16x32xf32>
    %158 = tpu.matmul %157, %98, %cst_146 {dimension_numbers = #tpu.dot_dimension_numbers<[1], [0], [0], [1], [0, 0, 1, 1], [], []>} : vector<16x16xbf16>, vector<16x32xbf16>, vector<16x32xf32> -> vector<16x32xf32>
    %159 = arith.truncf %158 : vector<16x32xf32> to vector<16x32xbf16>
    %c7_147 = arith.constant 7 : index
    %c0_148 = arith.constant 0 : index
    %c0_149 = arith.constant 0 : index
    %160 = vector.load %arg7[%c7_147, %c0_148, %c0_149] : memref<9x32x64xbf16, #tpu.memory_space<vmem>>, vector<1x32x64xbf16>
    %161 = vector.shape_cast %160 : vector<1x32x64xbf16> to vector<32x64xbf16>
    %cst_150 = arith.constant dense<0.000000e+00> : vector<16x64xf32>
    %162 = tpu.matmul %159, %161, %cst_150 {dimension_numbers = #tpu.dot_dimension_numbers<[1], [0], [0], [1], [0, 0, 1, 1], [], []>} : vector<16x32xbf16>, vector<32x64xbf16>, vector<16x64xf32> -> vector<16x64xf32>
    %163 = arith.addf %155, %162 : vector<16x64xf32>
    %c8_151 = arith.constant 8 : index
    %c0_152 = arith.constant 0 : index
    %c0_153 = arith.constant 0 : index
    %164 = vector.load %arg6[%c8_151, %c0_152, %c0_153] : memref<9x16x16xbf16, #tpu.memory_space<vmem>>, vector<1x16x16xbf16>
    %165 = vector.shape_cast %164 : vector<1x16x16xbf16> to vector<16x16xbf16>
    %cst_154 = arith.constant dense<0.000000e+00> : vector<16x32xf32>
    %166 = tpu.matmul %165, %98, %cst_154 {dimension_numbers = #tpu.dot_dimension_numbers<[1], [0], [0], [1], [0, 0, 1, 1], [], []>} : vector<16x16xbf16>, vector<16x32xbf16>, vector<16x32xf32> -> vector<16x32xf32>
    %167 = arith.truncf %166 : vector<16x32xf32> to vector<16x32xbf16>
    %c8_155 = arith.constant 8 : index
    %c0_156 = arith.constant 0 : index
    %c0_157 = arith.constant 0 : index
    %168 = vector.load %arg7[%c8_155, %c0_156, %c0_157] : memref<9x32x64xbf16, #tpu.memory_space<vmem>>, vector<1x32x64xbf16>
    %169 = vector.shape_cast %168 : vector<1x32x64xbf16> to vector<32x64xbf16>
    %cst_158 = arith.constant dense<0.000000e+00> : vector<16x64xf32>
    %170 = tpu.matmul %167, %169, %cst_158 {dimension_numbers = #tpu.dot_dimension_numbers<[1], [0], [0], [1], [0, 0, 1, 1], [], []>} : vector<16x32xbf16>, vector<32x64xbf16>, vector<16x64xf32> -> vector<16x64xf32>
    %171 = arith.addf %163, %170 : vector<16x64xf32>
    %c0_159 = arith.constant 0 : index
    %c0_160 = arith.constant 0 : index
    %172 = vector.load %arg8[%c0_159, %c0_160] : memref<1x64xf32, #tpu.memory_space<vmem>>, vector<1x64xf32>
    %173 = vector.broadcast %172 : vector<1x64xf32> to vector<16x64xf32>
    %174 = arith.addf %171, %173 : vector<16x64xf32>
    %cst_161 = arith.constant -1.000000e+00 : f32
    %cst_162 = arith.constant 1.000000e+00 : f32
    %175 = vector.broadcast %cst_161 : f32 to vector<16x64xf32>
    %176 = arith.maximumf %175, %174 : vector<16x64xf32>
    %177 = vector.broadcast %cst_162 : f32 to vector<16x64xf32>
    %178 = arith.minimumf %177, %176 : vector<16x64xf32>
    %179 = arith.truncf %178 : vector<16x64xf32> to vector<16x64xbf16>
    %c0_163 = arith.constant 0 : index
    %c0_164 = arith.constant 0 : index
    %c0_165 = arith.constant 0 : index
    %180 = vector.load %arg9[%c0_163, %c0_164, %c0_165] : memref<4x4x16xbf16, #tpu.memory_space<vmem>>, vector<1x4x16xbf16>
    %181 = vector.shape_cast %180 : vector<1x4x16xbf16> to vector<4x16xbf16>
    %cst_166 = arith.constant dense<0.000000e+00> : vector<4x64xf32>
    %182 = tpu.matmul %181, %179, %cst_166 {dimension_numbers = #tpu.dot_dimension_numbers<[1], [0], [0], [1], [0, 0, 1, 1], [], []>} : vector<4x16xbf16>, vector<16x64xbf16>, vector<4x64xf32> -> vector<4x64xf32>
    %c1_167 = arith.constant 1 : index
    %c0_168 = arith.constant 0 : index
    %c0_169 = arith.constant 0 : index
    %183 = vector.load %arg9[%c1_167, %c0_168, %c0_169] : memref<4x4x16xbf16, #tpu.memory_space<vmem>>, vector<1x4x16xbf16>
    %184 = vector.shape_cast %183 : vector<1x4x16xbf16> to vector<4x16xbf16>
    %cst_170 = arith.constant dense<0.000000e+00> : vector<4x64xf32>
    %185 = tpu.matmul %184, %179, %cst_170 {dimension_numbers = #tpu.dot_dimension_numbers<[1], [0], [0], [1], [0, 0, 1, 1], [], []>} : vector<4x16xbf16>, vector<16x64xbf16>, vector<4x64xf32> -> vector<4x64xf32>
    %186 = arith.maximumf %182, %185 : vector<4x64xf32>
    %c2_171 = arith.constant 2 : index
    %c0_172 = arith.constant 0 : index
    %c0_173 = arith.constant 0 : index
    %187 = vector.load %arg9[%c2_171, %c0_172, %c0_173] : memref<4x4x16xbf16, #tpu.memory_space<vmem>>, vector<1x4x16xbf16>
    %188 = vector.shape_cast %187 : vector<1x4x16xbf16> to vector<4x16xbf16>
    %cst_174 = arith.constant dense<0.000000e+00> : vector<4x64xf32>
    %189 = tpu.matmul %188, %179, %cst_174 {dimension_numbers = #tpu.dot_dimension_numbers<[1], [0], [0], [1], [0, 0, 1, 1], [], []>} : vector<4x16xbf16>, vector<16x64xbf16>, vector<4x64xf32> -> vector<4x64xf32>
    %190 = arith.maximumf %186, %189 : vector<4x64xf32>
    %c3_175 = arith.constant 3 : index
    %c0_176 = arith.constant 0 : index
    %c0_177 = arith.constant 0 : index
    %191 = vector.load %arg9[%c3_175, %c0_176, %c0_177] : memref<4x4x16xbf16, #tpu.memory_space<vmem>>, vector<1x4x16xbf16>
    %192 = vector.shape_cast %191 : vector<1x4x16xbf16> to vector<4x16xbf16>
    %cst_178 = arith.constant dense<0.000000e+00> : vector<4x64xf32>
    %193 = tpu.matmul %192, %179, %cst_178 {dimension_numbers = #tpu.dot_dimension_numbers<[1], [0], [0], [1], [0, 0, 1, 1], [], []>} : vector<4x16xbf16>, vector<16x64xbf16>, vector<4x64xf32> -> vector<4x64xf32>
    %194 = arith.maximumf %190, %193 : vector<4x64xf32>
    %195 = arith.truncf %194 : vector<4x64xf32> to vector<4x64xbf16>
    %cst_179 = arith.constant 0.000000e+00 : f32
    %196 = vector.broadcast %cst_179 : f32 to vector<4x512xf32>
    %c0_180 = arith.constant 0 : index
    %c0_181 = arith.constant 0 : index
    %c0_182 = arith.constant 0 : index
    %197 = vector.load %arg10[%c0_180, %c0_181, %c0_182] : memref<9x4x4xbf16, #tpu.memory_space<vmem>>, vector<1x4x4xbf16>
    %198 = vector.shape_cast %197 : vector<1x4x4xbf16> to vector<4x4xbf16>
    %cst_183 = arith.constant dense<0.000000e+00> : vector<4x64xf32>
    %199 = tpu.matmul %198, %195, %cst_183 {dimension_numbers = #tpu.dot_dimension_numbers<[1], [0], [0], [1], [0, 0, 1, 1], [], []>} : vector<4x4xbf16>, vector<4x64xbf16>, vector<4x64xf32> -> vector<4x64xf32>
    %200 = arith.truncf %199 : vector<4x64xf32> to vector<4x64xbf16>
    %c0_184 = arith.constant 0 : index
    %c0_185 = arith.constant 0 : index
    %c0_186 = arith.constant 0 : index
    %201 = vector.load %arg11[%c0_184, %c0_185, %c0_186] : memref<9x64x512xbf16, #tpu.memory_space<vmem>>, vector<1x64x512xbf16>
    %202 = vector.shape_cast %201 : vector<1x64x512xbf16> to vector<64x512xbf16>
    %cst_187 = arith.constant dense<0.000000e+00> : vector<4x512xf32>
    %203 = tpu.matmul %200, %202, %cst_187 {dimension_numbers = #tpu.dot_dimension_numbers<[1], [0], [0], [1], [0, 0, 1, 1], [], []>} : vector<4x64xbf16>, vector<64x512xbf16>, vector<4x512xf32> -> vector<4x512xf32>
    %204 = arith.addf %196, %203 : vector<4x512xf32>
    %c1_188 = arith.constant 1 : index
    %c0_189 = arith.constant 0 : index
    %c0_190 = arith.constant 0 : index
    %205 = vector.load %arg10[%c1_188, %c0_189, %c0_190] : memref<9x4x4xbf16, #tpu.memory_space<vmem>>, vector<1x4x4xbf16>
    %206 = vector.shape_cast %205 : vector<1x4x4xbf16> to vector<4x4xbf16>
    %cst_191 = arith.constant dense<0.000000e+00> : vector<4x64xf32>
    %207 = tpu.matmul %206, %195, %cst_191 {dimension_numbers = #tpu.dot_dimension_numbers<[1], [0], [0], [1], [0, 0, 1, 1], [], []>} : vector<4x4xbf16>, vector<4x64xbf16>, vector<4x64xf32> -> vector<4x64xf32>
    %208 = arith.truncf %207 : vector<4x64xf32> to vector<4x64xbf16>
    %c1_192 = arith.constant 1 : index
    %c0_193 = arith.constant 0 : index
    %c0_194 = arith.constant 0 : index
    %209 = vector.load %arg11[%c1_192, %c0_193, %c0_194] : memref<9x64x512xbf16, #tpu.memory_space<vmem>>, vector<1x64x512xbf16>
    %210 = vector.shape_cast %209 : vector<1x64x512xbf16> to vector<64x512xbf16>
    %cst_195 = arith.constant dense<0.000000e+00> : vector<4x512xf32>
    %211 = tpu.matmul %208, %210, %cst_195 {dimension_numbers = #tpu.dot_dimension_numbers<[1], [0], [0], [1], [0, 0, 1, 1], [], []>} : vector<4x64xbf16>, vector<64x512xbf16>, vector<4x512xf32> -> vector<4x512xf32>
    %212 = arith.addf %204, %211 : vector<4x512xf32>
    %c2_196 = arith.constant 2 : index
    %c0_197 = arith.constant 0 : index
    %c0_198 = arith.constant 0 : index
    %213 = vector.load %arg10[%c2_196, %c0_197, %c0_198] : memref<9x4x4xbf16, #tpu.memory_space<vmem>>, vector<1x4x4xbf16>
    %214 = vector.shape_cast %213 : vector<1x4x4xbf16> to vector<4x4xbf16>
    %cst_199 = arith.constant dense<0.000000e+00> : vector<4x64xf32>
    %215 = tpu.matmul %214, %195, %cst_199 {dimension_numbers = #tpu.dot_dimension_numbers<[1], [0], [0], [1], [0, 0, 1, 1], [], []>} : vector<4x4xbf16>, vector<4x64xbf16>, vector<4x64xf32> -> vector<4x64xf32>
    %216 = arith.truncf %215 : vector<4x64xf32> to vector<4x64xbf16>
    %c2_200 = arith.constant 2 : index
    %c0_201 = arith.constant 0 : index
    %c0_202 = arith.constant 0 : index
    %217 = vector.load %arg11[%c2_200, %c0_201, %c0_202] : memref<9x64x512xbf16, #tpu.memory_space<vmem>>, vector<1x64x512xbf16>
    %218 = vector.shape_cast %217 : vector<1x64x512xbf16> to vector<64x512xbf16>
    %cst_203 = arith.constant dense<0.000000e+00> : vector<4x512xf32>
    %219 = tpu.matmul %216, %218, %cst_203 {dimension_numbers = #tpu.dot_dimension_numbers<[1], [0], [0], [1], [0, 0, 1, 1], [], []>} : vector<4x64xbf16>, vector<64x512xbf16>, vector<4x512xf32> -> vector<4x512xf32>
    %220 = arith.addf %212, %219 : vector<4x512xf32>
    %c3_204 = arith.constant 3 : index
    %c0_205 = arith.constant 0 : index
    %c0_206 = arith.constant 0 : index
    %221 = vector.load %arg10[%c3_204, %c0_205, %c0_206] : memref<9x4x4xbf16, #tpu.memory_space<vmem>>, vector<1x4x4xbf16>
    %222 = vector.shape_cast %221 : vector<1x4x4xbf16> to vector<4x4xbf16>
    %cst_207 = arith.constant dense<0.000000e+00> : vector<4x64xf32>
    %223 = tpu.matmul %222, %195, %cst_207 {dimension_numbers = #tpu.dot_dimension_numbers<[1], [0], [0], [1], [0, 0, 1, 1], [], []>} : vector<4x4xbf16>, vector<4x64xbf16>, vector<4x64xf32> -> vector<4x64xf32>
    %224 = arith.truncf %223 : vector<4x64xf32> to vector<4x64xbf16>
    %c3_208 = arith.constant 3 : index
    %c0_209 = arith.constant 0 : index
    %c0_210 = arith.constant 0 : index
    %225 = vector.load %arg11[%c3_208, %c0_209, %c0_210] : memref<9x64x512xbf16, #tpu.memory_space<vmem>>, vector<1x64x512xbf16>
    %226 = vector.shape_cast %225 : vector<1x64x512xbf16> to vector<64x512xbf16>
    %cst_211 = arith.constant dense<0.000000e+00> : vector<4x512xf32>
    %227 = tpu.matmul %224, %226, %cst_211 {dimension_numbers = #tpu.dot_dimension_numbers<[1], [0], [0], [1], [0, 0, 1, 1], [], []>} : vector<4x64xbf16>, vector<64x512xbf16>, vector<4x512xf32> -> vector<4x512xf32>
    %228 = arith.addf %220, %227 : vector<4x512xf32>
    %c4_212 = arith.constant 4 : index
    %c0_213 = arith.constant 0 : index
    %c0_214 = arith.constant 0 : index
    %229 = vector.load %arg10[%c4_212, %c0_213, %c0_214] : memref<9x4x4xbf16, #tpu.memory_space<vmem>>, vector<1x4x4xbf16>
    %230 = vector.shape_cast %229 : vector<1x4x4xbf16> to vector<4x4xbf16>
    %cst_215 = arith.constant dense<0.000000e+00> : vector<4x64xf32>
    %231 = tpu.matmul %230, %195, %cst_215 {dimension_numbers = #tpu.dot_dimension_numbers<[1], [0], [0], [1], [0, 0, 1, 1], [], []>} : vector<4x4xbf16>, vector<4x64xbf16>, vector<4x64xf32> -> vector<4x64xf32>
    %232 = arith.truncf %231 : vector<4x64xf32> to vector<4x64xbf16>
    %c4_216 = arith.constant 4 : index
    %c0_217 = arith.constant 0 : index
    %c0_218 = arith.constant 0 : index
    %233 = vector.load %arg11[%c4_216, %c0_217, %c0_218] : memref<9x64x512xbf16, #tpu.memory_space<vmem>>, vector<1x64x512xbf16>
    %234 = vector.shape_cast %233 : vector<1x64x512xbf16> to vector<64x512xbf16>
    %cst_219 = arith.constant dense<0.000000e+00> : vector<4x512xf32>
    %235 = tpu.matmul %232, %234, %cst_219 {dimension_numbers = #tpu.dot_dimension_numbers<[1], [0], [0], [1], [0, 0, 1, 1], [], []>} : vector<4x64xbf16>, vector<64x512xbf16>, vector<4x512xf32> -> vector<4x512xf32>
    %236 = arith.addf %228, %235 : vector<4x512xf32>
    %c5_220 = arith.constant 5 : index
    %c0_221 = arith.constant 0 : index
    %c0_222 = arith.constant 0 : index
    %237 = vector.load %arg10[%c5_220, %c0_221, %c0_222] : memref<9x4x4xbf16, #tpu.memory_space<vmem>>, vector<1x4x4xbf16>
    %238 = vector.shape_cast %237 : vector<1x4x4xbf16> to vector<4x4xbf16>
    %cst_223 = arith.constant dense<0.000000e+00> : vector<4x64xf32>
    %239 = tpu.matmul %238, %195, %cst_223 {dimension_numbers = #tpu.dot_dimension_numbers<[1], [0], [0], [1], [0, 0, 1, 1], [], []>} : vector<4x4xbf16>, vector<4x64xbf16>, vector<4x64xf32> -> vector<4x64xf32>
    %240 = arith.truncf %239 : vector<4x64xf32> to vector<4x64xbf16>
    %c5_224 = arith.constant 5 : index
    %c0_225 = arith.constant 0 : index
    %c0_226 = arith.constant 0 : index
    %241 = vector.load %arg11[%c5_224, %c0_225, %c0_226] : memref<9x64x512xbf16, #tpu.memory_space<vmem>>, vector<1x64x512xbf16>
    %242 = vector.shape_cast %241 : vector<1x64x512xbf16> to vector<64x512xbf16>
    %cst_227 = arith.constant dense<0.000000e+00> : vector<4x512xf32>
    %243 = tpu.matmul %240, %242, %cst_227 {dimension_numbers = #tpu.dot_dimension_numbers<[1], [0], [0], [1], [0, 0, 1, 1], [], []>} : vector<4x64xbf16>, vector<64x512xbf16>, vector<4x512xf32> -> vector<4x512xf32>
    %244 = arith.addf %236, %243 : vector<4x512xf32>
    %c6_228 = arith.constant 6 : index
    %c0_229 = arith.constant 0 : index
    %c0_230 = arith.constant 0 : index
    %245 = vector.load %arg10[%c6_228, %c0_229, %c0_230] : memref<9x4x4xbf16, #tpu.memory_space<vmem>>, vector<1x4x4xbf16>
    %246 = vector.shape_cast %245 : vector<1x4x4xbf16> to vector<4x4xbf16>
    %cst_231 = arith.constant dense<0.000000e+00> : vector<4x64xf32>
    %247 = tpu.matmul %246, %195, %cst_231 {dimension_numbers = #tpu.dot_dimension_numbers<[1], [0], [0], [1], [0, 0, 1, 1], [], []>} : vector<4x4xbf16>, vector<4x64xbf16>, vector<4x64xf32> -> vector<4x64xf32>
    %248 = arith.truncf %247 : vector<4x64xf32> to vector<4x64xbf16>
    %c6_232 = arith.constant 6 : index
    %c0_233 = arith.constant 0 : index
    %c0_234 = arith.constant 0 : index
    %249 = vector.load %arg11[%c6_232, %c0_233, %c0_234] : memref<9x64x512xbf16, #tpu.memory_space<vmem>>, vector<1x64x512xbf16>
    %250 = vector.shape_cast %249 : vector<1x64x512xbf16> to vector<64x512xbf16>
    %cst_235 = arith.constant dense<0.000000e+00> : vector<4x512xf32>
    %251 = tpu.matmul %248, %250, %cst_235 {dimension_numbers = #tpu.dot_dimension_numbers<[1], [0], [0], [1], [0, 0, 1, 1], [], []>} : vector<4x64xbf16>, vector<64x512xbf16>, vector<4x512xf32> -> vector<4x512xf32>
    %252 = arith.addf %244, %251 : vector<4x512xf32>
    %c7_236 = arith.constant 7 : index
    %c0_237 = arith.constant 0 : index
    %c0_238 = arith.constant 0 : index
    %253 = vector.load %arg10[%c7_236, %c0_237, %c0_238] : memref<9x4x4xbf16, #tpu.memory_space<vmem>>, vector<1x4x4xbf16>
    %254 = vector.shape_cast %253 : vector<1x4x4xbf16> to vector<4x4xbf16>
    %cst_239 = arith.constant dense<0.000000e+00> : vector<4x64xf32>
    %255 = tpu.matmul %254, %195, %cst_239 {dimension_numbers = #tpu.dot_dimension_numbers<[1], [0], [0], [1], [0, 0, 1, 1], [], []>} : vector<4x4xbf16>, vector<4x64xbf16>, vector<4x64xf32> -> vector<4x64xf32>
    %256 = arith.truncf %255 : vector<4x64xf32> to vector<4x64xbf16>
    %c7_240 = arith.constant 7 : index
    %c0_241 = arith.constant 0 : index
    %c0_242 = arith.constant 0 : index
    %257 = vector.load %arg11[%c7_240, %c0_241, %c0_242] : memref<9x64x512xbf16, #tpu.memory_space<vmem>>, vector<1x64x512xbf16>
    %258 = vector.shape_cast %257 : vector<1x64x512xbf16> to vector<64x512xbf16>
    %cst_243 = arith.constant dense<0.000000e+00> : vector<4x512xf32>
    %259 = tpu.matmul %256, %258, %cst_243 {dimension_numbers = #tpu.dot_dimension_numbers<[1], [0], [0], [1], [0, 0, 1, 1], [], []>} : vector<4x64xbf16>, vector<64x512xbf16>, vector<4x512xf32> -> vector<4x512xf32>
    %260 = arith.addf %252, %259 : vector<4x512xf32>
    %c8_244 = arith.constant 8 : index
    %c0_245 = arith.constant 0 : index
    %c0_246 = arith.constant 0 : index
    %261 = vector.load %arg10[%c8_244, %c0_245, %c0_246] : memref<9x4x4xbf16, #tpu.memory_space<vmem>>, vector<1x4x4xbf16>
    %262 = vector.shape_cast %261 : vector<1x4x4xbf16> to vector<4x4xbf16>
    %cst_247 = arith.constant dense<0.000000e+00> : vector<4x64xf32>
    %263 = tpu.matmul %262, %195, %cst_247 {dimension_numbers = #tpu.dot_dimension_numbers<[1], [0], [0], [1], [0, 0, 1, 1], [], []>} : vector<4x4xbf16>, vector<4x64xbf16>, vector<4x64xf32> -> vector<4x64xf32>
    %264 = arith.truncf %263 : vector<4x64xf32> to vector<4x64xbf16>
    %c8_248 = arith.constant 8 : index
    %c0_249 = arith.constant 0 : index
    %c0_250 = arith.constant 0 : index
    %265 = vector.load %arg11[%c8_248, %c0_249, %c0_250] : memref<9x64x512xbf16, #tpu.memory_space<vmem>>, vector<1x64x512xbf16>
    %266 = vector.shape_cast %265 : vector<1x64x512xbf16> to vector<64x512xbf16>
    %cst_251 = arith.constant dense<0.000000e+00> : vector<4x512xf32>
    %267 = tpu.matmul %264, %266, %cst_251 {dimension_numbers = #tpu.dot_dimension_numbers<[1], [0], [0], [1], [0, 0, 1, 1], [], []>} : vector<4x64xbf16>, vector<64x512xbf16>, vector<4x512xf32> -> vector<4x512xf32>
    %268 = arith.addf %260, %267 : vector<4x512xf32>
    %c0_252 = arith.constant 0 : index
    %c0_253 = arith.constant 0 : index
    %269 = vector.load %arg12[%c0_252, %c0_253] : memref<1x512xf32, #tpu.memory_space<vmem>>, vector<1x512xf32>
    %270 = vector.broadcast %269 : vector<1x512xf32> to vector<4x512xf32>
    %271 = arith.addf %268, %270 : vector<4x512xf32>
    %cst_254 = arith.constant -1.000000e+00 : f32
    %cst_255 = arith.constant 1.000000e+00 : f32
    %272 = vector.broadcast %cst_254 : f32 to vector<4x512xf32>
    %273 = arith.maximumf %272, %271 : vector<4x512xf32>
    %274 = vector.broadcast %cst_255 : f32 to vector<4x512xf32>
    %275 = arith.minimumf %274, %273 : vector<4x512xf32>
    %276 = arith.truncf %275 : vector<4x512xf32> to vector<4x512xbf16>
    %c0_256 = arith.constant 0 : index
    %c0_257 = arith.constant 0 : index
    %c0_258 = arith.constant 0 : index
    %277 = vector.load %arg13[%c0_256, %c0_257, %c0_258] : memref<4x1x4xbf16, #tpu.memory_space<vmem>>, vector<1x1x4xbf16>
    %278 = vector.shape_cast %277 : vector<1x1x4xbf16> to vector<1x4xbf16>
    %cst_259 = arith.constant dense<0.000000e+00> : vector<1x512xf32>
    %279 = tpu.matmul %278, %276, %cst_259 {dimension_numbers = #tpu.dot_dimension_numbers<[1], [0], [0], [1], [0, 0, 1, 1], [], []>} : vector<1x4xbf16>, vector<4x512xbf16>, vector<1x512xf32> -> vector<1x512xf32>
    %c1_260 = arith.constant 1 : index
    %c0_261 = arith.constant 0 : index
    %c0_262 = arith.constant 0 : index
    %280 = vector.load %arg13[%c1_260, %c0_261, %c0_262] : memref<4x1x4xbf16, #tpu.memory_space<vmem>>, vector<1x1x4xbf16>
    %281 = vector.shape_cast %280 : vector<1x1x4xbf16> to vector<1x4xbf16>
    %cst_263 = arith.constant dense<0.000000e+00> : vector<1x512xf32>
    %282 = tpu.matmul %281, %276, %cst_263 {dimension_numbers = #tpu.dot_dimension_numbers<[1], [0], [0], [1], [0, 0, 1, 1], [], []>} : vector<1x4xbf16>, vector<4x512xbf16>, vector<1x512xf32> -> vector<1x512xf32>
    %283 = arith.maximumf %279, %282 : vector<1x512xf32>
    %c2_264 = arith.constant 2 : index
    %c0_265 = arith.constant 0 : index
    %c0_266 = arith.constant 0 : index
    %284 = vector.load %arg13[%c2_264, %c0_265, %c0_266] : memref<4x1x4xbf16, #tpu.memory_space<vmem>>, vector<1x1x4xbf16>
    %285 = vector.shape_cast %284 : vector<1x1x4xbf16> to vector<1x4xbf16>
    %cst_267 = arith.constant dense<0.000000e+00> : vector<1x512xf32>
    %286 = tpu.matmul %285, %276, %cst_267 {dimension_numbers = #tpu.dot_dimension_numbers<[1], [0], [0], [1], [0, 0, 1, 1], [], []>} : vector<1x4xbf16>, vector<4x512xbf16>, vector<1x512xf32> -> vector<1x512xf32>
    %287 = arith.maximumf %283, %286 : vector<1x512xf32>
    %c3_268 = arith.constant 3 : index
    %c0_269 = arith.constant 0 : index
    %c0_270 = arith.constant 0 : index
    %288 = vector.load %arg13[%c3_268, %c0_269, %c0_270] : memref<4x1x4xbf16, #tpu.memory_space<vmem>>, vector<1x1x4xbf16>
    %289 = vector.shape_cast %288 : vector<1x1x4xbf16> to vector<1x4xbf16>
    %cst_271 = arith.constant dense<0.000000e+00> : vector<1x512xf32>
    %290 = tpu.matmul %289, %276, %cst_271 {dimension_numbers = #tpu.dot_dimension_numbers<[1], [0], [0], [1], [0, 0, 1, 1], [], []>} : vector<1x4xbf16>, vector<4x512xbf16>, vector<1x512xf32> -> vector<1x512xf32>
    %291 = arith.maximumf %287, %290 : vector<1x512xf32>
    %292 = arith.truncf %291 : vector<1x512xf32> to vector<1x512xbf16>
    %293 = arith.extf %292 : vector<1x512xbf16> to vector<1x512xf32>
    %c0_272 = arith.constant 0 : index
    %c0_273 = arith.constant 0 : index
    %294 = vector.load %arg14[%c0_272, %c0_273] : memref<1x512xf32, #tpu.memory_space<vmem>>, vector<1x512xf32>
    %295 = arith.mulf %293, %294 : vector<1x512xf32>
    %c0_274 = arith.constant 0 : index
    %c0_275 = arith.constant 0 : index
    %296 = vector.load %arg15[%c0_274, %c0_275] : memref<1x512xf32, #tpu.memory_space<vmem>>, vector<1x512xf32>
    %297 = arith.addf %295, %296 : vector<1x512xf32>
    %cst_276 = arith.constant -1.000000e+00 : f32
    %cst_277 = arith.constant 1.000000e+00 : f32
    %298 = vector.broadcast %cst_276 : f32 to vector<1x512xf32>
    %299 = arith.maximumf %298, %297 : vector<1x512xf32>
    %300 = vector.broadcast %cst_277 : f32 to vector<1x512xf32>
    %301 = arith.minimumf %300, %299 : vector<1x512xf32>
    %302 = arith.truncf %301 : vector<1x512xf32> to vector<1x512xbf16>
    %c0_278 = arith.constant 0 : index
    %c0_279 = arith.constant 0 : index
    %303 = vector.load %arg16[%c0_278, %c0_279] : memref<512x10xbf16, #tpu.memory_space<vmem>>, vector<512x10xbf16>
    %cst_280 = arith.constant dense<0.000000e+00> : vector<1x10xf32>
    %304 = tpu.matmul %302, %303, %cst_280 {dimension_numbers = #tpu.dot_dimension_numbers<[1], [0], [0], [1], [0, 0, 1, 1], [], []>} : vector<1x512xbf16>, vector<512x10xbf16>, vector<1x10xf32> -> vector<1x10xf32>
    %c0_281 = arith.constant 0 : index
    %c0_282 = arith.constant 0 : index
    %305 = vector.load %arg17[%c0_281, %c0_282] : memref<1x10xf32, #tpu.memory_space<vmem>>, vector<1x10xf32>
    %306 = arith.addf %304, %305 : vector<1x10xf32>
    %cst_283 = arith.constant dense<0xFF800000> : vector<1xf32>
    %307 = vector.multi_reduction <maximumf>, %306, %cst_283 [1] : vector<1x10xf32> to vector<1xf32>
    %308 = vector.shape_cast %307 : vector<1xf32> to vector<1x1xf32>
    %309 = vector.broadcast %308 : vector<1x1xf32> to vector<1x10xf32>
    %310 = arith.subf %306, %309 : vector<1x10xf32>
    %311 = math.exp %310 : vector<1x10xf32>
    %cst_284 = arith.constant dense<0.000000e+00> : vector<1xf32>
    %312 = vector.multi_reduction <add>, %311, %cst_284 [1] : vector<1x10xf32> to vector<1xf32>
    %313 = vector.shape_cast %312 : vector<1xf32> to vector<1x1xf32>
    %314 = math.log %313 : vector<1x1xf32>
    %315 = vector.broadcast %314 : vector<1x1xf32> to vector<1x10xf32>
    %316 = arith.subf %310, %315 : vector<1x10xf32>
    %c0_285 = arith.constant 0 : index
    %c0_286 = arith.constant 0 : index
    %c0_287 = arith.constant 0 : index
    %317 = vector.load %arg18[%c0_285, %c0_286, %c0_287] : memref<1x1x10xf32, #tpu.memory_space<vmem>>, vector<1x1x10xf32>
    %318 = vector.shape_cast %317 : vector<1x1x10xf32> to vector<1x10xf32>
    %319 = vector.shape_cast %316 : vector<1x10xf32> to vector<1x1x10xf32>
    tpu.vector_store %arg18[%c0_285, %c0_286, %c0_287], %319 {strides = array<i32>} : memref<1x1x10xf32, #tpu.memory_space<vmem>>, vector<1x1x10xf32>,
    return
  }
  func.func @transform_0(%arg0: i32) -> (i32, i32, i32) {
    %c0_i32 = arith.constant 0 : i32
    %c0_i32_0 = arith.constant 0 : i32
    %c0_i32_1 = arith.constant 0 : i32
    return %arg0, %c0_i32, %c0_i32_0 : i32, i32, i32
  }
  func.func @transform_1(%arg0: i32) -> (i32, i32, i32) {
    %c0_i32 = arith.constant 0 : i32
    %c0_i32_0 = arith.constant 0 : i32
    %c0_i32_1 = arith.constant 0 : i32
    %c0_i32_2 = arith.constant 0 : i32
    return %c0_i32, %c0_i32_0, %c0_i32_1 : i32, i32, i32
  }
  func.func @transform_2(%arg0: i32) -> (i32, i32, i32) {
    %c0_i32 = arith.constant 0 : i32
    %c0_i32_0 = arith.constant 0 : i32
    %c0_i32_1 = arith.constant 0 : i32
    %c0_i32_2 = arith.constant 0 : i32
    return %c0_i32, %c0_i32_0, %c0_i32_1 : i32, i32, i32
  }
  func.func @transform_3(%arg0: i32) -> (i32, i32) {
    %c0_i32 = arith.constant 0 : i32
    %c0_i32_0 = arith.constant 0 : i32
    %c0_i32_1 = arith.constant 0 : i32
    return %c0_i32, %c0_i32_0 : i32, i32
  }
  func.func @transform_4(%arg0: i32) -> (i32, i32, i32) {
    %c0_i32 = arith.constant 0 : i32
    %c0_i32_0 = arith.constant 0 : i32
    %c0_i32_1 = arith.constant 0 : i32
    %c0_i32_2 = arith.constant 0 : i32
    return %c0_i32, %c0_i32_0, %c0_i32_1 : i32, i32, i32
  }
  func.func @transform_5(%arg0: i32) -> (i32, i32, i32) {
    %c0_i32 = arith.constant 0 : i32
    %c0_i32_0 = arith.constant 0 : i32
    %c0_i32_1 = arith.constant 0 : i32
    %c0_i32_2 = arith.constant 0 : i32
    return %c0_i32, %c0_i32_0, %c0_i32_1 : i32, i32, i32
  }
  func.func @transform_6(%arg0: i32) -> (i32, i32, i32) {
    %c0_i32 = arith.constant 0 : i32
    %c0_i32_0 = arith.constant 0 : i32
    %c0_i32_1 = arith.constant 0 : i32
    %c0_i32_2 = arith.constant 0 : i32
    return %c0_i32, %c0_i32_0, %c0_i32_1 : i32, i32, i32
  }
  func.func @transform_7(%arg0: i32) -> (i32, i32) {
    %c0_i32 = arith.constant 0 : i32
    %c0_i32_0 = arith.constant 0 : i32
    %c0_i32_1 = arith.constant 0 : i32
    return %c0_i32, %c0_i32_0 : i32, i32
  }
  func.func @transform_8(%arg0: i32) -> (i32, i32, i32) {
    %c0_i32 = arith.constant 0 : i32
    %c0_i32_0 = arith.constant 0 : i32
    %c0_i32_1 = arith.constant 0 : i32
    %c0_i32_2 = arith.constant 0 : i32
    return %c0_i32, %c0_i32_0, %c0_i32_1 : i32, i32, i32
  }
  func.func @transform_9(%arg0: i32) -> (i32, i32, i32) {
    %c0_i32 = arith.constant 0 : i32
    %c0_i32_0 = arith.constant 0 : i32
    %c0_i32_1 = arith.constant 0 : i32
    %c0_i32_2 = arith.constant 0 : i32
    return %c0_i32, %c0_i32_0, %c0_i32_1 : i32, i32, i32
  }
  func.func @transform_10(%arg0: i32) -> (i32, i32, i32) {
    %c0_i32 = arith.constant 0 : i32
    %c0_i32_0 = arith.constant 0 : i32
    %c0_i32_1 = arith.constant 0 : i32
    %c0_i32_2 = arith.constant 0 : i32
    return %c0_i32, %c0_i32_0, %c0_i32_1 : i32, i32, i32
  }
  func.func @transform_11(%arg0: i32) -> (i32, i32) {
    %c0_i32 = arith.constant 0 : i32
    %c0_i32_0 = arith.constant 0 : i32
    %c0_i32_1 = arith.constant 0 : i32
    return %c0_i32, %c0_i32_0 : i32, i32
  }
  func.func @transform_12(%arg0: i32) -> (i32, i32, i32) {
    %c0_i32 = arith.constant 0 : i32
    %c0_i32_0 = arith.constant 0 : i32
    %c0_i32_1 = arith.constant 0 : i32
    %c0_i32_2 = arith.constant 0 : i32
    return %c0_i32, %c0_i32_0, %c0_i32_1 : i32, i32, i32
  }
  func.func @transform_13(%arg0: i32) -> (i32, i32) {
    %c0_i32 = arith.constant 0 : i32
    %c0_i32_0 = arith.constant 0 : i32
    %c0_i32_1 = arith.constant 0 : i32
    return %c0_i32, %c0_i32_0 : i32, i32
  }
  func.func @transform_14(%arg0: i32) -> (i32, i32) {
    %c0_i32 = arith.constant 0 : i32
    %c0_i32_0 = arith.constant 0 : i32
    %c0_i32_1 = arith.constant 0 : i32
    return %c0_i32, %c0_i32_0 : i32, i32
  }
  func.func @transform_15(%arg0: i32) -> (i32, i32) {
    %c0_i32 = arith.constant 0 : i32
    %c0_i32_0 = arith.constant 0 : i32
    %c0_i32_1 = arith.constant 0 : i32
    return %c0_i32, %c0_i32_0 : i32, i32
  }
  func.func @transform_16(%arg0: i32) -> (i32, i32) {
    %c0_i32 = arith.constant 0 : i32
    %c0_i32_0 = arith.constant 0 : i32
    %c0_i32_1 = arith.constant 0 : i32
    return %c0_i32, %c0_i32_0 : i32, i32
  }
  func.func @transform_17(%arg0: i32) -> (i32, i32, i32) {
    %c0_i32 = arith.constant 0 : i32
    %c0_i32_0 = arith.constant 0 : i32
    %c0_i32_1 = arith.constant 0 : i32
    return %arg0, %c0_i32, %c0_i32_0 : i32, i32, i32
  }
}

</mosaic_0001>

<llo_original>
// kernel: vgg_forward.1
$region0: #{vgg_forward.1}
  #allocation0 [shape = 'u32[]', space=smem, size = 0x4, offset = 0x4, fixed_abs, tag = 'smem constant byte address 0x4 - core index']
  #allocation1 [shape = 'u32[144,128]{1,0:T(1,128)}', space=vmem, size = 0x12000, scoped, tag = 'internal scratch']
  %s0 = inlined_call_operand.vmem [shape: bf16[2,64,3], index: 0, kind: input, shape index: {}]
  %s1 = inlined_call_operand.vmem [shape: bf16[9,64,64], index: 1, kind: input, shape index: {}]
  %s2 = inlined_call_operand.vmem [shape: bf16[9,3,32], index: 2, kind: input, shape index: {}]
  %s3 = inlined_call_operand.vmem [shape: f32[1,32], index: 3, kind: input, shape index: {}]
  %s4 = inlined_call_operand.vmem [shape: bf16[4,16,64], index: 4, kind: input, shape index: {}]
  %s5 = inlined_call_operand.vmem [shape: bf16[9,16,16], index: 5, kind: input, shape index: {}]
  %s6 = inlined_call_operand.vmem [shape: bf16[9,32,64], index: 6, kind: input, shape index: {}]
  %s7 = inlined_call_operand.vmem [shape: f32[1,64], index: 7, kind: input, shape index: {}]
  %s8 = inlined_call_operand.vmem [shape: bf16[4,4,16], index: 8, kind: input, shape index: {}]
  %s9 = inlined_call_operand.vmem [shape: bf16[9,4,4], index: 9, kind: input, shape index: {}]
  %s10 = inlined_call_operand.vmem [shape: bf16[9,64,512], index: 10, kind: input, shape index: {}]
  %s11 = inlined_call_operand.vmem [shape: f32[1,512], index: 11, kind: input, shape index: {}]
  %s12 = inlined_call_operand.vmem [shape: bf16[4,1,4], index: 12, kind: input, shape index: {}]
  %s13 = inlined_call_operand.vmem [shape: f32[1,512], index: 13, kind: input, shape index: {}]
  %s14 = inlined_call_operand.vmem [shape: f32[1,512], index: 14, kind: input, shape index: {}]
  %s15 = inlined_call_operand.vmem [shape: bf16[512,10], index: 15, kind: input, shape index: {}]
  %s16 = inlined_call_operand.vmem [shape: f32[1,10], index: 16, kind: input, shape index: {}]
  %s17 = inlined_call_operand.hbm [shape: f32[2,1,10], index: 17, kind: output, shape index: {}]
  %s18 = sld [smem:[#allocation0]]
  $region101: #{vgg_forward.1} parent=0
    _
  %s20 = ssub.s32 1, %s18
  %s21 = scalar_select 0, %s20, %s18
  $region1: #{vgg_forward.1} parent=0
    #allocation2 [shape = 'u8[1024]{0}', space=vmem, size = 0x400, scoped, tag = 'output window, operand 0']
    #allocation3 [shape = 's32[2]{0}', space=sflag, size = 0x8, scoped, tag = 'scoped memory for vgg_forward.1']
    %22 = vsyncpa [#allocation3], 0
    %s23 = scalar_lea.sflag [#allocation3], 1
    %24 = vsyncpa %s23, 0
    loop: start=0, step=1, limit=4
    $region2: #{vgg_forward.1} parent=1 // loop_pre_header
      _
    $region3: #{vgg_forward.1} parent=1 // loop_header
      %s26 = sphi 0, %s30
      %p27 = scmp.ge.s32.totalorder %s26, 4
      %s36 = sphi 0, %s38
      %s39 = sphi 0, %s36
      %s40 = sphi 0, %s39
      %s56 = sphi 0, %s40
      %s60 = sphi 0, %s60
      %s62 = sphi 0, %s60
      %s63 = sphi 0, %s62
      %s77 = sphi 0, %s63
      %s81 = sphi 0, %s81
      %s83 = sphi 0, %s81
      %s84 = sphi 0, %s83
      %s98 = sphi 0, %s84
      %s102 = sphi 0, %s102
      %s104 = sphi 0, %s102
      %s105 = sphi 0, %s104
      %s119 = sphi 0, %s105
      %s123 = sphi 0, %s123
      %s125 = sphi 0, %s123
      %s126 = sphi 0, %s125
      %s140 = sphi 0, %s126
      %s144 = sphi 0, %s144
      %s146 = sphi 0, %s144
      %s147 = sphi 0, %s146
      %s161 = sphi 0, %s147
      %s165 = sphi 0, %s165
      %s167 = sphi 0, %s165
      %s168 = sphi 0, %s167
      %s182 = sphi 0, %s168
      %s186 = sphi 0, %s186
      %s188 = sphi 0, %s186
      %s189 = sphi 0, %s188
      %s203 = sphi 0, %s189
      %s207 = sphi 0, %s207
      %s209 = sphi 0, %s207
      %s210 = sphi 0, %s209
      %s224 = sphi 0, %s210
      %s228 = sphi 0, %s228
      %s230 = sphi 0, %s228
      %s231 = sphi 0, %s230
      %s245 = sphi 0, %s231
      %s249 = sphi 0, %s249
      %s251 = sphi 0, %s249
      %s252 = sphi 0, %s251
      %s266 = sphi 0, %s252
      %s270 = sphi 0, %s270
      %s272 = sphi 0, %s270
      %s273 = sphi 0, %s272
      %s287 = sphi 0, %s273
      %s291 = sphi 0, %s291
      %s293 = sphi 0, %s291
      %s294 = sphi 0, %s293
      %s308 = sphi 0, %s294
      %s312 = sphi 0, %s312
      %s314 = sphi 0, %s312
      %s315 = sphi 0, %s314
      %s329 = sphi 0, %s315
      %s333 = sphi 0, %s333
      %s335 = sphi 0, %s333
      %s336 = sphi 0, %s335
      %s350 = sphi 0, %s336
      %s354 = sphi 0, %s354
      %s356 = sphi 0, %s354
      %s357 = sphi 0, %s356
      %s371 = sphi 0, %s357
      %s375 = sphi 0, %s375
      %s377 = sphi 0, %s375
      %s378 = sphi 0, %s377
      %s392 = sphi 0, %s378
      %s398 = sphi 0, %s400
      %s401 = sphi 0, %s398
      %s402 = sphi 0, %s401
      %s418 = sphi 0, %s402
    $region4: #{vgg_forward.1} parent=1 // loop_header_branch
      %29 = sbr.rel (%p27) target = $region8
    $region5: #{vgg_forward.1} parent=1 // loop_body
      %s31 = ssub.s32 %s26, 1
      %s32 = ssub.s32 %s26, 2
      %s33 = sadd.s32 %s26, 1
      %s34 = ssub.s32 %s26, %s33
      %p35 = scmp.eq.s32.totalorder %s34, 0
      %s37 = sadd.s32 %s36, 1
      %s38 = scalar_select %p35, %s36, %s37
      %p41 = pneg %p35
      %p42 = scmp.eq.s32.totalorder %s26, 1
      %p43 = por %p41, %p42
      %p44 = scmp.ne.s32.totalorder %s36, %s39
      %p45 = scmp.eq.s32.totalorder %s26, 0
      %p46 = por %p44, %p45
      %p47 = scmp.ne.s32.totalorder %s36, %s39
      %p48 = scmp.eq.s32.totalorder %s31, 1
      %p49 = por %p47, %p48
      %p50 = scmp.ne.s32.totalorder %s39, %s40
      %p51 = scmp.eq.s32.totalorder %s31, 0
      %p52 = por %p50, %p51
      %p53 = scmp.ne.s32.totalorder %s39, %s40
      %p54 = scmp.eq.s32.totalorder %s32, 1
      %p55 = por %p53, %p54
      %p57 = scmp.ne.s32.totalorder %s40, %s56
      %p58 = scmp.eq.s32.totalorder %s32, 0
      %p59 = por %p57, %p58
      %s61 = sadd.s32 %s60, 1
      %p64 = scmp.eq.s32.totalorder %s26, 1
      %p65 = scmp.ne.s32.totalorder %s60, %s62
      %p66 = scmp.eq.s32.totalorder %s26, 0
      %p67 = por %p65, %p66
      %p68 = scmp.ne.s32.totalorder %s60, %s62
      %p69 = scmp.eq.s32.totalorder %s31, 1
      %p70 = por %p68, %p69
      %p71 = scmp.ne.s32.totalorder %s62, %s63
      %p72 = scmp.eq.s32.totalorder %s31, 0
      %p73 = por %p71, %p72
      %p74 = scmp.ne.s32.totalorder %s62, %s63
      %p75 = scmp.eq.s32.totalorder %s32, 1
      %p76 = por %p74, %p75
      %p78 = scmp.ne.s32.totalorder %s63, %s77
      %p79 = scmp.eq.s32.totalorder %s32, 0
      %p80 = por %p78, %p79
      %s82 = sadd.s32 %s81, 1
      %p85 = scmp.eq.s32.totalorder %s26, 1
      %p86 = scmp.ne.s32.totalorder %s81, %s83
      %p87 = scmp.eq.s32.totalorder %s26, 0
      %p88 = por %p86, %p87
      %p89 = scmp.ne.s32.totalorder %s81, %s83
      %p90 = scmp.eq.s32.totalorder %s31, 1
      %p91 = por %p89, %p90
      %p92 = scmp.ne.s32.totalorder %s83, %s84
      %p93 = scmp.eq.s32.totalorder %s31, 0
      %p94 = por %p92, %p93
      %p95 = scmp.ne.s32.totalorder %s83, %s84
      %p96 = scmp.eq.s32.totalorder %s32, 1
      %p97 = por %p95, %p96
      %p99 = scmp.ne.s32.totalorder %s84, %s98
      %p100 = scmp.eq.s32.totalorder %s32, 0
      %p101 = por %p99, %p100
      %s103 = sadd.s32 %s102, 1
      %p106 = scmp.eq.s32.totalorder %s26, 1
      %p107 = scmp.ne.s32.totalorder %s102, %s104
      %p108 = scmp.eq.s32.totalorder %s26, 0
      %p109 = por %p107, %p108
      %p110 = scmp.ne.s32.totalorder %s102, %s104
      %p111 = scmp.eq.s32.totalorder %s31, 1
      %p112 = por %p110, %p111
      %p113 = scmp.ne.s32.totalorder %s104, %s105
      %p114 = scmp.eq.s32.totalorder %s31, 0
      %p115 = por %p113, %p114
      %p116 = scmp.ne.s32.totalorder %s104, %s105
      %p117 = scmp.eq.s32.totalorder %s32, 1
      %p118 = por %p116, %p117
      %p120 = scmp.ne.s32.totalorder %s105, %s119
      %p121 = scmp.eq.s32.totalorder %s32, 0
      %p122 = por %p120, %p121
      %s124 = sadd.s32 %s123, 1
      %p127 = scmp.eq.s32.totalorder %s26, 1
      %p128 = scmp.ne.s32.totalorder %s123, %s125
      %p129 = scmp.eq.s32.totalorder %s26, 0
      %p130 = por %p128, %p129
      %p131 = scmp.ne.s32.totalorder %s123, %s125
      %p132 = scmp.eq.s32.totalorder %s31, 1
      %p133 = por %p131, %p132
      %p134 = scmp.ne.s32.totalorder %s125, %s126
      %p135 = scmp.eq.s32.totalorder %s31, 0
      %p136 = por %p134, %p135
      %p137 = scmp.ne.s32.totalorder %s125, %s126
      %p138 = scmp.eq.s32.totalorder %s32, 1
      %p139 = por %p137, %p138
      %p141 = scmp.ne.s32.totalorder %s126, %s140
      %p142 = scmp.eq.s32.totalorder %s32, 0
      %p143 = por %p141, %p142
      %s145 = sadd.s32 %s144, 1
      %p148 = scmp.eq.s32.totalorder %s26, 1
      %p149 = scmp.ne.s32.totalorder %s144, %s146
      %p150 = scmp.eq.s32.totalorder %s26, 0
      %p151 = por %p149, %p150
      %p152 = scmp.ne.s32.totalorder %s144, %s146
      %p153 = scmp.eq.s32.totalorder %s31, 1
      %p154 = por %p152, %p153
      %p155 = scmp.ne.s32.totalorder %s146, %s147
      %p156 = scmp.eq.s32.totalorder %s31, 0
      %p157 = por %p155, %p156
      %p158 = scmp.ne.s32.totalorder %s146, %s147
      %p159 = scmp.eq.s32.totalorder %s32, 1
      %p160 = por %p158, %p159
      %p162 = scmp.ne.s32.totalorder %s147, %s161
      %p163 = scmp.eq.s32.totalorder %s32, 0
      %p164 = por %p162, %p163
      %s166 = sadd.s32 %s165, 1
      %p169 = scmp.eq.s32.totalorder %s26, 1
      %p170 = scmp.ne.s32.totalorder %s165, %s167
      %p171 = scmp.eq.s32.totalorder %s26, 0
      %p172 = por %p170, %p171
      %p173 = scmp.ne.s32.totalorder %s165, %s167
      %p174 = scmp.eq.s32.totalorder %s31, 1
      %p175 = por %p173, %p174
      %p176 = scmp.ne.s32.totalorder %s167, %s168
      %p177 = scmp.eq.s32.totalorder %s31, 0
      %p178 = por %p176, %p177
      %p179 = scmp.ne.s32.totalorder %s167, %s168
      %p180 = scmp.eq.s32.totalorder %s32, 1
      %p181 = por %p179, %p180
      %p183 = scmp.ne.s32.totalorder %s168, %s182
      %p184 = scmp.eq.s32.totalorder %s32, 0
      %p185 = por %p183, %p184
      %s187 = sadd.s32 %s186, 1
      %p190 = scmp.eq.s32.totalorder %s26, 1
      %p191 = scmp.ne.s32.totalorder %s186, %s188
      %p192 = scmp.eq.s32.totalorder %s26, 0
      %p193 = por %p191, %p192
      %p194 = scmp.ne.s32.totalorder %s186, %s188
      %p195 = scmp.eq.s32.totalorder %s31, 1
      %p196 = por %p194, %p195
      %p197 = scmp.ne.s32.totalorder %s188, %s189
      %p198 = scmp.eq.s32.totalorder %s31, 0
      %p199 = por %p197, %p198
      %p200 = scmp.ne.s32.totalorder %s188, %s189
      %p201 = scmp.eq.s32.totalorder %s32, 1
      %p202 = por %p200, %p201
      %p204 = scmp.ne.s32.totalorder %s189, %s203
      %p205 = scmp.eq.s32.totalorder %s32, 0
      %p206 = por %p204, %p205
      %s208 = sadd.s32 %s207, 1
      %p211 = scmp.eq.s32.totalorder %s26, 1
      %p212 = scmp.ne.s32.totalorder %s207, %s209
      %p213 = scmp.eq.s32.totalorder %s26, 0
      %p214 = por %p212, %p213
      %p215 = scmp.ne.s32.totalorder %s207, %s209
      %p216 = scmp.eq.s32.totalorder %s31, 1
      %p217 = por %p215, %p216
      %p218 = scmp.ne.s32.totalorder %s209, %s210
      %p219 = scmp.eq.s32.totalorder %s31, 0
      %p220 = por %p218, %p219
      %p221 = scmp.ne.s32.totalorder %s209, %s210
      %p222 = scmp.eq.s32.totalorder %s32, 1
      %p223 = por %p221, %p222
      %p225 = scmp.ne.s32.totalorder %s210, %s224
      %p226 = scmp.eq.s32.totalorder %s32, 0
      %p227 = por %p225, %p226
      %s229 = sadd.s32 %s228, 1
      %p232 = scmp.eq.s32.totalorder %s26, 1
      %p233 = scmp.ne.s32.totalorder %s228, %s230
      %p234 = scmp.eq.s32.totalorder %s26, 0
      %p235 = por %p233, %p234
      %p236 = scmp.ne.s32.totalorder %s228, %s230
      %p237 = scmp.eq.s32.totalorder %s31, 1
      %p238 = por %p236, %p237
      %p239 = scmp.ne.s32.totalorder %s230, %s231
      %p240 = scmp.eq.s32.totalorder %s31, 0
      %p241 = por %p239, %p240
      %p242 = scmp.ne.s32.totalorder %s230, %s231
      %p243 = scmp.eq.s32.totalorder %s32, 1
      %p244 = por %p242, %p243
      %p246 = scmp.ne.s32.totalorder %s231, %s245
      %p247 = scmp.eq.s32.totalorder %s32, 0
      %p248 = por %p246, %p247
      %s250 = sadd.s32 %s249, 1
      %p253 = scmp.eq.s32.totalorder %s26, 1
      %p254 = scmp.ne.s32.totalorder %s249, %s251
      %p255 = scmp.eq.s32.totalorder %s26, 0
      %p256 = por %p254, %p255
      %p257 = scmp.ne.s32.totalorder %s249, %s251
      %p258 = scmp.eq.s32.totalorder %s31, 1
      %p259 = por %p257, %p258
      %p260 = scmp.ne.s32.totalorder %s251, %s252
      %p261 = scmp.eq.s32.totalorder %s31, 0
      %p262 = por %p260, %p261
      %p263 = scmp.ne.s32.totalorder %s251, %s252
      %p264 = scmp.eq.s32.totalorder %s32, 1
      %p265 = por %p263, %p264
      %p267 = scmp.ne.s32.totalorder %s252, %s266
      %p268 = scmp.eq.s32.totalorder %s32, 0
      %p269 = por %p267, %p268
      %s271 = sadd.s32 %s270, 1
      %p274 = scmp.eq.s32.totalorder %s26, 1
      %p275 = scmp.ne.s32.totalorder %s270, %s272
      %p276 = scmp.eq.s32.totalorder %s26, 0
      %p277 = por %p275, %p276
      %p278 = scmp.ne.s32.totalorder %s270, %s272
      %p279 = scmp.eq.s32.totalorder %s31, 1
      %p280 = por %p278, %p279
      %p281 = scmp.ne.s32.totalorder %s272, %s273
      %p282 = scmp.eq.s32.totalorder %s31, 0
      %p283 = por %p281, %p282
      %p284 = scmp.ne.s32.totalorder %s272, %s273
      %p285 = scmp.eq.s32.totalorder %s32, 1
      %p286 = por %p284, %p285
      %p288 = scmp.ne.s32.totalorder %s273, %s287
      %p289 = scmp.eq.s32.totalorder %s32, 0
      %p290 = por %p288, %p289
      %s292 = sadd.s32 %s291, 1
      %p295 = scmp.eq.s32.totalorder %s26, 1
      %p296 = scmp.ne.s32.totalorder %s291, %s293
      %p297 = scmp.eq.s32.totalorder %s26, 0
      %p298 = por %p296, %p297
      %p299 = scmp.ne.s32.totalorder %s291, %s293
      %p300 = scmp.eq.s32.totalorder %s31, 1
      %p301 = por %p299, %p300
      %p302 = scmp.ne.s32.totalorder %s293, %s294
      %p303 = scmp.eq.s32.totalorder %s31, 0
      %p304 = por %p302, %p303
      %p305 = scmp.ne.s32.totalorder %s293, %s294
      %p306 = scmp.eq.s32.totalorder %s32, 1
      %p307 = por %p305, %p306
      %p309 = scmp.ne.s32.totalorder %s294, %s308
      %p310 = scmp.eq.s32.totalorder %s32, 0
      %p311 = por %p309, %p310
      %s313 = sadd.s32 %s312, 1
      %p316 = scmp.eq.s32.totalorder %s26, 1
      %p317 = scmp.ne.s32.totalorder %s312, %s314
      %p318 = scmp.eq.s32.totalorder %s26, 0
      %p319 = por %p317, %p318
      %p320 = scmp.ne.s32.totalorder %s312, %s314
      %p321 = scmp.eq.s32.totalorder %s31, 1
      %p322 = por %p320, %p321
      %p323 = scmp.ne.s32.totalorder %s314, %s315
      %p324 = scmp.eq.s32.totalorder %s31, 0
      %p325 = por %p323, %p324
      %p326 = scmp.ne.s32.totalorder %s314, %s315
      %p327 = scmp.eq.s32.totalorder %s32, 1
      %p328 = por %p326, %p327
      %p330 = scmp.ne.s32.totalorder %s315, %s329
      %p331 = scmp.eq.s32.totalorder %s32, 0
      %p332 = por %p330, %p331
      %s334 = sadd.s32 %s333, 1
      %p337 = scmp.eq.s32.totalorder %s26, 1
      %p338 = scmp.ne.s32.totalorder %s333, %s335
      %p339 = scmp.eq.s32.totalorder %s26, 0
      %p340 = por %p338, %p339
      %p341 = scmp.ne.s32.totalorder %s333, %s335
      %p342 = scmp.eq.s32.totalorder %s31, 1
      %p343 = por %p341, %p342
      %p344 = scmp.ne.s32.totalorder %s335, %s336
      %p345 = scmp.eq.s32.totalorder %s31, 0
      %p346 = por %p344, %p345
      %p347 = scmp.ne.s32.totalorder %s335, %s336
      %p348 = scmp.eq.s32.totalorder %s32, 1
      %p349 = por %p347, %p348
      %p351 = scmp.ne.s32.totalorder %s336, %s350
      %p352 = scmp.eq.s32.totalorder %s32, 0
      %p353 = por %p351, %p352
      %s355 = sadd.s32 %s354, 1
      %p358 = scmp.eq.s32.totalorder %s26, 1
      %p359 = scmp.ne.s32.totalorder %s354, %s356
      %p360 = scmp.eq.s32.totalorder %s26, 0
      %p361 = por %p359, %p360
      %p362 = scmp.ne.s32.totalorder %s354, %s356
      %p363 = scmp.eq.s32.totalorder %s31, 1
      %p364 = por %p362, %p363
      %p365 = scmp.ne.s32.totalorder %s356, %s357
      %p366 = scmp.eq.s32.totalorder %s31, 0
      %p367 = por %p365, %p366
      %p368 = scmp.ne.s32.totalorder %s356, %s357
      %p369 = scmp.eq.s32.totalorder %s32, 1
      %p370 = por %p368, %p369
      %p372 = scmp.ne.s32.totalorder %s357, %s371
      %p373 = scmp.eq.s32.totalorder %s32, 0
      %p374 = por %p372, %p373
      %s376 = sadd.s32 %s375, 1
      %p379 = scmp.eq.s32.totalorder %s26, 1
      %p380 = scmp.ne.s32.totalorder %s375, %s377
      %p381 = scmp.eq.s32.totalorder %s26, 0
      %p382 = por %p380, %p381
      %p383 = scmp.ne.s32.totalorder %s375, %s377
      %p384 = scmp.eq.s32.totalorder %s31, 1
      %p385 = por %p383, %p384
      %p386 = scmp.ne.s32.totalorder %s377, %s378
      %p387 = scmp.eq.s32.totalorder %s31, 0
      %p388 = por %p386, %p387
      %p389 = scmp.ne.s32.totalorder %s377, %s378
      %p390 = scmp.eq.s32.totalorder %s32, 1
      %p391 = por %p389, %p390
      %p393 = scmp.ne.s32.totalorder %s378, %s392
      %p394 = scmp.eq.s32.totalorder %s32, 0
      %p395 = por %p393, %p394
      %s396 = ssub.s32 %s26, %s33
      %p397 = scmp.eq.s32.totalorder %s396, 0
      %s399 = sadd.s32 %s398, 1
      %s400 = scalar_select %p397, %s398, %s399
      %p403 = pneg %p397
      %p404 = scmp.eq.s32.totalorder %s26, 1
      %p405 = por %p403, %p404
      %p406 = scmp.ne.s32.totalorder %s398, %s401
      %p407 = scmp.eq.s32.totalorder %s26, 0
      %p408 = por %p406, %p407
      %p409 = scmp.ne.s32.totalorder %s398, %s401
      %p410 = scmp.eq.s32.totalorder %s31, 1
      %p411 = por %p409, %p410
      %p412 = scmp.ne.s32.totalorder %s401, %s402
      %p413 = scmp.eq.s32.totalorder %s31, 0
      %p414 = por %p412, %p413
      %p415 = scmp.ne.s32.totalorder %s401, %s402
      %p416 = scmp.eq.s32.totalorder %s32, 1
      %p417 = por %p415, %p416
      %p419 = scmp.ne.s32.totalorder %s402, %s418
      %p420 = scmp.eq.s32.totalorder %s32, 0
      %p421 = por %p419, %p420
      %p422 = scmp.le.s32.totalorder 1, %s26
      %p423 = scmp.lt.s32.totalorder %s26, 3
      %p424 = pnand %p422, %p423
      %p425 = pneg %p424
      // Predicated region
      $region9: #{vgg_forward.1} parent=5 // pred_check
        _
      $region10: #{vgg_forward.1} parent=5 // pred_check_branch
        %427 = sbr.rel (%p424) target = $region12
      $region11: #{vgg_forward.1} parent=5 // pred_region
        %s428 = ssub.s32 %s26, 1
        // Predicated region
        $region13: #{vgg_forward.1} parent=11 // pred_check
          %p429 = pneg %p73
        $region14: #{vgg_forward.1} parent=11 // pred_check_branch
          %431 = sbr.rel (%p429) target = $region16
        $region15: #{vgg_forward.1} parent=11 // pred_region
          _
        $region16: #{vgg_forward.1} parent=11 // pred_fallthru
          _
        // Predicated region
        $region17: #{vgg_forward.1} parent=11 // pred_check
          %p432 = pneg %p94
        $region18: #{vgg_forward.1} parent=11 // pred_check_branch
          %434 = sbr.rel (%p432) target = $region20
        $region19: #{vgg_forward.1} parent=11 // pred_region
          _
        $region20: #{vgg_forward.1} parent=11 // pred_fallthru
          _
        // Predicated region
        $region21: #{vgg_forward.1} parent=11 // pred_check
          %p435 = pneg %p115
        $region22: #{vgg_forward.1} parent=11 // pred_check_branch
          %437 = sbr.rel (%p435) target = $region24
        $region23: #{vgg_forward.1} parent=11 // pred_region
          _
        $region24: #{vgg_forward.1} parent=11 // pred_fallthru
          _
        // Predicated region
        $region25: #{vgg_forward.1} parent=11 // pred_check
          %p438 = pneg %p136
        $region26: #{vgg_forward.1} parent=11 // pred_check_branch
          %440 = sbr.rel (%p438) target = $region28
        $region27: #{vgg_forward.1} parent=11 // pred_region
          _
        $region28: #{vgg_forward.1} parent=11 // pred_fallthru
          _
        // Predicated region
        $region29: #{vgg_forward.1} parent=11 // pred_check
          %p441 = pneg %p157
        $region30: #{vgg_forward.1} parent=11 // pred_check_branch
          %443 = sbr.rel (%p441) target = $region32
        $region31: #{vgg_forward.1} parent=11 // pred_region
          _
        $region32: #{vgg_forward.1} parent=11 // pred_fallthru
          _
        // Predicated region
        $region33: #{vgg_forward.1} parent=11 // pred_check
          %p444 = pneg %p178
        $region34: #{vgg_forward.1} parent=11 // pred_check_branch
          %446 = sbr.rel (%p444) target = $region36
        $region35: #{vgg_forward.1} parent=11 // pred_region
          _
        $region36: #{vgg_forward.1} parent=11 // pred_fallthru
          _
        // Predicated region
        $region37: #{vgg_forward.1} parent=11 // pred_check
          %p447 = pneg %p199
        $region38: #{vgg_forward.1} parent=11 // pred_check_branch
          %449 = sbr.rel (%p447) target = $region40
        $region39: #{vgg_forward.1} parent=11 // pred_region
          _
        $region40: #{vgg_forward.1} parent=11 // pred_fallthru
          _
        // Predicated region
        $region41: #{vgg_forward.1} parent=11 // pred_check
          %p450 = pneg %p220
        $region42: #{vgg_forward.1} parent=11 // pred_check_branch
          %452 = sbr.rel (%p450) target = $region44
        $region43: #{vgg_forward.1} parent=11 // pred_region
          _
        $region44: #{vgg_forward.1} parent=11 // pred_fallthru
          _
        // Predicated region
        $region45: #{vgg_forward.1} parent=11 // pred_check
          %p453 = pneg %p241
        $region46: #{vgg_forward.1} parent=11 // pred_check_branch
          %455 = sbr.rel (%p453) target = $region48
        $region47: #{vgg_forward.1} parent=11 // pred_region
          _
        $region48: #{vgg_forward.1} parent=11 // pred_fallthru
          _
        // Predicated region
        $region49: #{vgg_forward.1} parent=11 // pred_check
          %p456 = pneg %p262
        $region50: #{vgg_forward.1} parent=11 // pred_check_branch
          %458 = sbr.rel (%p456) target = $region52
        $region51: #{vgg_forward.1} parent=11 // pred_region
          _
        $region52: #{vgg_forward.1} parent=11 // pred_fallthru
          _
        // Predicated region
        $region53: #{vgg_forward.1} parent=11 // pred_check
          %p459 = pneg %p283
        $region54: #{vgg_forward.1} parent=11 // pred_check_branch
          %461 = sbr.rel (%p459) target = $region56
        $region55: #{vgg_forward.1} parent=11 // pred_region
          _
        $region56: #{vgg_forward.1} parent=11 // pred_fallthru
          _
        // Predicated region
        $region57: #{vgg_forward.1} parent=11 // pred_check
          %p462 = pneg %p304
        $region58: #{vgg_forward.1} parent=11 // pred_check_branch
          %464 = sbr.rel (%p462) target = $region60
        $region59: #{vgg_forward.1} parent=11 // pred_region
          _
        $region60: #{vgg_forward.1} parent=11 // pred_fallthru
          _
        // Predicated region
        $region61: #{vgg_forward.1} parent=11 // pred_check
          %p465 = pneg %p325
        $region62: #{vgg_forward.1} parent=11 // pred_check_branch
          %467 = sbr.rel (%p465) target = $region64
        $region63: #{vgg_forward.1} parent=11 // pred_region
          _
        $region64: #{vgg_forward.1} parent=11 // pred_fallthru
          _
        // Predicated region
        $region65: #{vgg_forward.1} parent=11 // pred_check
          %p468 = pneg %p346
        $region66: #{vgg_forward.1} parent=11 // pred_check_branch
          %470 = sbr.rel (%p468) target = $region68
        $region67: #{vgg_forward.1} parent=11 // pred_region
          _
        $region68: #{vgg_forward.1} parent=11 // pred_fallthru
          _
        // Predicated region
        $region69: #{vgg_forward.1} parent=11 // pred_check
          %p471 = pneg %p367
        $region70: #{vgg_forward.1} parent=11 // pred_check_branch
          %473 = sbr.rel (%p471) target = $region72
        $region71: #{vgg_forward.1} parent=11 // pred_region
          _
        $region72: #{vgg_forward.1} parent=11 // pred_fallthru
          _
        // Predicated region
        $region73: #{vgg_forward.1} parent=11 // pred_check
          %p474 = pneg %p388
        $region74: #{vgg_forward.1} parent=11 // pred_check_branch
          %476 = sbr.rel (%p474) target = $region76
        $region75: #{vgg_forward.1} parent=11 // pred_region
          _
        $region76: #{vgg_forward.1} parent=11 // pred_fallthru
          _
      $region12: #{vgg_forward.1} parent=5 // pred_fallthru
        _
      %p477 = scmp.lt.s32.totalorder %s26, 2
      // Predicated region
      $region77: #{vgg_forward.1} parent=5 // pred_check
        %p478 = pneg %p477
      $region78: #{vgg_forward.1} parent=5 // pred_check_branch
        %480 = sbr.rel (%p478) target = $region80
      $region79: #{vgg_forward.1} parent=5 // pred_region
        // Predicated region
        $region81: #{vgg_forward.1} parent=79 // pred_check
          %p481 = pneg %p46
        $region82: #{vgg_forward.1} parent=79 // pred_check_branch
          %483 = sbr.rel (%p481) target = $region84
        $region83: #{vgg_forward.1} parent=79 // pred_region
          %p484 = scmp.lt.s32.totalorder %s26, 1
          %s485 = scalar_select %p484, %s26, 1
          %s486 = smul.addr %s485, 8
          %s487 = smul.addr %s486, 4
          %s488 = scalar_lea.vmem %s0, %s487
        $region84: #{vgg_forward.1} parent=79 // pred_fallthru
          _
      $region80: #{vgg_forward.1} parent=5 // pred_fallthru
        _
      %p489 = scmp.le.s32.totalorder 1, %s26
      %p490 = scmp.lt.s32.totalorder %s26, 3
      %p491 = pnand %p489, %p490
      %p492 = pneg %p491
      // Predicated region
      $region85: #{vgg_forward.1} parent=5 // pred_check
        _
      $region86: #{vgg_forward.1} parent=5 // pred_check_branch
        %494 = sbr.rel (%p491) target = $region88
      $region87: #{vgg_forward.1} parent=5 // pred_region
        %s495 = ssub.s32 %s26, 1
        %p496 = scmp.lt.s32.totalorder %s31, 1
        %s497 = scalar_select %p496, %s31, 1
        %s498 = smul.addr %s497, 8
        %s499 = smul.addr %s498, 4
        %s500 = scalar_lea.vmem %s0, %s499
        %p501 = pneg %p52
        %p502 = pneg %p49
        %p503 = pneg %p73
        %p504 = pneg %p70
        %p505 = pneg %p94
        %p506 = pneg %p91
        %p507 = pneg %p115
        %p508 = pneg %p112
        %p509 = pneg %p136
        %p510 = pneg %p133
        %p511 = pneg %p157
        %p512 = pneg %p154
        %p513 = pneg %p178
        %p514 = pneg %p175
        %p515 = pneg %p199
        %p516 = pneg %p196
        %p517 = pneg %p220
        %p518 = pneg %p217
        %p519 = pneg %p241
        %p520 = pneg %p238
        %p521 = pneg %p262
        %p522 = pneg %p259
        %p523 = pneg %p283
        %p524 = pneg %p280
        %p525 = pneg %p304
        %p526 = pneg %p301
        %p527 = pneg %p325
        %p528 = pneg %p322
        %p529 = pneg %p346
        %p530 = pneg %p343
        %p531 = pneg %p367
        %p532 = pneg %p364
        %p533 = pneg %p388
        %p534 = pneg %p385
        %p535 = pneg %p414
        %p536 = pneg %p411
        %s537 = sand.u32 %s401, 1
        %s538 = scalar_lea.sflag [#allocation3], %s537
        %s539 = sand.u32 %s401, 1
        %s540 = scalar_lea.vmem [#allocation2], %s539
        %p541 = scmp.lt.s32.totalorder %s31, 1
        %s542 = scalar_select %p541, %s31, 1
        %s543 = smul.addr %s542, 8
        %s544 = smul.addr %s543, 4
        %s545 = scalar_lea.vmem %s0, %s544
        %v547 = vld [vmem:[%s545] sm:$0xf]
        %v548 = vld [vmem:[%s545 + $0x4] sm:$0xf]
        %v549 = vld [vmem:[%s545 + $0x8] sm:$0xf]
        %v550 = vld [vmem:[%s545 + $0xc] sm:$0xf]
        %v551 = vld [vmem:[%s545 + $0x10] sm:$0xf]
        %v552 = vld [vmem:[%s545 + $0x14] sm:$0xf]
        %v553 = vld [vmem:[%s545 + $0x18] sm:$0xf]
        %v554 = vld [vmem:[%s545 + $0x1c] sm:$0xf]
        %v555 = vld [vmem:[%s1] sm:$0xf]
        %v556 = vld [vmem:[%s1 + $0x4] sm:$0xf]
        %v557 = vld [vmem:[%s1 + $0x8] sm:$0xf]
        %v558 = vld [vmem:[%s1 + $0xc] sm:$0xf]
        %v559 = vld [vmem:[%s1 + $0x10] sm:$0xf]
        %v560 = vld [vmem:[%s1 + $0x14] sm:$0xf]
        %v561 = vld [vmem:[%s1 + $0x18] sm:$0xf]
        %v562 = vld [vmem:[%s1 + $0x1c] sm:$0xf]
        %v571 = vunpack.c.l.b16 %v555
        %v572 = vunpack.c.l.b16 %v556
        %v573 = vunpack.c.l.b16 %v557
        %v574 = vunpack.c.l.b16 %v558
        %v575 = vunpack.c.l.b16 %v559
        %v576 = vunpack.c.l.b16 %v560
        %v577 = vunpack.c.l.b16 %v561
        %v578 = vunpack.c.l.b16 %v562
        %v579 = vpack.c.b16 %v572, %v571
        %v580 = vpack.c.b16 %v574, %v573
        %v581 = vpack.c.b16 %v576, %v575
        %v582 = vpack.c.b16 %v578, %v577
        %v591 = vunpack.c.l.b16 %v547
        %v592 = vunpack.c.l.b16 %v548
        %v593 = vunpack.c.l.b16 %v549
        %v594 = vunpack.c.l.b16 %v550
        %v595 = vunpack.c.l.b16 %v551
        %v596 = vunpack.c.l.b16 %v552
        %v597 = vunpack.c.l.b16 %v553
        %v598 = vunpack.c.l.b16 %v554
        %v599 = vpack.c.b16 %v592, %v591
        %v600 = vpack.c.b16 %v594, %v593
        %v601 = vpack.c.b16 %v596, %v595
        %v602 = vpack.c.b16 %v598, %v597
        %vm607 = vcmask 523264
        %v609 = vsel %vm607, %v579, 0
        %v612 = vsel %vm607, %v580, 0
        %v615 = vsel %vm607, %v581, 0
        %v618 = vsel %vm607, %v582, 0
        %620 = vmatprep.subr.bf16.mxu0 0
        %621 = vmatpush1.bf16.msra.mxu0 0
        %622 = vmatprep.subr.bf16.mxu0 0
        %623 = vmatpush1.bf16.msra.mxu0 0
        %624 = vmatprep.subr.bf16.mxu0 0
        %625 = vmatpush1.bf16.msra.mxu0 0
        %626 = vmatprep.subr.bf16.mxu0 0
        %627 = vmatpush1.bf16.msra.mxu0 0
        %628 = vmatprep.subr.bf16.mxu0 0
        %629 = vmatpush1.bf16.msra.mxu0 %v602
        %630 = vmatprep.subr.bf16.mxu0 0
        %631 = vmatpush1.bf16.msra.mxu0 %v601
        %632 = vmatprep.subr.bf16.mxu0 0
        %633 = vmatpush1.bf16.msra.mxu0 %v600
        %634 = vmatprep.subr.bf16.mxu0 0
        %635 = vmatpush1.bf16.msra.mxu0 %v599
        %636 = vmatprep.subr.bf16.mxu0 0
        %637 = vmatpush2.bf16.msra.mxu0 0
        %638 = vmatprep.subr.bf16.mxu0 0
        %639 = vmatpush2.bf16.msra.mxu0 0
        %640 = vmatprep.subr.bf16.mxu0 0
        %641 = vmatpush2.bf16.msra.mxu0 0
        %642 = vmatprep.subr.bf16.mxu0 0
        %643 = vmatpush2.bf16.msra.mxu0 0
        %644 = vmatprep.subr.bf16.mxu0 0
        %645 = vmatpush2.bf16.msra.mxu0 0
        %646 = vmatprep.subr.bf16.mxu0 0
        %647 = vmatpush2.bf16.msra.mxu0 0
        %648 = vmatprep.subr.bf16.mxu0 0
        %649 = vmatpush2.bf16.msra.mxu0 0
        %650 = vmatprep.subr.bf16.mxu0 0
        %651 = vmatpush2.bf16.msra.mxu0 0
        %652 = vmatprep.mubr.bf16.mxu0 0
        %653 = vmatmul.mubr.bf16.gmra.mxu0 %v609
        %v654 = vpop.f32.mrf.mxu0
        %v655 = vadd.f32 0.0, %v654
        %v656 = vpop.f32.mrf.mxu0
        %v657 = vpop.f32.mrf.mxu0
        %v658 = vadd.f32 0.0, %v657
        %v659 = vpop.f32.mrf.mxu0
        %660 = vmatprep.mubr.bf16.mxu0 0
        %661 = vmatmul.mubr.bf16.gmra.mxu0 %v612
        %v662 = vpop.f32.mrf.mxu0
        %v663 = vadd.f32 0.0, %v662
        %v664 = vpop.f32.mrf.mxu0
        %v665 = vpop.f32.mrf.mxu0
        %v666 = vadd.f32 0.0, %v665
        %v667 = vpop.f32.mrf.mxu0
        %668 = vmatprep.mubr.bf16.mxu0 0
        %669 = vmatmul.mubr.bf16.gmra.mxu0 %v615
        %v670 = vpop.f32.mrf.mxu0
        %v671 = vadd.f32 0.0, %v670
        %v672 = vpop.f32.mrf.mxu0
        %v673 = vpop.f32.mrf.mxu0
        %v674 = vadd.f32 0.0, %v673
        %v675 = vpop.f32.mrf.mxu0
        %676 = vmatprep.mubr.bf16.mxu0 0
        %677 = vmatmul.mubr.bf16.gmra.mxu0 %v618
        %v678 = vpop.f32.mrf.mxu0
        %v679 = vadd.f32 0.0, %v678
        %v680 = vpop.f32.mrf.mxu0
        %v681 = vpop.f32.mrf.mxu0
        %v682 = vadd.f32 0.0, %v681
        %v683 = vpop.f32.mrf.mxu0
        %684 = vdwg.mxu0
        %v685 = vpack.c.bf16 %v658, %v655
        %v686 = vpack.c.bf16 %v666, %v663
        %v687 = vpack.c.bf16 %v674, %v671
        %v688 = vpack.c.bf16 %v682, %v679
        %v689 = vld [vmem:[%s2] sm:$0x3]
        %s690 = scalar_lea.vmem %s1, 32
        %v691 = vld [vmem:[%s690] sm:$0xf]
        %v692 = vld [vmem:[%s690 + $0x4] sm:$0xf]
        %v693 = vld [vmem:[%s690 + $0x8] sm:$0xf]
        %v694 = vld [vmem:[%s690 + $0xc] sm:$0xf]
        %v695 = vld [vmem:[%s690 + $0x10] sm:$0xf]
        %v696 = vld [vmem:[%s690 + $0x14] sm:$0xf]
        %v697 = vld [vmem:[%s690 + $0x18] sm:$0xf]
        %v698 = vld [vmem:[%s690 + $0x1c] sm:$0xf]
        %v707 = vunpack.c.l.b16 %v691
        %v708 = vunpack.c.l.b16 %v692
        %v709 = vunpack.c.l.b16 %v693
        %v710 = vunpack.c.l.b16 %v694
        %v711 = vunpack.c.l.b16 %v695
        %v712 = vunpack.c.l.b16 %v696
        %v713 = vunpack.c.l.b16 %v697
        %v714 = vunpack.c.l.b16 %v698
        %v715 = vpack.c.b16 %v708, %v707
        %v716 = vpack.c.b16 %v710, %v709
        %v717 = vpack.c.b16 %v712, %v711
        %v718 = vpack.c.b16 %v714, %v713
        %v720 = vsel %vm607, %v715, 0
        %v723 = vsel %vm607, %v716, 0
        %v726 = vsel %vm607, %v717, 0
        %v729 = vsel %vm607, %v718, 0
        %731 = vmatprep.subr.bf16.mxu0 0
        %732 = vmatpush1.bf16.msra.mxu0 0
        %733 = vmatprep.subr.bf16.mxu0 0
        %734 = vmatpush1.bf16.msra.mxu0 0
        %735 = vmatprep.subr.bf16.mxu0 0
        %736 = vmatpush1.bf16.msra.mxu0 0
        %737 = vmatprep.subr.bf16.mxu0 0
        %738 = vmatpush1.bf16.msra.mxu0 0
        %739 = vmatprep.subr.bf16.mxu0 0
        %740 = vmatpush1.bf16.msra.mxu0 %v602
        %741 = vmatprep.subr.bf16.mxu0 0
        %742 = vmatpush1.bf16.msra.mxu0 %v601
        %743 = vmatprep.subr.bf16.mxu0 0
        %744 = vmatpush1.bf16.msra.mxu0 %v600
        %745 = vmatprep.subr.bf16.mxu0 0
        %746 = vmatpush1.bf16.msra.mxu0 %v599
        %747 = vmatprep.subr.bf16.mxu0 0
        %748 = vmatpush2.bf16.msra.mxu0 0
        %749 = vmatprep.subr.bf16.mxu0 0
        %750 = vmatpush2.bf16.msra.mxu0 0
        %751 = vmatprep.subr.bf16.mxu0 0
        %752 = vmatpush2.bf16.msra.mxu0 0
        %753 = vmatprep.subr.bf16.mxu0 0
        %754 = vmatpush2.bf16.msra.mxu0 0
        %755 = vmatprep.subr.bf16.mxu0 0
        %756 = vmatpush2.bf16.msra.mxu0 0
        %757 = vmatprep.subr.bf16.mxu0 0
        %758 = vmatpush2.bf16.msra.mxu0 0
        %759 = vmatprep.subr.bf16.mxu0 0
        %760 = vmatpush2.bf16.msra.mxu0 0
        %761 = vmatprep.subr.bf16.mxu0 0
        %762 = vmatpush2.bf16.msra.mxu0 0
        %763 = vmatprep.mubr.bf16.mxu0 0
        %764 = vmatmul.mubr.bf16.gmra.mxu0 %v720
        %v765 = vpop.f32.mrf.mxu0
        %v766 = vadd.f32 0.0, %v765
        %v767 = vpop.f32.mrf.mxu0
        %v768 = vpop.f32.mrf.mxu0
        %v769 = vadd.f32 0.0, %v768
        %v770 = vpop.f32.mrf.mxu0
        %771 = vmatprep.mubr.bf16.mxu0 0
        %772 = vmatmul.mubr.bf16.gmra.mxu0 %v723
        %v773 = vpop.f32.mrf.mxu0
        %v774 = vadd.f32 0.0, %v773
        %v775 = vpop.f32.mrf.mxu0
        %v776 = vpop.f32.mrf.mxu0
        %v777 = vadd.f32 0.0, %v776
        %v778 = vpop.f32.mrf.mxu0
        %779 = vmatprep.mubr.bf16.mxu0 0
        %780 = vmatmul.mubr.bf16.gmra.mxu0 %v726
        %v781 = vpop.f32.mrf.mxu0
        %v782 = vadd.f32 0.0, %v781
        %v783 = vpop.f32.mrf.mxu0
        %v784 = vpop.f32.mrf.mxu0
        %v785 = vadd.f32 0.0, %v784
        %v786 = vpop.f32.mrf.mxu0
        %787 = vmatprep.mubr.bf16.mxu0 0
        %788 = vmatmul.mubr.bf16.gmra.mxu0 %v729
        %v789 = vpop.f32.mrf.mxu0
        %v790 = vadd.f32 0.0, %v789
        %v791 = vpop.f32.mrf.mxu0
        %v792 = vpop.f32.mrf.mxu0
        %v793 = vadd.f32 0.0, %v792
        %v794 = vpop.f32.mrf.mxu0
        %795 = vdwg.mxu0
        %v796 = vpack.c.bf16 %v769, %v766
        %v797 = vpack.c.bf16 %v777, %v774
        %v798 = vpack.c.bf16 %v785, %v782
        %v799 = vpack.c.bf16 %v793, %v790
        %s800 = scalar_lea.vmem %s2, 2
        %v801 = vld [vmem:[%s800] sm:$0x3]
        %vm802 = vcmask 23552
        %v804 = vsel %vm802, %v796, 0
        %v807 = vsel %vm802, %v797, 0
        %v810 = vsel %vm802, %v798, 0
        %v813 = vsel %vm802, %v799, 0
        %vm815 = vcmask 1040384
        %vm816 = vcmask 1041408
        %v817 = vsel %vm815, 4294967295, 65535
        %v818 = vsel %vm816, %v817, 0
        %v820 = vand.u32 %v801, %v818
        %822 = vmatprep.subr.bf16.mxu0 0
        %823 = vmatpush1.bf16.msra.mxu0 0
        %824 = vmatprep.subr.bf16.mxu0 0
        %825 = vmatpush1.bf16.msra.mxu0 0
        %826 = vmatprep.subr.bf16.mxu0 0
        %827 = vmatpush1.bf16.msra.mxu0 0
        %828 = vmatprep.subr.bf16.mxu0 0
        %829 = vmatpush1.bf16.msra.mxu0 0
        %830 = vmatprep.subr.bf16.mxu0 0
        %831 = vmatpush1.bf16.msra.mxu0 0
        %832 = vmatprep.subr.bf16.mxu0 0
        %833 = vmatpush1.bf16.msra.mxu0 0
        %834 = vmatprep.subr.bf16.mxu0 0
        %835 = vmatpush1.bf16.msra.mxu0 0
        %836 = vmatprep.subr.bf16.mxu0 0
        %837 = vmatpush1.bf16.msra.mxu0 %v820
        %838 = vmatprep.subr.bf16.mxu0 0
        %839 = vmatpush2.bf16.msra.mxu0 0
        %840 = vmatprep.subr.bf16.mxu0 0
        %841 = vmatpush2.bf16.msra.mxu0 0
        %842 = vmatprep.subr.bf16.mxu0 0
        %843 = vmatpush2.bf16.msra.mxu0 0
        %844 = vmatprep.subr.bf16.mxu0 0
        %845 = vmatpush2.bf16.msra.mxu0 0
        %846 = vmatprep.subr.bf16.mxu0 0
        %847 = vmatpush2.bf16.msra.mxu0 0
        %848 = vmatprep.subr.bf16.mxu0 0
        %849 = vmatpush2.bf16.msra.mxu0 0
        %850 = vmatprep.subr.bf16.mxu0 0
        %851 = vmatpush2.bf16.msra.mxu0 0
        %852 = vmatprep.subr.bf16.mxu0 0
        %853 = vmatpush2.bf16.msra.mxu0 0
        %854 = vmatprep.mubr.bf16.mxu0 0
        %855 = vmatmul.mubr.bf16.gmra.mxu0 %v804
        %v856 = vpop.f32.mrf.mxu0
        %v857 = vadd.f32 0.0, %v856
        %v858 = vpop.f32.mrf.mxu0
        %v859 = vpop.f32.mrf.mxu0
        %v860 = vadd.f32 0.0, %v859
        %v861 = vpop.f32.mrf.mxu0
        %862 = vmatprep.mubr.bf16.mxu0 0
        %863 = vmatmul.mubr.bf16.gmra.mxu0 %v807
        %v864 = vpop.f32.mrf.mxu0
        %v865 = vadd.f32 0.0, %v864
        %v866 = vpop.f32.mrf.mxu0
        %v867 = vpop.f32.mrf.mxu0
        %v868 = vadd.f32 0.0, %v867
        %v869 = vpop.f32.mrf.mxu0
        %870 = vmatprep.mubr.bf16.mxu0 0
        %871 = vmatmul.mubr.bf16.gmra.mxu0 %v810
        %v872 = vpop.f32.mrf.mxu0
        %v873 = vadd.f32 0.0, %v872
        %v874 = vpop.f32.mrf.mxu0
        %v875 = vpop.f32.mrf.mxu0
        %v876 = vadd.f32 0.0, %v875
        %v877 = vpop.f32.mrf.mxu0
        %878 = vmatprep.mubr.bf16.mxu0 0
        %879 = vmatmul.mubr.bf16.gmra.mxu0 %v813
        %v880 = vpop.f32.mrf.mxu0
        %v881 = vadd.f32 0.0, %v880
        %v882 = vpop.f32.mrf.mxu0
        %v883 = vpop.f32.mrf.mxu0
        %v884 = vadd.f32 0.0, %v883
        %v885 = vpop.f32.mrf.mxu0
        %886 = vdwg.mxu0
        %v888 = vsel %vm802, %v685, 0
        %v891 = vsel %vm802, %v686, 0
        %v894 = vsel %vm802, %v687, 0
        %v897 = vsel %vm802, %v688, 0
        %v900 = vand.u32 %v689, %v818
        %902 = vmatprep.subr.bf16.mxu0 0
        %903 = vmatpush1.bf16.msra.mxu0 0
        %904 = vmatprep.subr.bf16.mxu0 0
        %905 = vmatpush1.bf16.msra.mxu0 0
        %906 = vmatprep.subr.bf16.mxu0 0
        %907 = vmatpush1.bf16.msra.mxu0 0
        %908 = vmatprep.subr.bf16.mxu0 0
        %909 = vmatpush1.bf16.msra.mxu0 0
        %910 = vmatprep.subr.bf16.mxu0 0
        %911 = vmatpush1.bf16.msra.mxu0 0
        %912 = vmatprep.subr.bf16.mxu0 0
        %913 = vmatpush1.bf16.msra.mxu0 0
        %914 = vmatprep.subr.bf16.mxu0 0
        %915 = vmatpush1.bf16.msra.mxu0 0
        %916 = vmatprep.subr.bf16.mxu0 0
        %917 = vmatpush1.bf16.msra.mxu0 %v900
        %918 = vmatprep.subr.bf16.mxu0 0
        %919 = vmatpush2.bf16.msra.mxu0 0
        %920 = vmatprep.subr.bf16.mxu0 0
        %921 = vmatpush2.bf16.msra.mxu0 0
        %922 = vmatprep.subr.bf16.mxu0 0
        %923 = vmatpush2.bf16.msra.mxu0 0
        %924 = vmatprep.subr.bf16.mxu0 0
        %925 = vmatpush2.bf16.msra.mxu0 0
        %926 = vmatprep.subr.bf16.mxu0 0
        %927 = vmatpush2.bf16.msra.mxu0 0
        %928 = vmatprep.subr.bf16.mxu0 0
        %929 = vmatpush2.bf16.msra.mxu0 0
        %930 = vmatprep.subr.bf16.mxu0 0
        %931 = vmatpush2.bf16.msra.mxu0 0
        %932 = vmatprep.subr.bf16.mxu0 0
        %933 = vmatpush2.bf16.msra.mxu0 0
        %934 = vmatprep.mubr.bf16.mxu0 0
        %935 = vmatmul.mubr.bf16.gmra.mxu0 %v888
        %v936 = vpop.f32.mrf.mxu0
        %v937 = vadd.f32 %v857, %v936
        %v938 = vpop.f32.mrf.mxu0
        %v939 = vpop.f32.mrf.mxu0
        %v940 = vadd.f32 %v860, %v939
        %v941 = vpop.f32.mrf.mxu0
        %942 = vmatprep.mubr.bf16.mxu0 0
        %943 = vmatmul.mubr.bf16.gmra.mxu0 %v891
        %v944 = vpop.f32.mrf.mxu0
        %v945 = vadd.f32 %v865, %v944
        %v946 = vpop.f32.mrf.mxu0
        %v947 = vpop.f32.mrf.mxu0
        %v948 = vadd.f32 %v868, %v947
        %v949 = vpop.f32.mrf.mxu0
        %950 = vmatprep.mubr.bf16.mxu0 0
        %951 = vmatmul.mubr.bf16.gmra.mxu0 %v894
        %v952 = vpop.f32.mrf.mxu0
        %v953 = vadd.f32 %v873, %v952
        %v954 = vpop.f32.mrf.mxu0
        %v955 = vpop.f32.mrf.mxu0
        %v956 = vadd.f32 %v876, %v955
        %v957 = vpop.f32.mrf.mxu0
        %958 = vmatprep.mubr.bf16.mxu0 0
        %959 = vmatmul.mubr.bf16.gmra.mxu0 %v897
        %v960 = vpop.f32.mrf.mxu0
        %v961 = vadd.f32 %v881, %v960
        %v962 = vpop.f32.mrf.mxu0
        %v963 = vpop.f32.mrf.mxu0
        %v964 = vadd.f32 %v884, %v963
        %v965 = vpop.f32.mrf.mxu0
        %966 = vdwg.mxu0
        %s967 = scalar_lea.vmem %s1, 64
        %v968 = vld [vmem:[%s967] sm:$0xf]
        %v969 = vld [vmem:[%s967 + $0x4] sm:$0xf]
        %v970 = vld [vmem:[%s967 + $0x8] sm:$0xf]
        %v971 = vld [vmem:[%s967 + $0xc] sm:$0xf]
        %v972 = vld [vmem:[%s967 + $0x10] sm:$0xf]
        %v973 = vld [vmem:[%s967 + $0x14] sm:$0xf]
        %v974 = vld [vmem:[%s967 + $0x18] sm:$0xf]
        %v975 = vld [vmem:[%s967 + $0x1c] sm:$0xf]
        %v984 = vunpack.c.l.b16 %v968
        %v985 = vunpack.c.l.b16 %v969
        %v986 = vunpack.c.l.b16 %v970
        %v987 = vunpack.c.l.b16 %v971
        %v988 = vunpack.c.l.b16 %v972
        %v989 = vunpack.c.l.b16 %v973
        %v990 = vunpack.c.l.b16 %v974
        %v991 = vunpack.c.l.b16 %v975
        %v992 = vpack.c.b16 %v985, %v984
        %v993 = vpack.c.b16 %v987, %v986
        %v994 = vpack.c.b16 %v989, %v988
        %v995 = vpack.c.b16 %v991, %v990
        %v997 = vsel %vm607, %v992, 0
        %v1000 = vsel %vm607, %v993, 0
        %v1003 = vsel %vm607, %v994, 0
        %v1006 = vsel %vm607, %v995, 0
        %1008 = vmatprep.subr.bf16.mxu0 0
        %1009 = vmatpush1.bf16.msra.mxu0 0
        %1010 = vmatprep.subr.bf16.mxu0 0
        %1011 = vmatpush1.bf16.msra.mxu0 0
        %1012 = vmatprep.subr.bf16.mxu0 0
        %1013 = vmatpush1.bf16.msra.mxu0 0
        %1014 = vmatprep.subr.bf16.mxu0 0
        %1015 = vmatpush1.bf16.msra.mxu0 0
        %1016 = vmatprep.subr.bf16.mxu0 0
        %1017 = vmatpush1.bf16.msra.mxu0 %v602
        %1018 = vmatprep.subr.bf16.mxu0 0
        %1019 = vmatpush1.bf16.msra.mxu0 %v601
        %1020 = vmatprep.subr.bf16.mxu0 0
        %1021 = vmatpush1.bf16.msra.mxu0 %v600
        %1022 = vmatprep.subr.bf16.mxu0 0
        %1023 = vmatpush1.bf16.msra.mxu0 %v599
        %1024 = vmatprep.subr.bf16.mxu0 0
        %1025 = vmatpush2.bf16.msra.mxu0 0
        %1026 = vmatprep.subr.bf16.mxu0 0
        %1027 = vmatpush2.bf16.msra.mxu0 0
        %1028 = vmatprep.subr.bf16.mxu0 0
        %1029 = vmatpush2.bf16.msra.mxu0 0
        %1030 = vmatprep.subr.bf16.mxu0 0
        %1031 = vmatpush2.bf16.msra.mxu0 0
        %1032 = vmatprep.subr.bf16.mxu0 0
        %1033 = vmatpush2.bf16.msra.mxu0 0
        %1034 = vmatprep.subr.bf16.mxu0 0
        %1035 = vmatpush2.bf16.msra.mxu0 0
        %1036 = vmatprep.subr.bf16.mxu0 0
        %1037 = vmatpush2.bf16.msra.mxu0 0
        %1038 = vmatprep.subr.bf16.mxu0 0
        %1039 = vmatpush2.bf16.msra.mxu0 0
        %1040 = vmatprep.mubr.bf16.mxu0 0
        %1041 = vmatmul.mubr.bf16.gmra.mxu0 %v997
        %v1042 = vpop.f32.mrf.mxu0
        %v1043 = vadd.f32 0.0, %v1042
        %v1044 = vpop.f32.mrf.mxu0
        %v1045 = vpop.f32.mrf.mxu0
        %v1046 = vadd.f32 0.0, %v1045
        %v1047 = vpop.f32.mrf.mxu0
        %1048 = vmatprep.mubr.bf16.mxu0 0
        %1049 = vmatmul.mubr.bf16.gmra.mxu0 %v1000
        %v1050 = vpop.f32.mrf.mxu0
        %v1051 = vadd.f32 0.0, %v1050
        %v1052 = vpop.f32.mrf.mxu0
        %v1053 = vpop.f32.mrf.mxu0
        %v1054 = vadd.f32 0.0, %v1053
        %v1055 = vpop.f32.mrf.mxu0
        %1056 = vmatprep.mubr.bf16.mxu0 0
        %1057 = vmatmul.mubr.bf16.gmra.mxu0 %v1003
        %v1058 = vpop.f32.mrf.mxu0
        %v1059 = vadd.f32 0.0, %v1058
        %v1060 = vpop.f32.mrf.mxu0
        %v1061 = vpop.f32.mrf.mxu0
        %v1062 = vadd.f32 0.0, %v1061
        %v1063 = vpop.f32.mrf.mxu0
        %1064 = vmatprep.mubr.bf16.mxu0 0
        %1065 = vmatmul.mubr.bf16.gmra.mxu0 %v1006
        %v1066 = vpop.f32.mrf.mxu0
        %v1067 = vadd.f32 0.0, %v1066
        %v1068 = vpop.f32.mrf.mxu0
        %v1069 = vpop.f32.mrf.mxu0
        %v1070 = vadd.f32 0.0, %v1069
        %v1071 = vpop.f32.mrf.mxu0
        %1072 = vdwg.mxu0
        %v1073 = vpack.c.bf16 %v1046, %v1043
        %v1074 = vpack.c.bf16 %v1054, %v1051
        %v1075 = vpack.c.bf16 %v1062, %v1059
        %v1076 = vpack.c.bf16 %v1070, %v1067
        %s1077 = scalar_lea.vmem %s2, 4
        %v1078 = vld [vmem:[%s1077] sm:$0x3]
        %v1080 = vsel %vm802, %v1073, 0
        %v1083 = vsel %vm802, %v1074, 0
        %v1086 = vsel %vm802, %v1075, 0
        %v1089 = vsel %vm802, %v1076, 0
        %v1092 = vand.u32 %v1078, %v818
        %1094 = vmatprep.subr.bf16.mxu0 0
        %1095 = vmatpush1.bf16.msra.mxu0 0
        %1096 = vmatprep.subr.bf16.mxu0 0
        %1097 = vmatpush1.bf16.msra.mxu0 0
        %1098 = vmatprep.subr.bf16.mxu0 0
        %1099 = vmatpush1.bf16.msra.mxu0 0
        %1100 = vmatprep.subr.bf16.mxu0 0
        %1101 = vmatpush1.bf16.msra.mxu0 0
        %1102 = vmatprep.subr.bf16.mxu0 0
        %1103 = vmatpush1.bf16.msra.mxu0 0
        %1104 = vmatprep.subr.bf16.mxu0 0
        %1105 = vmatpush1.bf16.msra.mxu0 0
        %1106 = vmatprep.subr.bf16.mxu0 0
        %1107 = vmatpush1.bf16.msra.mxu0 0
        %1108 = vmatprep.subr.bf16.mxu0 0
        %1109 = vmatpush1.bf16.msra.mxu0 %v1092
        %1110 = vmatprep.subr.bf16.mxu0 0
        %1111 = vmatpush2.bf16.msra.mxu0 0
        %1112 = vmatprep.subr.bf16.mxu0 0
        %1113 = vmatpush2.bf16.msra.mxu0 0
        %1114 = vmatprep.subr.bf16.mxu0 0
        %1115 = vmatpush2.bf16.msra.mxu0 0
        %1116 = vmatprep.subr.bf16.mxu0 0
        %1117 = vmatpush2.bf16.msra.mxu0 0
        %1118 = vmatprep.subr.bf16.mxu0 0
        %1119 = vmatpush2.bf16.msra.mxu0 0
        %1120 = vmatprep.subr.bf16.mxu0 0
        %1121 = vmatpush2.bf16.msra.mxu0 0
        %1122 = vmatprep.subr.bf16.mxu0 0
        %1123 = vmatpush2.bf16.msra.mxu0 0
        %1124 = vmatprep.subr.bf16.mxu0 0
        %1125 = vmatpush2.bf16.msra.mxu0 0
        %1126 = vmatprep.mubr.bf16.mxu0 0
        %1127 = vmatmul.mubr.bf16.gmra.mxu0 %v1080
        %v1128 = vpop.f32.mrf.mxu0
        %v1129 = vadd.f32 0.0, %v1128
        %v1130 = vpop.f32.mrf.mxu0
        %v1131 = vpop.f32.mrf.mxu0
        %v1132 = vadd.f32 0.0, %v1131
        %v1133 = vpop.f32.mrf.mxu0
        %1134 = vmatprep.mubr.bf16.mxu0 0
        %1135 = vmatmul.mubr.bf16.gmra.mxu0 %v1083
        %v1136 = vpop.f32.mrf.mxu0
        %v1137 = vadd.f32 0.0, %v1136
        %v1138 = vpop.f32.mrf.mxu0
        %v1139 = vpop.f32.mrf.mxu0
        %v1140 = vadd.f32 0.0, %v1139
        %v1141 = vpop.f32.mrf.mxu0
        %1142 = vmatprep.mubr.bf16.mxu0 0
        %1143 = vmatmul.mubr.bf16.gmra.mxu0 %v1086
        %v1144 = vpop.f32.mrf.mxu0
        %v1145 = vadd.f32 0.0, %v1144
        %v1146 = vpop.f32.mrf.mxu0
        %v1147 = vpop.f32.mrf.mxu0
        %v1148 = vadd.f32 0.0, %v1147
        %v1149 = vpop.f32.mrf.mxu0
        %1150 = vmatprep.mubr.bf16.mxu0 0
        %1151 = vmatmul.mubr.bf16.gmra.mxu0 %v1089
        %v1152 = vpop.f32.mrf.mxu0
        %v1153 = vadd.f32 0.0, %v1152
        %v1154 = vpop.f32.mrf.mxu0
        %v1155 = vpop.f32.mrf.mxu0
        %v1156 = vadd.f32 0.0, %v1155
        %v1157 = vpop.f32.mrf.mxu0
        %1158 = vdwg.mxu0
        %v1159 = vadd.f32 %v937, %v1129
        %v1160 = vadd.f32 %v940, %v1132
        %v1161 = vadd.f32 %v945, %v1137
        %v1162 = vadd.f32 %v948, %v1140
        %v1163 = vadd.f32 %v953, %v1145
        %v1164 = vadd.f32 %v956, %v1148
        %v1165 = vadd.f32 %v961, %v1153
        %v1166 = vadd.f32 %v964, %v1156
        %s1167 = scalar_lea.vmem %s1, 96
        %v1168 = vld [vmem:[%s1167] sm:$0xf]
        %v1169 = vld [vmem:[%s1167 + $0x4] sm:$0xf]
        %v1170 = vld [vmem:[%s1167 + $0x8] sm:$0xf]
        %v1171 = vld [vmem:[%s1167 + $0xc] sm:$0xf]
        %v1172 = vld [vmem:[%s1167 + $0x10] sm:$0xf]
        %v1173 = vld [vmem:[%s1167 + $0x14] sm:$0xf]
        %v1174 = vld [vmem:[%s1167 + $0x18] sm:$0xf]
        %v1175 = vld [vmem:[%s1167 + $0x1c] sm:$0xf]
        %v1184 = vunpack.c.l.b16 %v1168
        %v1185 = vunpack.c.l.b16 %v1169
        %v1186 = vunpack.c.l.b16 %v1170
        %v1187 = vunpack.c.l.b16 %v1171
        %v1188 = vunpack.c.l.b16 %v1172
        %v1189 = vunpack.c.l.b16 %v1173
        %v1190 = vunpack.c.l.b16 %v1174
        %v1191 = vunpack.c.l.b16 %v1175
        %v1192 = vpack.c.b16 %v1185, %v1184
        %v1193 = vpack.c.b16 %v1187, %v1186
        %v1194 = vpack.c.b16 %v1189, %v1188
        %v1195 = vpack.c.b16 %v1191, %v1190
        %v1197 = vsel %vm607, %v1192, 0
        %v1200 = vsel %vm607, %v1193, 0
        %v1203 = vsel %vm607, %v1194, 0
        %v1206 = vsel %vm607, %v1195, 0
        %1208 = vmatprep.subr.bf16.mxu0 0
        %1209 = vmatpush1.bf16.msra.mxu0 0
        %1210 = vmatprep.subr.bf16.mxu0 0
        %1211 = vmatpush1.bf16.msra.mxu0 0
        %1212 = vmatprep.subr.bf16.mxu0 0
        %1213 = vmatpush1.bf16.msra.mxu0 0
        %1214 = vmatprep.subr.bf16.mxu0 0
        %1215 = vmatpush1.bf16.msra.mxu0 0
        %1216 = vmatprep.subr.bf16.mxu0 0
        %1217 = vmatpush1.bf16.msra.mxu0 %v602
        %1218 = vmatprep.subr.bf16.mxu0 0
        %1219 = vmatpush1.bf16.msra.mxu0 %v601
        %1220 = vmatprep.subr.bf16.mxu0 0
        %1221 = vmatpush1.bf16.msra.mxu0 %v600
        %1222 = vmatprep.subr.bf16.mxu0 0
        %1223 = vmatpush1.bf16.msra.mxu0 %v599
        %1224 = vmatprep.subr.bf16.mxu0 0
        %1225 = vmatpush2.bf16.msra.mxu0 0
        %1226 = vmatprep.subr.bf16.mxu0 0
        %1227 = vmatpush2.bf16.msra.mxu0 0
        %1228 = vmatprep.subr.bf16.mxu0 0
        %1229 = vmatpush2.bf16.msra.mxu0 0
        %1230 = vmatprep.subr.bf16.mxu0 0
        %1231 = vmatpush2.bf16.msra.mxu0 0
        %1232 = vmatprep.subr.bf16.mxu0 0
        %1233 = vmatpush2.bf16.msra.mxu0 0
        %1234 = vmatprep.subr.bf16.mxu0 0
        %1235 = vmatpush2.bf16.msra.mxu0 0
        %1236 = vmatprep.subr.bf16.mxu0 0
        %1237 = vmatpush2.bf16.msra.mxu0 0
        %1238 = vmatprep.subr.bf16.mxu0 0
        %1239 = vmatpush2.bf16.msra.mxu0 0
        %1240 = vmatprep.mubr.bf16.mxu0 0
        %1241 = vmatmul.mubr.bf16.gmra.mxu0 %v1197
        %v1242 = vpop.f32.mrf.mxu0
        %v1243 = vadd.f32 0.0, %v1242
        %v1244 = vpop.f32.mrf.mxu0
        %v1245 = vpop.f32.mrf.mxu0
        %v1246 = vadd.f32 0.0, %v1245
        %v1247 = vpop.f32.mrf.mxu0
        %1248 = vmatprep.mubr.bf16.mxu0 0
        %1249 = vmatmul.mubr.bf16.gmra.mxu0 %v1200
        %v1250 = vpop.f32.mrf.mxu0
        %v1251 = vadd.f32 0.0, %v1250
        %v1252 = vpop.f32.mrf.mxu0
        %v1253 = vpop.f32.mrf.mxu0
        %v1254 = vadd.f32 0.0, %v1253
        %v1255 = vpop.f32.mrf.mxu0
        %1256 = vmatprep.mubr.bf16.mxu0 0
        %1257 = vmatmul.mubr.bf16.gmra.mxu0 %v1203
        %v1258 = vpop.f32.mrf.mxu0
        %v1259 = vadd.f32 0.0, %v1258
        %v1260 = vpop.f32.mrf.mxu0
        %v1261 = vpop.f32.mrf.mxu0
        %v1262 = vadd.f32 0.0, %v1261
        %v1263 = vpop.f32.mrf.mxu0
        %1264 = vmatprep.mubr.bf16.mxu0 0
        %1265 = vmatmul.mubr.bf16.gmra.mxu0 %v1206
        %v1266 = vpop.f32.mrf.mxu0
        %v1267 = vadd.f32 0.0, %v1266
        %v1268 = vpop.f32.mrf.mxu0
        %v1269 = vpop.f32.mrf.mxu0
        %v1270 = vadd.f32 0.0, %v1269
        %v1271 = vpop.f32.mrf.mxu0
        %1272 = vdwg.mxu0
        %v1273 = vpack.c.bf16 %v1246, %v1243
        %v1274 = vpack.c.bf16 %v1254, %v1251
        %v1275 = vpack.c.bf16 %v1262, %v1259
        %v1276 = vpack.c.bf16 %v1270, %v1267
        %s1277 = scalar_lea.vmem %s2, 6
        %v1278 = vld [vmem:[%s1277] sm:$0x3]
        %v1280 = vsel %vm802, %v1273, 0
        %v1283 = vsel %vm802, %v1274, 0
        %v1286 = vsel %vm802, %v1275, 0
        %v1289 = vsel %vm802, %v1276, 0
        %v1292 = vand.u32 %v1278, %v818
        %1294 = vmatprep.subr.bf16.mxu0 0
        %1295 = vmatpush1.bf16.msra.mxu0 0
        %1296 = vmatprep.subr.bf16.mxu0 0
        %1297 = vmatpush1.bf16.msra.mxu0 0
        %1298 = vmatprep.subr.bf16.mxu0 0
        %1299 = vmatpush1.bf16.msra.mxu0 0
        %1300 = vmatprep.subr.bf16.mxu0 0
        %1301 = vmatpush1.bf16.msra.mxu0 0
        %1302 = vmatprep.subr.bf16.mxu0 0
        %1303 = vmatpush1.bf16.msra.mxu0 0
        %1304 = vmatprep.subr.bf16.mxu0 0
        %1305 = vmatpush1.bf16.msra.mxu0 0
        %1306 = vmatprep.subr.bf16.mxu0 0
        %1307 = vmatpush1.bf16.msra.mxu0 0
        %1308 = vmatprep.subr.bf16.mxu0 0
        %1309 = vmatpush1.bf16.msra.mxu0 %v1292
        %1310 = vmatprep.subr.bf16.mxu0 0
        %1311 = vmatpush2.bf16.msra.mxu0 0
        %1312 = vmatprep.subr.bf16.mxu0 0
        %1313 = vmatpush2.bf16.msra.mxu0 0
        %1314 = vmatprep.subr.bf16.mxu0 0
        %1315 = vmatpush2.bf16.msra.mxu0 0
        %1316 = vmatprep.subr.bf16.mxu0 0
        %1317 = vmatpush2.bf16.msra.mxu0 0
        %1318 = vmatprep.subr.bf16.mxu0 0
        %1319 = vmatpush2.bf16.msra.mxu0 0
        %1320 = vmatprep.subr.bf16.mxu0 0
        %1321 = vmatpush2.bf16.msra.mxu0 0
        %1322 = vmatprep.subr.bf16.mxu0 0
        %1323 = vmatpush2.bf16.msra.mxu0 0
        %1324 = vmatprep.subr.bf16.mxu0 0
        %1325 = vmatpush2.bf16.msra.mxu0 0
        %1326 = vmatprep.mubr.bf16.mxu0 0
        %1327 = vmatmul.mubr.bf16.gmra.mxu0 %v1280
        %v1328 = vpop.f32.mrf.mxu0
        %v1329 = vadd.f32 0.0, %v1328
        %v1330 = vpop.f32.mrf.mxu0
        %v1331 = vpop.f32.mrf.mxu0
        %v1332 = vadd.f32 0.0, %v1331
        %v1333 = vpop.f32.mrf.mxu0
        %1334 = vmatprep.mubr.bf16.mxu0 0
        %1335 = vmatmul.mubr.bf16.gmra.mxu0 %v1283
        %v1336 = vpop.f32.mrf.mxu0
        %v1337 = vadd.f32 0.0, %v1336
        %v1338 = vpop.f32.mrf.mxu0
        %v1339 = vpop.f32.mrf.mxu0
        %v1340 = vadd.f32 0.0, %v1339
        %v1341 = vpop.f32.mrf.mxu0
        %1342 = vmatprep.mubr.bf16.mxu0 0
        %1343 = vmatmul.mubr.bf16.gmra.mxu0 %v1286
        %v1344 = vpop.f32.mrf.mxu0
        %v1345 = vadd.f32 0.0, %v1344
        %v1346 = vpop.f32.mrf.mxu0
        %v1347 = vpop.f32.mrf.mxu0
        %v1348 = vadd.f32 0.0, %v1347
        %v1349 = vpop.f32.mrf.mxu0
        %1350 = vmatprep.mubr.bf16.mxu0 0
        %1351 = vmatmul.mubr.bf16.gmra.mxu0 %v1289
        %v1352 = vpop.f32.mrf.mxu0
        %v1353 = vadd.f32 0.0, %v1352
        %v1354 = vpop.f32.mrf.mxu0
        %v1355 = vpop.f32.mrf.mxu0
        %v1356 = vadd.f32 0.0, %v1355
        %v1357 = vpop.f32.mrf.mxu0
        %1358 = vdwg.mxu0
        %v1359 = vadd.f32 %v1159, %v1329
        %v1360 = vadd.f32 %v1160, %v1332
        %v1361 = vadd.f32 %v1161, %v1337
        %v1362 = vadd.f32 %v1162, %v1340
        %v1363 = vadd.f32 %v1163, %v1345
        %v1364 = vadd.f32 %v1164, %v1348
        %v1365 = vadd.f32 %v1165, %v1353
        %v1366 = vadd.f32 %v1166, %v1356
        %s1367 = scalar_lea.vmem %s1, 128
        %v1368 = vld [vmem:[%s1367] sm:$0xf]
        %v1369 = vld [vmem:[%s1367 + $0x4] sm:$0xf]
        %v1370 = vld [vmem:[%s1367 + $0x8] sm:$0xf]
        %v1371 = vld [vmem:[%s1367 + $0xc] sm:$0xf]
        %v1372 = vld [vmem:[%s1367 + $0x10] sm:$0xf]
        %v1373 = vld [vmem:[%s1367 + $0x14] sm:$0xf]
        %v1374 = vld [vmem:[%s1367 + $0x18] sm:$0xf]
        %v1375 = vld [vmem:[%s1367 + $0x1c] sm:$0xf]
        %v1384 = vunpack.c.l.b16 %v1368
        %v1385 = vunpack.c.l.b16 %v1369
        %v1386 = vunpack.c.l.b16 %v1370
        %v1387 = vunpack.c.l.b16 %v1371
        %v1388 = vunpack.c.l.b16 %v1372
        %v1389 = vunpack.c.l.b16 %v1373
        %v1390 = vunpack.c.l.b16 %v1374
        %v1391 = vunpack.c.l.b16 %v1375
        %v1392 = vpack.c.b16 %v1385, %v1384
        %v1393 = vpack.c.b16 %v1387, %v1386
        %v1394 = vpack.c.b16 %v1389, %v1388
        %v1395 = vpack.c.b16 %v1391, %v1390
        %v1397 = vsel %vm607, %v1392, 0
        %v1400 = vsel %vm607, %v1393, 0
        %v1403 = vsel %vm607, %v1394, 0
        %v1406 = vsel %vm607, %v1395, 0
        %1408 = vmatprep.subr.bf16.mxu0 0
        %1409 = vmatpush1.bf16.msra.mxu0 0
        %1410 = vmatprep.subr.bf16.mxu0 0
        %1411 = vmatpush1.bf16.msra.mxu0 0
        %1412 = vmatprep.subr.bf16.mxu0 0
        %1413 = vmatpush1.bf16.msra.mxu0 0
        %1414 = vmatprep.subr.bf16.mxu0 0
        %1415 = vmatpush1.bf16.msra.mxu0 0
        %1416 = vmatprep.subr.bf16.mxu0 0
        %1417 = vmatpush1.bf16.msra.mxu0 %v602
        %1418 = vmatprep.subr.bf16.mxu0 0
        %1419 = vmatpush1.bf16.msra.mxu0 %v601
        %1420 = vmatprep.subr.bf16.mxu0 0
        %1421 = vmatpush1.bf16.msra.mxu0 %v600
        %1422 = vmatprep.subr.bf16.mxu0 0
        %1423 = vmatpush1.bf16.msra.mxu0 %v599
        %1424 = vmatprep.subr.bf16.mxu0 0
        %1425 = vmatpush2.bf16.msra.mxu0 0
        %1426 = vmatprep.subr.bf16.mxu0 0
        %1427 = vmatpush2.bf16.msra.mxu0 0
        %1428 = vmatprep.subr.bf16.mxu0 0
        %1429 = vmatpush2.bf16.msra.mxu0 0
        %1430 = vmatprep.subr.bf16.mxu0 0
        %1431 = vmatpush2.bf16.msra.mxu0 0
        %1432 = vmatprep.subr.bf16.mxu0 0
        %1433 = vmatpush2.bf16.msra.mxu0 0
        %1434 = vmatprep.subr.bf16.mxu0 0
        %1435 = vmatpush2.bf16.msra.mxu0 0
        %1436 = vmatprep.subr.bf16.mxu0 0
        %1437 = vmatpush2.bf16.msra.mxu0 0
        %1438 = vmatprep.subr.bf16.mxu0 0
        %1439 = vmatpush2.bf16.msra.mxu0 0
        %1440 = vmatprep.mubr.bf16.mxu0 0
        %1441 = vmatmul.mubr.bf16.gmra.mxu0 %v1397
        %v1442 = vpop.f32.mrf.mxu0
        %v1443 = vadd.f32 0.0, %v1442
        %v1444 = vpop.f32.mrf.mxu0
        %v1445 = vpop.f32.mrf.mxu0
        %v1446 = vadd.f32 0.0, %v1445
        %v1447 = vpop.f32.mrf.mxu0
        %1448 = vmatprep.mubr.bf16.mxu0 0
        %1449 = vmatmul.mubr.bf16.gmra.mxu0 %v1400
        %v1450 = vpop.f32.mrf.mxu0
        %v1451 = vadd.f32 0.0, %v1450
        %v1452 = vpop.f32.mrf.mxu0
        %v1453 = vpop.f32.mrf.mxu0
        %v1454 = vadd.f32 0.0, %v1453
        %v1455 = vpop.f32.mrf.mxu0
        %1456 = vmatprep.mubr.bf16.mxu0 0
        %1457 = vmatmul.mubr.bf16.gmra.mxu0 %v1403
        %v1458 = vpop.f32.mrf.mxu0
        %v1459 = vadd.f32 0.0, %v1458
        %v1460 = vpop.f32.mrf.mxu0
        %v1461 = vpop.f32.mrf.mxu0
        %v1462 = vadd.f32 0.0, %v1461
        %v1463 = vpop.f32.mrf.mxu0
        %1464 = vmatprep.mubr.bf16.mxu0 0
        %1465 = vmatmul.mubr.bf16.gmra.mxu0 %v1406
        %v1466 = vpop.f32.mrf.mxu0
        %v1467 = vadd.f32 0.0, %v1466
        %v1468 = vpop.f32.mrf.mxu0
        %v1469 = vpop.f32.mrf.mxu0
        %v1470 = vadd.f32 0.0, %v1469
        %v1471 = vpop.f32.mrf.mxu0
        %1472 = vdwg.mxu0
        %v1473 = vpack.c.bf16 %v1446, %v1443
        %v1474 = vpack.c.bf16 %v1454, %v1451
        %v1475 = vpack.c.bf16 %v1462, %v1459
        %v1476 = vpack.c.bf16 %v1470, %v1467
        %s1477 = scalar_lea.vmem %s2, 8
        %v1478 = vld [vmem:[%s1477] sm:$0x3]
        %v1480 = vsel %vm802, %v1473, 0
        %v1483 = vsel %vm802, %v1474, 0
        %v1486 = vsel %vm802, %v1475, 0
        %v1489 = vsel %vm802, %v1476, 0
        %v1492 = vand.u32 %v1478, %v818
        %1494 = vmatprep.subr.bf16.mxu0 0
        %1495 = vmatpush1.bf16.msra.mxu0 0
        %1496 = vmatprep.subr.bf16.mxu0 0
        %1497 = vmatpush1.bf16.msra.mxu0 0
        %1498 = vmatprep.subr.bf16.mxu0 0
        %1499 = vmatpush1.bf16.msra.mxu0 0
        %1500 = vmatprep.subr.bf16.mxu0 0
        %1501 = vmatpush1.bf16.msra.mxu0 0
        %1502 = vmatprep.subr.bf16.mxu0 0
        %1503 = vmatpush1.bf16.msra.mxu0 0
        %1504 = vmatprep.subr.bf16.mxu0 0
        %1505 = vmatpush1.bf16.msra.mxu0 0
        %1506 = vmatprep.subr.bf16.mxu0 0
        %1507 = vmatpush1.bf16.msra.mxu0 0
        %1508 = vmatprep.subr.bf16.mxu0 0
        %1509 = vmatpush1.bf16.msra.mxu0 %v1492
        %1510 = vmatprep.subr.bf16.mxu0 0
        %1511 = vmatpush2.bf16.msra.mxu0 0
        %1512 = vmatprep.subr.bf16.mxu0 0
        %1513 = vmatpush2.bf16.msra.mxu0 0
        %1514 = vmatprep.subr.bf16.mxu0 0
        %1515 = vmatpush2.bf16.msra.mxu0 0
        %1516 = vmatprep.subr.bf16.mxu0 0
        %1517 = vmatpush2.bf16.msra.mxu0 0
        %1518 = vmatprep.subr.bf16.mxu0 0
        %1519 = vmatpush2.bf16.msra.mxu0 0
        %1520 = vmatprep.subr.bf16.mxu0 0
        %1521 = vmatpush2.bf16.msra.mxu0 0
        %1522 = vmatprep.subr.bf16.mxu0 0
        %1523 = vmatpush2.bf16.msra.mxu0 0
        %1524 = vmatprep.subr.bf16.mxu0 0
        %1525 = vmatpush2.bf16.msra.mxu0 0
        %1526 = vmatprep.mubr.bf16.mxu0 0
        %1527 = vmatmul.mubr.bf16.gmra.mxu0 %v1480
        %v1528 = vpop.f32.mrf.mxu0
        %v1529 = vadd.f32 0.0, %v1528
        %v1530 = vpop.f32.mrf.mxu0
        %v1531 = vpop.f32.mrf.mxu0
        %v1532 = vadd.f32 0.0, %v1531
        %v1533 = vpop.f32.mrf.mxu0
        %1534 = vmatprep.mubr.bf16.mxu0 0
        %1535 = vmatmul.mubr.bf16.gmra.mxu0 %v1483
        %v1536 = vpop.f32.mrf.mxu0
        %v1537 = vadd.f32 0.0, %v1536
        %v1538 = vpop.f32.mrf.mxu0
        %v1539 = vpop.f32.mrf.mxu0
        %v1540 = vadd.f32 0.0, %v1539
        %v1541 = vpop.f32.mrf.mxu0
        %1542 = vmatprep.mubr.bf16.mxu0 0
        %1543 = vmatmul.mubr.bf16.gmra.mxu0 %v1486
        %v1544 = vpop.f32.mrf.mxu0
        %v1545 = vadd.f32 0.0, %v1544
        %v1546 = vpop.f32.mrf.mxu0
        %v1547 = vpop.f32.mrf.mxu0
        %v1548 = vadd.f32 0.0, %v1547
        %v1549 = vpop.f32.mrf.mxu0
        %1550 = vmatprep.mubr.bf16.mxu0 0
        %1551 = vmatmul.mubr.bf16.gmra.mxu0 %v1489
        %v1552 = vpop.f32.mrf.mxu0
        %v1553 = vadd.f32 0.0, %v1552
        %v1554 = vpop.f32.mrf.mxu0
        %v1555 = vpop.f32.mrf.mxu0
        %v1556 = vadd.f32 0.0, %v1555
        %v1557 = vpop.f32.mrf.mxu0
        %1558 = vdwg.mxu0
        %v1559 = vadd.f32 %v1359, %v1529
        %v1560 = vadd.f32 %v1360, %v1532
        %v1561 = vadd.f32 %v1361, %v1537
        %v1562 = vadd.f32 %v1362, %v1540
        %v1563 = vadd.f32 %v1363, %v1545
        %v1564 = vadd.f32 %v1364, %v1548
        %v1565 = vadd.f32 %v1365, %v1553
        %v1566 = vadd.f32 %v1366, %v1556
        %s1567 = scalar_lea.vmem %s1, 160
        %v1568 = vld [vmem:[%s1567] sm:$0xf]
        %v1569 = vld [vmem:[%s1567 + $0x4] sm:$0xf]
        %v1570 = vld [vmem:[%s1567 + $0x8] sm:$0xf]
        %v1571 = vld [vmem:[%s1567 + $0xc] sm:$0xf]
        %v1572 = vld [vmem:[%s1567 + $0x10] sm:$0xf]
        %v1573 = vld [vmem:[%s1567 + $0x14] sm:$0xf]
        %v1574 = vld [vmem:[%s1567 + $0x18] sm:$0xf]
        %v1575 = vld [vmem:[%s1567 + $0x1c] sm:$0xf]
        %v1584 = vunpack.c.l.b16 %v1568
        %v1585 = vunpack.c.l.b16 %v1569
        %v1586 = vunpack.c.l.b16 %v1570
        %v1587 = vunpack.c.l.b16 %v1571
        %v1588 = vunpack.c.l.b16 %v1572
        %v1589 = vunpack.c.l.b16 %v1573
        %v1590 = vunpack.c.l.b16 %v1574
        %v1591 = vunpack.c.l.b16 %v1575
        %v1592 = vpack.c.b16 %v1585, %v1584
        %v1593 = vpack.c.b16 %v1587, %v1586
        %v1594 = vpack.c.b16 %v1589, %v1588
        %v1595 = vpack.c.b16 %v1591, %v1590
        %v1597 = vsel %vm607, %v1592, 0
        %v1600 = vsel %vm607, %v1593, 0
        %v1603 = vsel %vm607, %v1594, 0
        %v1606 = vsel %vm607, %v1595, 0
        %1608 = vmatprep.subr.bf16.mxu0 0
        %1609 = vmatpush1.bf16.msra.mxu0 0
        %1610 = vmatprep.subr.bf16.mxu0 0
        %1611 = vmatpush1.bf16.msra.mxu0 0
        %1612 = vmatprep.subr.bf16.mxu0 0
        %1613 = vmatpush1.bf16.msra.mxu0 0
        %1614 = vmatprep.subr.bf16.mxu0 0
        %1615 = vmatpush1.bf16.msra.mxu0 0
        %1616 = vmatprep.subr.bf16.mxu0 0
        %1617 = vmatpush1.bf16.msra.mxu0 %v602
        %1618 = vmatprep.subr.bf16.mxu0 0
        %1619 = vmatpush1.bf16.msra.mxu0 %v601
        %1620 = vmatprep.subr.bf16.mxu0 0
        %1621 = vmatpush1.bf16.msra.mxu0 %v600
        %1622 = vmatprep.subr.bf16.mxu0 0
        %1623 = vmatpush1.bf16.msra.mxu0 %v599
        %1624 = vmatprep.subr.bf16.mxu0 0
        %1625 = vmatpush2.bf16.msra.mxu0 0
        %1626 = vmatprep.subr.bf16.mxu0 0
        %1627 = vmatpush2.bf16.msra.mxu0 0
        %1628 = vmatprep.subr.bf16.mxu0 0
        %1629 = vmatpush2.bf16.msra.mxu0 0
        %1630 = vmatprep.subr.bf16.mxu0 0
        %1631 = vmatpush2.bf16.msra.mxu0 0
        %1632 = vmatprep.subr.bf16.mxu0 0
        %1633 = vmatpush2.bf16.msra.mxu0 0
        %1634 = vmatprep.subr.bf16.mxu0 0
        %1635 = vmatpush2.bf16.msra.mxu0 0
        %1636 = vmatprep.subr.bf16.mxu0 0
        %1637 = vmatpush2.bf16.msra.mxu0 0
        %1638 = vmatprep.subr.bf16.mxu0 0
        %1639 = vmatpush2.bf16.msra.mxu0 0
        %1640 = vmatprep.mubr.bf16.mxu0 0
        %1641 = vmatmul.mubr.bf16.gmra.mxu0 %v1597
        %v1642 = vpop.f32.mrf.mxu0
        %v1643 = vadd.f32 0.0, %v1642
        %v1644 = vpop.f32.mrf.mxu0
        %v1645 = vpop.f32.mrf.mxu0
        %v1646 = vadd.f32 0.0, %v1645
        %v1647 = vpop.f32.mrf.mxu0
        %1648 = vmatprep.mubr.bf16.mxu0 0
        %1649 = vmatmul.mubr.bf16.gmra.mxu0 %v1600
        %v1650 = vpop.f32.mrf.mxu0
        %v1651 = vadd.f32 0.0, %v1650
        %v1652 = vpop.f32.mrf.mxu0
        %v1653 = vpop.f32.mrf.mxu0
        %v1654 = vadd.f32 0.0, %v1653
        %v1655 = vpop.f32.mrf.mxu0
        %1656 = vmatprep.mubr.bf16.mxu0 0
        %1657 = vmatmul.mubr.bf16.gmra.mxu0 %v1603
        %v1658 = vpop.f32.mrf.mxu0
        %v1659 = vadd.f32 0.0, %v1658
        %v1660 = vpop.f32.mrf.mxu0
        %v1661 = vpop.f32.mrf.mxu0
        %v1662 = vadd.f32 0.0, %v1661
        %v1663 = vpop.f32.mrf.mxu0
        %1664 = vmatprep.mubr.bf16.mxu0 0
        %1665 = vmatmul.mubr.bf16.gmra.mxu0 %v1606
        %v1666 = vpop.f32.mrf.mxu0
        %v1667 = vadd.f32 0.0, %v1666
        %v1668 = vpop.f32.mrf.mxu0
        %v1669 = vpop.f32.mrf.mxu0
        %v1670 = vadd.f32 0.0, %v1669
        %v1671 = vpop.f32.mrf.mxu0
        %1672 = vdwg.mxu0
        %v1673 = vpack.c.bf16 %v1646, %v1643
        %v1674 = vpack.c.bf16 %v1654, %v1651
        %v1675 = vpack.c.bf16 %v1662, %v1659
        %v1676 = vpack.c.bf16 %v1670, %v1667
        %s1677 = scalar_lea.vmem %s2, 10
        %v1678 = vld [vmem:[%s1677] sm:$0x3]
        %v1680 = vsel %vm802, %v1673, 0
        %v1683 = vsel %vm802, %v1674, 0
        %v1686 = vsel %vm802, %v1675, 0
        %v1689 = vsel %vm802, %v1676, 0
        %v1692 = vand.u32 %v1678, %v818
        %1694 = vmatprep.subr.bf16.mxu0 0
        %1695 = vmatpush1.bf16.msra.mxu0 0
        %1696 = vmatprep.subr.bf16.mxu0 0
        %1697 = vmatpush1.bf16.msra.mxu0 0
        %1698 = vmatprep.subr.bf16.mxu0 0
        %1699 = vmatpush1.bf16.msra.mxu0 0
        %1700 = vmatprep.subr.bf16.mxu0 0
        %1701 = vmatpush1.bf16.msra.mxu0 0
        %1702 = vmatprep.subr.bf16.mxu0 0
        %1703 = vmatpush1.bf16.msra.mxu0 0
        %1704 = vmatprep.subr.bf16.mxu0 0
        %1705 = vmatpush1.bf16.msra.mxu0 0
        %1706 = vmatprep.subr.bf16.mxu0 0
        %1707 = vmatpush1.bf16.msra.mxu0 0
        %1708 = vmatprep.subr.bf16.mxu0 0
        %1709 = vmatpush1.bf16.msra.mxu0 %v1692
        %1710 = vmatprep.subr.bf16.mxu0 0
        %1711 = vmatpush2.bf16.msra.mxu0 0
        %1712 = vmatprep.subr.bf16.mxu0 0
        %1713 = vmatpush2.bf16.msra.mxu0 0
        %1714 = vmatprep.subr.bf16.mxu0 0
        %1715 = vmatpush2.bf16.msra.mxu0 0
        %1716 = vmatprep.subr.bf16.mxu0 0
        %1717 = vmatpush2.bf16.msra.mxu0 0
        %1718 = vmatprep.subr.bf16.mxu0 0
        %1719 = vmatpush2.bf16.msra.mxu0 0
        %1720 = vmatprep.subr.bf16.mxu0 0
        %1721 = vmatpush2.bf16.msra.mxu0 0
        %1722 = vmatprep.subr.bf16.mxu0 0
        %1723 = vmatpush2.bf16.msra.mxu0 0
        %1724 = vmatprep.subr.bf16.mxu0 0
        %1725 = vmatpush2.bf16.msra.mxu0 0
        %1726 = vmatprep.mubr.bf16.mxu0 0
        %1727 = vmatmul.mubr.bf16.gmra.mxu0 %v1680
        %v1728 = vpop.f32.mrf.mxu0
        %v1729 = vadd.f32 0.0, %v1728
        %v1730 = vpop.f32.mrf.mxu0
        %v1731 = vpop.f32.mrf.mxu0
        %v1732 = vadd.f32 0.0, %v1731
        %v1733 = vpop.f32.mrf.mxu0
        %1734 = vmatprep.mubr.bf16.mxu0 0
        %1735 = vmatmul.mubr.bf16.gmra.mxu0 %v1683
        %v1736 = vpop.f32.mrf.mxu0
        %v1737 = vadd.f32 0.0, %v1736
        %v1738 = vpop.f32.mrf.mxu0
        %v1739 = vpop.f32.mrf.mxu0
        %v1740 = vadd.f32 0.0, %v1739
        %v1741 = vpop.f32.mrf.mxu0
        %1742 = vmatprep.mubr.bf16.mxu0 0
        %1743 = vmatmul.mubr.bf16.gmra.mxu0 %v1686
        %v1744 = vpop.f32.mrf.mxu0
        %v1745 = vadd.f32 0.0, %v1744
        %v1746 = vpop.f32.mrf.mxu0
        %v1747 = vpop.f32.mrf.mxu0
        %v1748 = vadd.f32 0.0, %v1747
        %v1749 = vpop.f32.mrf.mxu0
        %1750 = vmatprep.mubr.bf16.mxu0 0
        %1751 = vmatmul.mubr.bf16.gmra.mxu0 %v1689
        %v1752 = vpop.f32.mrf.mxu0
        %v1753 = vadd.f32 0.0, %v1752
        %v1754 = vpop.f32.mrf.mxu0
        %v1755 = vpop.f32.mrf.mxu0
        %v1756 = vadd.f32 0.0, %v1755
        %v1757 = vpop.f32.mrf.mxu0
        %1758 = vdwg.mxu0
        %v1759 = vadd.f32 %v1559, %v1729
        %v1760 = vadd.f32 %v1560, %v1732
        %v1761 = vadd.f32 %v1561, %v1737
        %v1762 = vadd.f32 %v1562, %v1740
        %v1763 = vadd.f32 %v1563, %v1745
        %v1764 = vadd.f32 %v1564, %v1748
        %v1765 = vadd.f32 %v1565, %v1753
        %v1766 = vadd.f32 %v1566, %v1756
        %s1767 = scalar_lea.vmem %s1, 192
        %v1768 = vld [vmem:[%s1767] sm:$0xf]
        %v1769 = vld [vmem:[%s1767 + $0x4] sm:$0xf]
        %v1770 = vld [vmem:[%s1767 + $0x8] sm:$0xf]
        %v1771 = vld [vmem:[%s1767 + $0xc] sm:$0xf]
        %v1772 = vld [vmem:[%s1767 + $0x10] sm:$0xf]
        %v1773 = vld [vmem:[%s1767 + $0x14] sm:$0xf]
        %v1774 = vld [vmem:[%s1767 + $0x18] sm:$0xf]
        %v1775 = vld [vmem:[%s1767 + $0x1c] sm:$0xf]
        %v1784 = vunpack.c.l.b16 %v1768
        %v1785 = vunpack.c.l.b16 %v1769
        %v1786 = vunpack.c.l.b16 %v1770
        %v1787 = vunpack.c.l.b16 %v1771
        %v1788 = vunpack.c.l.b16 %v1772
        %v1789 = vunpack.c.l.b16 %v1773
        %v1790 = vunpack.c.l.b16 %v1774
        %v1791 = vunpack.c.l.b16 %v1775
        %v1792 = vpack.c.b16 %v1785, %v1784
        %v1793 = vpack.c.b16 %v1787, %v1786
        %v1794 = vpack.c.b16 %v1789, %v1788
        %v1795 = vpack.c.b16 %v1791, %v1790
        %v1797 = vsel %vm607, %v1792, 0
        %v1800 = vsel %vm607, %v1793, 0
        %v1803 = vsel %vm607, %v1794, 0
        %v1806 = vsel %vm607, %v1795, 0
        %1808 = vmatprep.subr.bf16.mxu0 0
        %1809 = vmatpush1.bf16.msra.mxu0 0
        %1810 = vmatprep.subr.bf16.mxu0 0
        %1811 = vmatpush1.bf16.msra.mxu0 0
        %1812 = vmatprep.subr.bf16.mxu0 0
        %1813 = vmatpush1.bf16.msra.mxu0 0
        %1814 = vmatprep.subr.bf16.mxu0 0
        %1815 = vmatpush1.bf16.msra.mxu0 0
        %1816 = vmatprep.subr.bf16.mxu0 0
        %1817 = vmatpush1.bf16.msra.mxu0 %v602
        %1818 = vmatprep.subr.bf16.mxu0 0
        %1819 = vmatpush1.bf16.msra.mxu0 %v601
        %1820 = vmatprep.subr.bf16.mxu0 0
        %1821 = vmatpush1.bf16.msra.mxu0 %v600
        %1822 = vmatprep.subr.bf16.mxu0 0
        %1823 = vmatpush1.bf16.msra.mxu0 %v599
        %1824 = vmatprep.subr.bf16.mxu0 0
        %1825 = vmatpush2.bf16.msra.mxu0 0
        %1826 = vmatprep.subr.bf16.mxu0 0
        %1827 = vmatpush2.bf16.msra.mxu0 0
        %1828 = vmatprep.subr.bf16.mxu0 0
        %1829 = vmatpush2.bf16.msra.mxu0 0
        %1830 = vmatprep.subr.bf16.mxu0 0
        %1831 = vmatpush2.bf16.msra.mxu0 0
        %1832 = vmatprep.subr.bf16.mxu0 0
        %1833 = vmatpush2.bf16.msra.mxu0 0
        %1834 = vmatprep.subr.bf16.mxu0 0
        %1835 = vmatpush2.bf16.msra.mxu0 0
        %1836 = vmatprep.subr.bf16.mxu0 0
        %1837 = vmatpush2.bf16.msra.mxu0 0
        %1838 = vmatprep.subr.bf16.mxu0 0
        %1839 = vmatpush2.bf16.msra.mxu0 0
        %1840 = vmatprep.mubr.bf16.mxu0 0
        %1841 = vmatmul.mubr.bf16.gmra.mxu0 %v1797
        %v1842 = vpop.f32.mrf.mxu0
        %v1843 = vadd.f32 0.0, %v1842
        %v1844 = vpop.f32.mrf.mxu0
        %v1845 = vpop.f32.mrf.mxu0
        %v1846 = vadd.f32 0.0, %v1845
        %v1847 = vpop.f32.mrf.mxu0
        %1848 = vmatprep.mubr.bf16.mxu0 0
        %1849 = vmatmul.mubr.bf16.gmra.mxu0 %v1800
        %v1850 = vpop.f32.mrf.mxu0
        %v1851 = vadd.f32 0.0, %v1850
        %v1852 = vpop.f32.mrf.mxu0
        %v1853 = vpop.f32.mrf.mxu0
        %v1854 = vadd.f32 0.0, %v1853
        %v1855 = vpop.f32.mrf.mxu0
        %1856 = vmatprep.mubr.bf16.mxu0 0
        %1857 = vmatmul.mubr.bf16.gmra.mxu0 %v1803
        %v1858 = vpop.f32.mrf.mxu0
        %v1859 = vadd.f32 0.0, %v1858
        %v1860 = vpop.f32.mrf.mxu0
        %v1861 = vpop.f32.mrf.mxu0
        %v1862 = vadd.f32 0.0, %v1861
        %v1863 = vpop.f32.mrf.mxu0
        %1864 = vmatprep.mubr.bf16.mxu0 0
        %1865 = vmatmul.mubr.bf16.gmra.mxu0 %v1806
        %v1866 = vpop.f32.mrf.mxu0
        %v1867 = vadd.f32 0.0, %v1866
        %v1868 = vpop.f32.mrf.mxu0
        %v1869 = vpop.f32.mrf.mxu0
        %v1870 = vadd.f32 0.0, %v1869
        %v1871 = vpop.f32.mrf.mxu0
        %1872 = vdwg.mxu0
        %v1873 = vpack.c.bf16 %v1846, %v1843
        %v1874 = vpack.c.bf16 %v1854, %v1851
        %v1875 = vpack.c.bf16 %v1862, %v1859
        %v1876 = vpack.c.bf16 %v1870, %v1867
        %s1877 = scalar_lea.vmem %s2, 12
        %v1878 = vld [vmem:[%s1877] sm:$0x3]
        %v1880 = vsel %vm802, %v1873, 0
        %v1883 = vsel %vm802, %v1874, 0
        %v1886 = vsel %vm802, %v1875, 0
        %v1889 = vsel %vm802, %v1876, 0
        %v1892 = vand.u32 %v1878, %v818
        %1894 = vmatprep.subr.bf16.mxu0 0
        %1895 = vmatpush1.bf16.msra.mxu0 0
        %1896 = vmatprep.subr.bf16.mxu0 0
        %1897 = vmatpush1.bf16.msra.mxu0 0
        %1898 = vmatprep.subr.bf16.mxu0 0
        %1899 = vmatpush1.bf16.msra.mxu0 0
        %1900 = vmatprep.subr.bf16.mxu0 0
        %1901 = vmatpush1.bf16.msra.mxu0 0
        %1902 = vmatprep.subr.bf16.mxu0 0
        %1903 = vmatpush1.bf16.msra.mxu0 0
        %1904 = vmatprep.subr.bf16.mxu0 0
        %1905 = vmatpush1.bf16.msra.mxu0 0
        %1906 = vmatprep.subr.bf16.mxu0 0
        %1907 = vmatpush1.bf16.msra.mxu0 0
        %1908 = vmatprep.subr.bf16.mxu0 0
        %1909 = vmatpush1.bf16.msra.mxu0 %v1892
        %1910 = vmatprep.subr.bf16.mxu0 0
        %1911 = vmatpush2.bf16.msra.mxu0 0
        %1912 = vmatprep.subr.bf16.mxu0 0
        %1913 = vmatpush2.bf16.msra.mxu0 0
        %1914 = vmatprep.subr.bf16.mxu0 0
        %1915 = vmatpush2.bf16.msra.mxu0 0
        %1916 = vmatprep.subr.bf16.mxu0 0
        %1917 = vmatpush2.bf16.msra.mxu0 0
        %1918 = vmatprep.subr.bf16.mxu0 0
        %1919 = vmatpush2.bf16.msra.mxu0 0
        %1920 = vmatprep.subr.bf16.mxu0 0
        %1921 = vmatpush2.bf16.msra.mxu0 0
        %1922 = vmatprep.subr.bf16.mxu0 0
        %1923 = vmatpush2.bf16.msra.mxu0 0
        %1924 = vmatprep.subr.bf16.mxu0 0
        %1925 = vmatpush2.bf16.msra.mxu0 0
        %1926 = vmatprep.mubr.bf16.mxu0 0
        %1927 = vmatmul.mubr.bf16.gmra.mxu0 %v1880
        %v1928 = vpop.f32.mrf.mxu0
        %v1929 = vadd.f32 0.0, %v1928
        %v1930 = vpop.f32.mrf.mxu0
        %v1931 = vpop.f32.mrf.mxu0
        %v1932 = vadd.f32 0.0, %v1931
        %v1933 = vpop.f32.mrf.mxu0
        %1934 = vmatprep.mubr.bf16.mxu0 0
        %1935 = vmatmul.mubr.bf16.gmra.mxu0 %v1883
        %v1936 = vpop.f32.mrf.mxu0
        %v1937 = vadd.f32 0.0, %v1936
        %v1938 = vpop.f32.mrf.mxu0
        %v1939 = vpop.f32.mrf.mxu0
        %v1940 = vadd.f32 0.0, %v1939
        %v1941 = vpop.f32.mrf.mxu0
        %1942 = vmatprep.mubr.bf16.mxu0 0
        %1943 = vmatmul.mubr.bf16.gmra.mxu0 %v1886
        %v1944 = vpop.f32.mrf.mxu0
        %v1945 = vadd.f32 0.0, %v1944
        %v1946 = vpop.f32.mrf.mxu0
        %v1947 = vpop.f32.mrf.mxu0
        %v1948 = vadd.f32 0.0, %v1947
        %v1949 = vpop.f32.mrf.mxu0
        %1950 = vmatprep.mubr.bf16.mxu0 0
        %1951 = vmatmul.mubr.bf16.gmra.mxu0 %v1889
        %v1952 = vpop.f32.mrf.mxu0
        %v1953 = vadd.f32 0.0, %v1952
        %v1954 = vpop.f32.mrf.mxu0
        %v1955 = vpop.f32.mrf.mxu0
        %v1956 = vadd.f32 0.0, %v1955
        %v1957 = vpop.f32.mrf.mxu0
        %1958 = vdwg.mxu0
        %v1959 = vadd.f32 %v1759, %v1929
        %v1960 = vadd.f32 %v1760, %v1932
        %v1961 = vadd.f32 %v1761, %v1937
        %v1962 = vadd.f32 %v1762, %v1940
        %v1963 = vadd.f32 %v1763, %v1945
        %v1964 = vadd.f32 %v1764, %v1948
        %v1965 = vadd.f32 %v1765, %v1953
        %v1966 = vadd.f32 %v1766, %v1956
        %s1967 = scalar_lea.vmem %s1, 224
        %v1968 = vld [vmem:[%s1967] sm:$0xf]
        %v1969 = vld [vmem:[%s1967 + $0x4] sm:$0xf]
        %v1970 = vld [vmem:[%s1967 + $0x8] sm:$0xf]
        %v1971 = vld [vmem:[%s1967 + $0xc] sm:$0xf]
        %v1972 = vld [vmem:[%s1967 + $0x10] sm:$0xf]
        %v1973 = vld [vmem:[%s1967 + $0x14] sm:$0xf]
        %v1974 = vld [vmem:[%s1967 + $0x18] sm:$0xf]
        %v1975 = vld [vmem:[%s1967 + $0x1c] sm:$0xf]
        %v1984 = vunpack.c.l.b16 %v1968
        %v1985 = vunpack.c.l.b16 %v1969
        %v1986 = vunpack.c.l.b16 %v1970
        %v1987 = vunpack.c.l.b16 %v1971
        %v1988 = vunpack.c.l.b16 %v1972
        %v1989 = vunpack.c.l.b16 %v1973
        %v1990 = vunpack.c.l.b16 %v1974
        %v1991 = vunpack.c.l.b16 %v1975
        %v1992 = vpack.c.b16 %v1985, %v1984
        %v1993 = vpack.c.b16 %v1987, %v1986
        %v1994 = vpack.c.b16 %v1989, %v1988
        %v1995 = vpack.c.b16 %v1991, %v1990
        %v1997 = vsel %vm607, %v1992, 0
        %v2000 = vsel %vm607, %v1993, 0
        %v2003 = vsel %vm607, %v1994, 0
        %v2006 = vsel %vm607, %v1995, 0
        %2008 = vmatprep.subr.bf16.mxu0 0
        %2009 = vmatpush1.bf16.msra.mxu0 0
        %2010 = vmatprep.subr.bf16.mxu0 0
        %2011 = vmatpush1.bf16.msra.mxu0 0
        %2012 = vmatprep.subr.bf16.mxu0 0
        %2013 = vmatpush1.bf16.msra.mxu0 0
        %2014 = vmatprep.subr.bf16.mxu0 0
        %2015 = vmatpush1.bf16.msra.mxu0 0
        %2016 = vmatprep.subr.bf16.mxu0 0
        %2017 = vmatpush1.bf16.msra.mxu0 %v602
        %2018 = vmatprep.subr.bf16.mxu0 0
        %2019 = vmatpush1.bf16.msra.mxu0 %v601
        %2020 = vmatprep.subr.bf16.mxu0 0
        %2021 = vmatpush1.bf16.msra.mxu0 %v600
        %2022 = vmatprep.subr.bf16.mxu0 0
        %2023 = vmatpush1.bf16.msra.mxu0 %v599
        %2024 = vmatprep.subr.bf16.mxu0 0
        %2025 = vmatpush2.bf16.msra.mxu0 0
        %2026 = vmatprep.subr.bf16.mxu0 0
        %2027 = vmatpush2.bf16.msra.mxu0 0
        %2028 = vmatprep.subr.bf16.mxu0 0
        %2029 = vmatpush2.bf16.msra.mxu0 0
        %2030 = vmatprep.subr.bf16.mxu0 0
        %2031 = vmatpush2.bf16.msra.mxu0 0
        %2032 = vmatprep.subr.bf16.mxu0 0
        %2033 = vmatpush2.bf16.msra.mxu0 0
        %2034 = vmatprep.subr.bf16.mxu0 0
        %2035 = vmatpush2.bf16.msra.mxu0 0
        %2036 = vmatprep.subr.bf16.mxu0 0
        %2037 = vmatpush2.bf16.msra.mxu0 0
        %2038 = vmatprep.subr.bf16.mxu0 0
        %2039 = vmatpush2.bf16.msra.mxu0 0
        %2040 = vmatprep.mubr.bf16.mxu0 0
        %2041 = vmatmul.mubr.bf16.gmra.mxu0 %v1997
        %v2042 = vpop.f32.mrf.mxu0
        %v2043 = vadd.f32 0.0, %v2042
        %v2044 = vpop.f32.mrf.mxu0
        %v2045 = vpop.f32.mrf.mxu0
        %v2046 = vadd.f32 0.0, %v2045
        %v2047 = vpop.f32.mrf.mxu0
        %2048 = vmatprep.mubr.bf16.mxu0 0
        %2049 = vmatmul.mubr.bf16.gmra.mxu0 %v2000
        %v2050 = vpop.f32.mrf.mxu0
        %v2051 = vadd.f32 0.0, %v2050
        %v2052 = vpop.f32.mrf.mxu0
        %v2053 = vpop.f32.mrf.mxu0
        %v2054 = vadd.f32 0.0, %v2053
        %v2055 = vpop.f32.mrf.mxu0
        %2056 = vmatprep.mubr.bf16.mxu0 0
        %2057 = vmatmul.mubr.bf16.gmra.mxu0 %v2003
        %v2058 = vpop.f32.mrf.mxu0
        %v2059 = vadd.f32 0.0, %v2058
        %v2060 = vpop.f32.mrf.mxu0
        %v2061 = vpop.f32.mrf.mxu0
        %v2062 = vadd.f32 0.0, %v2061
        %v2063 = vpop.f32.mrf.mxu0
        %2064 = vmatprep.mubr.bf16.mxu0 0
        %2065 = vmatmul.mubr.bf16.gmra.mxu0 %v2006
        %v2066 = vpop.f32.mrf.mxu0
        %v2067 = vadd.f32 0.0, %v2066
        %v2068 = vpop.f32.mrf.mxu0
        %v2069 = vpop.f32.mrf.mxu0
        %v2070 = vadd.f32 0.0, %v2069
        %v2071 = vpop.f32.mrf.mxu0
        %2072 = vdwg.mxu0
        %v2073 = vpack.c.bf16 %v2046, %v2043
        %v2074 = vpack.c.bf16 %v2054, %v2051
        %v2075 = vpack.c.bf16 %v2062, %v2059
        %v2076 = vpack.c.bf16 %v2070, %v2067
        %s2077 = scalar_lea.vmem %s2, 14
        %v2078 = vld [vmem:[%s2077] sm:$0x3]
        %v2080 = vsel %vm802, %v2073, 0
        %v2083 = vsel %vm802, %v2074, 0
        %v2086 = vsel %vm802, %v2075, 0
        %v2089 = vsel %vm802, %v2076, 0
        %v2092 = vand.u32 %v2078, %v818
        %2094 = vmatprep.subr.bf16.mxu0 0
        %2095 = vmatpush1.bf16.msra.mxu0 0
        %2096 = vmatprep.subr.bf16.mxu0 0
        %2097 = vmatpush1.bf16.msra.mxu0 0
        %2098 = vmatprep.subr.bf16.mxu0 0
        %2099 = vmatpush1.bf16.msra.mxu0 0
        %2100 = vmatprep.subr.bf16.mxu0 0
        %2101 = vmatpush1.bf16.msra.mxu0 0
        %2102 = vmatprep.subr.bf16.mxu0 0
        %2103 = vmatpush1.bf16.msra.mxu0 0
        %2104 = vmatprep.subr.bf16.mxu0 0
        %2105 = vmatpush1.bf16.msra.mxu0 0
        %2106 = vmatprep.subr.bf16.mxu0 0
        %2107 = vmatpush1.bf16.msra.mxu0 0
        %2108 = vmatprep.subr.bf16.mxu0 0
        %2109 = vmatpush1.bf16.msra.mxu0 %v2092
        %2110 = vmatprep.subr.bf16.mxu0 0
        %2111 = vmatpush2.bf16.msra.mxu0 0
        %2112 = vmatprep.subr.bf16.mxu0 0
        %2113 = vmatpush2.bf16.msra.mxu0 0
        %2114 = vmatprep.subr.bf16.mxu0 0
        %2115 = vmatpush2.bf16.msra.mxu0 0
        %2116 = vmatprep.subr.bf16.mxu0 0
        %2117 = vmatpush2.bf16.msra.mxu0 0
        %2118 = vmatprep.subr.bf16.mxu0 0
        %2119 = vmatpush2.bf16.msra.mxu0 0
        %2120 = vmatprep.subr.bf16.mxu0 0
        %2121 = vmatpush2.bf16.msra.mxu0 0
        %2122 = vmatprep.subr.bf16.mxu0 0
        %2123 = vmatpush2.bf16.msra.mxu0 0
        %2124 = vmatprep.subr.bf16.mxu0 0
        %2125 = vmatpush2.bf16.msra.mxu0 0
        %2126 = vmatprep.mubr.bf16.mxu0 0
        %2127 = vmatmul.mubr.bf16.gmra.mxu0 %v2080
        %v2128 = vpop.f32.mrf.mxu0
        %v2129 = vadd.f32 0.0, %v2128
        %v2130 = vpop.f32.mrf.mxu0
        %v2131 = vpop.f32.mrf.mxu0
        %v2132 = vadd.f32 0.0, %v2131
        %v2133 = vpop.f32.mrf.mxu0
        %2134 = vmatprep.mubr.bf16.mxu0 0
        %2135 = vmatmul.mubr.bf16.gmra.mxu0 %v2083
        %v2136 = vpop.f32.mrf.mxu0
        %v2137 = vadd.f32 0.0, %v2136
        %v2138 = vpop.f32.mrf.mxu0
        %v2139 = vpop.f32.mrf.mxu0
        %v2140 = vadd.f32 0.0, %v2139
        %v2141 = vpop.f32.mrf.mxu0
        %2142 = vmatprep.mubr.bf16.mxu0 0
        %2143 = vmatmul.mubr.bf16.gmra.mxu0 %v2086
        %v2144 = vpop.f32.mrf.mxu0
        %v2145 = vadd.f32 0.0, %v2144
        %v2146 = vpop.f32.mrf.mxu0
        %v2147 = vpop.f32.mrf.mxu0
        %v2148 = vadd.f32 0.0, %v2147
        %v2149 = vpop.f32.mrf.mxu0
        %2150 = vmatprep.mubr.bf16.mxu0 0
        %2151 = vmatmul.mubr.bf16.gmra.mxu0 %v2089
        %v2152 = vpop.f32.mrf.mxu0
        %v2153 = vadd.f32 0.0, %v2152
        %v2154 = vpop.f32.mrf.mxu0
        %v2155 = vpop.f32.mrf.mxu0
        %v2156 = vadd.f32 0.0, %v2155
        %v2157 = vpop.f32.mrf.mxu0
        %2158 = vdwg.mxu0
        %v2159 = vadd.f32 %v1959, %v2129
        %v2160 = vadd.f32 %v1960, %v2132
        %v2161 = vadd.f32 %v1961, %v2137
        %v2162 = vadd.f32 %v1962, %v2140
        %v2163 = vadd.f32 %v1963, %v2145
        %v2164 = vadd.f32 %v1964, %v2148
        %v2165 = vadd.f32 %v1965, %v2153
        %v2166 = vadd.f32 %v1966, %v2156
        %s2167 = scalar_lea.vmem %s1, 256
        %v2168 = vld [vmem:[%s2167] sm:$0xf]
        %v2169 = vld [vmem:[%s2167 + $0x4] sm:$0xf]
        %v2170 = vld [vmem:[%s2167 + $0x8] sm:$0xf]
        %v2171 = vld [vmem:[%s2167 + $0xc] sm:$0xf]
        %v2172 = vld [vmem:[%s2167 + $0x10] sm:$0xf]
        %v2173 = vld [vmem:[%s2167 + $0x14] sm:$0xf]
        %v2174 = vld [vmem:[%s2167 + $0x18] sm:$0xf]
        %v2175 = vld [vmem:[%s2167 + $0x1c] sm:$0xf]
        %v2184 = vunpack.c.l.b16 %v2168
        %v2185 = vunpack.c.l.b16 %v2169
        %v2186 = vunpack.c.l.b16 %v2170
        %v2187 = vunpack.c.l.b16 %v2171
        %v2188 = vunpack.c.l.b16 %v2172
        %v2189 = vunpack.c.l.b16 %v2173
        %v2190 = vunpack.c.l.b16 %v2174
        %v2191 = vunpack.c.l.b16 %v2175
        %v2192 = vpack.c.b16 %v2185, %v2184
        %v2193 = vpack.c.b16 %v2187, %v2186
        %v2194 = vpack.c.b16 %v2189, %v2188
        %v2195 = vpack.c.b16 %v2191, %v2190
        %v2197 = vsel %vm607, %v2192, 0
        %v2200 = vsel %vm607, %v2193, 0
        %v2203 = vsel %vm607, %v2194, 0
        %v2206 = vsel %vm607, %v2195, 0
        %2208 = vmatprep.subr.bf16.mxu0 0
        %2209 = vmatpush1.bf16.msra.mxu0 0
        %2210 = vmatprep.subr.bf16.mxu0 0
        %2211 = vmatpush1.bf16.msra.mxu0 0
        %2212 = vmatprep.subr.bf16.mxu0 0
        %2213 = vmatpush1.bf16.msra.mxu0 0
        %2214 = vmatprep.subr.bf16.mxu0 0
        %2215 = vmatpush1.bf16.msra.mxu0 0
        %2216 = vmatprep.subr.bf16.mxu0 0
        %2217 = vmatpush1.bf16.msra.mxu0 %v602
        %2218 = vmatprep.subr.bf16.mxu0 0
        %2219 = vmatpush1.bf16.msra.mxu0 %v601
        %2220 = vmatprep.subr.bf16.mxu0 0
        %2221 = vmatpush1.bf16.msra.mxu0 %v600
        %2222 = vmatprep.subr.bf16.mxu0 0
        %2223 = vmatpush1.bf16.msra.mxu0 %v599
        %2224 = vmatprep.subr.bf16.mxu0 0
        %2225 = vmatpush2.bf16.msra.mxu0 0
        %2226 = vmatprep.subr.bf16.mxu0 0
        %2227 = vmatpush2.bf16.msra.mxu0 0
        %2228 = vmatprep.subr.bf16.mxu0 0
        %2229 = vmatpush2.bf16.msra.mxu0 0
        %2230 = vmatprep.subr.bf16.mxu0 0
        %2231 = vmatpush2.bf16.msra.mxu0 0
        %2232 = vmatprep.subr.bf16.mxu0 0
        %2233 = vmatpush2.bf16.msra.mxu0 0
        %2234 = vmatprep.subr.bf16.mxu0 0
        %2235 = vmatpush2.bf16.msra.mxu0 0
        %2236 = vmatprep.subr.bf16.mxu0 0
        %2237 = vmatpush2.bf16.msra.mxu0 0
        %2238 = vmatprep.subr.bf16.mxu0 0
        %2239 = vmatpush2.bf16.msra.mxu0 0
        %2240 = vmatprep.mubr.bf16.mxu0 0
        %2241 = vmatmul.mubr.bf16.gmra.mxu0 %v2197
        %v2242 = vpop.f32.mrf.mxu0
        %v2243 = vadd.f32 0.0, %v2242
        %v2244 = vpop.f32.mrf.mxu0
        %v2245 = vpop.f32.mrf.mxu0
        %v2246 = vadd.f32 0.0, %v2245
        %v2247 = vpop.f32.mrf.mxu0
        %2248 = vmatprep.mubr.bf16.mxu0 0
        %2249 = vmatmul.mubr.bf16.gmra.mxu0 %v2200
        %v2250 = vpop.f32.mrf.mxu0
        %v2251 = vadd.f32 0.0, %v2250
        %v2252 = vpop.f32.mrf.mxu0
        %v2253 = vpop.f32.mrf.mxu0
        %v2254 = vadd.f32 0.0, %v2253
        %v2255 = vpop.f32.mrf.mxu0
        %2256 = vmatprep.mubr.bf16.mxu0 0
        %2257 = vmatmul.mubr.bf16.gmra.mxu0 %v2203
        %v2258 = vpop.f32.mrf.mxu0
        %v2259 = vadd.f32 0.0, %v2258
        %v2260 = vpop.f32.mrf.mxu0
        %v2261 = vpop.f32.mrf.mxu0
        %v2262 = vadd.f32 0.0, %v2261
        %v2263 = vpop.f32.mrf.mxu0
        %2264 = vmatprep.mubr.bf16.mxu0 0
        %2265 = vmatmul.mubr.bf16.gmra.mxu0 %v2206
        %v2266 = vpop.f32.mrf.mxu0
        %v2267 = vadd.f32 0.0, %v2266
        %v2268 = vpop.f32.mrf.mxu0
        %v2269 = vpop.f32.mrf.mxu0
        %v2270 = vadd.f32 0.0, %v2269
        %v2271 = vpop.f32.mrf.mxu0
        %2272 = vdwg.mxu0
        %v2273 = vpack.c.bf16 %v2246, %v2243
        %v2274 = vpack.c.bf16 %v2254, %v2251
        %v2275 = vpack.c.bf16 %v2262, %v2259
        %v2276 = vpack.c.bf16 %v2270, %v2267
        %s2277 = scalar_lea.vmem %s2, 16
        %v2278 = vld [vmem:[%s2277] sm:$0x3]
        %v2280 = vsel %vm802, %v2273, 0
        %v2283 = vsel %vm802, %v2274, 0
        %v2286 = vsel %vm802, %v2275, 0
        %v2289 = vsel %vm802, %v2276, 0
        %v2292 = vand.u32 %v2278, %v818
        %2294 = vmatprep.subr.bf16.mxu0 0
        %2295 = vmatpush1.bf16.msra.mxu0 0
        %2296 = vmatprep.subr.bf16.mxu0 0
        %2297 = vmatpush1.bf16.msra.mxu0 0
        %2298 = vmatprep.subr.bf16.mxu0 0
        %2299 = vmatpush1.bf16.msra.mxu0 0
        %2300 = vmatprep.subr.bf16.mxu0 0
        %2301 = vmatpush1.bf16.msra.mxu0 0
        %2302 = vmatprep.subr.bf16.mxu0 0
        %2303 = vmatpush1.bf16.msra.mxu0 0
        %2304 = vmatprep.subr.bf16.mxu0 0
        %2305 = vmatpush1.bf16.msra.mxu0 0
        %2306 = vmatprep.subr.bf16.mxu0 0
        %2307 = vmatpush1.bf16.msra.mxu0 0
        %2308 = vmatprep.subr.bf16.mxu0 0
        %2309 = vmatpush1.bf16.msra.mxu0 %v2292
        %2310 = vmatprep.subr.bf16.mxu0 0
        %2311 = vmatpush2.bf16.msra.mxu0 0
        %2312 = vmatprep.subr.bf16.mxu0 0
        %2313 = vmatpush2.bf16.msra.mxu0 0
        %2314 = vmatprep.subr.bf16.mxu0 0
        %2315 = vmatpush2.bf16.msra.mxu0 0
        %2316 = vmatprep.subr.bf16.mxu0 0
        %2317 = vmatpush2.bf16.msra.mxu0 0
        %2318 = vmatprep.subr.bf16.mxu0 0
        %2319 = vmatpush2.bf16.msra.mxu0 0
        %2320 = vmatprep.subr.bf16.mxu0 0
        %2321 = vmatpush2.bf16.msra.mxu0 0
        %2322 = vmatprep.subr.bf16.mxu0 0
        %2323 = vmatpush2.bf16.msra.mxu0 0
        %2324 = vmatprep.subr.bf16.mxu0 0
        %2325 = vmatpush2.bf16.msra.mxu0 0
        %2326 = vmatprep.mubr.bf16.mxu0 0
        %2327 = vmatmul.mubr.bf16.gmra.mxu0 %v2280
        %v2328 = vpop.f32.mrf.mxu0
        %v2329 = vadd.f32 0.0, %v2328
        %v2330 = vpop.f32.mrf.mxu0
        %v2331 = vpop.f32.mrf.mxu0
        %v2332 = vadd.f32 0.0, %v2331
        %v2333 = vpop.f32.mrf.mxu0
        %2334 = vmatprep.mubr.bf16.mxu0 0
        %2335 = vmatmul.mubr.bf16.gmra.mxu0 %v2283
        %v2336 = vpop.f32.mrf.mxu0
        %v2337 = vadd.f32 0.0, %v2336
        %v2338 = vpop.f32.mrf.mxu0
        %v2339 = vpop.f32.mrf.mxu0
        %v2340 = vadd.f32 0.0, %v2339
        %v2341 = vpop.f32.mrf.mxu0
        %2342 = vmatprep.mubr.bf16.mxu0 0
        %2343 = vmatmul.mubr.bf16.gmra.mxu0 %v2286
        %v2344 = vpop.f32.mrf.mxu0
        %v2345 = vadd.f32 0.0, %v2344
        %v2346 = vpop.f32.mrf.mxu0
        %v2347 = vpop.f32.mrf.mxu0
        %v2348 = vadd.f32 0.0, %v2347
        %v2349 = vpop.f32.mrf.mxu0
        %2350 = vmatprep.mubr.bf16.mxu0 0
        %2351 = vmatmul.mubr.bf16.gmra.mxu0 %v2289
        %v2352 = vpop.f32.mrf.mxu0
        %v2353 = vadd.f32 0.0, %v2352
        %v2354 = vpop.f32.mrf.mxu0
        %v2355 = vpop.f32.mrf.mxu0
        %v2356 = vadd.f32 0.0, %v2355
        %v2357 = vpop.f32.mrf.mxu0
        %2358 = vdwg.mxu0
        %v2359 = vadd.f32 %v2159, %v2329
        %v2360 = vadd.f32 %v2160, %v2332
        %v2361 = vadd.f32 %v2161, %v2337
        %v2362 = vadd.f32 %v2162, %v2340
        %v2363 = vadd.f32 %v2163, %v2345
        %v2364 = vadd.f32 %v2164, %v2348
        %v2365 = vadd.f32 %v2165, %v2353
        %v2366 = vadd.f32 %v2166, %v2356
        %v2367 = vld [vmem:[%s3] sm:$0x1]
        %v2369 = vlaneseq
        %v2370 = vshrl.u32 %v2369, 7
        %v2371 = vsub.s32 0, %v2370
        %v2372 = vrot.slane %v2367, %v2371
        %v2374 = vadd.f32 %v2359, %v2372
        %v2375 = vadd.f32 %v2360, %v2372
        %v2376 = vadd.f32 %v2361, %v2372
        %v2377 = vadd.f32 %v2362, %v2372
        %v2378 = vadd.f32 %v2363, %v2372
        %v2379 = vadd.f32 %v2364, %v2372
        %v2380 = vadd.f32 %v2365, %v2372
        %v2381 = vadd.f32 %v2366, %v2372
        %v2382 = vmax.f32 %v2374, -1.0
        %v2383 = vmax.f32 %v2375, -1.0
        %v2384 = vmax.f32 %v2376, -1.0
        %v2385 = vmax.f32 %v2377, -1.0
        %v2386 = vmax.f32 %v2378, -1.0
        %v2387 = vmax.f32 %v2379, -1.0
        %v2388 = vmax.f32 %v2380, -1.0
        %v2389 = vmax.f32 %v2381, -1.0
        %v2390 = vmin.f32 %v2382, 1.0
        %v2391 = vmin.f32 %v2383, 1.0
        %v2392 = vmin.f32 %v2384, 1.0
        %v2393 = vmin.f32 %v2385, 1.0
        %v2394 = vmin.f32 %v2386, 1.0
        %v2395 = vmin.f32 %v2387, 1.0
        %v2396 = vmin.f32 %v2388, 1.0
        %v2397 = vmin.f32 %v2389, 1.0
        %v2398 = vpack.c.bf16 %v2391, %v2390
        %v2399 = vpack.c.bf16 %v2393, %v2392
        %v2400 = vpack.c.bf16 %v2395, %v2394
        %v2401 = vpack.c.bf16 %v2397, %v2396
        %v2402 = vld [vmem:[%s4] sm:$0xf]
        %v2403 = vld [vmem:[%s4 + $0x4] sm:$0xf]
        %v2406 = vunpack.c.l.b16 %v2402
        %v2407 = vunpack.c.l.b16 %v2403
        %v2408 = vpack.c.b16 %v2407, %v2406
        %v2410 = vsel %vm607, %v2408, 0
        %2412 = vmatprep.subr.bf16.mxu0 0
        %2413 = vmatpush1.bf16.msra.mxu0 0
        %2414 = vmatprep.subr.bf16.mxu0 0
        %2415 = vmatpush1.bf16.msra.mxu0 0
        %2416 = vmatprep.subr.bf16.mxu0 0
        %2417 = vmatpush1.bf16.msra.mxu0 0
        %2418 = vmatprep.subr.bf16.mxu0 0
        %2419 = vmatpush1.bf16.msra.mxu0 0
        %2420 = vmatprep.subr.bf16.mxu0 0
        %2421 = vmatpush1.bf16.msra.mxu0 %v2401
        %2422 = vmatprep.subr.bf16.mxu0 0
        %2423 = vmatpush1.bf16.msra.mxu0 %v2400
        %2424 = vmatprep.subr.bf16.mxu0 0
        %2425 = vmatpush1.bf16.msra.mxu0 %v2399
        %2426 = vmatprep.subr.bf16.mxu0 0
        %2427 = vmatpush1.bf16.msra.mxu0 %v2398
        %2428 = vmatprep.subr.bf16.mxu0 0
        %2429 = vmatpush2.bf16.msra.mxu0 0
        %2430 = vmatprep.subr.bf16.mxu0 0
        %2431 = vmatpush2.bf16.msra.mxu0 0
        %2432 = vmatprep.subr.bf16.mxu0 0
        %2433 = vmatpush2.bf16.msra.mxu0 0
        %2434 = vmatprep.subr.bf16.mxu0 0
        %2435 = vmatpush2.bf16.msra.mxu0 0
        %2436 = vmatprep.subr.bf16.mxu0 0
        %2437 = vmatpush2.bf16.msra.mxu0 0
        %2438 = vmatprep.subr.bf16.mxu0 0
        %2439 = vmatpush2.bf16.msra.mxu0 0
        %2440 = vmatprep.subr.bf16.mxu0 0
        %2441 = vmatpush2.bf16.msra.mxu0 0
        %2442 = vmatprep.subr.bf16.mxu0 0
        %2443 = vmatpush2.bf16.msra.mxu0 0
        %2444 = vmatprep.mubr.bf16.mxu0 0
        %2445 = vmatmul.mubr.bf16.gmra.mxu0 %v2410
        %v2446 = vpop.f32.mrf.mxu0
        %v2447 = vadd.f32 0.0, %v2446
        %v2448 = vpop.f32.mrf.mxu0
        %v2449 = vpop.f32.mrf.mxu0
        %v2450 = vadd.f32 0.0, %v2449
        %v2451 = vpop.f32.mrf.mxu0
        %2452 = vdwg.mxu0
        %s2453 = scalar_lea.vmem %s4, 8
        %v2454 = vld [vmem:[%s2453] sm:$0xf]
        %v2455 = vld [vmem:[%s2453 + $0x4] sm:$0xf]
        %v2458 = vunpack.c.l.b16 %v2454
        %v2459 = vunpack.c.l.b16 %v2455
        %v2460 = vpack.c.b16 %v2459, %v2458
        %v2462 = vsel %vm607, %v2460, 0
        %2464 = vmatprep.subr.bf16.mxu0 0
        %2465 = vmatpush1.bf16.msra.mxu0 0
        %2466 = vmatprep.subr.bf16.mxu0 0
        %2467 = vmatpush1.bf16.msra.mxu0 0
        %2468 = vmatprep.subr.bf16.mxu0 0
        %2469 = vmatpush1.bf16.msra.mxu0 0
        %2470 = vmatprep.subr.bf16.mxu0 0
        %2471 = vmatpush1.bf16.msra.mxu0 0
        %2472 = vmatprep.subr.bf16.mxu0 0
        %2473 = vmatpush1.bf16.msra.mxu0 %v2401
        %2474 = vmatprep.subr.bf16.mxu0 0
        %2475 = vmatpush1.bf16.msra.mxu0 %v2400
        %2476 = vmatprep.subr.bf16.mxu0 0
        %2477 = vmatpush1.bf16.msra.mxu0 %v2399
        %2478 = vmatprep.subr.bf16.mxu0 0
        %2479 = vmatpush1.bf16.msra.mxu0 %v2398
        %2480 = vmatprep.subr.bf16.mxu0 0
        %2481 = vmatpush2.bf16.msra.mxu0 0
        %2482 = vmatprep.subr.bf16.mxu0 0
        %2483 = vmatpush2.bf16.msra.mxu0 0
        %2484 = vmatprep.subr.bf16.mxu0 0
        %2485 = vmatpush2.bf16.msra.mxu0 0
        %2486 = vmatprep.subr.bf16.mxu0 0
        %2487 = vmatpush2.bf16.msra.mxu0 0
        %2488 = vmatprep.subr.bf16.mxu0 0
        %2489 = vmatpush2.bf16.msra.mxu0 0
        %2490 = vmatprep.subr.bf16.mxu0 0
        %2491 = vmatpush2.bf16.msra.mxu0 0
        %2492 = vmatprep.subr.bf16.mxu0 0
        %2493 = vmatpush2.bf16.msra.mxu0 0
        %2494 = vmatprep.subr.bf16.mxu0 0
        %2495 = vmatpush2.bf16.msra.mxu0 0
        %2496 = vmatprep.mubr.bf16.mxu0 0
        %2497 = vmatmul.mubr.bf16.gmra.mxu0 %v2462
        %v2498 = vpop.f32.mrf.mxu0
        %v2499 = vadd.f32 0.0, %v2498
        %v2500 = vpop.f32.mrf.mxu0
        %v2501 = vpop.f32.mrf.mxu0
        %v2502 = vadd.f32 0.0, %v2501
        %v2503 = vpop.f32.mrf.mxu0
        %2504 = vdwg.mxu0
        %v2505 = vmax.f32 %v2447, %v2499
        %v2506 = vmax.f32 %v2450, %v2502
        %s2507 = scalar_lea.vmem %s4, 16
        %v2508 = vld [vmem:[%s2507] sm:$0xf]
        %v2509 = vld [vmem:[%s2507 + $0x4] sm:$0xf]
        %v2512 = vunpack.c.l.b16 %v2508
        %v2513 = vunpack.c.l.b16 %v2509
        %v2514 = vpack.c.b16 %v2513, %v2512
        %v2516 = vsel %vm607, %v2514, 0
        %2518 = vmatprep.subr.bf16.mxu0 0
        %2519 = vmatpush1.bf16.msra.mxu0 0
        %2520 = vmatprep.subr.bf16.mxu0 0
        %2521 = vmatpush1.bf16.msra.mxu0 0
        %2522 = vmatprep.subr.bf16.mxu0 0
        %2523 = vmatpush1.bf16.msra.mxu0 0
        %2524 = vmatprep.subr.bf16.mxu0 0
        %2525 = vmatpush1.bf16.msra.mxu0 0
        %2526 = vmatprep.subr.bf16.mxu0 0
        %2527 = vmatpush1.bf16.msra.mxu0 %v2401
        %2528 = vmatprep.subr.bf16.mxu0 0
        %2529 = vmatpush1.bf16.msra.mxu0 %v2400
        %2530 = vmatprep.subr.bf16.mxu0 0
        %2531 = vmatpush1.bf16.msra.mxu0 %v2399
        %2532 = vmatprep.subr.bf16.mxu0 0
        %2533 = vmatpush1.bf16.msra.mxu0 %v2398
        %2534 = vmatprep.subr.bf16.mxu0 0
        %2535 = vmatpush2.bf16.msra.mxu0 0
        %2536 = vmatprep.subr.bf16.mxu0 0
        %2537 = vmatpush2.bf16.msra.mxu0 0
        %2538 = vmatprep.subr.bf16.mxu0 0
        %2539 = vmatpush2.bf16.msra.mxu0 0
        %2540 = vmatprep.subr.bf16.mxu0 0
        %2541 = vmatpush2.bf16.msra.mxu0 0
        %2542 = vmatprep.subr.bf16.mxu0 0
        %2543 = vmatpush2.bf16.msra.mxu0 0
        %2544 = vmatprep.subr.bf16.mxu0 0
        %2545 = vmatpush2.bf16.msra.mxu0 0
        %2546 = vmatprep.subr.bf16.mxu0 0
        %2547 = vmatpush2.bf16.msra.mxu0 0
        %2548 = vmatprep.subr.bf16.mxu0 0
        %2549 = vmatpush2.bf16.msra.mxu0 0
        %2550 = vmatprep.mubr.bf16.mxu0 0
        %2551 = vmatmul.mubr.bf16.gmra.mxu0 %v2516
        %v2552 = vpop.f32.mrf.mxu0
        %v2553 = vadd.f32 0.0, %v2552
        %v2554 = vpop.f32.mrf.mxu0
        %v2555 = vpop.f32.mrf.mxu0
        %v2556 = vadd.f32 0.0, %v2555
        %v2557 = vpop.f32.mrf.mxu0
        %2558 = vdwg.mxu0
        %v2559 = vmax.f32 %v2505, %v2553
        %v2560 = vmax.f32 %v2506, %v2556
        %s2561 = scalar_lea.vmem %s4, 24
        %v2562 = vld [vmem:[%s2561] sm:$0xf]
        %v2563 = vld [vmem:[%s2561 + $0x4] sm:$0xf]
        %v2566 = vunpack.c.l.b16 %v2562
        %v2567 = vunpack.c.l.b16 %v2563
        %v2568 = vpack.c.b16 %v2567, %v2566
        %v2570 = vsel %vm607, %v2568, 0
        %2572 = vmatprep.subr.bf16.mxu0 0
        %2573 = vmatpush1.bf16.msra.mxu0 0
        %2574 = vmatprep.subr.bf16.mxu0 0
        %2575 = vmatpush1.bf16.msra.mxu0 0
        %2576 = vmatprep.subr.bf16.mxu0 0
        %2577 = vmatpush1.bf16.msra.mxu0 0
        %2578 = vmatprep.subr.bf16.mxu0 0
        %2579 = vmatpush1.bf16.msra.mxu0 0
        %2580 = vmatprep.subr.bf16.mxu0 0
        %2581 = vmatpush1.bf16.msra.mxu0 %v2401
        %2582 = vmatprep.subr.bf16.mxu0 0
        %2583 = vmatpush1.bf16.msra.mxu0 %v2400
        %2584 = vmatprep.subr.bf16.mxu0 0
        %2585 = vmatpush1.bf16.msra.mxu0 %v2399
        %2586 = vmatprep.subr.bf16.mxu0 0
        %2587 = vmatpush1.bf16.msra.mxu0 %v2398
        %2588 = vmatprep.subr.bf16.mxu0 0
        %2589 = vmatpush2.bf16.msra.mxu0 0
        %2590 = vmatprep.subr.bf16.mxu0 0
        %2591 = vmatpush2.bf16.msra.mxu0 0
        %2592 = vmatprep.subr.bf16.mxu0 0
        %2593 = vmatpush2.bf16.msra.mxu0 0
        %2594 = vmatprep.subr.bf16.mxu0 0
        %2595 = vmatpush2.bf16.msra.mxu0 0
        %2596 = vmatprep.subr.bf16.mxu0 0
        %2597 = vmatpush2.bf16.msra.mxu0 0
        %2598 = vmatprep.subr.bf16.mxu0 0
        %2599 = vmatpush2.bf16.msra.mxu0 0
        %2600 = vmatprep.subr.bf16.mxu0 0
        %2601 = vmatpush2.bf16.msra.mxu0 0
        %2602 = vmatprep.subr.bf16.mxu0 0
        %2603 = vmatpush2.bf16.msra.mxu0 0
        %2604 = vmatprep.mubr.bf16.mxu0 0
        %2605 = vmatmul.mubr.bf16.gmra.mxu0 %v2570
        %v2606 = vpop.f32.mrf.mxu0
        %v2607 = vadd.f32 0.0, %v2606
        %v2608 = vpop.f32.mrf.mxu0
        %v2609 = vpop.f32.mrf.mxu0
        %v2610 = vadd.f32 0.0, %v2609
        %v2611 = vpop.f32.mrf.mxu0
        %2612 = vdwg.mxu0
        %v2613 = vmax.f32 %v2559, %v2607
        %v2614 = vmax.f32 %v2560, %v2610
        %v2615 = vpack.c.bf16 %v2614, %v2613
        %v2616 = vld [vmem:[%s5] sm:$0xf]
        %v2617 = vld [vmem:[%s5 + $0x4] sm:$0xf]
        %v2620 = vunpack.c.l.b16 %v2616
        %v2621 = vunpack.c.l.b16 %v2617
        %v2622 = vpack.c.b16 %v2621, %v2620
        %vm2623 = vcmask 130048
        %v2625 = vsel %vm2623, %v2622, 0
        %2627 = vmatprep.subr.bf16.mxu0 0
        %2628 = vmatpush1.bf16.msra.mxu0 0
        %2629 = vmatprep.subr.bf16.mxu0 0
        %2630 = vmatpush1.bf16.msra.mxu0 0
        %2631 = vmatprep.subr.bf16.mxu0 0
        %2632 = vmatpush1.bf16.msra.mxu0 0
        %2633 = vmatprep.subr.bf16.mxu0 0
        %2634 = vmatpush1.bf16.msra.mxu0 0
        %2635 = vmatprep.subr.bf16.mxu0 0
        %2636 = vmatpush1.bf16.msra.mxu0 0
        %2637 = vmatprep.subr.bf16.mxu0 0
        %2638 = vmatpush1.bf16.msra.mxu0 0
        %2639 = vmatprep.subr.bf16.mxu0 0
        %2640 = vmatpush1.bf16.msra.mxu0 0
        %2641 = vmatprep.subr.bf16.mxu0 0
        %2642 = vmatpush1.bf16.msra.mxu0 %v2615
        %2643 = vmatprep.subr.bf16.mxu0 0
        %2644 = vmatpush2.bf16.msra.mxu0 0
        %2645 = vmatprep.subr.bf16.mxu0 0
        %2646 = vmatpush2.bf16.msra.mxu0 0
        %2647 = vmatprep.subr.bf16.mxu0 0
        %2648 = vmatpush2.bf16.msra.mxu0 0
        %2649 = vmatprep.subr.bf16.mxu0 0
        %2650 = vmatpush2.bf16.msra.mxu0 0
        %2651 = vmatprep.subr.bf16.mxu0 0
        %2652 = vmatpush2.bf16.msra.mxu0 0
        %2653 = vmatprep.subr.bf16.mxu0 0
        %2654 = vmatpush2.bf16.msra.mxu0 0
        %2655 = vmatprep.subr.bf16.mxu0 0
        %2656 = vmatpush2.bf16.msra.mxu0 0
        %2657 = vmatprep.subr.bf16.mxu0 0
        %2658 = vmatpush2.bf16.msra.mxu0 0
        %2659 = vmatprep.mubr.bf16.mxu0 0
        %2660 = vmatmul.mubr.bf16.gmra.mxu0 %v2625
        %v2661 = vpop.f32.mrf.mxu0
        %v2662 = vadd.f32 0.0, %v2661
        %v2663 = vpop.f32.mrf.mxu0
        %v2664 = vpop.f32.mrf.mxu0
        %v2665 = vadd.f32 0.0, %v2664
        %v2666 = vpop.f32.mrf.mxu0
        %2667 = vdwg.mxu0
        %v2668 = vpack.c.bf16 %v2665, %v2662
        %v2669 = vld [vmem:[%s6] sm:$0xf]
        %v2670 = vld [vmem:[%s6 + $0x4] sm:$0xf]
        %v2671 = vld [vmem:[%s6 + $0x8] sm:$0xf]
        %v2672 = vld [vmem:[%s6 + $0xc] sm:$0xf]
        %s2673 = scalar_lea.vmem %s5, 8
        %v2674 = vld [vmem:[%s2673] sm:$0xf]
        %v2675 = vld [vmem:[%s2673 + $0x4] sm:$0xf]
        %v2678 = vunpack.c.l.b16 %v2674
        %v2679 = vunpack.c.l.b16 %v2675
        %v2680 = vpack.c.b16 %v2679, %v2678
        %v2682 = vsel %vm2623, %v2680, 0
        %2684 = vmatprep.subr.bf16.mxu0 0
        %2685 = vmatpush1.bf16.msra.mxu0 0
        %2686 = vmatprep.subr.bf16.mxu0 0
        %2687 = vmatpush1.bf16.msra.mxu0 0
        %2688 = vmatprep.subr.bf16.mxu0 0
        %2689 = vmatpush1.bf16.msra.mxu0 0
        %2690 = vmatprep.subr.bf16.mxu0 0
        %2691 = vmatpush1.bf16.msra.mxu0 0
        %2692 = vmatprep.subr.bf16.mxu0 0
        %2693 = vmatpush1.bf16.msra.mxu0 0
        %2694 = vmatprep.subr.bf16.mxu0 0
        %2695 = vmatpush1.bf16.msra.mxu0 0
        %2696 = vmatprep.subr.bf16.mxu0 0
        %2697 = vmatpush1.bf16.msra.mxu0 0
        %2698 = vmatprep.subr.bf16.mxu0 0
        %2699 = vmatpush1.bf16.msra.mxu0 %v2615
        %2700 = vmatprep.subr.bf16.mxu0 0
        %2701 = vmatpush2.bf16.msra.mxu0 0
        %2702 = vmatprep.subr.bf16.mxu0 0
        %2703 = vmatpush2.bf16.msra.mxu0 0
        %2704 = vmatprep.subr.bf16.mxu0 0
        %2705 = vmatpush2.bf16.msra.mxu0 0
        %2706 = vmatprep.subr.bf16.mxu0 0
        %2707 = vmatpush2.bf16.msra.mxu0 0
        %2708 = vmatprep.subr.bf16.mxu0 0
        %2709 = vmatpush2.bf16.msra.mxu0 0
        %2710 = vmatprep.subr.bf16.mxu0 0
        %2711 = vmatpush2.bf16.msra.mxu0 0
        %2712 = vmatprep.subr.bf16.mxu0 0
        %2713 = vmatpush2.bf16.msra.mxu0 0
        %2714 = vmatprep.subr.bf16.mxu0 0
        %2715 = vmatpush2.bf16.msra.mxu0 0
        %2716 = vmatprep.mubr.bf16.mxu0 0
        %2717 = vmatmul.mubr.bf16.gmra.mxu0 %v2682
        %v2718 = vpop.f32.mrf.mxu0
        %v2719 = vadd.f32 0.0, %v2718
        %v2720 = vpop.f32.mrf.mxu0
        %v2721 = vpop.f32.mrf.mxu0
        %v2722 = vadd.f32 0.0, %v2721
        %v2723 = vpop.f32.mrf.mxu0
        %2724 = vdwg.mxu0
        %v2725 = vpack.c.bf16 %v2722, %v2719
        %s2726 = scalar_lea.vmem %s6, 16
        %v2727 = vld [vmem:[%s2726] sm:$0xf]
        %v2728 = vld [vmem:[%s2726 + $0x4] sm:$0xf]
        %v2729 = vld [vmem:[%s2726 + $0x8] sm:$0xf]
        %v2730 = vld [vmem:[%s2726 + $0xc] sm:$0xf]
        %v2735 = vunpack.c.l.b16 %v2727
        %v2736 = vunpack.c.l.b16 %v2728
        %v2737 = vunpack.c.l.b16 %v2729
        %v2738 = vunpack.c.l.b16 %v2730
        %v2739 = vpack.c.b16 %v2736, %v2735
        %v2740 = vpack.c.b16 %v2738, %v2737
        %vm2743 = vcmask 261120
        %v2745 = vsel %vm2743, %v2725, 0
        %2747 = vmatprep.subr.bf16.mxu0 0
        %2748 = vmatpush1.bf16.msra.mxu0 0
        %2749 = vmatprep.subr.bf16.mxu0 0
        %2750 = vmatpush1.bf16.msra.mxu0 0
        %2751 = vmatprep.subr.bf16.mxu0 0
        %2752 = vmatpush1.bf16.msra.mxu0 0
        %2753 = vmatprep.subr.bf16.mxu0 0
        %2754 = vmatpush1.bf16.msra.mxu0 0
        %2755 = vmatprep.subr.bf16.mxu0 0
        %2756 = vmatpush1.bf16.msra.mxu0 0
        %2757 = vmatprep.subr.bf16.mxu0 0
        %2758 = vmatpush1.bf16.msra.mxu0 0
        %2759 = vmatprep.subr.bf16.mxu0 0
        %2760 = vmatpush1.bf16.msra.mxu0 %v2740
        %2761 = vmatprep.subr.bf16.mxu0 0
        %2762 = vmatpush1.bf16.msra.mxu0 %v2739
        %2763 = vmatprep.subr.bf16.mxu0 0
        %2764 = vmatpush2.bf16.msra.mxu0 0
        %2765 = vmatprep.subr.bf16.mxu0 0
        %2766 = vmatpush2.bf16.msra.mxu0 0
        %2767 = vmatprep.subr.bf16.mxu0 0
        %2768 = vmatpush2.bf16.msra.mxu0 0
        %2769 = vmatprep.subr.bf16.mxu0 0
        %2770 = vmatpush2.bf16.msra.mxu0 0
        %2771 = vmatprep.subr.bf16.mxu0 0
        %2772 = vmatpush2.bf16.msra.mxu0 0
        %2773 = vmatprep.subr.bf16.mxu0 0
        %2774 = vmatpush2.bf16.msra.mxu0 0
        %2775 = vmatprep.subr.bf16.mxu0 0
        %2776 = vmatpush2.bf16.msra.mxu0 0
        %2777 = vmatprep.subr.bf16.mxu0 0
        %2778 = vmatpush2.bf16.msra.mxu0 0
        %2779 = vmatprep.mubr.bf16.mxu0 0
        %2780 = vmatmul.mubr.bf16.gmra.mxu0 %v2745
        %v2781 = vpop.f32.mrf.mxu0
        %v2782 = vadd.f32 0.0, %v2781
        %v2783 = vpop.f32.mrf.mxu0
        %v2784 = vpop.f32.mrf.mxu0
        %v2785 = vadd.f32 0.0, %v2784
        %v2786 = vpop.f32.mrf.mxu0
        %2787 = vdwg.mxu0
        %v2792 = vunpack.c.l.b16 %v2669
        %v2793 = vunpack.c.l.b16 %v2670
        %v2794 = vunpack.c.l.b16 %v2671
        %v2795 = vunpack.c.l.b16 %v2672
        %v2796 = vpack.c.b16 %v2793, %v2792
        %v2797 = vpack.c.b16 %v2795, %v2794
        %v2801 = vsel %vm2743, %v2668, 0
        %2803 = vmatprep.subr.bf16.mxu0 0
        %2804 = vmatpush1.bf16.msra.mxu0 0
        %2805 = vmatprep.subr.bf16.mxu0 0
        %2806 = vmatpush1.bf16.msra.mxu0 0
        %2807 = vmatprep.subr.bf16.mxu0 0
        %2808 = vmatpush1.bf16.msra.mxu0 0
        %2809 = vmatprep.subr.bf16.mxu0 0
        %2810 = vmatpush1.bf16.msra.mxu0 0
        %2811 = vmatprep.subr.bf16.mxu0 0
        %2812 = vmatpush1.bf16.msra.mxu0 0
        %2813 = vmatprep.subr.bf16.mxu0 0
        %2814 = vmatpush1.bf16.msra.mxu0 0
        %2815 = vmatprep.subr.bf16.mxu0 0
        %2816 = vmatpush1.bf16.msra.mxu0 %v2797
        %2817 = vmatprep.subr.bf16.mxu0 0
        %2818 = vmatpush1.bf16.msra.mxu0 %v2796
        %2819 = vmatprep.subr.bf16.mxu0 0
        %2820 = vmatpush2.bf16.msra.mxu0 0
        %2821 = vmatprep.subr.bf16.mxu0 0
        %2822 = vmatpush2.bf16.msra.mxu0 0
        %2823 = vmatprep.subr.bf16.mxu0 0
        %2824 = vmatpush2.bf16.msra.mxu0 0
        %2825 = vmatprep.subr.bf16.mxu0 0
        %2826 = vmatpush2.bf16.msra.mxu0 0
        %2827 = vmatprep.subr.bf16.mxu0 0
        %2828 = vmatpush2.bf16.msra.mxu0 0
        %2829 = vmatprep.subr.bf16.mxu0 0
        %2830 = vmatpush2.bf16.msra.mxu0 0
        %2831 = vmatprep.subr.bf16.mxu0 0
        %2832 = vmatpush2.bf16.msra.mxu0 0
        %2833 = vmatprep.subr.bf16.mxu0 0
        %2834 = vmatpush2.bf16.msra.mxu0 0
        %2835 = vmatprep.mubr.bf16.mxu0 0
        %2836 = vmatmul.mubr.bf16.gmra.mxu0 %v2801
        %v2837 = vpop.f32.mrf.mxu0
        %v2838 = vadd.f32 %v2782, %v2837
        %v2839 = vpop.f32.mrf.mxu0
        %v2840 = vpop.f32.mrf.mxu0
        %v2841 = vadd.f32 %v2785, %v2840
        %v2842 = vpop.f32.mrf.mxu0
        %2843 = vdwg.mxu0
        %s2844 = scalar_lea.vmem %s5, 16
        %v2845 = vld [vmem:[%s2844] sm:$0xf]
        %v2846 = vld [vmem:[%s2844 + $0x4] sm:$0xf]
        %v2849 = vunpack.c.l.b16 %v2845
        %v2850 = vunpack.c.l.b16 %v2846
        %v2851 = vpack.c.b16 %v2850, %v2849
        %v2853 = vsel %vm2623, %v2851, 0
        %2855 = vmatprep.subr.bf16.mxu0 0
        %2856 = vmatpush1.bf16.msra.mxu0 0
        %2857 = vmatprep.subr.bf16.mxu0 0
        %2858 = vmatpush1.bf16.msra.mxu0 0
        %2859 = vmatprep.subr.bf16.mxu0 0
        %2860 = vmatpush1.bf16.msra.mxu0 0
        %2861 = vmatprep.subr.bf16.mxu0 0
        %2862 = vmatpush1.bf16.msra.mxu0 0
        %2863 = vmatprep.subr.bf16.mxu0 0
        %2864 = vmatpush1.bf16.msra.mxu0 0
        %2865 = vmatprep.subr.bf16.mxu0 0
        %2866 = vmatpush1.bf16.msra.mxu0 0
        %2867 = vmatprep.subr.bf16.mxu0 0
        %2868 = vmatpush1.bf16.msra.mxu0 0
        %2869 = vmatprep.subr.bf16.mxu0 0
        %2870 = vmatpush1.bf16.msra.mxu0 %v2615
        %2871 = vmatprep.subr.bf16.mxu0 0
        %2872 = vmatpush2.bf16.msra.mxu0 0
        %2873 = vmatprep.subr.bf16.mxu0 0
        %2874 = vmatpush2.bf16.msra.mxu0 0
        %2875 = vmatprep.subr.bf16.mxu0 0
        %2876 = vmatpush2.bf16.msra.mxu0 0
        %2877 = vmatprep.subr.bf16.mxu0 0
        %2878 = vmatpush2.bf16.msra.mxu0 0
        %2879 = vmatprep.subr.bf16.mxu0 0
        %2880 = vmatpush2.bf16.msra.mxu0 0
        %2881 = vmatprep.subr.bf16.mxu0 0
        %2882 = vmatpush2.bf16.msra.mxu0 0
        %2883 = vmatprep.subr.bf16.mxu0 0
        %2884 = vmatpush2.bf16.msra.mxu0 0
        %2885 = vmatprep.subr.bf16.mxu0 0
        %2886 = vmatpush2.bf16.msra.mxu0 0
        %2887 = vmatprep.mubr.bf16.mxu0 0
        %2888 = vmatmul.mubr.bf16.gmra.mxu0 %v2853
        %v2889 = vpop.f32.mrf.mxu0
        %v2890 = vadd.f32 0.0, %v2889
        %v2891 = vpop.f32.mrf.mxu0
        %v2892 = vpop.f32.mrf.mxu0
        %v2893 = vadd.f32 0.0, %v2892
        %v2894 = vpop.f32.mrf.mxu0
        %2895 = vdwg.mxu0
        %v2896 = vpack.c.bf16 %v2893, %v2890
        %s2897 = scalar_lea.vmem %s6, 32
        %v2898 = vld [vmem:[%s2897] sm:$0xf]
        %v2899 = vld [vmem:[%s2897 + $0x4] sm:$0xf]
        %v2900 = vld [vmem:[%s2897 + $0x8] sm:$0xf]
        %v2901 = vld [vmem:[%s2897 + $0xc] sm:$0xf]
        %v2906 = vunpack.c.l.b16 %v2898
        %v2907 = vunpack.c.l.b16 %v2899
        %v2908 = vunpack.c.l.b16 %v2900
        %v2909 = vunpack.c.l.b16 %v2901
        %v2910 = vpack.c.b16 %v2907, %v2906
        %v2911 = vpack.c.b16 %v2909, %v2908
        %v2915 = vsel %vm2743, %v2896, 0
        %2917 = vmatprep.subr.bf16.mxu0 0
        %2918 = vmatpush1.bf16.msra.mxu0 0
        %2919 = vmatprep.subr.bf16.mxu0 0
        %2920 = vmatpush1.bf16.msra.mxu0 0
        %2921 = vmatprep.subr.bf16.mxu0 0
        %2922 = vmatpush1.bf16.msra.mxu0 0
        %2923 = vmatprep.subr.bf16.mxu0 0
        %2924 = vmatpush1.bf16.msra.mxu0 0
        %2925 = vmatprep.subr.bf16.mxu0 0
        %2926 = vmatpush1.bf16.msra.mxu0 0
        %2927 = vmatprep.subr.bf16.mxu0 0
        %2928 = vmatpush1.bf16.msra.mxu0 0
        %2929 = vmatprep.subr.bf16.mxu0 0
        %2930 = vmatpush1.bf16.msra.mxu0 %v2911
        %2931 = vmatprep.subr.bf16.mxu0 0
        %2932 = vmatpush1.bf16.msra.mxu0 %v2910
        %2933 = vmatprep.subr.bf16.mxu0 0
        %2934 = vmatpush2.bf16.msra.mxu0 0
        %2935 = vmatprep.subr.bf16.mxu0 0
        %2936 = vmatpush2.bf16.msra.mxu0 0
        %2937 = vmatprep.subr.bf16.mxu0 0
        %2938 = vmatpush2.bf16.msra.mxu0 0
        %2939 = vmatprep.subr.bf16.mxu0 0
        %2940 = vmatpush2.bf16.msra.mxu0 0
        %2941 = vmatprep.subr.bf16.mxu0 0
        %2942 = vmatpush2.bf16.msra.mxu0 0
        %2943 = vmatprep.subr.bf16.mxu0 0
        %2944 = vmatpush2.bf16.msra.mxu0 0
        %2945 = vmatprep.subr.bf16.mxu0 0
        %2946 = vmatpush2.bf16.msra.mxu0 0
        %2947 = vmatprep.subr.bf16.mxu0 0
        %2948 = vmatpush2.bf16.msra.mxu0 0
        %2949 = vmatprep.mubr.bf16.mxu0 0
        %2950 = vmatmul.mubr.bf16.gmra.mxu0 %v2915
        %v2951 = vpop.f32.mrf.mxu0
        %v2952 = vadd.f32 0.0, %v2951
        %v2953 = vpop.f32.mrf.mxu0
        %v2954 = vpop.f32.mrf.mxu0
        %v2955 = vadd.f32 0.0, %v2954
        %v2956 = vpop.f32.mrf.mxu0
        %2957 = vdwg.mxu0
        %v2958 = vadd.f32 %v2838, %v2952
        %v2959 = vadd.f32 %v2841, %v2955
        %s2960 = scalar_lea.vmem %s5, 24
        %v2961 = vld [vmem:[%s2960] sm:$0xf]
        %v2962 = vld [vmem:[%s2960 + $0x4] sm:$0xf]
        %v2965 = vunpack.c.l.b16 %v2961
        %v2966 = vunpack.c.l.b16 %v2962
        %v2967 = vpack.c.b16 %v2966, %v2965
        %v2969 = vsel %vm2623, %v2967, 0
        %2971 = vmatprep.subr.bf16.mxu0 0
        %2972 = vmatpush1.bf16.msra.mxu0 0
        %2973 = vmatprep.subr.bf16.mxu0 0
        %2974 = vmatpush1.bf16.msra.mxu0 0
        %2975 = vmatprep.subr.bf16.mxu0 0
        %2976 = vmatpush1.bf16.msra.mxu0 0
        %2977 = vmatprep.subr.bf16.mxu0 0
        %2978 = vmatpush1.bf16.msra.mxu0 0
        %2979 = vmatprep.subr.bf16.mxu0 0
        %2980 = vmatpush1.bf16.msra.mxu0 0
        %2981 = vmatprep.subr.bf16.mxu0 0
        %2982 = vmatpush1.bf16.msra.mxu0 0
        %2983 = vmatprep.subr.bf16.mxu0 0
        %2984 = vmatpush1.bf16.msra.mxu0 0
        %2985 = vmatprep.subr.bf16.mxu0 0
        %2986 = vmatpush1.bf16.msra.mxu0 %v2615
        %2987 = vmatprep.subr.bf16.mxu0 0
        %2988 = vmatpush2.bf16.msra.mxu0 0
        %2989 = vmatprep.subr.bf16.mxu0 0
        %2990 = vmatpush2.bf16.msra.mxu0 0
        %2991 = vmatprep.subr.bf16.mxu0 0
        %2992 = vmatpush2.bf16.msra.mxu0 0
        %2993 = vmatprep.subr.bf16.mxu0 0
        %2994 = vmatpush2.bf16.msra.mxu0 0
        %2995 = vmatprep.subr.bf16.mxu0 0
        %2996 = vmatpush2.bf16.msra.mxu0 0
        %2997 = vmatprep.subr.bf16.mxu0 0
        %2998 = vmatpush2.bf16.msra.mxu0 0
        %2999 = vmatprep.subr.bf16.mxu0 0
        %3000 = vmatpush2.bf16.msra.mxu0 0
        %3001 = vmatprep.subr.bf16.mxu0 0
        %3002 = vmatpush2.bf16.msra.mxu0 0
        %3003 = vmatprep.mubr.bf16.mxu0 0
        %3004 = vmatmul.mubr.bf16.gmra.mxu0 %v2969
        %v3005 = vpop.f32.mrf.mxu0
        %v3006 = vadd.f32 0.0, %v3005
        %v3007 = vpop.f32.mrf.mxu0
        %v3008 = vpop.f32.mrf.mxu0
        %v3009 = vadd.f32 0.0, %v3008
        %v3010 = vpop.f32.mrf.mxu0
        %3011 = vdwg.mxu0
        %v3012 = vpack.c.bf16 %v3009, %v3006
        %s3013 = scalar_lea.vmem %s6, 48
        %v3014 = vld [vmem:[%s3013] sm:$0xf]
        %v3015 = vld [vmem:[%s3013 + $0x4] sm:$0xf]
        %v3016 = vld [vmem:[%s3013 + $0x8] sm:$0xf]
        %v3017 = vld [vmem:[%s3013 + $0xc] sm:$0xf]
        %v3022 = vunpack.c.l.b16 %v3014
        %v3023 = vunpack.c.l.b16 %v3015
        %v3024 = vunpack.c.l.b16 %v3016
        %v3025 = vunpack.c.l.b16 %v3017
        %v3026 = vpack.c.b16 %v3023, %v3022
        %v3027 = vpack.c.b16 %v3025, %v3024
        %v3031 = vsel %vm2743, %v3012, 0
        %3033 = vmatprep.subr.bf16.mxu0 0
        %3034 = vmatpush1.bf16.msra.mxu0 0
        %3035 = vmatprep.subr.bf16.mxu0 0
        %3036 = vmatpush1.bf16.msra.mxu0 0
        %3037 = vmatprep.subr.bf16.mxu0 0
        %3038 = vmatpush1.bf16.msra.mxu0 0
        %3039 = vmatprep.subr.bf16.mxu0 0
        %3040 = vmatpush1.bf16.msra.mxu0 0
        %3041 = vmatprep.subr.bf16.mxu0 0
        %3042 = vmatpush1.bf16.msra.mxu0 0
        %3043 = vmatprep.subr.bf16.mxu0 0
        %3044 = vmatpush1.bf16.msra.mxu0 0
        %3045 = vmatprep.subr.bf16.mxu0 0
        %3046 = vmatpush1.bf16.msra.mxu0 %v3027
        %3047 = vmatprep.subr.bf16.mxu0 0
        %3048 = vmatpush1.bf16.msra.mxu0 %v3026
        %3049 = vmatprep.subr.bf16.mxu0 0
        %3050 = vmatpush2.bf16.msra.mxu0 0
        %3051 = vmatprep.subr.bf16.mxu0 0
        %3052 = vmatpush2.bf16.msra.mxu0 0
        %3053 = vmatprep.subr.bf16.mxu0 0
        %3054 = vmatpush2.bf16.msra.mxu0 0
        %3055 = vmatprep.subr.bf16.mxu0 0
        %3056 = vmatpush2.bf16.msra.mxu0 0
        %3057 = vmatprep.subr.bf16.mxu0 0
        %3058 = vmatpush2.bf16.msra.mxu0 0
        %3059 = vmatprep.subr.bf16.mxu0 0
        %3060 = vmatpush2.bf16.msra.mxu0 0
        %3061 = vmatprep.subr.bf16.mxu0 0
        %3062 = vmatpush2.bf16.msra.mxu0 0
        %3063 = vmatprep.subr.bf16.mxu0 0
        %3064 = vmatpush2.bf16.msra.mxu0 0
        %3065 = vmatprep.mubr.bf16.mxu0 0
        %3066 = vmatmul.mubr.bf16.gmra.mxu0 %v3031
        %v3067 = vpop.f32.mrf.mxu0
        %v3068 = vadd.f32 0.0, %v3067
        %v3069 = vpop.f32.mrf.mxu0
        %v3070 = vpop.f32.mrf.mxu0
        %v3071 = vadd.f32 0.0, %v3070
        %v3072 = vpop.f32.mrf.mxu0
        %3073 = vdwg.mxu0
        %v3074 = vadd.f32 %v2958, %v3068
        %v3075 = vadd.f32 %v2959, %v3071
        %s3076 = scalar_lea.vmem %s5, 32
        %v3077 = vld [vmem:[%s3076] sm:$0xf]
        %v3078 = vld [vmem:[%s3076 + $0x4] sm:$0xf]
        %v3081 = vunpack.c.l.b16 %v3077
        %v3082 = vunpack.c.l.b16 %v3078
        %v3083 = vpack.c.b16 %v3082, %v3081
        %v3085 = vsel %vm2623, %v3083, 0
        %3087 = vmatprep.subr.bf16.mxu0 0
        %3088 = vmatpush1.bf16.msra.mxu0 0
        %3089 = vmatprep.subr.bf16.mxu0 0
        %3090 = vmatpush1.bf16.msra.mxu0 0
        %3091 = vmatprep.subr.bf16.mxu0 0
        %3092 = vmatpush1.bf16.msra.mxu0 0
        %3093 = vmatprep.subr.bf16.mxu0 0
        %3094 = vmatpush1.bf16.msra.mxu0 0
        %3095 = vmatprep.subr.bf16.mxu0 0
        %3096 = vmatpush1.bf16.msra.mxu0 0
        %3097 = vmatprep.subr.bf16.mxu0 0
        %3098 = vmatpush1.bf16.msra.mxu0 0
        %3099 = vmatprep.subr.bf16.mxu0 0
        %3100 = vmatpush1.bf16.msra.mxu0 0
        %3101 = vmatprep.subr.bf16.mxu0 0
        %3102 = vmatpush1.bf16.msra.mxu0 %v2615
        %3103 = vmatprep.subr.bf16.mxu0 0
        %3104 = vmatpush2.bf16.msra.mxu0 0
        %3105 = vmatprep.subr.bf16.mxu0 0
        %3106 = vmatpush2.bf16.msra.mxu0 0
        %3107 = vmatprep.subr.bf16.mxu0 0
        %3108 = vmatpush2.bf16.msra.mxu0 0
        %3109 = vmatprep.subr.bf16.mxu0 0
        %3110 = vmatpush2.bf16.msra.mxu0 0
        %3111 = vmatprep.subr.bf16.mxu0 0
        %3112 = vmatpush2.bf16.msra.mxu0 0
        %3113 = vmatprep.subr.bf16.mxu0 0
        %3114 = vmatpush2.bf16.msra.mxu0 0
        %3115 = vmatprep.subr.bf16.mxu0 0
        %3116 = vmatpush2.bf16.msra.mxu0 0
        %3117 = vmatprep.subr.bf16.mxu0 0
        %3118 = vmatpush2.bf16.msra.mxu0 0
        %3119 = vmatprep.mubr.bf16.mxu0 0
        %3120 = vmatmul.mubr.bf16.gmra.mxu0 %v3085
        %v3121 = vpop.f32.mrf.mxu0
        %v3122 = vadd.f32 0.0, %v3121
        %v3123 = vpop.f32.mrf.mxu0
        %v3124 = vpop.f32.mrf.mxu0
        %v3125 = vadd.f32 0.0, %v3124
        %v3126 = vpop.f32.mrf.mxu0
        %3127 = vdwg.mxu0
        %v3128 = vpack.c.bf16 %v3125, %v3122
        %s3129 = scalar_lea.vmem %s6, 64
        %v3130 = vld [vmem:[%s3129] sm:$0xf]
        %v3131 = vld [vmem:[%s3129 + $0x4] sm:$0xf]
        %v3132 = vld [vmem:[%s3129 + $0x8] sm:$0xf]
        %v3133 = vld [vmem:[%s3129 + $0xc] sm:$0xf]
        %v3138 = vunpack.c.l.b16 %v3130
        %v3139 = vunpack.c.l.b16 %v3131
        %v3140 = vunpack.c.l.b16 %v3132
        %v3141 = vunpack.c.l.b16 %v3133
        %v3142 = vpack.c.b16 %v3139, %v3138
        %v3143 = vpack.c.b16 %v3141, %v3140
        %v3147 = vsel %vm2743, %v3128, 0
        %3149 = vmatprep.subr.bf16.mxu0 0
        %3150 = vmatpush1.bf16.msra.mxu0 0
        %3151 = vmatprep.subr.bf16.mxu0 0
        %3152 = vmatpush1.bf16.msra.mxu0 0
        %3153 = vmatprep.subr.bf16.mxu0 0
        %3154 = vmatpush1.bf16.msra.mxu0 0
        %3155 = vmatprep.subr.bf16.mxu0 0
        %3156 = vmatpush1.bf16.msra.mxu0 0
        %3157 = vmatprep.subr.bf16.mxu0 0
        %3158 = vmatpush1.bf16.msra.mxu0 0
        %3159 = vmatprep.subr.bf16.mxu0 0
        %3160 = vmatpush1.bf16.msra.mxu0 0
        %3161 = vmatprep.subr.bf16.mxu0 0
        %3162 = vmatpush1.bf16.msra.mxu0 %v3143
        %3163 = vmatprep.subr.bf16.mxu0 0
        %3164 = vmatpush1.bf16.msra.mxu0 %v3142
        %3165 = vmatprep.subr.bf16.mxu0 0
        %3166 = vmatpush2.bf16.msra.mxu0 0
        %3167 = vmatprep.subr.bf16.mxu0 0
        %3168 = vmatpush2.bf16.msra.mxu0 0
        %3169 = vmatprep.subr.bf16.mxu0 0
        %3170 = vmatpush2.bf16.msra.mxu0 0
        %3171 = vmatprep.subr.bf16.mxu0 0
        %3172 = vmatpush2.bf16.msra.mxu0 0
        %3173 = vmatprep.subr.bf16.mxu0 0
        %3174 = vmatpush2.bf16.msra.mxu0 0
        %3175 = vmatprep.subr.bf16.mxu0 0
        %3176 = vmatpush2.bf16.msra.mxu0 0
        %3177 = vmatprep.subr.bf16.mxu0 0
        %3178 = vmatpush2.bf16.msra.mxu0 0
        %3179 = vmatprep.subr.bf16.mxu0 0
        %3180 = vmatpush2.bf16.msra.mxu0 0
        %3181 = vmatprep.mubr.bf16.mxu0 0
        %3182 = vmatmul.mubr.bf16.gmra.mxu0 %v3147
        %v3183 = vpop.f32.mrf.mxu0
        %v3184 = vadd.f32 0.0, %v3183
        %v3185 = vpop.f32.mrf.mxu0
        %v3186 = vpop.f32.mrf.mxu0
        %v3187 = vadd.f32 0.0, %v3186
        %v3188 = vpop.f32.mrf.mxu0
        %3189 = vdwg.mxu0
        %v3190 = vadd.f32 %v3074, %v3184
        %v3191 = vadd.f32 %v3075, %v3187
        %s3192 = scalar_lea.vmem %s5, 40
        %v3193 = vld [vmem:[%s3192] sm:$0xf]
        %v3194 = vld [vmem:[%s3192 + $0x4] sm:$0xf]
        %v3197 = vunpack.c.l.b16 %v3193
        %v3198 = vunpack.c.l.b16 %v3194
        %v3199 = vpack.c.b16 %v3198, %v3197
        %v3201 = vsel %vm2623, %v3199, 0
        %3203 = vmatprep.subr.bf16.mxu0 0
        %3204 = vmatpush1.bf16.msra.mxu0 0
        %3205 = vmatprep.subr.bf16.mxu0 0
        %3206 = vmatpush1.bf16.msra.mxu0 0
        %3207 = vmatprep.subr.bf16.mxu0 0
        %3208 = vmatpush1.bf16.msra.mxu0 0
        %3209 = vmatprep.subr.bf16.mxu0 0
        %3210 = vmatpush1.bf16.msra.mxu0 0
        %3211 = vmatprep.subr.bf16.mxu0 0
        %3212 = vmatpush1.bf16.msra.mxu0 0
        %3213 = vmatprep.subr.bf16.mxu0 0
        %3214 = vmatpush1.bf16.msra.mxu0 0
        %3215 = vmatprep.subr.bf16.mxu0 0
        %3216 = vmatpush1.bf16.msra.mxu0 0
        %3217 = vmatprep.subr.bf16.mxu0 0
        %3218 = vmatpush1.bf16.msra.mxu0 %v2615
        %3219 = vmatprep.subr.bf16.mxu0 0
        %3220 = vmatpush2.bf16.msra.mxu0 0
        %3221 = vmatprep.subr.bf16.mxu0 0
        %3222 = vmatpush2.bf16.msra.mxu0 0
        %3223 = vmatprep.subr.bf16.mxu0 0
        %3224 = vmatpush2.bf16.msra.mxu0 0
        %3225 = vmatprep.subr.bf16.mxu0 0
        %3226 = vmatpush2.bf16.msra.mxu0 0
        %3227 = vmatprep.subr.bf16.mxu0 0
        %3228 = vmatpush2.bf16.msra.mxu0 0
        %3229 = vmatprep.subr.bf16.mxu0 0
        %3230 = vmatpush2.bf16.msra.mxu0 0
        %3231 = vmatprep.subr.bf16.mxu0 0
        %3232 = vmatpush2.bf16.msra.mxu0 0
        %3233 = vmatprep.subr.bf16.mxu0 0
        %3234 = vmatpush2.bf16.msra.mxu0 0
        %3235 = vmatprep.mubr.bf16.mxu0 0
        %3236 = vmatmul.mubr.bf16.gmra.mxu0 %v3201
        %v3237 = vpop.f32.mrf.mxu0
        %v3238 = vadd.f32 0.0, %v3237
        %v3239 = vpop.f32.mrf.mxu0
        %v3240 = vpop.f32.mrf.mxu0
        %v3241 = vadd.f32 0.0, %v3240
        %v3242 = vpop.f32.mrf.mxu0
        %3243 = vdwg.mxu0
        %v3244 = vpack.c.bf16 %v3241, %v3238
        %s3245 = scalar_lea.vmem %s6, 80
        %v3246 = vld [vmem:[%s3245] sm:$0xf]
        %v3247 = vld [vmem:[%s3245 + $0x4] sm:$0xf]
        %v3248 = vld [vmem:[%s3245 + $0x8] sm:$0xf]
        %v3249 = vld [vmem:[%s3245 + $0xc] sm:$0xf]
        %v3254 = vunpack.c.l.b16 %v3246
        %v3255 = vunpack.c.l.b16 %v3247
        %v3256 = vunpack.c.l.b16 %v3248
        %v3257 = vunpack.c.l.b16 %v3249
        %v3258 = vpack.c.b16 %v3255, %v3254
        %v3259 = vpack.c.b16 %v3257, %v3256
        %v3263 = vsel %vm2743, %v3244, 0
        %3265 = vmatprep.subr.bf16.mxu0 0
        %3266 = vmatpush1.bf16.msra.mxu0 0
        %3267 = vmatprep.subr.bf16.mxu0 0
        %3268 = vmatpush1.bf16.msra.mxu0 0
        %3269 = vmatprep.subr.bf16.mxu0 0
        %3270 = vmatpush1.bf16.msra.mxu0 0
        %3271 = vmatprep.subr.bf16.mxu0 0
        %3272 = vmatpush1.bf16.msra.mxu0 0
        %3273 = vmatprep.subr.bf16.mxu0 0
        %3274 = vmatpush1.bf16.msra.mxu0 0
        %3275 = vmatprep.subr.bf16.mxu0 0
        %3276 = vmatpush1.bf16.msra.mxu0 0
        %3277 = vmatprep.subr.bf16.mxu0 0
        %3278 = vmatpush1.bf16.msra.mxu0 %v3259
        %3279 = vmatprep.subr.bf16.mxu0 0
        %3280 = vmatpush1.bf16.msra.mxu0 %v3258
        %3281 = vmatprep.subr.bf16.mxu0 0
        %3282 = vmatpush2.bf16.msra.mxu0 0
        %3283 = vmatprep.subr.bf16.mxu0 0
        %3284 = vmatpush2.bf16.msra.mxu0 0
        %3285 = vmatprep.subr.bf16.mxu0 0
        %3286 = vmatpush2.bf16.msra.mxu0 0
        %3287 = vmatprep.subr.bf16.mxu0 0
        %3288 = vmatpush2.bf16.msra.mxu0 0
        %3289 = vmatprep.subr.bf16.mxu0 0
        %3290 = vmatpush2.bf16.msra.mxu0 0
        %3291 = vmatprep.subr.bf16.mxu0 0
        %3292 = vmatpush2.bf16.msra.mxu0 0
        %3293 = vmatprep.subr.bf16.mxu0 0
        %3294 = vmatpush2.bf16.msra.mxu0 0
        %3295 = vmatprep.subr.bf16.mxu0 0
        %3296 = vmatpush2.bf16.msra.mxu0 0
        %3297 = vmatprep.mubr.bf16.mxu0 0
        %3298 = vmatmul.mubr.bf16.gmra.mxu0 %v3263
        %v3299 = vpop.f32.mrf.mxu0
        %v3300 = vadd.f32 0.0, %v3299
        %v3301 = vpop.f32.mrf.mxu0
        %v3302 = vpop.f32.mrf.mxu0
        %v3303 = vadd.f32 0.0, %v3302
        %v3304 = vpop.f32.mrf.mxu0
        %3305 = vdwg.mxu0
        %v3306 = vadd.f32 %v3190, %v3300
        %v3307 = vadd.f32 %v3191, %v3303
        %s3308 = scalar_lea.vmem %s5, 48
        %v3309 = vld [vmem:[%s3308] sm:$0xf]
        %v3310 = vld [vmem:[%s3308 + $0x4] sm:$0xf]
        %v3313 = vunpack.c.l.b16 %v3309
        %v3314 = vunpack.c.l.b16 %v3310
        %v3315 = vpack.c.b16 %v3314, %v3313
        %v3317 = vsel %vm2623, %v3315, 0
        %3319 = vmatprep.subr.bf16.mxu0 0
        %3320 = vmatpush1.bf16.msra.mxu0 0
        %3321 = vmatprep.subr.bf16.mxu0 0
        %3322 = vmatpush1.bf16.msra.mxu0 0
        %3323 = vmatprep.subr.bf16.mxu0 0
        %3324 = vmatpush1.bf16.msra.mxu0 0
        %3325 = vmatprep.subr.bf16.mxu0 0
        %3326 = vmatpush1.bf16.msra.mxu0 0
        %3327 = vmatprep.subr.bf16.mxu0 0
        %3328 = vmatpush1.bf16.msra.mxu0 0
        %3329 = vmatprep.subr.bf16.mxu0 0
        %3330 = vmatpush1.bf16.msra.mxu0 0
        %3331 = vmatprep.subr.bf16.mxu0 0
        %3332 = vmatpush1.bf16.msra.mxu0 0
        %3333 = vmatprep.subr.bf16.mxu0 0
        %3334 = vmatpush1.bf16.msra.mxu0 %v2615
        %3335 = vmatprep.subr.bf16.mxu0 0
        %3336 = vmatpush2.bf16.msra.mxu0 0
        %3337 = vmatprep.subr.bf16.mxu0 0
        %3338 = vmatpush2.bf16.msra.mxu0 0
        %3339 = vmatprep.subr.bf16.mxu0 0
        %3340 = vmatpush2.bf16.msra.mxu0 0
        %3341 = vmatprep.subr.bf16.mxu0 0
        %3342 = vmatpush2.bf16.msra.mxu0 0
        %3343 = vmatprep.subr.bf16.mxu0 0
        %3344 = vmatpush2.bf16.msra.mxu0 0
        %3345 = vmatprep.subr.bf16.mxu0 0
        %3346 = vmatpush2.bf16.msra.mxu0 0
        %3347 = vmatprep.subr.bf16.mxu0 0
        %3348 = vmatpush2.bf16.msra.mxu0 0
        %3349 = vmatprep.subr.bf16.mxu0 0
        %3350 = vmatpush2.bf16.msra.mxu0 0
        %3351 = vmatprep.mubr.bf16.mxu0 0
        %3352 = vmatmul.mubr.bf16.gmra.mxu0 %v3317
        %v3353 = vpop.f32.mrf.mxu0
        %v3354 = vadd.f32 0.0, %v3353
        %v3355 = vpop.f32.mrf.mxu0
        %v3356 = vpop.f32.mrf.mxu0
        %v3357 = vadd.f32 0.0, %v3356
        %v3358 = vpop.f32.mrf.mxu0
        %3359 = vdwg.mxu0
        %v3360 = vpack.c.bf16 %v3357, %v3354
        %s3361 = scalar_lea.vmem %s6, 96
        %v3362 = vld [vmem:[%s3361] sm:$0xf]
        %v3363 = vld [vmem:[%s3361 + $0x4] sm:$0xf]
        %v3364 = vld [vmem:[%s3361 + $0x8] sm:$0xf]
        %v3365 = vld [vmem:[%s3361 + $0xc] sm:$0xf]
        %v3370 = vunpack.c.l.b16 %v3362
        %v3371 = vunpack.c.l.b16 %v3363
        %v3372 = vunpack.c.l.b16 %v3364
        %v3373 = vunpack.c.l.b16 %v3365
        %v3374 = vpack.c.b16 %v3371, %v3370
        %v3375 = vpack.c.b16 %v3373, %v3372
        %v3379 = vsel %vm2743, %v3360, 0
        %3381 = vmatprep.subr.bf16.mxu0 0
        %3382 = vmatpush1.bf16.msra.mxu0 0
        %3383 = vmatprep.subr.bf16.mxu0 0
        %3384 = vmatpush1.bf16.msra.mxu0 0
        %3385 = vmatprep.subr.bf16.mxu0 0
        %3386 = vmatpush1.bf16.msra.mxu0 0
        %3387 = vmatprep.subr.bf16.mxu0 0
        %3388 = vmatpush1.bf16.msra.mxu0 0
        %3389 = vmatprep.subr.bf16.mxu0 0
        %3390 = vmatpush1.bf16.msra.mxu0 0
        %3391 = vmatprep.subr.bf16.mxu0 0
        %3392 = vmatpush1.bf16.msra.mxu0 0
        %3393 = vmatprep.subr.bf16.mxu0 0
        %3394 = vmatpush1.bf16.msra.mxu0 %v3375
        %3395 = vmatprep.subr.bf16.mxu0 0
        %3396 = vmatpush1.bf16.msra.mxu0 %v3374
        %3397 = vmatprep.subr.bf16.mxu0 0
        %3398 = vmatpush2.bf16.msra.mxu0 0
        %3399 = vmatprep.subr.bf16.mxu0 0
        %3400 = vmatpush2.bf16.msra.mxu0 0
        %3401 = vmatprep.subr.bf16.mxu0 0
        %3402 = vmatpush2.bf16.msra.mxu0 0
        %3403 = vmatprep.subr.bf16.mxu0 0
        %3404 = vmatpush2.bf16.msra.mxu0 0
        %3405 = vmatprep.subr.bf16.mxu0 0
        %3406 = vmatpush2.bf16.msra.mxu0 0
        %3407 = vmatprep.subr.bf16.mxu0 0
        %3408 = vmatpush2.bf16.msra.mxu0 0
        %3409 = vmatprep.subr.bf16.mxu0 0
        %3410 = vmatpush2.bf16.msra.mxu0 0
        %3411 = vmatprep.subr.bf16.mxu0 0
        %3412 = vmatpush2.bf16.msra.mxu0 0
        %3413 = vmatprep.mubr.bf16.mxu0 0
        %3414 = vmatmul.mubr.bf16.gmra.mxu0 %v3379
        %v3415 = vpop.f32.mrf.mxu0
        %v3416 = vadd.f32 0.0, %v3415
        %v3417 = vpop.f32.mrf.mxu0
        %v3418 = vpop.f32.mrf.mxu0
        %v3419 = vadd.f32 0.0, %v3418
        %v3420 = vpop.f32.mrf.mxu0
        %3421 = vdwg.mxu0
        %v3422 = vadd.f32 %v3306, %v3416
        %v3423 = vadd.f32 %v3307, %v3419
        %s3424 = scalar_lea.vmem %s5, 56
        %v3425 = vld [vmem:[%s3424] sm:$0xf]
        %v3426 = vld [vmem:[%s3424 + $0x4] sm:$0xf]
        %v3429 = vunpack.c.l.b16 %v3425
        %v3430 = vunpack.c.l.b16 %v3426
        %v3431 = vpack.c.b16 %v3430, %v3429
        %v3433 = vsel %vm2623, %v3431, 0
        %3435 = vmatprep.subr.bf16.mxu0 0
        %3436 = vmatpush1.bf16.msra.mxu0 0
        %3437 = vmatprep.subr.bf16.mxu0 0
        %3438 = vmatpush1.bf16.msra.mxu0 0
        %3439 = vmatprep.subr.bf16.mxu0 0
        %3440 = vmatpush1.bf16.msra.mxu0 0
        %3441 = vmatprep.subr.bf16.mxu0 0
        %3442 = vmatpush1.bf16.msra.mxu0 0
        %3443 = vmatprep.subr.bf16.mxu0 0
        %3444 = vmatpush1.bf16.msra.mxu0 0
        %3445 = vmatprep.subr.bf16.mxu0 0
        %3446 = vmatpush1.bf16.msra.mxu0 0
        %3447 = vmatprep.subr.bf16.mxu0 0
        %3448 = vmatpush1.bf16.msra.mxu0 0
        %3449 = vmatprep.subr.bf16.mxu0 0
        %3450 = vmatpush1.bf16.msra.mxu0 %v2615
        %3451 = vmatprep.subr.bf16.mxu0 0
        %3452 = vmatpush2.bf16.msra.mxu0 0
        %3453 = vmatprep.subr.bf16.mxu0 0
        %3454 = vmatpush2.bf16.msra.mxu0 0
        %3455 = vmatprep.subr.bf16.mxu0 0
        %3456 = vmatpush2.bf16.msra.mxu0 0
        %3457 = vmatprep.subr.bf16.mxu0 0
        %3458 = vmatpush2.bf16.msra.mxu0 0
        %3459 = vmatprep.subr.bf16.mxu0 0
        %3460 = vmatpush2.bf16.msra.mxu0 0
        %3461 = vmatprep.subr.bf16.mxu0 0
        %3462 = vmatpush2.bf16.msra.mxu0 0
        %3463 = vmatprep.subr.bf16.mxu0 0
        %3464 = vmatpush2.bf16.msra.mxu0 0
        %3465 = vmatprep.subr.bf16.mxu0 0
        %3466 = vmatpush2.bf16.msra.mxu0 0
        %3467 = vmatprep.mubr.bf16.mxu0 0
        %3468 = vmatmul.mubr.bf16.gmra.mxu0 %v3433
        %v3469 = vpop.f32.mrf.mxu0
        %v3470 = vadd.f32 0.0, %v3469
        %v3471 = vpop.f32.mrf.mxu0
        %v3472 = vpop.f32.mrf.mxu0
        %v3473 = vadd.f32 0.0, %v3472
        %v3474 = vpop.f32.mrf.mxu0
        %3475 = vdwg.mxu0
        %v3476 = vpack.c.bf16 %v3473, %v3470
        %s3477 = scalar_lea.vmem %s6, 112
        %v3478 = vld [vmem:[%s3477] sm:$0xf]
        %v3479 = vld [vmem:[%s3477 + $0x4] sm:$0xf]
        %v3480 = vld [vmem:[%s3477 + $0x8] sm:$0xf]
        %v3481 = vld [vmem:[%s3477 + $0xc] sm:$0xf]
        %v3486 = vunpack.c.l.b16 %v3478
        %v3487 = vunpack.c.l.b16 %v3479
        %v3488 = vunpack.c.l.b16 %v3480
        %v3489 = vunpack.c.l.b16 %v3481
        %v3490 = vpack.c.b16 %v3487, %v3486
        %v3491 = vpack.c.b16 %v3489, %v3488
        %v3495 = vsel %vm2743, %v3476, 0
        %3497 = vmatprep.subr.bf16.mxu0 0
        %3498 = vmatpush1.bf16.msra.mxu0 0
        %3499 = vmatprep.subr.bf16.mxu0 0
        %3500 = vmatpush1.bf16.msra.mxu0 0
        %3501 = vmatprep.subr.bf16.mxu0 0
        %3502 = vmatpush1.bf16.msra.mxu0 0
        %3503 = vmatprep.subr.bf16.mxu0 0
        %3504 = vmatpush1.bf16.msra.mxu0 0
        %3505 = vmatprep.subr.bf16.mxu0 0
        %3506 = vmatpush1.bf16.msra.mxu0 0
        %3507 = vmatprep.subr.bf16.mxu0 0
        %3508 = vmatpush1.bf16.msra.mxu0 0
        %3509 = vmatprep.subr.bf16.mxu0 0
        %3510 = vmatpush1.bf16.msra.mxu0 %v3491
        %3511 = vmatprep.subr.bf16.mxu0 0
        %3512 = vmatpush1.bf16.msra.mxu0 %v3490
        %3513 = vmatprep.subr.bf16.mxu0 0
        %3514 = vmatpush2.bf16.msra.mxu0 0
        %3515 = vmatprep.subr.bf16.mxu0 0
        %3516 = vmatpush2.bf16.msra.mxu0 0
        %3517 = vmatprep.subr.bf16.mxu0 0
        %3518 = vmatpush2.bf16.msra.mxu0 0
        %3519 = vmatprep.subr.bf16.mxu0 0
        %3520 = vmatpush2.bf16.msra.mxu0 0
        %3521 = vmatprep.subr.bf16.mxu0 0
        %3522 = vmatpush2.bf16.msra.mxu0 0
        %3523 = vmatprep.subr.bf16.mxu0 0
        %3524 = vmatpush2.bf16.msra.mxu0 0
        %3525 = vmatprep.subr.bf16.mxu0 0
        %3526 = vmatpush2.bf16.msra.mxu0 0
        %3527 = vmatprep.subr.bf16.mxu0 0
        %3528 = vmatpush2.bf16.msra.mxu0 0
        %3529 = vmatprep.mubr.bf16.mxu0 0
        %3530 = vmatmul.mubr.bf16.gmra.mxu0 %v3495
        %v3531 = vpop.f32.mrf.mxu0
        %v3532 = vadd.f32 0.0, %v3531
        %v3533 = vpop.f32.mrf.mxu0
        %v3534 = vpop.f32.mrf.mxu0
        %v3535 = vadd.f32 0.0, %v3534
        %v3536 = vpop.f32.mrf.mxu0
        %3537 = vdwg.mxu0
        %v3538 = vadd.f32 %v3422, %v3532
        %v3539 = vadd.f32 %v3423, %v3535
        %s3540 = scalar_lea.vmem %s5, 64
        %v3541 = vld [vmem:[%s3540] sm:$0xf]
        %v3542 = vld [vmem:[%s3540 + $0x4] sm:$0xf]
        %v3545 = vunpack.c.l.b16 %v3541
        %v3546 = vunpack.c.l.b16 %v3542
        %v3547 = vpack.c.b16 %v3546, %v3545
        %v3549 = vsel %vm2623, %v3547, 0
        %3551 = vmatprep.subr.bf16.mxu0 0
        %3552 = vmatpush1.bf16.msra.mxu0 0
        %3553 = vmatprep.subr.bf16.mxu0 0
        %3554 = vmatpush1.bf16.msra.mxu0 0
        %3555 = vmatprep.subr.bf16.mxu0 0
        %3556 = vmatpush1.bf16.msra.mxu0 0
        %3557 = vmatprep.subr.bf16.mxu0 0
        %3558 = vmatpush1.bf16.msra.mxu0 0
        %3559 = vmatprep.subr.bf16.mxu0 0
        %3560 = vmatpush1.bf16.msra.mxu0 0
        %3561 = vmatprep.subr.bf16.mxu0 0
        %3562 = vmatpush1.bf16.msra.mxu0 0
        %3563 = vmatprep.subr.bf16.mxu0 0
        %3564 = vmatpush1.bf16.msra.mxu0 0
        %3565 = vmatprep.subr.bf16.mxu0 0
        %3566 = vmatpush1.bf16.msra.mxu0 %v2615
        %3567 = vmatprep.subr.bf16.mxu0 0
        %3568 = vmatpush2.bf16.msra.mxu0 0
        %3569 = vmatprep.subr.bf16.mxu0 0
        %3570 = vmatpush2.bf16.msra.mxu0 0
        %3571 = vmatprep.subr.bf16.mxu0 0
        %3572 = vmatpush2.bf16.msra.mxu0 0
        %3573 = vmatprep.subr.bf16.mxu0 0
        %3574 = vmatpush2.bf16.msra.mxu0 0
        %3575 = vmatprep.subr.bf16.mxu0 0
        %3576 = vmatpush2.bf16.msra.mxu0 0
        %3577 = vmatprep.subr.bf16.mxu0 0
        %3578 = vmatpush2.bf16.msra.mxu0 0
        %3579 = vmatprep.subr.bf16.mxu0 0
        %3580 = vmatpush2.bf16.msra.mxu0 0
        %3581 = vmatprep.subr.bf16.mxu0 0
        %3582 = vmatpush2.bf16.msra.mxu0 0
        %3583 = vmatprep.mubr.bf16.mxu0 0
        %3584 = vmatmul.mubr.bf16.gmra.mxu0 %v3549
        %v3585 = vpop.f32.mrf.mxu0
        %v3586 = vadd.f32 0.0, %v3585
        %v3587 = vpop.f32.mrf.mxu0
        %v3588 = vpop.f32.mrf.mxu0
        %v3589 = vadd.f32 0.0, %v3588
        %v3590 = vpop.f32.mrf.mxu0
        %3591 = vdwg.mxu0
        %v3592 = vpack.c.bf16 %v3589, %v3586
        %s3593 = scalar_lea.vmem %s6, 128
        %v3594 = vld [vmem:[%s3593] sm:$0xf]
        %v3595 = vld [vmem:[%s3593 + $0x4] sm:$0xf]
        %v3596 = vld [vmem:[%s3593 + $0x8] sm:$0xf]
        %v3597 = vld [vmem:[%s3593 + $0xc] sm:$0xf]
        %v3602 = vunpack.c.l.b16 %v3594
        %v3603 = vunpack.c.l.b16 %v3595
        %v3604 = vunpack.c.l.b16 %v3596
        %v3605 = vunpack.c.l.b16 %v3597
        %v3606 = vpack.c.b16 %v3603, %v3602
        %v3607 = vpack.c.b16 %v3605, %v3604
        %v3611 = vsel %vm2743, %v3592, 0
        %3613 = vmatprep.subr.bf16.mxu0 0
        %3614 = vmatpush1.bf16.msra.mxu0 0
        %3615 = vmatprep.subr.bf16.mxu0 0
        %3616 = vmatpush1.bf16.msra.mxu0 0
        %3617 = vmatprep.subr.bf16.mxu0 0
        %3618 = vmatpush1.bf16.msra.mxu0 0
        %3619 = vmatprep.subr.bf16.mxu0 0
        %3620 = vmatpush1.bf16.msra.mxu0 0
        %3621 = vmatprep.subr.bf16.mxu0 0
        %3622 = vmatpush1.bf16.msra.mxu0 0
        %3623 = vmatprep.subr.bf16.mxu0 0
        %3624 = vmatpush1.bf16.msra.mxu0 0
        %3625 = vmatprep.subr.bf16.mxu0 0
        %3626 = vmatpush1.bf16.msra.mxu0 %v3607
        %3627 = vmatprep.subr.bf16.mxu0 0
        %3628 = vmatpush1.bf16.msra.mxu0 %v3606
        %3629 = vmatprep.subr.bf16.mxu0 0
        %3630 = vmatpush2.bf16.msra.mxu0 0
        %3631 = vmatprep.subr.bf16.mxu0 0
        %3632 = vmatpush2.bf16.msra.mxu0 0
        %3633 = vmatprep.subr.bf16.mxu0 0
        %3634 = vmatpush2.bf16.msra.mxu0 0
        %3635 = vmatprep.subr.bf16.mxu0 0
        %3636 = vmatpush2.bf16.msra.mxu0 0
        %3637 = vmatprep.subr.bf16.mxu0 0
        %3638 = vmatpush2.bf16.msra.mxu0 0
        %3639 = vmatprep.subr.bf16.mxu0 0
        %3640 = vmatpush2.bf16.msra.mxu0 0
        %3641 = vmatprep.subr.bf16.mxu0 0
        %3642 = vmatpush2.bf16.msra.mxu0 0
        %3643 = vmatprep.subr.bf16.mxu0 0
        %3644 = vmatpush2.bf16.msra.mxu0 0
        %3645 = vmatprep.mubr.bf16.mxu0 0
        %3646 = vmatmul.mubr.bf16.gmra.mxu0 %v3611
        %v3647 = vpop.f32.mrf.mxu0
        %v3648 = vadd.f32 0.0, %v3647
        %v3649 = vpop.f32.mrf.mxu0
        %v3650 = vpop.f32.mrf.mxu0
        %v3651 = vadd.f32 0.0, %v3650
        %v3652 = vpop.f32.mrf.mxu0
        %3653 = vdwg.mxu0
        %v3654 = vadd.f32 %v3538, %v3648
        %v3655 = vadd.f32 %v3539, %v3651
        %v3656 = vld [vmem:[%s7] sm:$0x1]
        %v3658 = vlaneseq
        %v3659 = vshrl.u32 %v3658, 7
        %v3660 = vsub.s32 0, %v3659
        %v3661 = vrot.slane %v3656, %v3660
        %v3663 = vadd.f32 %v3654, %v3661
        %v3664 = vadd.f32 %v3655, %v3661
        %v3665 = vmax.f32 %v3663, -1.0
        %v3666 = vmax.f32 %v3664, -1.0
        %v3667 = vmin.f32 %v3665, 1.0
        %v3668 = vmin.f32 %v3666, 1.0
        %v3669 = vpack.c.bf16 %v3668, %v3667
        %v3670 = vld [vmem:[%s8] sm:$0x3]
        %v3672 = vsel %vm2623, %v3670, 0
        %3674 = vmatprep.subr.bf16.mxu0 0
        %3675 = vmatpush1.bf16.msra.mxu0 0
        %3676 = vmatprep.subr.bf16.mxu0 0
        %3677 = vmatpush1.bf16.msra.mxu0 0
        %3678 = vmatprep.subr.bf16.mxu0 0
        %3679 = vmatpush1.bf16.msra.mxu0 0
        %3680 = vmatprep.subr.bf16.mxu0 0
        %3681 = vmatpush1.bf16.msra.mxu0 0
        %3682 = vmatprep.subr.bf16.mxu0 0
        %3683 = vmatpush1.bf16.msra.mxu0 0
        %3684 = vmatprep.subr.bf16.mxu0 0
        %3685 = vmatpush1.bf16.msra.mxu0 0
        %3686 = vmatprep.subr.bf16.mxu0 0
        %3687 = vmatpush1.bf16.msra.mxu0 0
        %3688 = vmatprep.subr.bf16.mxu0 0
        %3689 = vmatpush1.bf16.msra.mxu0 %v3669
        %3690 = vmatprep.subr.bf16.mxu0 0
        %3691 = vmatpush2.bf16.msra.mxu0 0
        %3692 = vmatprep.subr.bf16.mxu0 0
        %3693 = vmatpush2.bf16.msra.mxu0 0
        %3694 = vmatprep.subr.bf16.mxu0 0
        %3695 = vmatpush2.bf16.msra.mxu0 0
        %3696 = vmatprep.subr.bf16.mxu0 0
        %3697 = vmatpush2.bf16.msra.mxu0 0
        %3698 = vmatprep.subr.bf16.mxu0 0
        %3699 = vmatpush2.bf16.msra.mxu0 0
        %3700 = vmatprep.subr.bf16.mxu0 0
        %3701 = vmatpush2.bf16.msra.mxu0 0
        %3702 = vmatprep.subr.bf16.mxu0 0
        %3703 = vmatpush2.bf16.msra.mxu0 0
        %3704 = vmatprep.subr.bf16.mxu0 0
        %3705 = vmatpush2.bf16.msra.mxu0 0
        %3706 = vmatprep.mubr.bf16.mxu0 0
        %3707 = vmatmul.mubr.bf16.gmra.mxu0 %v3672
        %v3708 = vpop.f32.mrf.mxu0
        %v3709 = vadd.f32 0.0, %v3708
        %v3710 = vpop.f32.mrf.mxu0
        %v3711 = vpop.f32.mrf.mxu0
        %v3712 = vpop.f32.mrf.mxu0
        %3713 = vdwg.mxu0
        %s3714 = scalar_lea.vmem %s8, 2
        %v3715 = vld [vmem:[%s3714] sm:$0x3]
        %v3717 = vsel %vm2623, %v3715, 0
        %3719 = vmatprep.subr.bf16.mxu0 0
        %3720 = vmatpush1.bf16.msra.mxu0 0
        %3721 = vmatprep.subr.bf16.mxu0 0
        %3722 = vmatpush1.bf16.msra.mxu0 0
        %3723 = vmatprep.subr.bf16.mxu0 0
        %3724 = vmatpush1.bf16.msra.mxu0 0
        %3725 = vmatprep.subr.bf16.mxu0 0
        %3726 = vmatpush1.bf16.msra.mxu0 0
        %3727 = vmatprep.subr.bf16.mxu0 0
        %3728 = vmatpush1.bf16.msra.mxu0 0
        %3729 = vmatprep.subr.bf16.mxu0 0
        %3730 = vmatpush1.bf16.msra.mxu0 0
        %3731 = vmatprep.subr.bf16.mxu0 0
        %3732 = vmatpush1.bf16.msra.mxu0 0
        %3733 = vmatprep.subr.bf16.mxu0 0
        %3734 = vmatpush1.bf16.msra.mxu0 %v3669
        %3735 = vmatprep.subr.bf16.mxu0 0
        %3736 = vmatpush2.bf16.msra.mxu0 0
        %3737 = vmatprep.subr.bf16.mxu0 0
        %3738 = vmatpush2.bf16.msra.mxu0 0
        %3739 = vmatprep.subr.bf16.mxu0 0
        %3740 = vmatpush2.bf16.msra.mxu0 0
        %3741 = vmatprep.subr.bf16.mxu0 0
        %3742 = vmatpush2.bf16.msra.mxu0 0
        %3743 = vmatprep.subr.bf16.mxu0 0
        %3744 = vmatpush2.bf16.msra.mxu0 0
        %3745 = vmatprep.subr.bf16.mxu0 0
        %3746 = vmatpush2.bf16.msra.mxu0 0
        %3747 = vmatprep.subr.bf16.mxu0 0
        %3748 = vmatpush2.bf16.msra.mxu0 0
        %3749 = vmatprep.subr.bf16.mxu0 0
        %3750 = vmatpush2.bf16.msra.mxu0 0
        %3751 = vmatprep.mubr.bf16.mxu0 0
        %3752 = vmatmul.mubr.bf16.gmra.mxu0 %v3717
        %v3753 = vpop.f32.mrf.mxu0
        %v3754 = vadd.f32 0.0, %v3753
        %v3755 = vpop.f32.mrf.mxu0
        %v3756 = vpop.f32.mrf.mxu0
        %v3757 = vpop.f32.mrf.mxu0
        %3758 = vdwg.mxu0
        %v3759 = vmax.f32 %v3709, %v3754
        %s3760 = scalar_lea.vmem %s8, 4
        %v3761 = vld [vmem:[%s3760] sm:$0x3]
        %v3763 = vsel %vm2623, %v3761, 0
        %3765 = vmatprep.subr.bf16.mxu0 0
        %3766 = vmatpush1.bf16.msra.mxu0 0
        %3767 = vmatprep.subr.bf16.mxu0 0
        %3768 = vmatpush1.bf16.msra.mxu0 0
        %3769 = vmatprep.subr.bf16.mxu0 0
        %3770 = vmatpush1.bf16.msra.mxu0 0
        %3771 = vmatprep.subr.bf16.mxu0 0
        %3772 = vmatpush1.bf16.msra.mxu0 0
        %3773 = vmatprep.subr.bf16.mxu0 0
        %3774 = vmatpush1.bf16.msra.mxu0 0
        %3775 = vmatprep.subr.bf16.mxu0 0
        %3776 = vmatpush1.bf16.msra.mxu0 0
        %3777 = vmatprep.subr.bf16.mxu0 0
        %3778 = vmatpush1.bf16.msra.mxu0 0
        %3779 = vmatprep.subr.bf16.mxu0 0
        %3780 = vmatpush1.bf16.msra.mxu0 %v3669
        %3781 = vmatprep.subr.bf16.mxu0 0
        %3782 = vmatpush2.bf16.msra.mxu0 0
        %3783 = vmatprep.subr.bf16.mxu0 0
        %3784 = vmatpush2.bf16.msra.mxu0 0
        %3785 = vmatprep.subr.bf16.mxu0 0
        %3786 = vmatpush2.bf16.msra.mxu0 0
        %3787 = vmatprep.subr.bf16.mxu0 0
        %3788 = vmatpush2.bf16.msra.mxu0 0
        %3789 = vmatprep.subr.bf16.mxu0 0
        %3790 = vmatpush2.bf16.msra.mxu0 0
        %3791 = vmatprep.subr.bf16.mxu0 0
        %3792 = vmatpush2.bf16.msra.mxu0 0
        %3793 = vmatprep.subr.bf16.mxu0 0
        %3794 = vmatpush2.bf16.msra.mxu0 0
        %3795 = vmatprep.subr.bf16.mxu0 0
        %3796 = vmatpush2.bf16.msra.mxu0 0
        %3797 = vmatprep.mubr.bf16.mxu0 0
        %3798 = vmatmul.mubr.bf16.gmra.mxu0 %v3763
        %v3799 = vpop.f32.mrf.mxu0
        %v3800 = vadd.f32 0.0, %v3799
        %v3801 = vpop.f32.mrf.mxu0
        %v3802 = vpop.f32.mrf.mxu0
        %v3803 = vpop.f32.mrf.mxu0
        %3804 = vdwg.mxu0
        %v3805 = vmax.f32 %v3759, %v3800
        %s3806 = scalar_lea.vmem %s8, 6
        %v3807 = vld [vmem:[%s3806] sm:$0x3]
        %v3809 = vsel %vm2623, %v3807, 0
        %3811 = vmatprep.subr.bf16.mxu0 0
        %3812 = vmatpush1.bf16.msra.mxu0 0
        %3813 = vmatprep.subr.bf16.mxu0 0
        %3814 = vmatpush1.bf16.msra.mxu0 0
        %3815 = vmatprep.subr.bf16.mxu0 0
        %3816 = vmatpush1.bf16.msra.mxu0 0
        %3817 = vmatprep.subr.bf16.mxu0 0
        %3818 = vmatpush1.bf16.msra.mxu0 0
        %3819 = vmatprep.subr.bf16.mxu0 0
        %3820 = vmatpush1.bf16.msra.mxu0 0
        %3821 = vmatprep.subr.bf16.mxu0 0
        %3822 = vmatpush1.bf16.msra.mxu0 0
        %3823 = vmatprep.subr.bf16.mxu0 0
        %3824 = vmatpush1.bf16.msra.mxu0 0
        %3825 = vmatprep.subr.bf16.mxu0 0
        %3826 = vmatpush1.bf16.msra.mxu0 %v3669
        %3827 = vmatprep.subr.bf16.mxu0 0
        %3828 = vmatpush2.bf16.msra.mxu0 0
        %3829 = vmatprep.subr.bf16.mxu0 0
        %3830 = vmatpush2.bf16.msra.mxu0 0
        %3831 = vmatprep.subr.bf16.mxu0 0
        %3832 = vmatpush2.bf16.msra.mxu0 0
        %3833 = vmatprep.subr.bf16.mxu0 0
        %3834 = vmatpush2.bf16.msra.mxu0 0
        %3835 = vmatprep.subr.bf16.mxu0 0
        %3836 = vmatpush2.bf16.msra.mxu0 0
        %3837 = vmatprep.subr.bf16.mxu0 0
        %3838 = vmatpush2.bf16.msra.mxu0 0
        %3839 = vmatprep.subr.bf16.mxu0 0
        %3840 = vmatpush2.bf16.msra.mxu0 0
        %3841 = vmatprep.subr.bf16.mxu0 0
        %3842 = vmatpush2.bf16.msra.mxu0 0
        %3843 = vmatprep.mubr.bf16.mxu0 0
        %3844 = vmatmul.mubr.bf16.gmra.mxu0 %v3809
        %v3845 = vpop.f32.mrf.mxu0
        %v3846 = vadd.f32 0.0, %v3845
        %v3847 = vpop.f32.mrf.mxu0
        %v3848 = vpop.f32.mrf.mxu0
        %v3849 = vpop.f32.mrf.mxu0
        %3850 = vdwg.mxu0
        %v3851 = vmax.f32 %v3805, %v3846
        %v3852 = vpack.c.bf16 %v3851, %v3851
        %v3853 = vld [vmem:[%s9] sm:$0x3]
        %vm3854 = vcmask 31744
        %v3856 = vsel %vm3854, %v3853, 0
        %v3859 = vsel %vm816, %v3852, 0
        %3861 = vmatprep.subr.bf16.mxu0 0
        %3862 = vmatpush1.bf16.msra.mxu0 0
        %3863 = vmatprep.subr.bf16.mxu0 0
        %3864 = vmatpush1.bf16.msra.mxu0 0
        %3865 = vmatprep.subr.bf16.mxu0 0
        %3866 = vmatpush1.bf16.msra.mxu0 0
        %3867 = vmatprep.subr.bf16.mxu0 0
        %3868 = vmatpush1.bf16.msra.mxu0 0
        %3869 = vmatprep.subr.bf16.mxu0 0
        %3870 = vmatpush1.bf16.msra.mxu0 0
        %3871 = vmatprep.subr.bf16.mxu0 0
        %3872 = vmatpush1.bf16.msra.mxu0 0
        %3873 = vmatprep.subr.bf16.mxu0 0
        %3874 = vmatpush1.bf16.msra.mxu0 0
        %3875 = vmatprep.subr.bf16.mxu0 0
        %3876 = vmatpush1.bf16.msra.mxu0 %v3859
        %3877 = vmatprep.subr.bf16.mxu0 0
        %3878 = vmatpush2.bf16.msra.mxu0 0
        %3879 = vmatprep.subr.bf16.mxu0 0
        %3880 = vmatpush2.bf16.msra.mxu0 0
        %3881 = vmatprep.subr.bf16.mxu0 0
        %3882 = vmatpush2.bf16.msra.mxu0 0
        %3883 = vmatprep.subr.bf16.mxu0 0
        %3884 = vmatpush2.bf16.msra.mxu0 0
        %3885 = vmatprep.subr.bf16.mxu0 0
        %3886 = vmatpush2.bf16.msra.mxu0 0
        %3887 = vmatprep.subr.bf16.mxu0 0
        %3888 = vmatpush2.bf16.msra.mxu0 0
        %3889 = vmatprep.subr.bf16.mxu0 0
        %3890 = vmatpush2.bf16.msra.mxu0 0
        %3891 = vmatprep.subr.bf16.mxu0 0
        %3892 = vmatpush2.bf16.msra.mxu0 0
        %3893 = vmatprep.mubr.bf16.mxu0 0
        %3894 = vmatmul.mubr.bf16.gmra.mxu0 %v3856
        %v3895 = vpop.f32.mrf.mxu0
        %v3896 = vadd.f32 0.0, %v3895
        %v3897 = vpop.f32.mrf.mxu0
        %v3898 = vpop.f32.mrf.mxu0
        %v3899 = vpop.f32.mrf.mxu0
        %3900 = vdwg.mxu0
        %v3901 = vpack.c.bf16 %v3896, %v3896
        %v3902 = vld [vmem:[%s10] sm:$0xff]
        %v3903 = vld [vmem:[%s10 + $0x8] sm:$0xff]
        %v3904 = vld [vmem:[%s10 + $0x10] sm:$0xff]
        %v3905 = vld [vmem:[%s10 + $0x18] sm:$0xff]
        %v3906 = vld [vmem:[%s10 + $0x20] sm:$0xff]
        %v3907 = vld [vmem:[%s10 + $0x28] sm:$0xff]
        %v3908 = vld [vmem:[%s10 + $0x30] sm:$0xff]
        %v3909 = vld [vmem:[%s10 + $0x38] sm:$0xff]
        %v3910 = vld [vmem:[%s10 + $0x40] sm:$0xff]
        %v3911 = vld [vmem:[%s10 + $0x48] sm:$0xff]
        %v3912 = vld [vmem:[%s10 + $0x50] sm:$0xff]
        %v3913 = vld [vmem:[%s10 + $0x58] sm:$0xff]
        %v3914 = vld [vmem:[%s10 + $0x60] sm:$0xff]
        %v3915 = vld [vmem:[%s10 + $0x68] sm:$0xff]
        %v3916 = vld [vmem:[%s10 + $0x70] sm:$0xff]
        %v3917 = vld [vmem:[%s10 + $0x78] sm:$0xff]
        %s3918 = scalar_lea.vmem %s9, 2
        %v3919 = vld [vmem:[%s3918] sm:$0x3]
        %v3921 = vsel %vm3854, %v3919, 0
        %3923 = vmatprep.subr.bf16.mxu0 0
        %3924 = vmatpush1.bf16.msra.mxu0 0
        %3925 = vmatprep.subr.bf16.mxu0 0
        %3926 = vmatpush1.bf16.msra.mxu0 0
        %3927 = vmatprep.subr.bf16.mxu0 0
        %3928 = vmatpush1.bf16.msra.mxu0 0
        %3929 = vmatprep.subr.bf16.mxu0 0
        %3930 = vmatpush1.bf16.msra.mxu0 0
        %3931 = vmatprep.subr.bf16.mxu0 0
        %3932 = vmatpush1.bf16.msra.mxu0 0
        %3933 = vmatprep.subr.bf16.mxu0 0
        %3934 = vmatpush1.bf16.msra.mxu0 0
        %3935 = vmatprep.subr.bf16.mxu0 0
        %3936 = vmatpush1.bf16.msra.mxu0 0
        %3937 = vmatprep.subr.bf16.mxu0 0
        %3938 = vmatpush1.bf16.msra.mxu0 %v3859
        %3939 = vmatprep.subr.bf16.mxu0 0
        %3940 = vmatpush2.bf16.msra.mxu0 0
        %3941 = vmatprep.subr.bf16.mxu0 0
        %3942 = vmatpush2.bf16.msra.mxu0 0
        %3943 = vmatprep.subr.bf16.mxu0 0
        %3944 = vmatpush2.bf16.msra.mxu0 0
        %3945 = vmatprep.subr.bf16.mxu0 0
        %3946 = vmatpush2.bf16.msra.mxu0 0
        %3947 = vmatprep.subr.bf16.mxu0 0
        %3948 = vmatpush2.bf16.msra.mxu0 0
        %3949 = vmatprep.subr.bf16.mxu0 0
        %3950 = vmatpush2.bf16.msra.mxu0 0
        %3951 = vmatprep.subr.bf16.mxu0 0
        %3952 = vmatpush2.bf16.msra.mxu0 0
        %3953 = vmatprep.subr.bf16.mxu0 0
        %3954 = vmatpush2.bf16.msra.mxu0 0
        %3955 = vmatprep.mubr.bf16.mxu0 0
        %3956 = vmatmul.mubr.bf16.gmra.mxu0 %v3921
        %v3957 = vpop.f32.mrf.mxu0
        %v3958 = vadd.f32 0.0, %v3957
        %v3959 = vpop.f32.mrf.mxu0
        %v3960 = vpop.f32.mrf.mxu0
        %v3961 = vpop.f32.mrf.mxu0
        %3962 = vdwg.mxu0
        %v3963 = vpack.c.bf16 %v3958, %v3958
        %s3964 = scalar_lea.vmem %s10, 128
        %v3965 = vld [vmem:[%s3964] sm:$0xff]
        %v3966 = vld [vmem:[%s3964 + $0x8] sm:$0xff]
        %v3967 = vld [vmem:[%s3964 + $0x10] sm:$0xff]
        %v3968 = vld [vmem:[%s3964 + $0x18] sm:$0xff]
        %v3969 = vld [vmem:[%s3964 + $0x20] sm:$0xff]
        %v3970 = vld [vmem:[%s3964 + $0x28] sm:$0xff]
        %v3971 = vld [vmem:[%s3964 + $0x30] sm:$0xff]
        %v3972 = vld [vmem:[%s3964 + $0x38] sm:$0xff]
        %v3973 = vld [vmem:[%s3964 + $0x40] sm:$0xff]
        %v3974 = vld [vmem:[%s3964 + $0x48] sm:$0xff]
        %v3975 = vld [vmem:[%s3964 + $0x50] sm:$0xff]
        %v3976 = vld [vmem:[%s3964 + $0x58] sm:$0xff]
        %v3977 = vld [vmem:[%s3964 + $0x60] sm:$0xff]
        %v3978 = vld [vmem:[%s3964 + $0x68] sm:$0xff]
        %v3979 = vld [vmem:[%s3964 + $0x70] sm:$0xff]
        %v3980 = vld [vmem:[%s3964 + $0x78] sm:$0xff]
        %v3997 = vunpack.c.l.b16 %v3965
        %v3998 = vunpack.c.h.b16 %v3965
        %v3999 = vunpack.c.l.b16 %v3966
        %v4000 = vunpack.c.h.b16 %v3966
        %v4001 = vunpack.c.l.b16 %v3967
        %v4002 = vunpack.c.h.b16 %v3967
        %v4003 = vunpack.c.l.b16 %v3968
        %v4004 = vunpack.c.h.b16 %v3968
        %v4005 = vunpack.c.l.b16 %v3969
        %v4006 = vunpack.c.h.b16 %v3969
        %v4007 = vunpack.c.l.b16 %v3970
        %v4008 = vunpack.c.h.b16 %v3970
        %v4009 = vunpack.c.l.b16 %v3971
        %v4010 = vunpack.c.h.b16 %v3971
        %v4011 = vunpack.c.l.b16 %v3972
        %v4012 = vunpack.c.h.b16 %v3972
        %v4013 = vunpack.c.l.b16 %v3973
        %v4014 = vunpack.c.h.b16 %v3973
        %v4015 = vunpack.c.l.b16 %v3974
        %v4016 = vunpack.c.h.b16 %v3974
        %v4017 = vunpack.c.l.b16 %v3975
        %v4018 = vunpack.c.h.b16 %v3975
        %v4019 = vunpack.c.l.b16 %v3976
        %v4020 = vunpack.c.h.b16 %v3976
        %v4021 = vunpack.c.l.b16 %v3977
        %v4022 = vunpack.c.h.b16 %v3977
        %v4023 = vunpack.c.l.b16 %v3978
        %v4024 = vunpack.c.h.b16 %v3978
        %v4025 = vunpack.c.l.b16 %v3979
        %v4026 = vunpack.c.h.b16 %v3979
        %v4027 = vunpack.c.l.b16 %v3980
        %v4028 = vunpack.c.h.b16 %v3980
        %v4029 = vpack.c.b16 %v4001, %v3997
        %v4030 = vpack.c.b16 %v4002, %v3998
        %v4031 = vpack.c.b16 %v4003, %v3999
        %v4032 = vpack.c.b16 %v4004, %v4000
        %v4033 = vpack.c.b16 %v4009, %v4005
        %v4034 = vpack.c.b16 %v4010, %v4006
        %v4035 = vpack.c.b16 %v4011, %v4007
        %v4036 = vpack.c.b16 %v4012, %v4008
        %v4037 = vpack.c.b16 %v4017, %v4013
        %v4038 = vpack.c.b16 %v4018, %v4014
        %v4039 = vpack.c.b16 %v4019, %v4015
        %v4040 = vpack.c.b16 %v4020, %v4016
        %v4041 = vpack.c.b16 %v4025, %v4021
        %v4042 = vpack.c.b16 %v4026, %v4022
        %v4043 = vpack.c.b16 %v4027, %v4023
        %v4044 = vpack.c.b16 %v4028, %v4024
        %v4062 = vsel %vm607, %v3963, 0
        %4064 = vmatprep.subr.bf16.mxu0 0
        %4065 = vmatpush1.bf16.msra.mxu0 0
        %4066 = vmatprep.subr.bf16.mxu0 0
        %4067 = vmatpush1.bf16.msra.mxu0 0
        %4068 = vmatprep.subr.bf16.mxu0 0
        %4069 = vmatpush1.bf16.msra.mxu0 0
        %4070 = vmatprep.subr.bf16.mxu0 0
        %4071 = vmatpush1.bf16.msra.mxu0 0
        %4072 = vmatprep.subr.bf16.mxu0 %v4042
        %4073 = vmatpush1.bf16.msra.mxu0 %v4041
        %4074 = vmatprep.subr.bf16.mxu0 %v4038
        %4075 = vmatpush1.bf16.msra.mxu0 %v4037
        %4076 = vmatprep.subr.bf16.mxu0 %v4034
        %4077 = vmatpush1.bf16.msra.mxu0 %v4033
        %4078 = vmatprep.subr.bf16.mxu0 %v4030
        %4079 = vmatpush1.bf16.msra.mxu0 %v4029
        %4080 = vmatprep.subr.bf16.mxu0 0
        %4081 = vmatpush2.bf16.msra.mxu0 0
        %4082 = vmatprep.subr.bf16.mxu0 0
        %4083 = vmatpush2.bf16.msra.mxu0 0
        %4084 = vmatprep.subr.bf16.mxu0 0
        %4085 = vmatpush2.bf16.msra.mxu0 0
        %4086 = vmatprep.subr.bf16.mxu0 0
        %4087 = vmatpush2.bf16.msra.mxu0 0
        %4088 = vmatprep.subr.bf16.mxu0 0
        %4089 = vmatpush2.bf16.msra.mxu0 0
        %4090 = vmatprep.subr.bf16.mxu0 0
        %4091 = vmatpush2.bf16.msra.mxu0 0
        %4092 = vmatprep.subr.bf16.mxu0 0
        %4093 = vmatpush2.bf16.msra.mxu0 0
        %4094 = vmatprep.subr.bf16.mxu0 0
        %4095 = vmatpush2.bf16.msra.mxu0 0
        %4096 = vmatprep.mubr.bf16.mxu0 0
        %4097 = vmatmul.mubr.bf16.gmra.mxu0 %v4062
        %v4098 = vpop.f32.mrf.mxu0
        %v4099 = vadd.f32 0.0, %v4098
        %v4100 = vpop.f32.mrf.mxu0
        %v4101 = vadd.f32 0.0, %v4100
        %v4102 = vpop.f32.mrf.mxu0
        %v4103 = vpop.f32.mrf.mxu0
        %4104 = vdwg.mxu0
        %4105 = vmatprep.subr.bf16.mxu0 0
        %4106 = vmatpush1.bf16.msra.mxu0 0
        %4107 = vmatprep.subr.bf16.mxu0 0
        %4108 = vmatpush1.bf16.msra.mxu0 0
        %4109 = vmatprep.subr.bf16.mxu0 0
        %4110 = vmatpush1.bf16.msra.mxu0 0
        %4111 = vmatprep.subr.bf16.mxu0 0
        %4112 = vmatpush1.bf16.msra.mxu0 0
        %4113 = vmatprep.subr.bf16.mxu0 %v4044
        %4114 = vmatpush1.bf16.msra.mxu0 %v4043
        %4115 = vmatprep.subr.bf16.mxu0 %v4040
        %4116 = vmatpush1.bf16.msra.mxu0 %v4039
        %4117 = vmatprep.subr.bf16.mxu0 %v4036
        %4118 = vmatpush1.bf16.msra.mxu0 %v4035
        %4119 = vmatprep.subr.bf16.mxu0 %v4032
        %4120 = vmatpush1.bf16.msra.mxu0 %v4031
        %4121 = vmatprep.subr.bf16.mxu0 0
        %4122 = vmatpush2.bf16.msra.mxu0 0
        %4123 = vmatprep.subr.bf16.mxu0 0
        %4124 = vmatpush2.bf16.msra.mxu0 0
        %4125 = vmatprep.subr.bf16.mxu0 0
        %4126 = vmatpush2.bf16.msra.mxu0 0
        %4127 = vmatprep.subr.bf16.mxu0 0
        %4128 = vmatpush2.bf16.msra.mxu0 0
        %4129 = vmatprep.subr.bf16.mxu0 0
        %4130 = vmatpush2.bf16.msra.mxu0 0
        %4131 = vmatprep.subr.bf16.mxu0 0
        %4132 = vmatpush2.bf16.msra.mxu0 0
        %4133 = vmatprep.subr.bf16.mxu0 0
        %4134 = vmatpush2.bf16.msra.mxu0 0
        %4135 = vmatprep.subr.bf16.mxu0 0
        %4136 = vmatpush2.bf16.msra.mxu0 0
        %4137 = vmatprep.mubr.bf16.mxu0 0
        %4138 = vmatmul.mubr.bf16.gmra.mxu0 %v4062
        %v4139 = vpop.f32.mrf.mxu0
        %v4140 = vadd.f32 0.0, %v4139
        %v4141 = vpop.f32.mrf.mxu0
        %v4142 = vadd.f32 0.0, %v4141
        %v4143 = vpop.f32.mrf.mxu0
        %v4144 = vpop.f32.mrf.mxu0
        %4145 = vdwg.mxu0
        %v4162 = vunpack.c.l.b16 %v3902
        %v4163 = vunpack.c.h.b16 %v3902
        %v4164 = vunpack.c.l.b16 %v3903
        %v4165 = vunpack.c.h.b16 %v3903
        %v4166 = vunpack.c.l.b16 %v3904
        %v4167 = vunpack.c.h.b16 %v3904
        %v4168 = vunpack.c.l.b16 %v3905
        %v4169 = vunpack.c.h.b16 %v3905
        %v4170 = vunpack.c.l.b16 %v3906
        %v4171 = vunpack.c.h.b16 %v3906
        %v4172 = vunpack.c.l.b16 %v3907
        %v4173 = vunpack.c.h.b16 %v3907
        %v4174 = vunpack.c.l.b16 %v3908
        %v4175 = vunpack.c.h.b16 %v3908
        %v4176 = vunpack.c.l.b16 %v3909
        %v4177 = vunpack.c.h.b16 %v3909
        %v4178 = vunpack.c.l.b16 %v3910
        %v4179 = vunpack.c.h.b16 %v3910
        %v4180 = vunpack.c.l.b16 %v3911
        %v4181 = vunpack.c.h.b16 %v3911
        %v4182 = vunpack.c.l.b16 %v3912
        %v4183 = vunpack.c.h.b16 %v3912
        %v4184 = vunpack.c.l.b16 %v3913
        %v4185 = vunpack.c.h.b16 %v3913
        %v4186 = vunpack.c.l.b16 %v3914
        %v4187 = vunpack.c.h.b16 %v3914
        %v4188 = vunpack.c.l.b16 %v3915
        %v4189 = vunpack.c.h.b16 %v3915
        %v4190 = vunpack.c.l.b16 %v3916
        %v4191 = vunpack.c.h.b16 %v3916
        %v4192 = vunpack.c.l.b16 %v3917
        %v4193 = vunpack.c.h.b16 %v3917
        %v4194 = vpack.c.b16 %v4166, %v4162
        %v4195 = vpack.c.b16 %v4167, %v4163
        %v4196 = vpack.c.b16 %v4168, %v4164
        %v4197 = vpack.c.b16 %v4169, %v4165
        %v4198 = vpack.c.b16 %v4174, %v4170
        %v4199 = vpack.c.b16 %v4175, %v4171
        %v4200 = vpack.c.b16 %v4176, %v4172
        %v4201 = vpack.c.b16 %v4177, %v4173
        %v4202 = vpack.c.b16 %v4182, %v4178
        %v4203 = vpack.c.b16 %v4183, %v4179
        %v4204 = vpack.c.b16 %v4184, %v4180
        %v4205 = vpack.c.b16 %v4185, %v4181
        %v4206 = vpack.c.b16 %v4190, %v4186
        %v4207 = vpack.c.b16 %v4191, %v4187
        %v4208 = vpack.c.b16 %v4192, %v4188
        %v4209 = vpack.c.b16 %v4193, %v4189
        %v4227 = vsel %vm607, %v3901, 0
        %4229 = vmatprep.subr.bf16.mxu0 0
        %4230 = vmatpush1.bf16.msra.mxu0 0
        %4231 = vmatprep.subr.bf16.mxu0 0
        %4232 = vmatpush1.bf16.msra.mxu0 0
        %4233 = vmatprep.subr.bf16.mxu0 0
        %4234 = vmatpush1.bf16.msra.mxu0 0
        %4235 = vmatprep.subr.bf16.mxu0 0
        %4236 = vmatpush1.bf16.msra.mxu0 0
        %4237 = vmatprep.subr.bf16.mxu0 %v4207
        %4238 = vmatpush1.bf16.msra.mxu0 %v4206
        %4239 = vmatprep.subr.bf16.mxu0 %v4203
        %4240 = vmatpush1.bf16.msra.mxu0 %v4202
        %4241 = vmatprep.subr.bf16.mxu0 %v4199
        %4242 = vmatpush1.bf16.msra.mxu0 %v4198
        %4243 = vmatprep.subr.bf16.mxu0 %v4195
        %4244 = vmatpush1.bf16.msra.mxu0 %v4194
        %4245 = vmatprep.subr.bf16.mxu0 0
        %4246 = vmatpush2.bf16.msra.mxu0 0
        %4247 = vmatprep.subr.bf16.mxu0 0
        %4248 = vmatpush2.bf16.msra.mxu0 0
        %4249 = vmatprep.subr.bf16.mxu0 0
        %4250 = vmatpush2.bf16.msra.mxu0 0
        %4251 = vmatprep.subr.bf16.mxu0 0
        %4252 = vmatpush2.bf16.msra.mxu0 0
        %4253 = vmatprep.subr.bf16.mxu0 0
        %4254 = vmatpush2.bf16.msra.mxu0 0
        %4255 = vmatprep.subr.bf16.mxu0 0
        %4256 = vmatpush2.bf16.msra.mxu0 0
        %4257 = vmatprep.subr.bf16.mxu0 0
        %4258 = vmatpush2.bf16.msra.mxu0 0
        %4259 = vmatprep.subr.bf16.mxu0 0
        %4260 = vmatpush2.bf16.msra.mxu0 0
        %4261 = vmatprep.mubr.bf16.mxu0 0
        %4262 = vmatmul.mubr.bf16.gmra.mxu0 %v4227
        %v4263 = vpop.f32.mrf.mxu0
        %v4264 = vadd.f32 %v4099, %v4263
        %v4265 = vpop.f32.mrf.mxu0
        %v4266 = vadd.f32 %v4101, %v4265
        %v4267 = vpop.f32.mrf.mxu0
        %v4268 = vpop.f32.mrf.mxu0
        %4269 = vdwg.mxu0
        %4270 = vmatprep.subr.bf16.mxu0 0
        %4271 = vmatpush1.bf16.msra.mxu0 0
        %4272 = vmatprep.subr.bf16.mxu0 0
        %4273 = vmatpush1.bf16.msra.mxu0 0
        %4274 = vmatprep.subr.bf16.mxu0 0
        %4275 = vmatpush1.bf16.msra.mxu0 0
        %4276 = vmatprep.subr.bf16.mxu0 0
        %4277 = vmatpush1.bf16.msra.mxu0 0
        %4278 = vmatprep.subr.bf16.mxu0 %v4209
        %4279 = vmatpush1.bf16.msra.mxu0 %v4208
        %4280 = vmatprep.subr.bf16.mxu0 %v4205
        %4281 = vmatpush1.bf16.msra.mxu0 %v4204
        %4282 = vmatprep.subr.bf16.mxu0 %v4201
        %4283 = vmatpush1.bf16.msra.mxu0 %v4200
        %4284 = vmatprep.subr.bf16.mxu0 %v4197
        %4285 = vmatpush1.bf16.msra.mxu0 %v4196
        %4286 = vmatprep.subr.bf16.mxu0 0
        %4287 = vmatpush2.bf16.msra.mxu0 0
        %4288 = vmatprep.subr.bf16.mxu0 0
        %4289 = vmatpush2.bf16.msra.mxu0 0
        %4290 = vmatprep.subr.bf16.mxu0 0
        %4291 = vmatpush2.bf16.msra.mxu0 0
        %4292 = vmatprep.subr.bf16.mxu0 0
        %4293 = vmatpush2.bf16.msra.mxu0 0
        %4294 = vmatprep.subr.bf16.mxu0 0
        %4295 = vmatpush2.bf16.msra.mxu0 0
        %4296 = vmatprep.subr.bf16.mxu0 0
        %4297 = vmatpush2.bf16.msra.mxu0 0
        %4298 = vmatprep.subr.bf16.mxu0 0
        %4299 = vmatpush2.bf16.msra.mxu0 0
        %4300 = vmatprep.subr.bf16.mxu0 0
        %4301 = vmatpush2.bf16.msra.mxu0 0
        %4302 = vmatprep.mubr.bf16.mxu0 0
        %4303 = vmatmul.mubr.bf16.gmra.mxu0 %v4227
        %v4304 = vpop.f32.mrf.mxu0
        %v4305 = vadd.f32 %v4140, %v4304
        %v4306 = vpop.f32.mrf.mxu0
        %v4307 = vadd.f32 %v4142, %v4306
        %v4308 = vpop.f32.mrf.mxu0
        %v4309 = vpop.f32.mrf.mxu0
        %4310 = vdwg.mxu0
        %s4311 = scalar_lea.vmem %s9, 4
        %v4312 = vld [vmem:[%s4311] sm:$0x3]
        %v4314 = vsel %vm3854, %v4312, 0
        %4316 = vmatprep.subr.bf16.mxu0 0
        %4317 = vmatpush1.bf16.msra.mxu0 0
        %4318 = vmatprep.subr.bf16.mxu0 0
        %4319 = vmatpush1.bf16.msra.mxu0 0
        %4320 = vmatprep.subr.bf16.mxu0 0
        %4321 = vmatpush1.bf16.msra.mxu0 0
        %4322 = vmatprep.subr.bf16.mxu0 0
        %4323 = vmatpush1.bf16.msra.mxu0 0
        %4324 = vmatprep.subr.bf16.mxu0 0
        %4325 = vmatpush1.bf16.msra.mxu0 0
        %4326 = vmatprep.subr.bf16.mxu0 0
        %4327 = vmatpush1.bf16.msra.mxu0 0
        %4328 = vmatprep.subr.bf16.mxu0 0
        %4329 = vmatpush1.bf16.msra.mxu0 0
        %4330 = vmatprep.subr.bf16.mxu0 0
        %4331 = vmatpush1.bf16.msra.mxu0 %v3859
        %4332 = vmatprep.subr.bf16.mxu0 0
        %4333 = vmatpush2.bf16.msra.mxu0 0
        %4334 = vmatprep.subr.bf16.mxu0 0
        %4335 = vmatpush2.bf16.msra.mxu0 0
        %4336 = vmatprep.subr.bf16.mxu0 0
        %4337 = vmatpush2.bf16.msra.mxu0 0
        %4338 = vmatprep.subr.bf16.mxu0 0
        %4339 = vmatpush2.bf16.msra.mxu0 0
        %4340 = vmatprep.subr.bf16.mxu0 0
        %4341 = vmatpush2.bf16.msra.mxu0 0
        %4342 = vmatprep.subr.bf16.mxu0 0
        %4343 = vmatpush2.bf16.msra.mxu0 0
        %4344 = vmatprep.subr.bf16.mxu0 0
        %4345 = vmatpush2.bf16.msra.mxu0 0
        %4346 = vmatprep.subr.bf16.mxu0 0
        %4347 = vmatpush2.bf16.msra.mxu0 0
        %4348 = vmatprep.mubr.bf16.mxu0 0
        %4349 = vmatmul.mubr.bf16.gmra.mxu0 %v4314
        %v4350 = vpop.f32.mrf.mxu0
        %v4351 = vadd.f32 0.0, %v4350
        %v4352 = vpop.f32.mrf.mxu0
        %v4353 = vpop.f32.mrf.mxu0
        %v4354 = vpop.f32.mrf.mxu0
        %4355 = vdwg.mxu0
        %v4356 = vpack.c.bf16 %v4351, %v4351
        %s4357 = scalar_lea.vmem %s10, 256
        %v4358 = vld [vmem:[%s4357] sm:$0xff]
        %v4359 = vld [vmem:[%s4357 + $0x8] sm:$0xff]
        %v4360 = vld [vmem:[%s4357 + $0x10] sm:$0xff]
        %v4361 = vld [vmem:[%s4357 + $0x18] sm:$0xff]
        %v4362 = vld [vmem:[%s4357 + $0x20] sm:$0xff]
        %v4363 = vld [vmem:[%s4357 + $0x28] sm:$0xff]
        %v4364 = vld [vmem:[%s4357 + $0x30] sm:$0xff]
        %v4365 = vld [vmem:[%s4357 + $0x38] sm:$0xff]
        %v4366 = vld [vmem:[%s4357 + $0x40] sm:$0xff]
        %v4367 = vld [vmem:[%s4357 + $0x48] sm:$0xff]
        %v4368 = vld [vmem:[%s4357 + $0x50] sm:$0xff]
        %v4369 = vld [vmem:[%s4357 + $0x58] sm:$0xff]
        %v4370 = vld [vmem:[%s4357 + $0x60] sm:$0xff]
        %v4371 = vld [vmem:[%s4357 + $0x68] sm:$0xff]
        %v4372 = vld [vmem:[%s4357 + $0x70] sm:$0xff]
        %v4373 = vld [vmem:[%s4357 + $0x78] sm:$0xff]
        %v4390 = vunpack.c.l.b16 %v4358
        %v4391 = vunpack.c.h.b16 %v4358
        %v4392 = vunpack.c.l.b16 %v4359
        %v4393 = vunpack.c.h.b16 %v4359
        %v4394 = vunpack.c.l.b16 %v4360
        %v4395 = vunpack.c.h.b16 %v4360
        %v4396 = vunpack.c.l.b16 %v4361
        %v4397 = vunpack.c.h.b16 %v4361
        %v4398 = vunpack.c.l.b16 %v4362
        %v4399 = vunpack.c.h.b16 %v4362
        %v4400 = vunpack.c.l.b16 %v4363
        %v4401 = vunpack.c.h.b16 %v4363
        %v4402 = vunpack.c.l.b16 %v4364
        %v4403 = vunpack.c.h.b16 %v4364
        %v4404 = vunpack.c.l.b16 %v4365
        %v4405 = vunpack.c.h.b16 %v4365
        %v4406 = vunpack.c.l.b16 %v4366
        %v4407 = vunpack.c.h.b16 %v4366
        %v4408 = vunpack.c.l.b16 %v4367
        %v4409 = vunpack.c.h.b16 %v4367
        %v4410 = vunpack.c.l.b16 %v4368
        %v4411 = vunpack.c.h.b16 %v4368
        %v4412 = vunpack.c.l.b16 %v4369
        %v4413 = vunpack.c.h.b16 %v4369
        %v4414 = vunpack.c.l.b16 %v4370
        %v4415 = vunpack.c.h.b16 %v4370
        %v4416 = vunpack.c.l.b16 %v4371
        %v4417 = vunpack.c.h.b16 %v4371
        %v4418 = vunpack.c.l.b16 %v4372
        %v4419 = vunpack.c.h.b16 %v4372
        %v4420 = vunpack.c.l.b16 %v4373
        %v4421 = vunpack.c.h.b16 %v4373
        %v4422 = vpack.c.b16 %v4394, %v4390
        %v4423 = vpack.c.b16 %v4395, %v4391
        %v4424 = vpack.c.b16 %v4396, %v4392
        %v4425 = vpack.c.b16 %v4397, %v4393
        %v4426 = vpack.c.b16 %v4402, %v4398
        %v4427 = vpack.c.b16 %v4403, %v4399
        %v4428 = vpack.c.b16 %v4404, %v4400
        %v4429 = vpack.c.b16 %v4405, %v4401
        %v4430 = vpack.c.b16 %v4410, %v4406
        %v4431 = vpack.c.b16 %v4411, %v4407
        %v4432 = vpack.c.b16 %v4412, %v4408
        %v4433 = vpack.c.b16 %v4413, %v4409
        %v4434 = vpack.c.b16 %v4418, %v4414
        %v4435 = vpack.c.b16 %v4419, %v4415
        %v4436 = vpack.c.b16 %v4420, %v4416
        %v4437 = vpack.c.b16 %v4421, %v4417
        %v4455 = vsel %vm607, %v4356, 0
        %4457 = vmatprep.subr.bf16.mxu0 0
        %4458 = vmatpush1.bf16.msra.mxu0 0
        %4459 = vmatprep.subr.bf16.mxu0 0
        %4460 = vmatpush1.bf16.msra.mxu0 0
        %4461 = vmatprep.subr.bf16.mxu0 0
        %4462 = vmatpush1.bf16.msra.mxu0 0
        %4463 = vmatprep.subr.bf16.mxu0 0
        %4464 = vmatpush1.bf16.msra.mxu0 0
        %4465 = vmatprep.subr.bf16.mxu0 %v4435
        %4466 = vmatpush1.bf16.msra.mxu0 %v4434
        %4467 = vmatprep.subr.bf16.mxu0 %v4431
        %4468 = vmatpush1.bf16.msra.mxu0 %v4430
        %4469 = vmatprep.subr.bf16.mxu0 %v4427
        %4470 = vmatpush1.bf16.msra.mxu0 %v4426
        %4471 = vmatprep.subr.bf16.mxu0 %v4423
        %4472 = vmatpush1.bf16.msra.mxu0 %v4422
        %4473 = vmatprep.subr.bf16.mxu0 0
        %4474 = vmatpush2.bf16.msra.mxu0 0
        %4475 = vmatprep.subr.bf16.mxu0 0
        %4476 = vmatpush2.bf16.msra.mxu0 0
        %4477 = vmatprep.subr.bf16.mxu0 0
        %4478 = vmatpush2.bf16.msra.mxu0 0
        %4479 = vmatprep.subr.bf16.mxu0 0
        %4480 = vmatpush2.bf16.msra.mxu0 0
        %4481 = vmatprep.subr.bf16.mxu0 0
        %4482 = vmatpush2.bf16.msra.mxu0 0
        %4483 = vmatprep.subr.bf16.mxu0 0
        %4484 = vmatpush2.bf16.msra.mxu0 0
        %4485 = vmatprep.subr.bf16.mxu0 0
        %4486 = vmatpush2.bf16.msra.mxu0 0
        %4487 = vmatprep.subr.bf16.mxu0 0
        %4488 = vmatpush2.bf16.msra.mxu0 0
        %4489 = vmatprep.mubr.bf16.mxu0 0
        %4490 = vmatmul.mubr.bf16.gmra.mxu0 %v4455
        %v4491 = vpop.f32.mrf.mxu0
        %v4492 = vadd.f32 0.0, %v4491
        %v4493 = vpop.f32.mrf.mxu0
        %v4494 = vadd.f32 0.0, %v4493
        %v4495 = vpop.f32.mrf.mxu0
        %v4496 = vpop.f32.mrf.mxu0
        %4497 = vdwg.mxu0
        %4498 = vmatprep.subr.bf16.mxu0 0
        %4499 = vmatpush1.bf16.msra.mxu0 0
        %4500 = vmatprep.subr.bf16.mxu0 0
        %4501 = vmatpush1.bf16.msra.mxu0 0
        %4502 = vmatprep.subr.bf16.mxu0 0
        %4503 = vmatpush1.bf16.msra.mxu0 0
        %4504 = vmatprep.subr.bf16.mxu0 0
        %4505 = vmatpush1.bf16.msra.mxu0 0
        %4506 = vmatprep.subr.bf16.mxu0 %v4437
        %4507 = vmatpush1.bf16.msra.mxu0 %v4436
        %4508 = vmatprep.subr.bf16.mxu0 %v4433
        %4509 = vmatpush1.bf16.msra.mxu0 %v4432
        %4510 = vmatprep.subr.bf16.mxu0 %v4429
        %4511 = vmatpush1.bf16.msra.mxu0 %v4428
        %4512 = vmatprep.subr.bf16.mxu0 %v4425
        %4513 = vmatpush1.bf16.msra.mxu0 %v4424
        %4514 = vmatprep.subr.bf16.mxu0 0
        %4515 = vmatpush2.bf16.msra.mxu0 0
        %4516 = vmatprep.subr.bf16.mxu0 0
        %4517 = vmatpush2.bf16.msra.mxu0 0
        %4518 = vmatprep.subr.bf16.mxu0 0
        %4519 = vmatpush2.bf16.msra.mxu0 0
        %4520 = vmatprep.subr.bf16.mxu0 0
        %4521 = vmatpush2.bf16.msra.mxu0 0
        %4522 = vmatprep.subr.bf16.mxu0 0
        %4523 = vmatpush2.bf16.msra.mxu0 0
        %4524 = vmatprep.subr.bf16.mxu0 0
        %4525 = vmatpush2.bf16.msra.mxu0 0
        %4526 = vmatprep.subr.bf16.mxu0 0
        %4527 = vmatpush2.bf16.msra.mxu0 0
        %4528 = vmatprep.subr.bf16.mxu0 0
        %4529 = vmatpush2.bf16.msra.mxu0 0
        %4530 = vmatprep.mubr.bf16.mxu0 0
        %4531 = vmatmul.mubr.bf16.gmra.mxu0 %v4455
        %v4532 = vpop.f32.mrf.mxu0
        %v4533 = vadd.f32 0.0, %v4532
        %v4534 = vpop.f32.mrf.mxu0
        %v4535 = vadd.f32 0.0, %v4534
        %v4536 = vpop.f32.mrf.mxu0
        %v4537 = vpop.f32.mrf.mxu0
        %4538 = vdwg.mxu0
        %v4539 = vadd.f32 %v4264, %v4492
        %v4540 = vadd.f32 %v4266, %v4494
        %v4541 = vadd.f32 %v4305, %v4533
        %v4542 = vadd.f32 %v4307, %v4535
        %s4543 = scalar_lea.vmem %s9, 6
        %v4544 = vld [vmem:[%s4543] sm:$0x3]
        %v4546 = vsel %vm3854, %v4544, 0
        %4548 = vmatprep.subr.bf16.mxu0 0
        %4549 = vmatpush1.bf16.msra.mxu0 0
        %4550 = vmatprep.subr.bf16.mxu0 0
        %4551 = vmatpush1.bf16.msra.mxu0 0
        %4552 = vmatprep.subr.bf16.mxu0 0
        %4553 = vmatpush1.bf16.msra.mxu0 0
        %4554 = vmatprep.subr.bf16.mxu0 0
        %4555 = vmatpush1.bf16.msra.mxu0 0
        %4556 = vmatprep.subr.bf16.mxu0 0
        %4557 = vmatpush1.bf16.msra.mxu0 0
        %4558 = vmatprep.subr.bf16.mxu0 0
        %4559 = vmatpush1.bf16.msra.mxu0 0
        %4560 = vmatprep.subr.bf16.mxu0 0
        %4561 = vmatpush1.bf16.msra.mxu0 0
        %4562 = vmatprep.subr.bf16.mxu0 0
        %4563 = vmatpush1.bf16.msra.mxu0 %v3859
        %4564 = vmatprep.subr.bf16.mxu0 0
        %4565 = vmatpush2.bf16.msra.mxu0 0
        %4566 = vmatprep.subr.bf16.mxu0 0
        %4567 = vmatpush2.bf16.msra.mxu0 0
        %4568 = vmatprep.subr.bf16.mxu0 0
        %4569 = vmatpush2.bf16.msra.mxu0 0
        %4570 = vmatprep.subr.bf16.mxu0 0
        %4571 = vmatpush2.bf16.msra.mxu0 0
        %4572 = vmatprep.subr.bf16.mxu0 0
        %4573 = vmatpush2.bf16.msra.mxu0 0
        %4574 = vmatprep.subr.bf16.mxu0 0
        %4575 = vmatpush2.bf16.msra.mxu0 0
        %4576 = vmatprep.subr.bf16.mxu0 0
        %4577 = vmatpush2.bf16.msra.mxu0 0
        %4578 = vmatprep.subr.bf16.mxu0 0
        %4579 = vmatpush2.bf16.msra.mxu0 0
        %4580 = vmatprep.mubr.bf16.mxu0 0
        %4581 = vmatmul.mubr.bf16.gmra.mxu0 %v4546
        %v4582 = vpop.f32.mrf.mxu0
        %v4583 = vadd.f32 0.0, %v4582
        %v4584 = vpop.f32.mrf.mxu0
        %v4585 = vpop.f32.mrf.mxu0
        %v4586 = vpop.f32.mrf.mxu0
        %4587 = vdwg.mxu0
        %v4588 = vpack.c.bf16 %v4583, %v4583
        %s4589 = scalar_lea.vmem %s10, 384
        %v4590 = vld [vmem:[%s4589] sm:$0xff]
        %v4591 = vld [vmem:[%s4589 + $0x8] sm:$0xff]
        %v4592 = vld [vmem:[%s4589 + $0x10] sm:$0xff]
        %v4593 = vld [vmem:[%s4589 + $0x18] sm:$0xff]
        %v4594 = vld [vmem:[%s4589 + $0x20] sm:$0xff]
        %v4595 = vld [vmem:[%s4589 + $0x28] sm:$0xff]
        %v4596 = vld [vmem:[%s4589 + $0x30] sm:$0xff]
        %v4597 = vld [vmem:[%s4589 + $0x38] sm:$0xff]
        %v4598 = vld [vmem:[%s4589 + $0x40] sm:$0xff]
        %v4599 = vld [vmem:[%s4589 + $0x48] sm:$0xff]
        %v4600 = vld [vmem:[%s4589 + $0x50] sm:$0xff]
        %v4601 = vld [vmem:[%s4589 + $0x58] sm:$0xff]
        %v4602 = vld [vmem:[%s4589 + $0x60] sm:$0xff]
        %v4603 = vld [vmem:[%s4589 + $0x68] sm:$0xff]
        %v4604 = vld [vmem:[%s4589 + $0x70] sm:$0xff]
        %v4605 = vld [vmem:[%s4589 + $0x78] sm:$0xff]
        %v4622 = vunpack.c.l.b16 %v4590
        %v4623 = vunpack.c.h.b16 %v4590
        %v4624 = vunpack.c.l.b16 %v4591
        %v4625 = vunpack.c.h.b16 %v4591
        %v4626 = vunpack.c.l.b16 %v4592
        %v4627 = vunpack.c.h.b16 %v4592
        %v4628 = vunpack.c.l.b16 %v4593
        %v4629 = vunpack.c.h.b16 %v4593
        %v4630 = vunpack.c.l.b16 %v4594
        %v4631 = vunpack.c.h.b16 %v4594
        %v4632 = vunpack.c.l.b16 %v4595
        %v4633 = vunpack.c.h.b16 %v4595
        %v4634 = vunpack.c.l.b16 %v4596
        %v4635 = vunpack.c.h.b16 %v4596
        %v4636 = vunpack.c.l.b16 %v4597
        %v4637 = vunpack.c.h.b16 %v4597
        %v4638 = vunpack.c.l.b16 %v4598
        %v4639 = vunpack.c.h.b16 %v4598
        %v4640 = vunpack.c.l.b16 %v4599
        %v4641 = vunpack.c.h.b16 %v4599
        %v4642 = vunpack.c.l.b16 %v4600
        %v4643 = vunpack.c.h.b16 %v4600
        %v4644 = vunpack.c.l.b16 %v4601
        %v4645 = vunpack.c.h.b16 %v4601
        %v4646 = vunpack.c.l.b16 %v4602
        %v4647 = vunpack.c.h.b16 %v4602
        %v4648 = vunpack.c.l.b16 %v4603
        %v4649 = vunpack.c.h.b16 %v4603
        %v4650 = vunpack.c.l.b16 %v4604
        %v4651 = vunpack.c.h.b16 %v4604
        %v4652 = vunpack.c.l.b16 %v4605
        %v4653 = vunpack.c.h.b16 %v4605
        %v4654 = vpack.c.b16 %v4626, %v4622
        %v4655 = vpack.c.b16 %v4627, %v4623
        %v4656 = vpack.c.b16 %v4628, %v4624
        %v4657 = vpack.c.b16 %v4629, %v4625
        %v4658 = vpack.c.b16 %v4634, %v4630
        %v4659 = vpack.c.b16 %v4635, %v4631
        %v4660 = vpack.c.b16 %v4636, %v4632
        %v4661 = vpack.c.b16 %v4637, %v4633
        %v4662 = vpack.c.b16 %v4642, %v4638
        %v4663 = vpack.c.b16 %v4643, %v4639
        %v4664 = vpack.c.b16 %v4644, %v4640
        %v4665 = vpack.c.b16 %v4645, %v4641
        %v4666 = vpack.c.b16 %v4650, %v4646
        %v4667 = vpack.c.b16 %v4651, %v4647
        %v4668 = vpack.c.b16 %v4652, %v4648
        %v4669 = vpack.c.b16 %v4653, %v4649
        %v4687 = vsel %vm607, %v4588, 0
        %4689 = vmatprep.subr.bf16.mxu0 0
        %4690 = vmatpush1.bf16.msra.mxu0 0
        %4691 = vmatprep.subr.bf16.mxu0 0
        %4692 = vmatpush1.bf16.msra.mxu0 0
        %4693 = vmatprep.subr.bf16.mxu0 0
        %4694 = vmatpush1.bf16.msra.mxu0 0
        %4695 = vmatprep.subr.bf16.mxu0 0
        %4696 = vmatpush1.bf16.msra.mxu0 0
        %4697 = vmatprep.subr.bf16.mxu0 %v4667
        %4698 = vmatpush1.bf16.msra.mxu0 %v4666
        %4699 = vmatprep.subr.bf16.mxu0 %v4663
        %4700 = vmatpush1.bf16.msra.mxu0 %v4662
        %4701 = vmatprep.subr.bf16.mxu0 %v4659
        %4702 = vmatpush1.bf16.msra.mxu0 %v4658
        %4703 = vmatprep.subr.bf16.mxu0 %v4655
        %4704 = vmatpush1.bf16.msra.mxu0 %v4654
        %4705 = vmatprep.subr.bf16.mxu0 0
        %4706 = vmatpush2.bf16.msra.mxu0 0
        %4707 = vmatprep.subr.bf16.mxu0 0
        %4708 = vmatpush2.bf16.msra.mxu0 0
        %4709 = vmatprep.subr.bf16.mxu0 0
        %4710 = vmatpush2.bf16.msra.mxu0 0
        %4711 = vmatprep.subr.bf16.mxu0 0
        %4712 = vmatpush2.bf16.msra.mxu0 0
        %4713 = vmatprep.subr.bf16.mxu0 0
        %4714 = vmatpush2.bf16.msra.mxu0 0
        %4715 = vmatprep.subr.bf16.mxu0 0
        %4716 = vmatpush2.bf16.msra.mxu0 0
        %4717 = vmatprep.subr.bf16.mxu0 0
        %4718 = vmatpush2.bf16.msra.mxu0 0
        %4719 = vmatprep.subr.bf16.mxu0 0
        %4720 = vmatpush2.bf16.msra.mxu0 0
        %4721 = vmatprep.mubr.bf16.mxu0 0
        %4722 = vmatmul.mubr.bf16.gmra.mxu0 %v4687
        %v4723 = vpop.f32.mrf.mxu0
        %v4724 = vadd.f32 0.0, %v4723
        %v4725 = vpop.f32.mrf.mxu0
        %v4726 = vadd.f32 0.0, %v4725
        %v4727 = vpop.f32.mrf.mxu0
        %v4728 = vpop.f32.mrf.mxu0
        %4729 = vdwg.mxu0
        %4730 = vmatprep.subr.bf16.mxu0 0
        %4731 = vmatpush1.bf16.msra.mxu0 0
        %4732 = vmatprep.subr.bf16.mxu0 0
        %4733 = vmatpush1.bf16.msra.mxu0 0
        %4734 = vmatprep.subr.bf16.mxu0 0
        %4735 = vmatpush1.bf16.msra.mxu0 0
        %4736 = vmatprep.subr.bf16.mxu0 0
        %4737 = vmatpush1.bf16.msra.mxu0 0
        %4738 = vmatprep.subr.bf16.mxu0 %v4669
        %4739 = vmatpush1.bf16.msra.mxu0 %v4668
        %4740 = vmatprep.subr.bf16.mxu0 %v4665
        %4741 = vmatpush1.bf16.msra.mxu0 %v4664
        %4742 = vmatprep.subr.bf16.mxu0 %v4661
        %4743 = vmatpush1.bf16.msra.mxu0 %v4660
        %4744 = vmatprep.subr.bf16.mxu0 %v4657
        %4745 = vmatpush1.bf16.msra.mxu0 %v4656
        %4746 = vmatprep.subr.bf16.mxu0 0
        %4747 = vmatpush2.bf16.msra.mxu0 0
        %4748 = vmatprep.subr.bf16.mxu0 0
        %4749 = vmatpush2.bf16.msra.mxu0 0
        %4750 = vmatprep.subr.bf16.mxu0 0
        %4751 = vmatpush2.bf16.msra.mxu0 0
        %4752 = vmatprep.subr.bf16.mxu0 0
        %4753 = vmatpush2.bf16.msra.mxu0 0
        %4754 = vmatprep.subr.bf16.mxu0 0
        %4755 = vmatpush2.bf16.msra.mxu0 0
        %4756 = vmatprep.subr.bf16.mxu0 0
        %4757 = vmatpush2.bf16.msra.mxu0 0
        %4758 = vmatprep.subr.bf16.mxu0 0
        %4759 = vmatpush2.bf16.msra.mxu0 0
        %4760 = vmatprep.subr.bf16.mxu0 0
        %4761 = vmatpush2.bf16.msra.mxu0 0
        %4762 = vmatprep.mubr.bf16.mxu0 0
        %4763 = vmatmul.mubr.bf16.gmra.mxu0 %v4687
        %v4764 = vpop.f32.mrf.mxu0
        %v4765 = vadd.f32 0.0, %v4764
        %v4766 = vpop.f32.mrf.mxu0
        %v4767 = vadd.f32 0.0, %v4766
        %v4768 = vpop.f32.mrf.mxu0
        %v4769 = vpop.f32.mrf.mxu0
        %4770 = vdwg.mxu0
        %v4771 = vadd.f32 %v4539, %v4724
        %v4772 = vadd.f32 %v4540, %v4726
        %v4773 = vadd.f32 %v4541, %v4765
        %v4774 = vadd.f32 %v4542, %v4767
        %s4775 = scalar_lea.vmem %s9, 8
        %v4776 = vld [vmem:[%s4775] sm:$0x3]
        %v4778 = vsel %vm3854, %v4776, 0
        %4780 = vmatprep.subr.bf16.mxu0 0
        %4781 = vmatpush1.bf16.msra.mxu0 0
        %4782 = vmatprep.subr.bf16.mxu0 0
        %4783 = vmatpush1.bf16.msra.mxu0 0
        %4784 = vmatprep.subr.bf16.mxu0 0
        %4785 = vmatpush1.bf16.msra.mxu0 0
        %4786 = vmatprep.subr.bf16.mxu0 0
        %4787 = vmatpush1.bf16.msra.mxu0 0
        %4788 = vmatprep.subr.bf16.mxu0 0
        %4789 = vmatpush1.bf16.msra.mxu0 0
        %4790 = vmatprep.subr.bf16.mxu0 0
        %4791 = vmatpush1.bf16.msra.mxu0 0
        %4792 = vmatprep.subr.bf16.mxu0 0
        %4793 = vmatpush1.bf16.msra.mxu0 0
        %4794 = vmatprep.subr.bf16.mxu0 0
        %4795 = vmatpush1.bf16.msra.mxu0 %v3859
        %4796 = vmatprep.subr.bf16.mxu0 0
        %4797 = vmatpush2.bf16.msra.mxu0 0
        %4798 = vmatprep.subr.bf16.mxu0 0
        %4799 = vmatpush2.bf16.msra.mxu0 0
        %4800 = vmatprep.subr.bf16.mxu0 0
        %4801 = vmatpush2.bf16.msra.mxu0 0
        %4802 = vmatprep.subr.bf16.mxu0 0
        %4803 = vmatpush2.bf16.msra.mxu0 0
        %4804 = vmatprep.subr.bf16.mxu0 0
        %4805 = vmatpush2.bf16.msra.mxu0 0
        %4806 = vmatprep.subr.bf16.mxu0 0
        %4807 = vmatpush2.bf16.msra.mxu0 0
        %4808 = vmatprep.subr.bf16.mxu0 0
        %4809 = vmatpush2.bf16.msra.mxu0 0
        %4810 = vmatprep.subr.bf16.mxu0 0
        %4811 = vmatpush2.bf16.msra.mxu0 0
        %4812 = vmatprep.mubr.bf16.mxu0 0
        %4813 = vmatmul.mubr.bf16.gmra.mxu0 %v4778
        %v4814 = vpop.f32.mrf.mxu0
        %v4815 = vadd.f32 0.0, %v4814
        %v4816 = vpop.f32.mrf.mxu0
        %v4817 = vpop.f32.mrf.mxu0
        %v4818 = vpop.f32.mrf.mxu0
        %4819 = vdwg.mxu0
        %v4820 = vpack.c.bf16 %v4815, %v4815
        %s4821 = scalar_lea.vmem %s10, 512
        %v4822 = vld [vmem:[%s4821] sm:$0xff]
        %v4823 = vld [vmem:[%s4821 + $0x8] sm:$0xff]
        %v4824 = vld [vmem:[%s4821 + $0x10] sm:$0xff]
        %v4825 = vld [vmem:[%s4821 + $0x18] sm:$0xff]
        %v4826 = vld [vmem:[%s4821 + $0x20] sm:$0xff]
        %v4827 = vld [vmem:[%s4821 + $0x28] sm:$0xff]
        %v4828 = vld [vmem:[%s4821 + $0x30] sm:$0xff]
        %v4829 = vld [vmem:[%s4821 + $0x38] sm:$0xff]
        %v4830 = vld [vmem:[%s4821 + $0x40] sm:$0xff]
        %v4831 = vld [vmem:[%s4821 + $0x48] sm:$0xff]
        %v4832 = vld [vmem:[%s4821 + $0x50] sm:$0xff]
        %v4833 = vld [vmem:[%s4821 + $0x58] sm:$0xff]
        %v4834 = vld [vmem:[%s4821 + $0x60] sm:$0xff]
        %v4835 = vld [vmem:[%s4821 + $0x68] sm:$0xff]
        %v4836 = vld [vmem:[%s4821 + $0x70] sm:$0xff]
        %v4837 = vld [vmem:[%s4821 + $0x78] sm:$0xff]
        %v4854 = vunpack.c.l.b16 %v4822
        %v4855 = vunpack.c.h.b16 %v4822
        %v4856 = vunpack.c.l.b16 %v4823
        %v4857 = vunpack.c.h.b16 %v4823
        %v4858 = vunpack.c.l.b16 %v4824
        %v4859 = vunpack.c.h.b16 %v4824
        %v4860 = vunpack.c.l.b16 %v4825
        %v4861 = vunpack.c.h.b16 %v4825
        %v4862 = vunpack.c.l.b16 %v4826
        %v4863 = vunpack.c.h.b16 %v4826
        %v4864 = vunpack.c.l.b16 %v4827
        %v4865 = vunpack.c.h.b16 %v4827
        %v4866 = vunpack.c.l.b16 %v4828
        %v4867 = vunpack.c.h.b16 %v4828
        %v4868 = vunpack.c.l.b16 %v4829
        %v4869 = vunpack.c.h.b16 %v4829
        %v4870 = vunpack.c.l.b16 %v4830
        %v4871 = vunpack.c.h.b16 %v4830
        %v4872 = vunpack.c.l.b16 %v4831
        %v4873 = vunpack.c.h.b16 %v4831
        %v4874 = vunpack.c.l.b16 %v4832
        %v4875 = vunpack.c.h.b16 %v4832
        %v4876 = vunpack.c.l.b16 %v4833
        %v4877 = vunpack.c.h.b16 %v4833
        %v4878 = vunpack.c.l.b16 %v4834
        %v4879 = vunpack.c.h.b16 %v4834
        %v4880 = vunpack.c.l.b16 %v4835
        %v4881 = vunpack.c.h.b16 %v4835
        %v4882 = vunpack.c.l.b16 %v4836
        %v4883 = vunpack.c.h.b16 %v4836
        %v4884 = vunpack.c.l.b16 %v4837
        %v4885 = vunpack.c.h.b16 %v4837
        %v4886 = vpack.c.b16 %v4858, %v4854
        %v4887 = vpack.c.b16 %v4859, %v4855
        %v4888 = vpack.c.b16 %v4860, %v4856
        %v4889 = vpack.c.b16 %v4861, %v4857
        %v4890 = vpack.c.b16 %v4866, %v4862
        %v4891 = vpack.c.b16 %v4867, %v4863
        %v4892 = vpack.c.b16 %v4868, %v4864
        %v4893 = vpack.c.b16 %v4869, %v4865
        %v4894 = vpack.c.b16 %v4874, %v4870
        %v4895 = vpack.c.b16 %v4875, %v4871
        %v4896 = vpack.c.b16 %v4876, %v4872
        %v4897 = vpack.c.b16 %v4877, %v4873
        %v4898 = vpack.c.b16 %v4882, %v4878
        %v4899 = vpack.c.b16 %v4883, %v4879
        %v4900 = vpack.c.b16 %v4884, %v4880
        %v4901 = vpack.c.b16 %v4885, %v4881
        %v4919 = vsel %vm607, %v4820, 0
        %4921 = vmatprep.subr.bf16.mxu0 0
        %4922 = vmatpush1.bf16.msra.mxu0 0
        %4923 = vmatprep.subr.bf16.mxu0 0
        %4924 = vmatpush1.bf16.msra.mxu0 0
        %4925 = vmatprep.subr.bf16.mxu0 0
        %4926 = vmatpush1.bf16.msra.mxu0 0
        %4927 = vmatprep.subr.bf16.mxu0 0
        %4928 = vmatpush1.bf16.msra.mxu0 0
        %4929 = vmatprep.subr.bf16.mxu0 %v4899
        %4930 = vmatpush1.bf16.msra.mxu0 %v4898
        %4931 = vmatprep.subr.bf16.mxu0 %v4895
        %4932 = vmatpush1.bf16.msra.mxu0 %v4894
        %4933 = vmatprep.subr.bf16.mxu0 %v4891
        %4934 = vmatpush1.bf16.msra.mxu0 %v4890
        %4935 = vmatprep.subr.bf16.mxu0 %v4887
        %4936 = vmatpush1.bf16.msra.mxu0 %v4886
        %4937 = vmatprep.subr.bf16.mxu0 0
        %4938 = vmatpush2.bf16.msra.mxu0 0
        %4939 = vmatprep.subr.bf16.mxu0 0
        %4940 = vmatpush2.bf16.msra.mxu0 0
        %4941 = vmatprep.subr.bf16.mxu0 0
        %4942 = vmatpush2.bf16.msra.mxu0 0
        %4943 = vmatprep.subr.bf16.mxu0 0
        %4944 = vmatpush2.bf16.msra.mxu0 0
        %4945 = vmatprep.subr.bf16.mxu0 0
        %4946 = vmatpush2.bf16.msra.mxu0 0
        %4947 = vmatprep.subr.bf16.mxu0 0
        %4948 = vmatpush2.bf16.msra.mxu0 0
        %4949 = vmatprep.subr.bf16.mxu0 0
        %4950 = vmatpush2.bf16.msra.mxu0 0
        %4951 = vmatprep.subr.bf16.mxu0 0
        %4952 = vmatpush2.bf16.msra.mxu0 0
        %4953 = vmatprep.mubr.bf16.mxu0 0
        %4954 = vmatmul.mubr.bf16.gmra.mxu0 %v4919
        %v4955 = vpop.f32.mrf.mxu0
        %v4956 = vadd.f32 0.0, %v4955
        %v4957 = vpop.f32.mrf.mxu0
        %v4958 = vadd.f32 0.0, %v4957
        %v4959 = vpop.f32.mrf.mxu0
        %v4960 = vpop.f32.mrf.mxu0
        %4961 = vdwg.mxu0
        %4962 = vmatprep.subr.bf16.mxu0 0
        %4963 = vmatpush1.bf16.msra.mxu0 0
        %4964 = vmatprep.subr.bf16.mxu0 0
        %4965 = vmatpush1.bf16.msra.mxu0 0
        %4966 = vmatprep.subr.bf16.mxu0 0
        %4967 = vmatpush1.bf16.msra.mxu0 0
        %4968 = vmatprep.subr.bf16.mxu0 0
        %4969 = vmatpush1.bf16.msra.mxu0 0
        %4970 = vmatprep.subr.bf16.mxu0 %v4901
        %4971 = vmatpush1.bf16.msra.mxu0 %v4900
        %4972 = vmatprep.subr.bf16.mxu0 %v4897
        %4973 = vmatpush1.bf16.msra.mxu0 %v4896
        %4974 = vmatprep.subr.bf16.mxu0 %v4893
        %4975 = vmatpush1.bf16.msra.mxu0 %v4892
        %4976 = vmatprep.subr.bf16.mxu0 %v4889
        %4977 = vmatpush1.bf16.msra.mxu0 %v4888
        %4978 = vmatprep.subr.bf16.mxu0 0
        %4979 = vmatpush2.bf16.msra.mxu0 0
        %4980 = vmatprep.subr.bf16.mxu0 0
        %4981 = vmatpush2.bf16.msra.mxu0 0
        %4982 = vmatprep.subr.bf16.mxu0 0
        %4983 = vmatpush2.bf16.msra.mxu0 0
        %4984 = vmatprep.subr.bf16.mxu0 0
        %4985 = vmatpush2.bf16.msra.mxu0 0
        %4986 = vmatprep.subr.bf16.mxu0 0
        %4987 = vmatpush2.bf16.msra.mxu0 0
        %4988 = vmatprep.subr.bf16.mxu0 0
        %4989 = vmatpush2.bf16.msra.mxu0 0
        %4990 = vmatprep.subr.bf16.mxu0 0
        %4991 = vmatpush2.bf16.msra.mxu0 0
        %4992 = vmatprep.subr.bf16.mxu0 0
        %4993 = vmatpush2.bf16.msra.mxu0 0
        %4994 = vmatprep.mubr.bf16.mxu0 0
        %4995 = vmatmul.mubr.bf16.gmra.mxu0 %v4919
        %v4996 = vpop.f32.mrf.mxu0
        %v4997 = vadd.f32 0.0, %v4996
        %v4998 = vpop.f32.mrf.mxu0
        %v4999 = vadd.f32 0.0, %v4998
        %v5000 = vpop.f32.mrf.mxu0
        %v5001 = vpop.f32.mrf.mxu0
        %5002 = vdwg.mxu0
        %v5003 = vadd.f32 %v4771, %v4956
        %v5004 = vadd.f32 %v4772, %v4958
        %v5005 = vadd.f32 %v4773, %v4997
        %v5006 = vadd.f32 %v4774, %v4999
        %s5007 = scalar_lea.vmem %s9, 10
        %v5008 = vld [vmem:[%s5007] sm:$0x3]
        %v5010 = vsel %vm3854, %v5008, 0
        %5012 = vmatprep.subr.bf16.mxu0 0
        %5013 = vmatpush1.bf16.msra.mxu0 0
        %5014 = vmatprep.subr.bf16.mxu0 0
        %5015 = vmatpush1.bf16.msra.mxu0 0
        %5016 = vmatprep.subr.bf16.mxu0 0
        %5017 = vmatpush1.bf16.msra.mxu0 0
        %5018 = vmatprep.subr.bf16.mxu0 0
        %5019 = vmatpush1.bf16.msra.mxu0 0
        %5020 = vmatprep.subr.bf16.mxu0 0
        %5021 = vmatpush1.bf16.msra.mxu0 0
        %5022 = vmatprep.subr.bf16.mxu0 0
        %5023 = vmatpush1.bf16.msra.mxu0 0
        %5024 = vmatprep.subr.bf16.mxu0 0
        %5025 = vmatpush1.bf16.msra.mxu0 0
        %5026 = vmatprep.subr.bf16.mxu0 0
        %5027 = vmatpush1.bf16.msra.mxu0 %v3859
        %5028 = vmatprep.subr.bf16.mxu0 0
        %5029 = vmatpush2.bf16.msra.mxu0 0
        %5030 = vmatprep.subr.bf16.mxu0 0
        %5031 = vmatpush2.bf16.msra.mxu0 0
        %5032 = vmatprep.subr.bf16.mxu0 0
        %5033 = vmatpush2.bf16.msra.mxu0 0
        %5034 = vmatprep.subr.bf16.mxu0 0
        %5035 = vmatpush2.bf16.msra.mxu0 0
        %5036 = vmatprep.subr.bf16.mxu0 0
        %5037 = vmatpush2.bf16.msra.mxu0 0
        %5038 = vmatprep.subr.bf16.mxu0 0
        %5039 = vmatpush2.bf16.msra.mxu0 0
        %5040 = vmatprep.subr.bf16.mxu0 0
        %5041 = vmatpush2.bf16.msra.mxu0 0
        %5042 = vmatprep.subr.bf16.mxu0 0
        %5043 = vmatpush2.bf16.msra.mxu0 0
        %5044 = vmatprep.mubr.bf16.mxu0 0
        %5045 = vmatmul.mubr.bf16.gmra.mxu0 %v5010
        %v5046 = vpop.f32.mrf.mxu0
        %v5047 = vadd.f32 0.0, %v5046
        %v5048 = vpop.f32.mrf.mxu0
        %v5049 = vpop.f32.mrf.mxu0
        %v5050 = vpop.f32.mrf.mxu0
        %5051 = vdwg.mxu0
        %v5052 = vpack.c.bf16 %v5047, %v5047
        %s5053 = scalar_lea.vmem %s10, 640
        %v5054 = vld [vmem:[%s5053] sm:$0xff]
        %v5055 = vld [vmem:[%s5053 + $0x8] sm:$0xff]
        %v5056 = vld [vmem:[%s5053 + $0x10] sm:$0xff]
        %v5057 = vld [vmem:[%s5053 + $0x18] sm:$0xff]
        %v5058 = vld [vmem:[%s5053 + $0x20] sm:$0xff]
        %v5059 = vld [vmem:[%s5053 + $0x28] sm:$0xff]
        %v5060 = vld [vmem:[%s5053 + $0x30] sm:$0xff]
        %v5061 = vld [vmem:[%s5053 + $0x38] sm:$0xff]
        %v5062 = vld [vmem:[%s5053 + $0x40] sm:$0xff]
        %v5063 = vld [vmem:[%s5053 + $0x48] sm:$0xff]
        %v5064 = vld [vmem:[%s5053 + $0x50] sm:$0xff]
        %v5065 = vld [vmem:[%s5053 + $0x58] sm:$0xff]
        %v5066 = vld [vmem:[%s5053 + $0x60] sm:$0xff]
        %v5067 = vld [vmem:[%s5053 + $0x68] sm:$0xff]
        %v5068 = vld [vmem:[%s5053 + $0x70] sm:$0xff]
        %v5069 = vld [vmem:[%s5053 + $0x78] sm:$0xff]
        %v5086 = vunpack.c.l.b16 %v5054
        %v5087 = vunpack.c.h.b16 %v5054
        %v5088 = vunpack.c.l.b16 %v5055
        %v5089 = vunpack.c.h.b16 %v5055
        %v5090 = vunpack.c.l.b16 %v5056
        %v5091 = vunpack.c.h.b16 %v5056
        %v5092 = vunpack.c.l.b16 %v5057
        %v5093 = vunpack.c.h.b16 %v5057
        %v5094 = vunpack.c.l.b16 %v5058
        %v5095 = vunpack.c.h.b16 %v5058
        %v5096 = vunpack.c.l.b16 %v5059
        %v5097 = vunpack.c.h.b16 %v5059
        %v5098 = vunpack.c.l.b16 %v5060
        %v5099 = vunpack.c.h.b16 %v5060
        %v5100 = vunpack.c.l.b16 %v5061
        %v5101 = vunpack.c.h.b16 %v5061
        %v5102 = vunpack.c.l.b16 %v5062
        %v5103 = vunpack.c.h.b16 %v5062
        %v5104 = vunpack.c.l.b16 %v5063
        %v5105 = vunpack.c.h.b16 %v5063
        %v5106 = vunpack.c.l.b16 %v5064
        %v5107 = vunpack.c.h.b16 %v5064
        %v5108 = vunpack.c.l.b16 %v5065
        %v5109 = vunpack.c.h.b16 %v5065
        %v5110 = vunpack.c.l.b16 %v5066
        %v5111 = vunpack.c.h.b16 %v5066
        %v5112 = vunpack.c.l.b16 %v5067
        %v5113 = vunpack.c.h.b16 %v5067
        %v5114 = vunpack.c.l.b16 %v5068
        %v5115 = vunpack.c.h.b16 %v5068
        %v5116 = vunpack.c.l.b16 %v5069
        %v5117 = vunpack.c.h.b16 %v5069
        %v5118 = vpack.c.b16 %v5090, %v5086
        %v5119 = vpack.c.b16 %v5091, %v5087
        %v5120 = vpack.c.b16 %v5092, %v5088
        %v5121 = vpack.c.b16 %v5093, %v5089
        %v5122 = vpack.c.b16 %v5098, %v5094
        %v5123 = vpack.c.b16 %v5099, %v5095
        %v5124 = vpack.c.b16 %v5100, %v5096
        %v5125 = vpack.c.b16 %v5101, %v5097
        %v5126 = vpack.c.b16 %v5106, %v5102
        %v5127 = vpack.c.b16 %v5107, %v5103
        %v5128 = vpack.c.b16 %v5108, %v5104
        %v5129 = vpack.c.b16 %v5109, %v5105
        %v5130 = vpack.c.b16 %v5114, %v5110
        %v5131 = vpack.c.b16 %v5115, %v5111
        %v5132 = vpack.c.b16 %v5116, %v5112
        %v5133 = vpack.c.b16 %v5117, %v5113
        %v5151 = vsel %vm607, %v5052, 0
        %5153 = vmatprep.subr.bf16.mxu0 0
        %5154 = vmatpush1.bf16.msra.mxu0 0
        %5155 = vmatprep.subr.bf16.mxu0 0
        %5156 = vmatpush1.bf16.msra.mxu0 0
        %5157 = vmatprep.subr.bf16.mxu0 0
        %5158 = vmatpush1.bf16.msra.mxu0 0
        %5159 = vmatprep.subr.bf16.mxu0 0
        %5160 = vmatpush1.bf16.msra.mxu0 0
        %5161 = vmatprep.subr.bf16.mxu0 %v5131
        %5162 = vmatpush1.bf16.msra.mxu0 %v5130
        %5163 = vmatprep.subr.bf16.mxu0 %v5127
        %5164 = vmatpush1.bf16.msra.mxu0 %v5126
        %5165 = vmatprep.subr.bf16.mxu0 %v5123
        %5166 = vmatpush1.bf16.msra.mxu0 %v5122
        %5167 = vmatprep.subr.bf16.mxu0 %v5119
        %5168 = vmatpush1.bf16.msra.mxu0 %v5118
        %5169 = vmatprep.subr.bf16.mxu0 0
        %5170 = vmatpush2.bf16.msra.mxu0 0
        %5171 = vmatprep.subr.bf16.mxu0 0
        %5172 = vmatpush2.bf16.msra.mxu0 0
        %5173 = vmatprep.subr.bf16.mxu0 0
        %5174 = vmatpush2.bf16.msra.mxu0 0
        %5175 = vmatprep.subr.bf16.mxu0 0
        %5176 = vmatpush2.bf16.msra.mxu0 0
        %5177 = vmatprep.subr.bf16.mxu0 0
        %5178 = vmatpush2.bf16.msra.mxu0 0
        %5179 = vmatprep.subr.bf16.mxu0 0
        %5180 = vmatpush2.bf16.msra.mxu0 0
        %5181 = vmatprep.subr.bf16.mxu0 0
        %5182 = vmatpush2.bf16.msra.mxu0 0
        %5183 = vmatprep.subr.bf16.mxu0 0
        %5184 = vmatpush2.bf16.msra.mxu0 0
        %5185 = vmatprep.mubr.bf16.mxu0 0
        %5186 = vmatmul.mubr.bf16.gmra.mxu0 %v5151
        %v5187 = vpop.f32.mrf.mxu0
        %v5188 = vadd.f32 0.0, %v5187
        %v5189 = vpop.f32.mrf.mxu0
        %v5190 = vadd.f32 0.0, %v5189
        %v5191 = vpop.f32.mrf.mxu0
        %v5192 = vpop.f32.mrf.mxu0
        %5193 = vdwg.mxu0
        %5194 = vmatprep.subr.bf16.mxu0 0
        %5195 = vmatpush1.bf16.msra.mxu0 0
        %5196 = vmatprep.subr.bf16.mxu0 0
        %5197 = vmatpush1.bf16.msra.mxu0 0
        %5198 = vmatprep.subr.bf16.mxu0 0
        %5199 = vmatpush1.bf16.msra.mxu0 0
        %5200 = vmatprep.subr.bf16.mxu0 0
        %5201 = vmatpush1.bf16.msra.mxu0 0
        %5202 = vmatprep.subr.bf16.mxu0 %v5133
        %5203 = vmatpush1.bf16.msra.mxu0 %v5132
        %5204 = vmatprep.subr.bf16.mxu0 %v5129
        %5205 = vmatpush1.bf16.msra.mxu0 %v5128
        %5206 = vmatprep.subr.bf16.mxu0 %v5125
        %5207 = vmatpush1.bf16.msra.mxu0 %v5124
        %5208 = vmatprep.subr.bf16.mxu0 %v5121
        %5209 = vmatpush1.bf16.msra.mxu0 %v5120
        %5210 = vmatprep.subr.bf16.mxu0 0
        %5211 = vmatpush2.bf16.msra.mxu0 0
        %5212 = vmatprep.subr.bf16.mxu0 0
        %5213 = vmatpush2.bf16.msra.mxu0 0
        %5214 = vmatprep.subr.bf16.mxu0 0
        %5215 = vmatpush2.bf16.msra.mxu0 0
        %5216 = vmatprep.subr.bf16.mxu0 0
        %5217 = vmatpush2.bf16.msra.mxu0 0
        %5218 = vmatprep.subr.bf16.mxu0 0
        %5219 = vmatpush2.bf16.msra.mxu0 0
        %5220 = vmatprep.subr.bf16.mxu0 0
        %5221 = vmatpush2.bf16.msra.mxu0 0
        %5222 = vmatprep.subr.bf16.mxu0 0
        %5223 = vmatpush2.bf16.msra.mxu0 0
        %5224 = vmatprep.subr.bf16.mxu0 0
        %5225 = vmatpush2.bf16.msra.mxu0 0
        %5226 = vmatprep.mubr.bf16.mxu0 0
        %5227 = vmatmul.mubr.bf16.gmra.mxu0 %v5151
        %v5228 = vpop.f32.mrf.mxu0
        %v5229 = vadd.f32 0.0, %v5228
        %v5230 = vpop.f32.mrf.mxu0
        %v5231 = vadd.f32 0.0, %v5230
        %v5232 = vpop.f32.mrf.mxu0
        %v5233 = vpop.f32.mrf.mxu0
        %5234 = vdwg.mxu0
        %v5235 = vadd.f32 %v5003, %v5188
        %v5236 = vadd.f32 %v5004, %v5190
        %v5237 = vadd.f32 %v5005, %v5229
        %v5238 = vadd.f32 %v5006, %v5231
        %s5239 = scalar_lea.vmem %s9, 12
        %v5240 = vld [vmem:[%s5239] sm:$0x3]
        %v5242 = vsel %vm3854, %v5240, 0
        %5244 = vmatprep.subr.bf16.mxu0 0
        %5245 = vmatpush1.bf16.msra.mxu0 0
        %5246 = vmatprep.subr.bf16.mxu0 0
        %5247 = vmatpush1.bf16.msra.mxu0 0
        %5248 = vmatprep.subr.bf16.mxu0 0
        %5249 = vmatpush1.bf16.msra.mxu0 0
        %5250 = vmatprep.subr.bf16.mxu0 0
        %5251 = vmatpush1.bf16.msra.mxu0 0
        %5252 = vmatprep.subr.bf16.mxu0 0
        %5253 = vmatpush1.bf16.msra.mxu0 0
        %5254 = vmatprep.subr.bf16.mxu0 0
        %5255 = vmatpush1.bf16.msra.mxu0 0
        %5256 = vmatprep.subr.bf16.mxu0 0
        %5257 = vmatpush1.bf16.msra.mxu0 0
        %5258 = vmatprep.subr.bf16.mxu0 0
        %5259 = vmatpush1.bf16.msra.mxu0 %v3859
        %5260 = vmatprep.subr.bf16.mxu0 0
        %5261 = vmatpush2.bf16.msra.mxu0 0
        %5262 = vmatprep.subr.bf16.mxu0 0
        %5263 = vmatpush2.bf16.msra.mxu0 0
        %5264 = vmatprep.subr.bf16.mxu0 0
        %5265 = vmatpush2.bf16.msra.mxu0 0
        %5266 = vmatprep.subr.bf16.mxu0 0
        %5267 = vmatpush2.bf16.msra.mxu0 0
        %5268 = vmatprep.subr.bf16.mxu0 0
        %5269 = vmatpush2.bf16.msra.mxu0 0
        %5270 = vmatprep.subr.bf16.mxu0 0
        %5271 = vmatpush2.bf16.msra.mxu0 0
        %5272 = vmatprep.subr.bf16.mxu0 0
        %5273 = vmatpush2.bf16.msra.mxu0 0
        %5274 = vmatprep.subr.bf16.mxu0 0
        %5275 = vmatpush2.bf16.msra.mxu0 0
        %5276 = vmatprep.mubr.bf16.mxu0 0
        %5277 = vmatmul.mubr.bf16.gmra.mxu0 %v5242
        %v5278 = vpop.f32.mrf.mxu0
        %v5279 = vadd.f32 0.0, %v5278
        %v5280 = vpop.f32.mrf.mxu0
        %v5281 = vpop.f32.mrf.mxu0
        %v5282 = vpop.f32.mrf.mxu0
        %5283 = vdwg.mxu0
        %v5284 = vpack.c.bf16 %v5279, %v5279
        %s5285 = scalar_lea.vmem %s10, 768
        %v5286 = vld [vmem:[%s5285] sm:$0xff]
        %v5287 = vld [vmem:[%s5285 + $0x8] sm:$0xff]
        %v5288 = vld [vmem:[%s5285 + $0x10] sm:$0xff]
        %v5289 = vld [vmem:[%s5285 + $0x18] sm:$0xff]
        %v5290 = vld [vmem:[%s5285 + $0x20] sm:$0xff]
        %v5291 = vld [vmem:[%s5285 + $0x28] sm:$0xff]
        %v5292 = vld [vmem:[%s5285 + $0x30] sm:$0xff]
        %v5293 = vld [vmem:[%s5285 + $0x38] sm:$0xff]
        %v5294 = vld [vmem:[%s5285 + $0x40] sm:$0xff]
        %v5295 = vld [vmem:[%s5285 + $0x48] sm:$0xff]
        %v5296 = vld [vmem:[%s5285 + $0x50] sm:$0xff]
        %v5297 = vld [vmem:[%s5285 + $0x58] sm:$0xff]
        %v5298 = vld [vmem:[%s5285 + $0x60] sm:$0xff]
        %v5299 = vld [vmem:[%s5285 + $0x68] sm:$0xff]
        %v5300 = vld [vmem:[%s5285 + $0x70] sm:$0xff]
        %v5301 = vld [vmem:[%s5285 + $0x78] sm:$0xff]
        %v5318 = vunpack.c.l.b16 %v5286
        %v5319 = vunpack.c.h.b16 %v5286
        %v5320 = vunpack.c.l.b16 %v5287
        %v5321 = vunpack.c.h.b16 %v5287
        %v5322 = vunpack.c.l.b16 %v5288
        %v5323 = vunpack.c.h.b16 %v5288
        %v5324 = vunpack.c.l.b16 %v5289
        %v5325 = vunpack.c.h.b16 %v5289
        %v5326 = vunpack.c.l.b16 %v5290
        %v5327 = vunpack.c.h.b16 %v5290
        %v5328 = vunpack.c.l.b16 %v5291
        %v5329 = vunpack.c.h.b16 %v5291
        %v5330 = vunpack.c.l.b16 %v5292
        %v5331 = vunpack.c.h.b16 %v5292
        %v5332 = vunpack.c.l.b16 %v5293
        %v5333 = vunpack.c.h.b16 %v5293
        %v5334 = vunpack.c.l.b16 %v5294
        %v5335 = vunpack.c.h.b16 %v5294
        %v5336 = vunpack.c.l.b16 %v5295
        %v5337 = vunpack.c.h.b16 %v5295
        %v5338 = vunpack.c.l.b16 %v5296
        %v5339 = vunpack.c.h.b16 %v5296
        %v5340 = vunpack.c.l.b16 %v5297
        %v5341 = vunpack.c.h.b16 %v5297
        %v5342 = vunpack.c.l.b16 %v5298
        %v5343 = vunpack.c.h.b16 %v5298
        %v5344 = vunpack.c.l.b16 %v5299
        %v5345 = vunpack.c.h.b16 %v5299
        %v5346 = vunpack.c.l.b16 %v5300
        %v5347 = vunpack.c.h.b16 %v5300
        %v5348 = vunpack.c.l.b16 %v5301
        %v5349 = vunpack.c.h.b16 %v5301
        %v5350 = vpack.c.b16 %v5322, %v5318
        %v5351 = vpack.c.b16 %v5323, %v5319
        %v5352 = vpack.c.b16 %v5324, %v5320
        %v5353 = vpack.c.b16 %v5325, %v5321
        %v5354 = vpack.c.b16 %v5330, %v5326
        %v5355 = vpack.c.b16 %v5331, %v5327
        %v5356 = vpack.c.b16 %v5332, %v5328
        %v5357 = vpack.c.b16 %v5333, %v5329
        %v5358 = vpack.c.b16 %v5338, %v5334
        %v5359 = vpack.c.b16 %v5339, %v5335
        %v5360 = vpack.c.b16 %v5340, %v5336
        %v5361 = vpack.c.b16 %v5341, %v5337
        %v5362 = vpack.c.b16 %v5346, %v5342
        %v5363 = vpack.c.b16 %v5347, %v5343
        %v5364 = vpack.c.b16 %v5348, %v5344
        %v5365 = vpack.c.b16 %v5349, %v5345
        %v5383 = vsel %vm607, %v5284, 0
        %5385 = vmatprep.subr.bf16.mxu0 0
        %5386 = vmatpush1.bf16.msra.mxu0 0
        %5387 = vmatprep.subr.bf16.mxu0 0
        %5388 = vmatpush1.bf16.msra.mxu0 0
        %5389 = vmatprep.subr.bf16.mxu0 0
        %5390 = vmatpush1.bf16.msra.mxu0 0
        %5391 = vmatprep.subr.bf16.mxu0 0
        %5392 = vmatpush1.bf16.msra.mxu0 0
        %5393 = vmatprep.subr.bf16.mxu0 %v5363
        %5394 = vmatpush1.bf16.msra.mxu0 %v5362
        %5395 = vmatprep.subr.bf16.mxu0 %v5359
        %5396 = vmatpush1.bf16.msra.mxu0 %v5358
        %5397 = vmatprep.subr.bf16.mxu0 %v5355
        %5398 = vmatpush1.bf16.msra.mxu0 %v5354
        %5399 = vmatprep.subr.bf16.mxu0 %v5351
        %5400 = vmatpush1.bf16.msra.mxu0 %v5350
        %5401 = vmatprep.subr.bf16.mxu0 0
        %5402 = vmatpush2.bf16.msra.mxu0 0
        %5403 = vmatprep.subr.bf16.mxu0 0
        %5404 = vmatpush2.bf16.msra.mxu0 0
        %5405 = vmatprep.subr.bf16.mxu0 0
        %5406 = vmatpush2.bf16.msra.mxu0 0
        %5407 = vmatprep.subr.bf16.mxu0 0
        %5408 = vmatpush2.bf16.msra.mxu0 0
        %5409 = vmatprep.subr.bf16.mxu0 0
        %5410 = vmatpush2.bf16.msra.mxu0 0
        %5411 = vmatprep.subr.bf16.mxu0 0
        %5412 = vmatpush2.bf16.msra.mxu0 0
        %5413 = vmatprep.subr.bf16.mxu0 0
        %5414 = vmatpush2.bf16.msra.mxu0 0
        %5415 = vmatprep.subr.bf16.mxu0 0
        %5416 = vmatpush2.bf16.msra.mxu0 0
        %5417 = vmatprep.mubr.bf16.mxu0 0
        %5418 = vmatmul.mubr.bf16.gmra.mxu0 %v5383
        %v5419 = vpop.f32.mrf.mxu0
        %v5420 = vadd.f32 0.0, %v5419
        %v5421 = vpop.f32.mrf.mxu0
        %v5422 = vadd.f32 0.0, %v5421
        %v5423 = vpop.f32.mrf.mxu0
        %v5424 = vpop.f32.mrf.mxu0
        %5425 = vdwg.mxu0
        %5426 = vmatprep.subr.bf16.mxu0 0
        %5427 = vmatpush1.bf16.msra.mxu0 0
        %5428 = vmatprep.subr.bf16.mxu0 0
        %5429 = vmatpush1.bf16.msra.mxu0 0
        %5430 = vmatprep.subr.bf16.mxu0 0
        %5431 = vmatpush1.bf16.msra.mxu0 0
        %5432 = vmatprep.subr.bf16.mxu0 0
        %5433 = vmatpush1.bf16.msra.mxu0 0
        %5434 = vmatprep.subr.bf16.mxu0 %v5365
        %5435 = vmatpush1.bf16.msra.mxu0 %v5364
        %5436 = vmatprep.subr.bf16.mxu0 %v5361
        %5437 = vmatpush1.bf16.msra.mxu0 %v5360
        %5438 = vmatprep.subr.bf16.mxu0 %v5357
        %5439 = vmatpush1.bf16.msra.mxu0 %v5356
        %5440 = vmatprep.subr.bf16.mxu0 %v5353
        %5441 = vmatpush1.bf16.msra.mxu0 %v5352
        %5442 = vmatprep.subr.bf16.mxu0 0
        %5443 = vmatpush2.bf16.msra.mxu0 0
        %5444 = vmatprep.subr.bf16.mxu0 0
        %5445 = vmatpush2.bf16.msra.mxu0 0
        %5446 = vmatprep.subr.bf16.mxu0 0
        %5447 = vmatpush2.bf16.msra.mxu0 0
        %5448 = vmatprep.subr.bf16.mxu0 0
        %5449 = vmatpush2.bf16.msra.mxu0 0
        %5450 = vmatprep.subr.bf16.mxu0 0
        %5451 = vmatpush2.bf16.msra.mxu0 0
        %5452 = vmatprep.subr.bf16.mxu0 0
        %5453 = vmatpush2.bf16.msra.mxu0 0
        %5454 = vmatprep.subr.bf16.mxu0 0
        %5455 = vmatpush2.bf16.msra.mxu0 0
        %5456 = vmatprep.subr.bf16.mxu0 0
        %5457 = vmatpush2.bf16.msra.mxu0 0
        %5458 = vmatprep.mubr.bf16.mxu0 0
        %5459 = vmatmul.mubr.bf16.gmra.mxu0 %v5383
        %v5460 = vpop.f32.mrf.mxu0
        %v5461 = vadd.f32 0.0, %v5460
        %v5462 = vpop.f32.mrf.mxu0
        %v5463 = vadd.f32 0.0, %v5462
        %v5464 = vpop.f32.mrf.mxu0
        %v5465 = vpop.f32.mrf.mxu0
        %5466 = vdwg.mxu0
        %v5467 = vadd.f32 %v5235, %v5420
        %v5468 = vadd.f32 %v5236, %v5422
        %v5469 = vadd.f32 %v5237, %v5461
        %v5470 = vadd.f32 %v5238, %v5463
        %s5471 = scalar_lea.vmem %s9, 14
        %v5472 = vld [vmem:[%s5471] sm:$0x3]
        %v5474 = vsel %vm3854, %v5472, 0
        %5476 = vmatprep.subr.bf16.mxu0 0
        %5477 = vmatpush1.bf16.msra.mxu0 0
        %5478 = vmatprep.subr.bf16.mxu0 0
        %5479 = vmatpush1.bf16.msra.mxu0 0
        %5480 = vmatprep.subr.bf16.mxu0 0
        %5481 = vmatpush1.bf16.msra.mxu0 0
        %5482 = vmatprep.subr.bf16.mxu0 0
        %5483 = vmatpush1.bf16.msra.mxu0 0
        %5484 = vmatprep.subr.bf16.mxu0 0
        %5485 = vmatpush1.bf16.msra.mxu0 0
        %5486 = vmatprep.subr.bf16.mxu0 0
        %5487 = vmatpush1.bf16.msra.mxu0 0
        %5488 = vmatprep.subr.bf16.mxu0 0
        %5489 = vmatpush1.bf16.msra.mxu0 0
        %5490 = vmatprep.subr.bf16.mxu0 0
        %5491 = vmatpush1.bf16.msra.mxu0 %v3859
        %5492 = vmatprep.subr.bf16.mxu0 0
        %5493 = vmatpush2.bf16.msra.mxu0 0
        %5494 = vmatprep.subr.bf16.mxu0 0
        %5495 = vmatpush2.bf16.msra.mxu0 0
        %5496 = vmatprep.subr.bf16.mxu0 0
        %5497 = vmatpush2.bf16.msra.mxu0 0
        %5498 = vmatprep.subr.bf16.mxu0 0
        %5499 = vmatpush2.bf16.msra.mxu0 0
        %5500 = vmatprep.subr.bf16.mxu0 0
        %5501 = vmatpush2.bf16.msra.mxu0 0
        %5502 = vmatprep.subr.bf16.mxu0 0
        %5503 = vmatpush2.bf16.msra.mxu0 0
        %5504 = vmatprep.subr.bf16.mxu0 0
        %5505 = vmatpush2.bf16.msra.mxu0 0
        %5506 = vmatprep.subr.bf16.mxu0 0
        %5507 = vmatpush2.bf16.msra.mxu0 0
        %5508 = vmatprep.mubr.bf16.mxu0 0
        %5509 = vmatmul.mubr.bf16.gmra.mxu0 %v5474
        %v5510 = vpop.f32.mrf.mxu0
        %v5511 = vadd.f32 0.0, %v5510
        %v5512 = vpop.f32.mrf.mxu0
        %v5513 = vpop.f32.mrf.mxu0
        %v5514 = vpop.f32.mrf.mxu0
        %5515 = vdwg.mxu0
        %v5516 = vpack.c.bf16 %v5511, %v5511
        %s5517 = scalar_lea.vmem %s10, 896
        %v5518 = vld [vmem:[%s5517] sm:$0xff]
        %v5519 = vld [vmem:[%s5517 + $0x8] sm:$0xff]
        %v5520 = vld [vmem:[%s5517 + $0x10] sm:$0xff]
        %v5521 = vld [vmem:[%s5517 + $0x18] sm:$0xff]
        %v5522 = vld [vmem:[%s5517 + $0x20] sm:$0xff]
        %v5523 = vld [vmem:[%s5517 + $0x28] sm:$0xff]
        %v5524 = vld [vmem:[%s5517 + $0x30] sm:$0xff]
        %v5525 = vld [vmem:[%s5517 + $0x38] sm:$0xff]
        %v5526 = vld [vmem:[%s5517 + $0x40] sm:$0xff]
        %v5527 = vld [vmem:[%s5517 + $0x48] sm:$0xff]
        %v5528 = vld [vmem:[%s5517 + $0x50] sm:$0xff]
        %v5529 = vld [vmem:[%s5517 + $0x58] sm:$0xff]
        %v5530 = vld [vmem:[%s5517 + $0x60] sm:$0xff]
        %v5531 = vld [vmem:[%s5517 + $0x68] sm:$0xff]
        %v5532 = vld [vmem:[%s5517 + $0x70] sm:$0xff]
        %v5533 = vld [vmem:[%s5517 + $0x78] sm:$0xff]
        %v5550 = vunpack.c.l.b16 %v5518
        %v5551 = vunpack.c.h.b16 %v5518
        %v5552 = vunpack.c.l.b16 %v5519
        %v5553 = vunpack.c.h.b16 %v5519
        %v5554 = vunpack.c.l.b16 %v5520
        %v5555 = vunpack.c.h.b16 %v5520
        %v5556 = vunpack.c.l.b16 %v5521
        %v5557 = vunpack.c.h.b16 %v5521
        %v5558 = vunpack.c.l.b16 %v5522
        %v5559 = vunpack.c.h.b16 %v5522
        %v5560 = vunpack.c.l.b16 %v5523
        %v5561 = vunpack.c.h.b16 %v5523
        %v5562 = vunpack.c.l.b16 %v5524
        %v5563 = vunpack.c.h.b16 %v5524
        %v5564 = vunpack.c.l.b16 %v5525
        %v5565 = vunpack.c.h.b16 %v5525
        %v5566 = vunpack.c.l.b16 %v5526
        %v5567 = vunpack.c.h.b16 %v5526
        %v5568 = vunpack.c.l.b16 %v5527
        %v5569 = vunpack.c.h.b16 %v5527
        %v5570 = vunpack.c.l.b16 %v5528
        %v5571 = vunpack.c.h.b16 %v5528
        %v5572 = vunpack.c.l.b16 %v5529
        %v5573 = vunpack.c.h.b16 %v5529
        %v5574 = vunpack.c.l.b16 %v5530
        %v5575 = vunpack.c.h.b16 %v5530
        %v5576 = vunpack.c.l.b16 %v5531
        %v5577 = vunpack.c.h.b16 %v5531
        %v5578 = vunpack.c.l.b16 %v5532
        %v5579 = vunpack.c.h.b16 %v5532
        %v5580 = vunpack.c.l.b16 %v5533
        %v5581 = vunpack.c.h.b16 %v5533
        %v5582 = vpack.c.b16 %v5554, %v5550
        %v5583 = vpack.c.b16 %v5555, %v5551
        %v5584 = vpack.c.b16 %v5556, %v5552
        %v5585 = vpack.c.b16 %v5557, %v5553
        %v5586 = vpack.c.b16 %v5562, %v5558
        %v5587 = vpack.c.b16 %v5563, %v5559
        %v5588 = vpack.c.b16 %v5564, %v5560
        %v5589 = vpack.c.b16 %v5565, %v5561
        %v5590 = vpack.c.b16 %v5570, %v5566
        %v5591 = vpack.c.b16 %v5571, %v5567
        %v5592 = vpack.c.b16 %v5572, %v5568
        %v5593 = vpack.c.b16 %v5573, %v5569
        %v5594 = vpack.c.b16 %v5578, %v5574
        %v5595 = vpack.c.b16 %v5579, %v5575
        %v5596 = vpack.c.b16 %v5580, %v5576
        %v5597 = vpack.c.b16 %v5581, %v5577
        %v5615 = vsel %vm607, %v5516, 0
        %5617 = vmatprep.subr.bf16.mxu0 0
        %5618 = vmatpush1.bf16.msra.mxu0 0
        %5619 = vmatprep.subr.bf16.mxu0 0
        %5620 = vmatpush1.bf16.msra.mxu0 0
        %5621 = vmatprep.subr.bf16.mxu0 0
        %5622 = vmatpush1.bf16.msra.mxu0 0
        %5623 = vmatprep.subr.bf16.mxu0 0
        %5624 = vmatpush1.bf16.msra.mxu0 0
        %5625 = vmatprep.subr.bf16.mxu0 %v5595
        %5626 = vmatpush1.bf16.msra.mxu0 %v5594
        %5627 = vmatprep.subr.bf16.mxu0 %v5591
        %5628 = vmatpush1.bf16.msra.mxu0 %v5590
        %5629 = vmatprep.subr.bf16.mxu0 %v5587
        %5630 = vmatpush1.bf16.msra.mxu0 %v5586
        %5631 = vmatprep.subr.bf16.mxu0 %v5583
        %5632 = vmatpush1.bf16.msra.mxu0 %v5582
        %5633 = vmatprep.subr.bf16.mxu0 0
        %5634 = vmatpush2.bf16.msra.mxu0 0
        %5635 = vmatprep.subr.bf16.mxu0 0
        %5636 = vmatpush2.bf16.msra.mxu0 0
        %5637 = vmatprep.subr.bf16.mxu0 0
        %5638 = vmatpush2.bf16.msra.mxu0 0
        %5639 = vmatprep.subr.bf16.mxu0 0
        %5640 = vmatpush2.bf16.msra.mxu0 0
        %5641 = vmatprep.subr.bf16.mxu0 0
        %5642 = vmatpush2.bf16.msra.mxu0 0
        %5643 = vmatprep.subr.bf16.mxu0 0
        %5644 = vmatpush2.bf16.msra.mxu0 0
        %5645 = vmatprep.subr.bf16.mxu0 0
        %5646 = vmatpush2.bf16.msra.mxu0 0
        %5647 = vmatprep.subr.bf16.mxu0 0
        %5648 = vmatpush2.bf16.msra.mxu0 0
        %5649 = vmatprep.mubr.bf16.mxu0 0
        %5650 = vmatmul.mubr.bf16.gmra.mxu0 %v5615
        %v5651 = vpop.f32.mrf.mxu0
        %v5652 = vadd.f32 0.0, %v5651
        %v5653 = vpop.f32.mrf.mxu0
        %v5654 = vadd.f32 0.0, %v5653
        %v5655 = vpop.f32.mrf.mxu0
        %v5656 = vpop.f32.mrf.mxu0
        %5657 = vdwg.mxu0
        %5658 = vmatprep.subr.bf16.mxu0 0
        %5659 = vmatpush1.bf16.msra.mxu0 0
        %5660 = vmatprep.subr.bf16.mxu0 0
        %5661 = vmatpush1.bf16.msra.mxu0 0
        %5662 = vmatprep.subr.bf16.mxu0 0
        %5663 = vmatpush1.bf16.msra.mxu0 0
        %5664 = vmatprep.subr.bf16.mxu0 0
        %5665 = vmatpush1.bf16.msra.mxu0 0
        %5666 = vmatprep.subr.bf16.mxu0 %v5597
        %5667 = vmatpush1.bf16.msra.mxu0 %v5596
        %5668 = vmatprep.subr.bf16.mxu0 %v5593
        %5669 = vmatpush1.bf16.msra.mxu0 %v5592
        %5670 = vmatprep.subr.bf16.mxu0 %v5589
        %5671 = vmatpush1.bf16.msra.mxu0 %v5588
        %5672 = vmatprep.subr.bf16.mxu0 %v5585
        %5673 = vmatpush1.bf16.msra.mxu0 %v5584
        %5674 = vmatprep.subr.bf16.mxu0 0
        %5675 = vmatpush2.bf16.msra.mxu0 0
        %5676 = vmatprep.subr.bf16.mxu0 0
        %5677 = vmatpush2.bf16.msra.mxu0 0
        %5678 = vmatprep.subr.bf16.mxu0 0
        %5679 = vmatpush2.bf16.msra.mxu0 0
        %5680 = vmatprep.subr.bf16.mxu0 0
        %5681 = vmatpush2.bf16.msra.mxu0 0
        %5682 = vmatprep.subr.bf16.mxu0 0
        %5683 = vmatpush2.bf16.msra.mxu0 0
        %5684 = vmatprep.subr.bf16.mxu0 0
        %5685 = vmatpush2.bf16.msra.mxu0 0
        %5686 = vmatprep.subr.bf16.mxu0 0
        %5687 = vmatpush2.bf16.msra.mxu0 0
        %5688 = vmatprep.subr.bf16.mxu0 0
        %5689 = vmatpush2.bf16.msra.mxu0 0
        %5690 = vmatprep.mubr.bf16.mxu0 0
        %5691 = vmatmul.mubr.bf16.gmra.mxu0 %v5615
        %v5692 = vpop.f32.mrf.mxu0
        %v5693 = vadd.f32 0.0, %v5692
        %v5694 = vpop.f32.mrf.mxu0
        %v5695 = vadd.f32 0.0, %v5694
        %v5696 = vpop.f32.mrf.mxu0
        %v5697 = vpop.f32.mrf.mxu0
        %5698 = vdwg.mxu0
        %v5699 = vadd.f32 %v5467, %v5652
        %v5700 = vadd.f32 %v5468, %v5654
        %v5701 = vadd.f32 %v5469, %v5693
        %v5702 = vadd.f32 %v5470, %v5695
        %s5703 = scalar_lea.vmem %s9, 16
        %v5704 = vld [vmem:[%s5703] sm:$0x3]
        %v5706 = vsel %vm3854, %v5704, 0
        %5708 = vmatprep.subr.bf16.mxu0 0
        %5709 = vmatpush1.bf16.msra.mxu0 0
        %5710 = vmatprep.subr.bf16.mxu0 0
        %5711 = vmatpush1.bf16.msra.mxu0 0
        %5712 = vmatprep.subr.bf16.mxu0 0
        %5713 = vmatpush1.bf16.msra.mxu0 0
        %5714 = vmatprep.subr.bf16.mxu0 0
        %5715 = vmatpush1.bf16.msra.mxu0 0
        %5716 = vmatprep.subr.bf16.mxu0 0
        %5717 = vmatpush1.bf16.msra.mxu0 0
        %5718 = vmatprep.subr.bf16.mxu0 0
        %5719 = vmatpush1.bf16.msra.mxu0 0
        %5720 = vmatprep.subr.bf16.mxu0 0
        %5721 = vmatpush1.bf16.msra.mxu0 0
        %5722 = vmatprep.subr.bf16.mxu0 0
        %5723 = vmatpush1.bf16.msra.mxu0 %v3859
        %5724 = vmatprep.subr.bf16.mxu0 0
        %5725 = vmatpush2.bf16.msra.mxu0 0
        %5726 = vmatprep.subr.bf16.mxu0 0
        %5727 = vmatpush2.bf16.msra.mxu0 0
        %5728 = vmatprep.subr.bf16.mxu0 0
        %5729 = vmatpush2.bf16.msra.mxu0 0
        %5730 = vmatprep.subr.bf16.mxu0 0
        %5731 = vmatpush2.bf16.msra.mxu0 0
        %5732 = vmatprep.subr.bf16.mxu0 0
        %5733 = vmatpush2.bf16.msra.mxu0 0
        %5734 = vmatprep.subr.bf16.mxu0 0
        %5735 = vmatpush2.bf16.msra.mxu0 0
        %5736 = vmatprep.subr.bf16.mxu0 0
        %5737 = vmatpush2.bf16.msra.mxu0 0
        %5738 = vmatprep.subr.bf16.mxu0 0
        %5739 = vmatpush2.bf16.msra.mxu0 0
        %5740 = vmatprep.mubr.bf16.mxu0 0
        %5741 = vmatmul.mubr.bf16.gmra.mxu0 %v5706
        %v5742 = vpop.f32.mrf.mxu0
        %v5743 = vadd.f32 0.0, %v5742
        %v5744 = vpop.f32.mrf.mxu0
        %v5745 = vpop.f32.mrf.mxu0
        %v5746 = vpop.f32.mrf.mxu0
        %5747 = vdwg.mxu0
        %v5748 = vpack.c.bf16 %v5743, %v5743
        %s5749 = scalar_lea.vmem %s10, 1024
        %v5750 = vld [vmem:[%s5749] sm:$0xff]
        %v5751 = vld [vmem:[%s5749 + $0x8] sm:$0xff]
        %v5752 = vld [vmem:[%s5749 + $0x10] sm:$0xff]
        %v5753 = vld [vmem:[%s5749 + $0x18] sm:$0xff]
        %v5754 = vld [vmem:[%s5749 + $0x20] sm:$0xff]
        %v5755 = vld [vmem:[%s5749 + $0x28] sm:$0xff]
        %v5756 = vld [vmem:[%s5749 + $0x30] sm:$0xff]
        %v5757 = vld [vmem:[%s5749 + $0x38] sm:$0xff]
        %v5758 = vld [vmem:[%s5749 + $0x40] sm:$0xff]
        %v5759 = vld [vmem:[%s5749 + $0x48] sm:$0xff]
        %v5760 = vld [vmem:[%s5749 + $0x50] sm:$0xff]
        %v5761 = vld [vmem:[%s5749 + $0x58] sm:$0xff]
        %v5762 = vld [vmem:[%s5749 + $0x60] sm:$0xff]
        %v5763 = vld [vmem:[%s5749 + $0x68] sm:$0xff]
        %v5764 = vld [vmem:[%s5749 + $0x70] sm:$0xff]
        %v5765 = vld [vmem:[%s5749 + $0x78] sm:$0xff]
        %v5782 = vunpack.c.l.b16 %v5750
        %v5783 = vunpack.c.h.b16 %v5750
        %v5784 = vunpack.c.l.b16 %v5751
        %v5785 = vunpack.c.h.b16 %v5751
        %v5786 = vunpack.c.l.b16 %v5752
        %v5787 = vunpack.c.h.b16 %v5752
        %v5788 = vunpack.c.l.b16 %v5753
        %v5789 = vunpack.c.h.b16 %v5753
        %v5790 = vunpack.c.l.b16 %v5754
        %v5791 = vunpack.c.h.b16 %v5754
        %v5792 = vunpack.c.l.b16 %v5755
        %v5793 = vunpack.c.h.b16 %v5755
        %v5794 = vunpack.c.l.b16 %v5756
        %v5795 = vunpack.c.h.b16 %v5756
        %v5796 = vunpack.c.l.b16 %v5757
        %v5797 = vunpack.c.h.b16 %v5757
        %v5798 = vunpack.c.l.b16 %v5758
        %v5799 = vunpack.c.h.b16 %v5758
        %v5800 = vunpack.c.l.b16 %v5759
        %v5801 = vunpack.c.h.b16 %v5759
        %v5802 = vunpack.c.l.b16 %v5760
        %v5803 = vunpack.c.h.b16 %v5760
        %v5804 = vunpack.c.l.b16 %v5761
        %v5805 = vunpack.c.h.b16 %v5761
        %v5806 = vunpack.c.l.b16 %v5762
        %v5807 = vunpack.c.h.b16 %v5762
        %v5808 = vunpack.c.l.b16 %v5763
        %v5809 = vunpack.c.h.b16 %v5763
        %v5810 = vunpack.c.l.b16 %v5764
        %v5811 = vunpack.c.h.b16 %v5764
        %v5812 = vunpack.c.l.b16 %v5765
        %v5813 = vunpack.c.h.b16 %v5765
        %v5814 = vpack.c.b16 %v5786, %v5782
        %v5815 = vpack.c.b16 %v5787, %v5783
        %v5816 = vpack.c.b16 %v5788, %v5784
        %v5817 = vpack.c.b16 %v5789, %v5785
        %v5818 = vpack.c.b16 %v5794, %v5790
        %v5819 = vpack.c.b16 %v5795, %v5791
        %v5820 = vpack.c.b16 %v5796, %v5792
        %v5821 = vpack.c.b16 %v5797, %v5793
        %v5822 = vpack.c.b16 %v5802, %v5798
        %v5823 = vpack.c.b16 %v5803, %v5799
        %v5824 = vpack.c.b16 %v5804, %v5800
        %v5825 = vpack.c.b16 %v5805, %v5801
        %v5826 = vpack.c.b16 %v5810, %v5806
        %v5827 = vpack.c.b16 %v5811, %v5807
        %v5828 = vpack.c.b16 %v5812, %v5808
        %v5829 = vpack.c.b16 %v5813, %v5809
        %v5847 = vsel %vm607, %v5748, 0
        %5849 = vmatprep.subr.bf16.mxu0 0
        %5850 = vmatpush1.bf16.msra.mxu0 0
        %5851 = vmatprep.subr.bf16.mxu0 0
        %5852 = vmatpush1.bf16.msra.mxu0 0
        %5853 = vmatprep.subr.bf16.mxu0 0
        %5854 = vmatpush1.bf16.msra.mxu0 0
        %5855 = vmatprep.subr.bf16.mxu0 0
        %5856 = vmatpush1.bf16.msra.mxu0 0
        %5857 = vmatprep.subr.bf16.mxu0 %v5827
        %5858 = vmatpush1.bf16.msra.mxu0 %v5826
        %5859 = vmatprep.subr.bf16.mxu0 %v5823
        %5860 = vmatpush1.bf16.msra.mxu0 %v5822
        %5861 = vmatprep.subr.bf16.mxu0 %v5819
        %5862 = vmatpush1.bf16.msra.mxu0 %v5818
        %5863 = vmatprep.subr.bf16.mxu0 %v5815
        %5864 = vmatpush1.bf16.msra.mxu0 %v5814
        %5865 = vmatprep.subr.bf16.mxu0 0
        %5866 = vmatpush2.bf16.msra.mxu0 0
        %5867 = vmatprep.subr.bf16.mxu0 0
        %5868 = vmatpush2.bf16.msra.mxu0 0
        %5869 = vmatprep.subr.bf16.mxu0 0
        %5870 = vmatpush2.bf16.msra.mxu0 0
        %5871 = vmatprep.subr.bf16.mxu0 0
        %5872 = vmatpush2.bf16.msra.mxu0 0
        %5873 = vmatprep.subr.bf16.mxu0 0
        %5874 = vmatpush2.bf16.msra.mxu0 0
        %5875 = vmatprep.subr.bf16.mxu0 0
        %5876 = vmatpush2.bf16.msra.mxu0 0
        %5877 = vmatprep.subr.bf16.mxu0 0
        %5878 = vmatpush2.bf16.msra.mxu0 0
        %5879 = vmatprep.subr.bf16.mxu0 0
        %5880 = vmatpush2.bf16.msra.mxu0 0
        %5881 = vmatprep.mubr.bf16.mxu0 0
        %5882 = vmatmul.mubr.bf16.gmra.mxu0 %v5847
        %v5883 = vpop.f32.mrf.mxu0
        %v5884 = vadd.f32 0.0, %v5883
        %v5885 = vpop.f32.mrf.mxu0
        %v5886 = vadd.f32 0.0, %v5885
        %v5887 = vpop.f32.mrf.mxu0
        %v5888 = vpop.f32.mrf.mxu0
        %5889 = vdwg.mxu0
        %5890 = vmatprep.subr.bf16.mxu0 0
        %5891 = vmatpush1.bf16.msra.mxu0 0
        %5892 = vmatprep.subr.bf16.mxu0 0
        %5893 = vmatpush1.bf16.msra.mxu0 0
        %5894 = vmatprep.subr.bf16.mxu0 0
        %5895 = vmatpush1.bf16.msra.mxu0 0
        %5896 = vmatprep.subr.bf16.mxu0 0
        %5897 = vmatpush1.bf16.msra.mxu0 0
        %5898 = vmatprep.subr.bf16.mxu0 %v5829
        %5899 = vmatpush1.bf16.msra.mxu0 %v5828
        %5900 = vmatprep.subr.bf16.mxu0 %v5825
        %5901 = vmatpush1.bf16.msra.mxu0 %v5824
        %5902 = vmatprep.subr.bf16.mxu0 %v5821
        %5903 = vmatpush1.bf16.msra.mxu0 %v5820
        %5904 = vmatprep.subr.bf16.mxu0 %v5817
        %5905 = vmatpush1.bf16.msra.mxu0 %v5816
        %5906 = vmatprep.subr.bf16.mxu0 0
        %5907 = vmatpush2.bf16.msra.mxu0 0
        %5908 = vmatprep.subr.bf16.mxu0 0
        %5909 = vmatpush2.bf16.msra.mxu0 0
        %5910 = vmatprep.subr.bf16.mxu0 0
        %5911 = vmatpush2.bf16.msra.mxu0 0
        %5912 = vmatprep.subr.bf16.mxu0 0
        %5913 = vmatpush2.bf16.msra.mxu0 0
        %5914 = vmatprep.subr.bf16.mxu0 0
        %5915 = vmatpush2.bf16.msra.mxu0 0
        %5916 = vmatprep.subr.bf16.mxu0 0
        %5917 = vmatpush2.bf16.msra.mxu0 0
        %5918 = vmatprep.subr.bf16.mxu0 0
        %5919 = vmatpush2.bf16.msra.mxu0 0
        %5920 = vmatprep.subr.bf16.mxu0 0
        %5921 = vmatpush2.bf16.msra.mxu0 0
        %5922 = vmatprep.mubr.bf16.mxu0 0
        %5923 = vmatmul.mubr.bf16.gmra.mxu0 %v5847
        %v5924 = vpop.f32.mrf.mxu0
        %v5925 = vadd.f32 0.0, %v5924
        %v5926 = vpop.f32.mrf.mxu0
        %v5927 = vadd.f32 0.0, %v5926
        %v5928 = vpop.f32.mrf.mxu0
        %v5929 = vpop.f32.mrf.mxu0
        %5930 = vdwg.mxu0
        %v5931 = vadd.f32 %v5699, %v5884
        %v5932 = vadd.f32 %v5700, %v5886
        %v5933 = vadd.f32 %v5701, %v5925
        %v5934 = vadd.f32 %v5702, %v5927
        %v5935 = vld [vmem:[%s11] sm:$0xf]
        %v5937 = vlaneseq
        %v5938 = vshrl.u32 %v5937, 7
        %v5939 = vsub.s32 0, %v5938
        %v5940 = vrot.slane %v5935, %v5939
        %v5941 = vlaneseq
        %v5942 = vshrl.u32 %v5941, 7
        %v5943 = vsub.s32 1, %v5942
        %v5944 = vrot.slane %v5935, %v5943
        %v5945 = vlaneseq
        %v5946 = vshrl.u32 %v5945, 7
        %v5947 = vsub.s32 2, %v5946
        %v5948 = vrot.slane %v5935, %v5947
        %v5949 = vlaneseq
        %v5950 = vshrl.u32 %v5949, 7
        %v5951 = vsub.s32 3, %v5950
        %v5952 = vrot.slane %v5935, %v5951
        %v5957 = vadd.f32 %v5931, %v5940
        %v5958 = vadd.f32 %v5932, %v5944
        %v5959 = vadd.f32 %v5933, %v5948
        %v5960 = vadd.f32 %v5934, %v5952
        %v5961 = vmax.f32 %v5957, -1.0
        %v5962 = vmax.f32 %v5958, -1.0
        %v5963 = vmax.f32 %v5959, -1.0
        %v5964 = vmax.f32 %v5960, -1.0
        %v5965 = vmin.f32 %v5961, 1.0
        %v5966 = vmin.f32 %v5962, 1.0
        %v5967 = vmin.f32 %v5963, 1.0
        %v5968 = vmin.f32 %v5964, 1.0
        %v5969 = vpack.c.bf16 %v5965, %v5965
        %v5970 = vpack.c.bf16 %v5966, %v5966
        %v5971 = vpack.c.bf16 %v5967, %v5967
        %v5972 = vpack.c.bf16 %v5968, %v5968
        %v5973 = vld [vmem:[%s12] sm:$0x1]
        %v5975 = vsel %vm3854, %v5973, 0
        %v5978 = vsel %vm816, %v5969, 0
        %v5981 = vsel %vm816, %v5970, 0
        %v5984 = vsel %vm816, %v5971, 0
        %v5987 = vsel %vm816, %v5972, 0
        %5989 = vmatprep.subr.bf16.mxu0 0
        %5990 = vmatpush1.bf16.msra.mxu0 0
        %5991 = vmatprep.subr.bf16.mxu0 0
        %5992 = vmatpush1.bf16.msra.mxu0 0
        %5993 = vmatprep.subr.bf16.mxu0 0
        %5994 = vmatpush1.bf16.msra.mxu0 0
        %5995 = vmatprep.subr.bf16.mxu0 0
        %5996 = vmatpush1.bf16.msra.mxu0 0
        %5997 = vmatprep.subr.bf16.mxu0 0
        %5998 = vmatpush1.bf16.msra.mxu0 0
        %5999 = vmatprep.subr.bf16.mxu0 0
        %6000 = vmatpush1.bf16.msra.mxu0 0
        %6001 = vmatprep.subr.bf16.mxu0 0
        %6002 = vmatpush1.bf16.msra.mxu0 0
        %6003 = vmatprep.subr.bf16.mxu0 %v5981
        %6004 = vmatpush1.bf16.msra.mxu0 %v5978
        %6005 = vmatprep.subr.bf16.mxu0 0
        %6006 = vmatpush2.bf16.msra.mxu0 0
        %6007 = vmatprep.subr.bf16.mxu0 0
        %6008 = vmatpush2.bf16.msra.mxu0 0
        %6009 = vmatprep.subr.bf16.mxu0 0
        %6010 = vmatpush2.bf16.msra.mxu0 0
        %6011 = vmatprep.subr.bf16.mxu0 0
        %6012 = vmatpush2.bf16.msra.mxu0 0
        %6013 = vmatprep.subr.bf16.mxu0 0
        %6014 = vmatpush2.bf16.msra.mxu0 0
        %6015 = vmatprep.subr.bf16.mxu0 0
        %6016 = vmatpush2.bf16.msra.mxu0 0
        %6017 = vmatprep.subr.bf16.mxu0 0
        %6018 = vmatpush2.bf16.msra.mxu0 0
        %6019 = vmatprep.subr.bf16.mxu0 0
        %6020 = vmatpush2.bf16.msra.mxu0 0
        %6021 = vmatprep.mubr.bf16.mxu0 0
        %6022 = vmatmul.mubr.bf16.gmra.mxu0 %v5975
        %v6023 = vpop.f32.mrf.mxu0
        %v6024 = vadd.f32 0.0, %v6023
        %v6025 = vpop.f32.mrf.mxu0
        %v6026 = vadd.f32 0.0, %v6025
        %v6027 = vpop.f32.mrf.mxu0
        %v6028 = vpop.f32.mrf.mxu0
        %6029 = vdwg.mxu0
        %6030 = vmatprep.subr.bf16.mxu0 0
        %6031 = vmatpush1.bf16.msra.mxu0 0
        %6032 = vmatprep.subr.bf16.mxu0 0
        %6033 = vmatpush1.bf16.msra.mxu0 0
        %6034 = vmatprep.subr.bf16.mxu0 0
        %6035 = vmatpush1.bf16.msra.mxu0 0
        %6036 = vmatprep.subr.bf16.mxu0 0
        %6037 = vmatpush1.bf16.msra.mxu0 0
        %6038 = vmatprep.subr.bf16.mxu0 0
        %6039 = vmatpush1.bf16.msra.mxu0 0
        %6040 = vmatprep.subr.bf16.mxu0 0
        %6041 = vmatpush1.bf16.msra.mxu0 0
        %6042 = vmatprep.subr.bf16.mxu0 0
        %6043 = vmatpush1.bf16.msra.mxu0 0
        %6044 = vmatprep.subr.bf16.mxu0 %v5987
        %6045 = vmatpush1.bf16.msra.mxu0 %v5984
        %6046 = vmatprep.subr.bf16.mxu0 0
        %6047 = vmatpush2.bf16.msra.mxu0 0
        %6048 = vmatprep.subr.bf16.mxu0 0
        %6049 = vmatpush2.bf16.msra.mxu0 0
        %6050 = vmatprep.subr.bf16.mxu0 0
        %6051 = vmatpush2.bf16.msra.mxu0 0
        %6052 = vmatprep.subr.bf16.mxu0 0
        %6053 = vmatpush2.bf16.msra.mxu0 0
        %6054 = vmatprep.subr.bf16.mxu0 0
        %6055 = vmatpush2.bf16.msra.mxu0 0
        %6056 = vmatprep.subr.bf16.mxu0 0
        %6057 = vmatpush2.bf16.msra.mxu0 0
        %6058 = vmatprep.subr.bf16.mxu0 0
        %6059 = vmatpush2.bf16.msra.mxu0 0
        %6060 = vmatprep.subr.bf16.mxu0 0
        %6061 = vmatpush2.bf16.msra.mxu0 0
        %6062 = vmatprep.mubr.bf16.mxu0 0
        %6063 = vmatmul.mubr.bf16.gmra.mxu0 %v5975
        %v6064 = vpop.f32.mrf.mxu0
        %v6065 = vadd.f32 0.0, %v6064
        %v6066 = vpop.f32.mrf.mxu0
        %v6067 = vadd.f32 0.0, %v6066
        %v6068 = vpop.f32.mrf.mxu0
        %v6069 = vpop.f32.mrf.mxu0
        %6070 = vdwg.mxu0
        %s6071 = scalar_lea.vmem %s12, 1
        %v6072 = vld [vmem:[%s6071] sm:$0x1]
        %v6074 = vsel %vm3854, %v6072, 0
        %6076 = vmatprep.subr.bf16.mxu0 0
        %6077 = vmatpush1.bf16.msra.mxu0 0
        %6078 = vmatprep.subr.bf16.mxu0 0
        %6079 = vmatpush1.bf16.msra.mxu0 0
        %6080 = vmatprep.subr.bf16.mxu0 0
        %6081 = vmatpush1.bf16.msra.mxu0 0
        %6082 = vmatprep.subr.bf16.mxu0 0
        %6083 = vmatpush1.bf16.msra.mxu0 0
        %6084 = vmatprep.subr.bf16.mxu0 0
        %6085 = vmatpush1.bf16.msra.mxu0 0
        %6086 = vmatprep.subr.bf16.mxu0 0
        %6087 = vmatpush1.bf16.msra.mxu0 0
        %6088 = vmatprep.subr.bf16.mxu0 0
        %6089 = vmatpush1.bf16.msra.mxu0 0
        %6090 = vmatprep.subr.bf16.mxu0 %v5981
        %6091 = vmatpush1.bf16.msra.mxu0 %v5978
        %6092 = vmatprep.subr.bf16.mxu0 0
        %6093 = vmatpush2.bf16.msra.mxu0 0
        %6094 = vmatprep.subr.bf16.mxu0 0
        %6095 = vmatpush2.bf16.msra.mxu0 0
        %6096 = vmatprep.subr.bf16.mxu0 0
        %6097 = vmatpush2.bf16.msra.mxu0 0
        %6098 = vmatprep.subr.bf16.mxu0 0
        %6099 = vmatpush2.bf16.msra.mxu0 0
        %6100 = vmatprep.subr.bf16.mxu0 0
        %6101 = vmatpush2.bf16.msra.mxu0 0
        %6102 = vmatprep.subr.bf16.mxu0 0
        %6103 = vmatpush2.bf16.msra.mxu0 0
        %6104 = vmatprep.subr.bf16.mxu0 0
        %6105 = vmatpush2.bf16.msra.mxu0 0
        %6106 = vmatprep.subr.bf16.mxu0 0
        %6107 = vmatpush2.bf16.msra.mxu0 0
        %6108 = vmatprep.mubr.bf16.mxu0 0
        %6109 = vmatmul.mubr.bf16.gmra.mxu0 %v6074
        %v6110 = vpop.f32.mrf.mxu0
        %v6111 = vadd.f32 0.0, %v6110
        %v6112 = vpop.f32.mrf.mxu0
        %v6113 = vadd.f32 0.0, %v6112
        %v6114 = vpop.f32.mrf.mxu0
        %v6115 = vpop.f32.mrf.mxu0
        %6116 = vdwg.mxu0
        %6117 = vmatprep.subr.bf16.mxu0 0
        %6118 = vmatpush1.bf16.msra.mxu0 0
        %6119 = vmatprep.subr.bf16.mxu0 0
        %6120 = vmatpush1.bf16.msra.mxu0 0
        %6121 = vmatprep.subr.bf16.mxu0 0
        %6122 = vmatpush1.bf16.msra.mxu0 0
        %6123 = vmatprep.subr.bf16.mxu0 0
        %6124 = vmatpush1.bf16.msra.mxu0 0
        %6125 = vmatprep.subr.bf16.mxu0 0
        %6126 = vmatpush1.bf16.msra.mxu0 0
        %6127 = vmatprep.subr.bf16.mxu0 0
        %6128 = vmatpush1.bf16.msra.mxu0 0
        %6129 = vmatprep.subr.bf16.mxu0 0
        %6130 = vmatpush1.bf16.msra.mxu0 0
        %6131 = vmatprep.subr.bf16.mxu0 %v5987
        %6132 = vmatpush1.bf16.msra.mxu0 %v5984
        %6133 = vmatprep.subr.bf16.mxu0 0
        %6134 = vmatpush2.bf16.msra.mxu0 0
        %6135 = vmatprep.subr.bf16.mxu0 0
        %6136 = vmatpush2.bf16.msra.mxu0 0
        %6137 = vmatprep.subr.bf16.mxu0 0
        %6138 = vmatpush2.bf16.msra.mxu0 0
        %6139 = vmatprep.subr.bf16.mxu0 0
        %6140 = vmatpush2.bf16.msra.mxu0 0
        %6141 = vmatprep.subr.bf16.mxu0 0
        %6142 = vmatpush2.bf16.msra.mxu0 0
        %6143 = vmatprep.subr.bf16.mxu0 0
        %6144 = vmatpush2.bf16.msra.mxu0 0
        %6145 = vmatprep.subr.bf16.mxu0 0
        %6146 = vmatpush2.bf16.msra.mxu0 0
        %6147 = vmatprep.subr.bf16.mxu0 0
        %6148 = vmatpush2.bf16.msra.mxu0 0
        %6149 = vmatprep.mubr.bf16.mxu0 0
        %6150 = vmatmul.mubr.bf16.gmra.mxu0 %v6074
        %v6151 = vpop.f32.mrf.mxu0
        %v6152 = vadd.f32 0.0, %v6151
        %v6153 = vpop.f32.mrf.mxu0
        %v6154 = vadd.f32 0.0, %v6153
        %v6155 = vpop.f32.mrf.mxu0
        %v6156 = vpop.f32.mrf.mxu0
        %6157 = vdwg.mxu0
        %v6158 = vmax.f32 %v6024, %v6111
        %v6159 = vmax.f32 %v6026, %v6113
        %v6160 = vmax.f32 %v6065, %v6152
        %v6161 = vmax.f32 %v6067, %v6154
        %s6162 = scalar_lea.vmem %s12, 2
        %v6163 = vld [vmem:[%s6162] sm:$0x1]
        %v6165 = vsel %vm3854, %v6163, 0
        %6167 = vmatprep.subr.bf16.mxu0 0
        %6168 = vmatpush1.bf16.msra.mxu0 0
        %6169 = vmatprep.subr.bf16.mxu0 0
        %6170 = vmatpush1.bf16.msra.mxu0 0
        %6171 = vmatprep.subr.bf16.mxu0 0
        %6172 = vmatpush1.bf16.msra.mxu0 0
        %6173 = vmatprep.subr.bf16.mxu0 0
        %6174 = vmatpush1.bf16.msra.mxu0 0
        %6175 = vmatprep.subr.bf16.mxu0 0
        %6176 = vmatpush1.bf16.msra.mxu0 0
        %6177 = vmatprep.subr.bf16.mxu0 0
        %6178 = vmatpush1.bf16.msra.mxu0 0
        %6179 = vmatprep.subr.bf16.mxu0 0
        %6180 = vmatpush1.bf16.msra.mxu0 0
        %6181 = vmatprep.subr.bf16.mxu0 %v5981
        %6182 = vmatpush1.bf16.msra.mxu0 %v5978
        %6183 = vmatprep.subr.bf16.mxu0 0
        %6184 = vmatpush2.bf16.msra.mxu0 0
        %6185 = vmatprep.subr.bf16.mxu0 0
        %6186 = vmatpush2.bf16.msra.mxu0 0
        %6187 = vmatprep.subr.bf16.mxu0 0
        %6188 = vmatpush2.bf16.msra.mxu0 0
        %6189 = vmatprep.subr.bf16.mxu0 0
        %6190 = vmatpush2.bf16.msra.mxu0 0
        %6191 = vmatprep.subr.bf16.mxu0 0
        %6192 = vmatpush2.bf16.msra.mxu0 0
        %6193 = vmatprep.subr.bf16.mxu0 0
        %6194 = vmatpush2.bf16.msra.mxu0 0
        %6195 = vmatprep.subr.bf16.mxu0 0
        %6196 = vmatpush2.bf16.msra.mxu0 0
        %6197 = vmatprep.subr.bf16.mxu0 0
        %6198 = vmatpush2.bf16.msra.mxu0 0
        %6199 = vmatprep.mubr.bf16.mxu0 0
        %6200 = vmatmul.mubr.bf16.gmra.mxu0 %v6165
        %v6201 = vpop.f32.mrf.mxu0
        %v6202 = vadd.f32 0.0, %v6201
        %v6203 = vpop.f32.mrf.mxu0
        %v6204 = vadd.f32 0.0, %v6203
        %v6205 = vpop.f32.mrf.mxu0
        %v6206 = vpop.f32.mrf.mxu0
        %6207 = vdwg.mxu0
        %6208 = vmatprep.subr.bf16.mxu0 0
        %6209 = vmatpush1.bf16.msra.mxu0 0
        %6210 = vmatprep.subr.bf16.mxu0 0
        %6211 = vmatpush1.bf16.msra.mxu0 0
        %6212 = vmatprep.subr.bf16.mxu0 0
        %6213 = vmatpush1.bf16.msra.mxu0 0
        %6214 = vmatprep.subr.bf16.mxu0 0
        %6215 = vmatpush1.bf16.msra.mxu0 0
        %6216 = vmatprep.subr.bf16.mxu0 0
        %6217 = vmatpush1.bf16.msra.mxu0 0
        %6218 = vmatprep.subr.bf16.mxu0 0
        %6219 = vmatpush1.bf16.msra.mxu0 0
        %6220 = vmatprep.subr.bf16.mxu0 0
        %6221 = vmatpush1.bf16.msra.mxu0 0
        %6222 = vmatprep.subr.bf16.mxu0 %v5987
        %6223 = vmatpush1.bf16.msra.mxu0 %v5984
        %6224 = vmatprep.subr.bf16.mxu0 0
        %6225 = vmatpush2.bf16.msra.mxu0 0
        %6226 = vmatprep.subr.bf16.mxu0 0
        %6227 = vmatpush2.bf16.msra.mxu0 0
        %6228 = vmatprep.subr.bf16.mxu0 0
        %6229 = vmatpush2.bf16.msra.mxu0 0
        %6230 = vmatprep.subr.bf16.mxu0 0
        %6231 = vmatpush2.bf16.msra.mxu0 0
        %6232 = vmatprep.subr.bf16.mxu0 0
        %6233 = vmatpush2.bf16.msra.mxu0 0
        %6234 = vmatprep.subr.bf16.mxu0 0
        %6235 = vmatpush2.bf16.msra.mxu0 0
        %6236 = vmatprep.subr.bf16.mxu0 0
        %6237 = vmatpush2.bf16.msra.mxu0 0
        %6238 = vmatprep.subr.bf16.mxu0 0
        %6239 = vmatpush2.bf16.msra.mxu0 0
        %6240 = vmatprep.mubr.bf16.mxu0 0
        %6241 = vmatmul.mubr.bf16.gmra.mxu0 %v6165
        %v6242 = vpop.f32.mrf.mxu0
        %v6243 = vadd.f32 0.0, %v6242
        %v6244 = vpop.f32.mrf.mxu0
        %v6245 = vadd.f32 0.0, %v6244
        %v6246 = vpop.f32.mrf.mxu0
        %v6247 = vpop.f32.mrf.mxu0
        %6248 = vdwg.mxu0
        %v6249 = vmax.f32 %v6158, %v6202
        %v6250 = vmax.f32 %v6159, %v6204
        %v6251 = vmax.f32 %v6160, %v6243
        %v6252 = vmax.f32 %v6161, %v6245
        %s6253 = scalar_lea.vmem %s12, 3
        %v6254 = vld [vmem:[%s6253] sm:$0x1]
        %v6256 = vsel %vm3854, %v6254, 0
        %6258 = vmatprep.subr.bf16.mxu0 0
        %6259 = vmatpush1.bf16.msra.mxu0 0
        %6260 = vmatprep.subr.bf16.mxu0 0
        %6261 = vmatpush1.bf16.msra.mxu0 0
        %6262 = vmatprep.subr.bf16.mxu0 0
        %6263 = vmatpush1.bf16.msra.mxu0 0
        %6264 = vmatprep.subr.bf16.mxu0 0
        %6265 = vmatpush1.bf16.msra.mxu0 0
        %6266 = vmatprep.subr.bf16.mxu0 0
        %6267 = vmatpush1.bf16.msra.mxu0 0
        %6268 = vmatprep.subr.bf16.mxu0 0
        %6269 = vmatpush1.bf16.msra.mxu0 0
        %6270 = vmatprep.subr.bf16.mxu0 0
        %6271 = vmatpush1.bf16.msra.mxu0 0
        %6272 = vmatprep.subr.bf16.mxu0 %v5981
        %6273 = vmatpush1.bf16.msra.mxu0 %v5978
        %6274 = vmatprep.subr.bf16.mxu0 0
        %6275 = vmatpush2.bf16.msra.mxu0 0
        %6276 = vmatprep.subr.bf16.mxu0 0
        %6277 = vmatpush2.bf16.msra.mxu0 0
        %6278 = vmatprep.subr.bf16.mxu0 0
        %6279 = vmatpush2.bf16.msra.mxu0 0
        %6280 = vmatprep.subr.bf16.mxu0 0
        %6281 = vmatpush2.bf16.msra.mxu0 0
        %6282 = vmatprep.subr.bf16.mxu0 0
        %6283 = vmatpush2.bf16.msra.mxu0 0
        %6284 = vmatprep.subr.bf16.mxu0 0
        %6285 = vmatpush2.bf16.msra.mxu0 0
        %6286 = vmatprep.subr.bf16.mxu0 0
        %6287 = vmatpush2.bf16.msra.mxu0 0
        %6288 = vmatprep.subr.bf16.mxu0 0
        %6289 = vmatpush2.bf16.msra.mxu0 0
        %6290 = vmatprep.mubr.bf16.mxu0 0
        %6291 = vmatmul.mubr.bf16.gmra.mxu0 %v6256
        %v6292 = vpop.f32.mrf.mxu0
        %v6293 = vadd.f32 0.0, %v6292
        %v6294 = vpop.f32.mrf.mxu0
        %v6295 = vadd.f32 0.0, %v6294
        %v6296 = vpop.f32.mrf.mxu0
        %v6297 = vpop.f32.mrf.mxu0
        %6298 = vdwg.mxu0
        %6299 = vmatprep.subr.bf16.mxu0 0
        %6300 = vmatpush1.bf16.msra.mxu0 0
        %6301 = vmatprep.subr.bf16.mxu0 0
        %6302 = vmatpush1.bf16.msra.mxu0 0
        %6303 = vmatprep.subr.bf16.mxu0 0
        %6304 = vmatpush1.bf16.msra.mxu0 0
        %6305 = vmatprep.subr.bf16.mxu0 0
        %6306 = vmatpush1.bf16.msra.mxu0 0
        %6307 = vmatprep.subr.bf16.mxu0 0
        %6308 = vmatpush1.bf16.msra.mxu0 0
        %6309 = vmatprep.subr.bf16.mxu0 0
        %6310 = vmatpush1.bf16.msra.mxu0 0
        %6311 = vmatprep.subr.bf16.mxu0 0
        %6312 = vmatpush1.bf16.msra.mxu0 0
        %6313 = vmatprep.subr.bf16.mxu0 %v5987
        %6314 = vmatpush1.bf16.msra.mxu0 %v5984
        %6315 = vmatprep.subr.bf16.mxu0 0
        %6316 = vmatpush2.bf16.msra.mxu0 0
        %6317 = vmatprep.subr.bf16.mxu0 0
        %6318 = vmatpush2.bf16.msra.mxu0 0
        %6319 = vmatprep.subr.bf16.mxu0 0
        %6320 = vmatpush2.bf16.msra.mxu0 0
        %6321 = vmatprep.subr.bf16.mxu0 0
        %6322 = vmatpush2.bf16.msra.mxu0 0
        %6323 = vmatprep.subr.bf16.mxu0 0
        %6324 = vmatpush2.bf16.msra.mxu0 0
        %6325 = vmatprep.subr.bf16.mxu0 0
        %6326 = vmatpush2.bf16.msra.mxu0 0
        %6327 = vmatprep.subr.bf16.mxu0 0
        %6328 = vmatpush2.bf16.msra.mxu0 0
        %6329 = vmatprep.subr.bf16.mxu0 0
        %6330 = vmatpush2.bf16.msra.mxu0 0
        %6331 = vmatprep.mubr.bf16.mxu0 0
        %6332 = vmatmul.mubr.bf16.gmra.mxu0 %v6256
        %v6333 = vpop.f32.mrf.mxu0
        %v6334 = vadd.f32 0.0, %v6333
        %v6335 = vpop.f32.mrf.mxu0
        %v6336 = vadd.f32 0.0, %v6335
        %v6337 = vpop.f32.mrf.mxu0
        %v6338 = vpop.f32.mrf.mxu0
        %6339 = vdwg.mxu0
        %v6340 = vmax.f32 %v6249, %v6293
        %v6341 = vmax.f32 %v6250, %v6295
        %v6342 = vmax.f32 %v6251, %v6334
        %v6343 = vmax.f32 %v6252, %v6336
        %v6344 = vpack.c.bf16 %v6340, %v6340
        %v6345 = vpack.c.bf16 %v6341, %v6341
        %v6346 = vpack.c.bf16 %v6342, %v6342
        %v6347 = vpack.c.bf16 %v6343, %v6343
        %v6348 = vunpack.c.l.bf16 %v6344
        %v6349 = vunpack.c.l.bf16 %v6345
        %v6350 = vunpack.c.l.bf16 %v6346
        %v6351 = vunpack.c.l.bf16 %v6347
        %v6352 = vld [vmem:[%s13] sm:$0xf]
        %v6354 = vlaneseq
        %v6355 = vshrl.u32 %v6354, 7
        %v6356 = vsub.s32 0, %v6355
        %v6357 = vrot.slane %v6352, %v6356
        %v6358 = vlaneseq
        %v6359 = vshrl.u32 %v6358, 7
        %v6360 = vsub.s32 1, %v6359
        %v6361 = vrot.slane %v6352, %v6360
        %v6362 = vlaneseq
        %v6363 = vshrl.u32 %v6362, 7
        %v6364 = vsub.s32 2, %v6363
        %v6365 = vrot.slane %v6352, %v6364
        %v6366 = vlaneseq
        %v6367 = vshrl.u32 %v6366, 7
        %v6368 = vsub.s32 3, %v6367
        %v6369 = vrot.slane %v6352, %v6368
        %v6374 = vmul.f32 %v6348, %v6357
        %v6375 = vmul.f32 %v6349, %v6361
        %v6376 = vmul.f32 %v6350, %v6365
        %v6377 = vmul.f32 %v6351, %v6369
        %v6378 = vld [vmem:[%s14] sm:$0xf]
        %v6380 = vlaneseq
        %v6381 = vshrl.u32 %v6380, 7
        %v6382 = vsub.s32 0, %v6381
        %v6383 = vrot.slane %v6378, %v6382
        %v6384 = vlaneseq
        %v6385 = vshrl.u32 %v6384, 7
        %v6386 = vsub.s32 1, %v6385
        %v6387 = vrot.slane %v6378, %v6386
        %v6388 = vlaneseq
        %v6389 = vshrl.u32 %v6388, 7
        %v6390 = vsub.s32 2, %v6389
        %v6391 = vrot.slane %v6378, %v6390
        %v6392 = vlaneseq
        %v6393 = vshrl.u32 %v6392, 7
        %v6394 = vsub.s32 3, %v6393
        %v6395 = vrot.slane %v6378, %v6394
        %v6400 = vadd.f32 %v6374, %v6383
        %v6401 = vadd.f32 %v6375, %v6387
        %v6402 = vadd.f32 %v6376, %v6391
        %v6403 = vadd.f32 %v6377, %v6395
        %v6404 = vmax.f32 %v6400, -1.0
        %v6405 = vmax.f32 %v6401, -1.0
        %v6406 = vmax.f32 %v6402, -1.0
        %v6407 = vmax.f32 %v6403, -1.0
        %v6408 = vmin.f32 %v6404, 1.0
        %v6409 = vmin.f32 %v6405, 1.0
        %v6410 = vmin.f32 %v6406, 1.0
        %v6411 = vmin.f32 %v6407, 1.0
        %v6412 = vpack.c.bf16 %v6408, %v6408
        %v6413 = vpack.c.bf16 %v6409, %v6409
        %v6414 = vpack.c.bf16 %v6410, %v6410
        %v6415 = vpack.c.bf16 %v6411, %v6411
        %v6416 = vld [vmem:[%s15] sm:$0xf]
        %v6417 = vld [vmem:[%s15 + $0x4] sm:$0xf]
        %v6418 = vld [vmem:[%s15 + $0x8] sm:$0xf]
        %v6419 = vld [vmem:[%s15 + $0xc] sm:$0xf]
        %v6420 = vld [vmem:[%s15 + $0x10] sm:$0xf]
        %v6421 = vld [vmem:[%s15 + $0x14] sm:$0xf]
        %v6422 = vld [vmem:[%s15 + $0x18] sm:$0xf]
        %v6423 = vld [vmem:[%s15 + $0x1c] sm:$0xf]
        %v6424 = vld [vmem:[%s15 + $0x20] sm:$0xf]
        %v6425 = vld [vmem:[%s15 + $0x24] sm:$0xf]
        %v6426 = vld [vmem:[%s15 + $0x28] sm:$0xf]
        %v6427 = vld [vmem:[%s15 + $0x2c] sm:$0xf]
        %v6428 = vld [vmem:[%s15 + $0x30] sm:$0xf]
        %v6429 = vld [vmem:[%s15 + $0x34] sm:$0xf]
        %v6430 = vld [vmem:[%s15 + $0x38] sm:$0xf]
        %v6431 = vld [vmem:[%s15 + $0x3c] sm:$0xf]
        %v6432 = vld [vmem:[%s15 + $0x40] sm:$0xf]
        %v6433 = vld [vmem:[%s15 + $0x44] sm:$0xf]
        %v6434 = vld [vmem:[%s15 + $0x48] sm:$0xf]
        %v6435 = vld [vmem:[%s15 + $0x4c] sm:$0xf]
        %v6436 = vld [vmem:[%s15 + $0x50] sm:$0xf]
        %v6437 = vld [vmem:[%s15 + $0x54] sm:$0xf]
        %v6438 = vld [vmem:[%s15 + $0x58] sm:$0xf]
        %v6439 = vld [vmem:[%s15 + $0x5c] sm:$0xf]
        %v6440 = vld [vmem:[%s15 + $0x60] sm:$0xf]
        %v6441 = vld [vmem:[%s15 + $0x64] sm:$0xf]
        %v6442 = vld [vmem:[%s15 + $0x68] sm:$0xf]
        %v6443 = vld [vmem:[%s15 + $0x6c] sm:$0xf]
        %v6444 = vld [vmem:[%s15 + $0x70] sm:$0xf]
        %v6445 = vld [vmem:[%s15 + $0x74] sm:$0xf]
        %v6446 = vld [vmem:[%s15 + $0x78] sm:$0xf]
        %v6447 = vld [vmem:[%s15 + $0x7c] sm:$0xf]
        %v6448 = vld [vmem:[%s15 + $0x80] sm:$0xf]
        %v6449 = vld [vmem:[%s15 + $0x84] sm:$0xf]
        %v6450 = vld [vmem:[%s15 + $0x88] sm:$0xf]
        %v6451 = vld [vmem:[%s15 + $0x8c] sm:$0xf]
        %v6452 = vld [vmem:[%s15 + $0x90] sm:$0xf]
        %v6453 = vld [vmem:[%s15 + $0x94] sm:$0xf]
        %v6454 = vld [vmem:[%s15 + $0x98] sm:$0xf]
        %v6455 = vld [vmem:[%s15 + $0x9c] sm:$0xf]
        %v6456 = vld [vmem:[%s15 + $0xa0] sm:$0xf]
        %v6457 = vld [vmem:[%s15 + $0xa4] sm:$0xf]
        %v6458 = vld [vmem:[%s15 + $0xa8] sm:$0xf]
        %v6459 = vld [vmem:[%s15 + $0xac] sm:$0xf]
        %v6460 = vld [vmem:[%s15 + $0xb0] sm:$0xf]
        %v6461 = vld [vmem:[%s15 + $0xb4] sm:$0xf]
        %v6462 = vld [vmem:[%s15 + $0xb8] sm:$0xf]
        %v6463 = vld [vmem:[%s15 + $0xbc] sm:$0xf]
        %v6464 = vld [vmem:[%s15 + $0xc0] sm:$0xf]
        %v6465 = vld [vmem:[%s15 + $0xc4] sm:$0xf]
        %v6466 = vld [vmem:[%s15 + $0xc8] sm:$0xf]
        %v6467 = vld [vmem:[%s15 + $0xcc] sm:$0xf]
        %v6468 = vld [vmem:[%s15 + $0xd0] sm:$0xf]
        %v6469 = vld [vmem:[%s15 + $0xd4] sm:$0xf]
        %v6470 = vld [vmem:[%s15 + $0xd8] sm:$0xf]
        %v6471 = vld [vmem:[%s15 + $0xdc] sm:$0xf]
        %v6472 = vld [vmem:[%s15 + $0xe0] sm:$0xf]
        %v6473 = vld [vmem:[%s15 + $0xe4] sm:$0xf]
        %v6474 = vld [vmem:[%s15 + $0xe8] sm:$0xf]
        %v6475 = vld [vmem:[%s15 + $0xec] sm:$0xf]
        %v6476 = vld [vmem:[%s15 + $0xf0] sm:$0xf]
        %v6477 = vld [vmem:[%s15 + $0xf4] sm:$0xf]
        %v6478 = vld [vmem:[%s15 + $0xf8] sm:$0xf]
        %v6479 = vld [vmem:[%s15 + $0xfc] sm:$0xf]
        %v6480 = vld [vmem:[%s16] sm:$0x1]
        %v6545 = vunpack.c.l.b16 %v6416
        %v6546 = vunpack.c.l.b16 %v6417
        %v6547 = vunpack.c.l.b16 %v6418
        %v6548 = vunpack.c.l.b16 %v6419
        %v6549 = vunpack.c.l.b16 %v6420
        %v6550 = vunpack.c.l.b16 %v6421
        %v6551 = vunpack.c.l.b16 %v6422
        %v6552 = vunpack.c.l.b16 %v6423
        %v6553 = vunpack.c.l.b16 %v6424
        %v6554 = vunpack.c.l.b16 %v6425
        %v6555 = vunpack.c.l.b16 %v6426
        %v6556 = vunpack.c.l.b16 %v6427
        %v6557 = vunpack.c.l.b16 %v6428
        %v6558 = vunpack.c.l.b16 %v6429
        %v6559 = vunpack.c.l.b16 %v6430
        %v6560 = vunpack.c.l.b16 %v6431
        %v6561 = vunpack.c.l.b16 %v6432
        %v6562 = vunpack.c.l.b16 %v6433
        %v6563 = vunpack.c.l.b16 %v6434
        %v6564 = vunpack.c.l.b16 %v6435
        %v6565 = vunpack.c.l.b16 %v6436
        %v6566 = vunpack.c.l.b16 %v6437
        %v6567 = vunpack.c.l.b16 %v6438
        %v6568 = vunpack.c.l.b16 %v6439
        %v6569 = vunpack.c.l.b16 %v6440
        %v6570 = vunpack.c.l.b16 %v6441
        %v6571 = vunpack.c.l.b16 %v6442
        %v6572 = vunpack.c.l.b16 %v6443
        %v6573 = vunpack.c.l.b16 %v6444
        %v6574 = vunpack.c.l.b16 %v6445
        %v6575 = vunpack.c.l.b16 %v6446
        %v6576 = vunpack.c.l.b16 %v6447
        %v6577 = vunpack.c.l.b16 %v6448
        %v6578 = vunpack.c.l.b16 %v6449
        %v6579 = vunpack.c.l.b16 %v6450
        %v6580 = vunpack.c.l.b16 %v6451
        %v6581 = vunpack.c.l.b16 %v6452
        %v6582 = vunpack.c.l.b16 %v6453
        %v6583 = vunpack.c.l.b16 %v6454
        %v6584 = vunpack.c.l.b16 %v6455
        %v6585 = vunpack.c.l.b16 %v6456
        %v6586 = vunpack.c.l.b16 %v6457
        %v6587 = vunpack.c.l.b16 %v6458
        %v6588 = vunpack.c.l.b16 %v6459
        %v6589 = vunpack.c.l.b16 %v6460
        %v6590 = vunpack.c.l.b16 %v6461
        %v6591 = vunpack.c.l.b16 %v6462
        %v6592 = vunpack.c.l.b16 %v6463
        %v6593 = vunpack.c.l.b16 %v6464
        %v6594 = vunpack.c.l.b16 %v6465
        %v6595 = vunpack.c.l.b16 %v6466
        %v6596 = vunpack.c.l.b16 %v6467
        %v6597 = vunpack.c.l.b16 %v6468
        %v6598 = vunpack.c.l.b16 %v6469
        %v6599 = vunpack.c.l.b16 %v6470
        %v6600 = vunpack.c.l.b16 %v6471
        %v6601 = vunpack.c.l.b16 %v6472
        %v6602 = vunpack.c.l.b16 %v6473
        %v6603 = vunpack.c.l.b16 %v6474
        %v6604 = vunpack.c.l.b16 %v6475
        %v6605 = vunpack.c.l.b16 %v6476
        %v6606 = vunpack.c.l.b16 %v6477
        %v6607 = vunpack.c.l.b16 %v6478
        %v6608 = vunpack.c.l.b16 %v6479
        %v6609 = vpack.c.b16 %v6546, %v6545
        %v6610 = vpack.c.b16 %v6548, %v6547
        %v6611 = vpack.c.b16 %v6550, %v6549
        %v6612 = vpack.c.b16 %v6552, %v6551
        %v6613 = vpack.c.b16 %v6554, %v6553
        %v6614 = vpack.c.b16 %v6556, %v6555
        %v6615 = vpack.c.b16 %v6558, %v6557
        %v6616 = vpack.c.b16 %v6560, %v6559
        %v6617 = vpack.c.b16 %v6562, %v6561
        %v6618 = vpack.c.b16 %v6564, %v6563
        %v6619 = vpack.c.b16 %v6566, %v6565
        %v6620 = vpack.c.b16 %v6568, %v6567
        %v6621 = vpack.c.b16 %v6570, %v6569
        %v6622 = vpack.c.b16 %v6572, %v6571
        %v6623 = vpack.c.b16 %v6574, %v6573
        %v6624 = vpack.c.b16 %v6576, %v6575
        %v6625 = vpack.c.b16 %v6578, %v6577
        %v6626 = vpack.c.b16 %v6580, %v6579
        %v6627 = vpack.c.b16 %v6582, %v6581
        %v6628 = vpack.c.b16 %v6584, %v6583
        %v6629 = vpack.c.b16 %v6586, %v6585
        %v6630 = vpack.c.b16 %v6588, %v6587
        %v6631 = vpack.c.b16 %v6590, %v6589
        %v6632 = vpack.c.b16 %v6592, %v6591
        %v6633 = vpack.c.b16 %v6594, %v6593
        %v6634 = vpack.c.b16 %v6596, %v6595
        %v6635 = vpack.c.b16 %v6598, %v6597
        %v6636 = vpack.c.b16 %v6600, %v6599
        %v6637 = vpack.c.b16 %v6602, %v6601
        %v6638 = vpack.c.b16 %v6604, %v6603
        %v6639 = vpack.c.b16 %v6606, %v6605
        %v6640 = vpack.c.b16 %v6608, %v6607
        %6673 = vmatprep.subr.bf16.mxu0 0
        %6674 = vmatpush1.bf16.msra.mxu0 %v6616
        %6675 = vmatprep.subr.bf16.mxu0 0
        %6676 = vmatpush1.bf16.msra.mxu0 %v6615
        %6677 = vmatprep.subr.bf16.mxu0 0
        %6678 = vmatpush1.bf16.msra.mxu0 %v6614
        %6679 = vmatprep.subr.bf16.mxu0 0
        %6680 = vmatpush1.bf16.msra.mxu0 %v6613
        %6681 = vmatprep.subr.bf16.mxu0 0
        %6682 = vmatpush1.bf16.msra.mxu0 %v6612
        %6683 = vmatprep.subr.bf16.mxu0 0
        %6684 = vmatpush1.bf16.msra.mxu0 %v6611
        %6685 = vmatprep.subr.bf16.mxu0 0
        %6686 = vmatpush1.bf16.msra.mxu0 %v6610
        %6687 = vmatprep.subr.bf16.mxu0 0
        %6688 = vmatpush1.bf16.msra.mxu0 %v6609
        %6689 = vmatprep.subr.bf16.mxu0 0
        %6690 = vmatpush2.bf16.msra.mxu0 %v6624
        %6691 = vmatprep.subr.bf16.mxu0 0
        %6692 = vmatpush2.bf16.msra.mxu0 %v6623
        %6693 = vmatprep.subr.bf16.mxu0 0
        %6694 = vmatpush2.bf16.msra.mxu0 %v6622
        %6695 = vmatprep.subr.bf16.mxu0 0
        %6696 = vmatpush2.bf16.msra.mxu0 %v6621
        %6697 = vmatprep.subr.bf16.mxu0 0
        %6698 = vmatpush2.bf16.msra.mxu0 %v6620
        %6699 = vmatprep.subr.bf16.mxu0 0
        %6700 = vmatpush2.bf16.msra.mxu0 %v6619
        %6701 = vmatprep.subr.bf16.mxu0 0
        %6702 = vmatpush2.bf16.msra.mxu0 %v6618
        %6703 = vmatprep.subr.bf16.mxu0 0
        %6704 = vmatpush2.bf16.msra.mxu0 %v6617
        %6705 = vmatprep.mubr.bf16.mxu0 %v6413
        %6706 = vmatmul.mubr.bf16.gmra.mxu0 %v6412
        %v6707 = vpop.f32.mrf.mxu0
        %v6708 = vadd.f32 %v6480, %v6707
        %v6709 = vpop.f32.mrf.mxu0
        %v6710 = vpop.f32.mrf.mxu0
        %v6711 = vpop.f32.mrf.mxu0
        %6712 = vdwg.mxu0
        %6713 = vmatprep.subr.bf16.mxu0 0
        %6714 = vmatpush1.bf16.msra.mxu0 %v6632
        %6715 = vmatprep.subr.bf16.mxu0 0
        %6716 = vmatpush1.bf16.msra.mxu0 %v6631
        %6717 = vmatprep.subr.bf16.mxu0 0
        %6718 = vmatpush1.bf16.msra.mxu0 %v6630
        %6719 = vmatprep.subr.bf16.mxu0 0
        %6720 = vmatpush1.bf16.msra.mxu0 %v6629
        %6721 = vmatprep.subr.bf16.mxu0 0
        %6722 = vmatpush1.bf16.msra.mxu0 %v6628
        %6723 = vmatprep.subr.bf16.mxu0 0
        %6724 = vmatpush1.bf16.msra.mxu0 %v6627
        %6725 = vmatprep.subr.bf16.mxu0 0
        %6726 = vmatpush1.bf16.msra.mxu0 %v6626
        %6727 = vmatprep.subr.bf16.mxu0 0
        %6728 = vmatpush1.bf16.msra.mxu0 %v6625
        %6729 = vmatprep.subr.bf16.mxu0 0
        %6730 = vmatpush2.bf16.msra.mxu0 %v6640
        %6731 = vmatprep.subr.bf16.mxu0 0
        %6732 = vmatpush2.bf16.msra.mxu0 %v6639
        %6733 = vmatprep.subr.bf16.mxu0 0
        %6734 = vmatpush2.bf16.msra.mxu0 %v6638
        %6735 = vmatprep.subr.bf16.mxu0 0
        %6736 = vmatpush2.bf16.msra.mxu0 %v6637
        %6737 = vmatprep.subr.bf16.mxu0 0
        %6738 = vmatpush2.bf16.msra.mxu0 %v6636
        %6739 = vmatprep.subr.bf16.mxu0 0
        %6740 = vmatpush2.bf16.msra.mxu0 %v6635
        %6741 = vmatprep.subr.bf16.mxu0 0
        %6742 = vmatpush2.bf16.msra.mxu0 %v6634
        %6743 = vmatprep.subr.bf16.mxu0 0
        %6744 = vmatpush2.bf16.msra.mxu0 %v6633
        %6745 = vmatprep.mubr.bf16.mxu0 %v6415
        %6746 = vmatmul.mubr.bf16.gmra.mxu0 %v6414
        %v6747 = vpop.f32.mrf.mxu0
        %v6748 = vadd.f32 %v6708, %v6747
        %v6749 = vpop.f32.mrf.mxu0
        %v6750 = vpop.f32.mrf.mxu0
        %v6751 = vpop.f32.mrf.mxu0
        %6752 = vdwg.mxu0
        %vm6753 = vcmask 73728
        %v6754 = vsel %vm6753, %v6748, -inf
        %6755 = vmax.xlane.f32.xlu0 %v6754
        %v6756 = vpop.xlane.xlu0 %6755
        %v6757 = vsub.f32 %v6748, %v6756
        %v6758 = vmul.f32 %v6757, 1.442695
        %v6759 = vpow.pop %v6758
        %v6760 = vsel %vm6753, %v6759, 0.0
        %6761 = vadd.xlane.f32.xlu0 %v6760
        %v6762 = vpop.xlane.xlu0 %6761
        %v6763 = vlog2.pop %v6762
        %v6764 = vmul.f32 %v6763, 0.6931472
        %v6765 = vsub.f32 %v6757, %v6764
        %6766 = vst.msk [vmem:[%s540] sm:$0x1] %vm6753, %v6765
        %s6767 = sand.u32 %s401, 1
        %s6768 = scalar_lea.sflag [#allocation3], %s6767
        %s6769 = sand.u32 %s401, 1
        %s6770 = scalar_lea.vmem [#allocation2], %s6769
        // Predicated region
        $region89: #{vgg_forward.1} parent=87 // pred_check
          %p6771 = pneg %p411
        $region90: #{vgg_forward.1} parent=87 // pred_check_branch
          %6773 = sbr.rel (%p6771) target = $region92
        $region91: #{vgg_forward.1} parent=87 // pred_region
          %s6775 = ssub.s32 16, 16
          %6776 = vsyncadd %s6768, %s6775
          %s6777 = smul.addr %s31, 16
          %s6778 = scalar_lea.hbm %s17, %s6777
          %s6780 = sshll.u32 %s6770, 4
          %s6781 = int_to_ptr.vmem [resolvable:$true] %s6780
          %6783 = dma.vmem_to_hbm [thread:$0]  %s6781, 16, %s6778, %s6768
        $region92: #{vgg_forward.1} parent=87 // pred_fallthru
          _
      $region88: #{vgg_forward.1} parent=5 // pred_fallthru
        _
      %p6784 = scmp.le.s32.totalorder 2, %s26
      // Predicated region
      $region93: #{vgg_forward.1} parent=5 // pred_check
        %p6785 = pneg %p6784
      $region94: #{vgg_forward.1} parent=5 // pred_check_branch
        %6787 = sbr.rel (%p6785) target = $region96
      $region95: #{vgg_forward.1} parent=5 // pred_region
        %s6788 = ssub.s32 %s26, 2
        // Predicated region
        $region97: #{vgg_forward.1} parent=95 // pred_check
          %p6789 = pneg %p417
        $region98: #{vgg_forward.1} parent=95 // pred_check_branch
          %6791 = sbr.rel (%p6789) target = $region100
        $region99: #{vgg_forward.1} parent=95 // pred_region
          %s6792 = sand.u32 %s402, 1
          %s6793 = scalar_lea.sflag [#allocation3], %s6792
          %s6794 = sand.u32 %s402, 1
          %s6795 = scalar_lea.vmem [#allocation2], %s6794
          %6796 = dma.done %s6793, 16
        $region100: #{vgg_forward.1} parent=95 // pred_fallthru
          _
      $region96: #{vgg_forward.1} parent=5 // pred_fallthru
        _
    $region6: #{vgg_forward.1} parent=1 // loop_footer
      %s30 = sadd.s32 1, %s26
    $region7: #{vgg_forward.1} parent=1 // loop_footer_branch
      %25 = sbr.rel target = $region3
    $region8: #{vgg_forward.1} parent=1 // loop_exit
      _
    %6797 = vsyncpa [#allocation3], 1
    %s6798 = scalar_lea.sflag [#allocation3], 1
    %6799 = vsyncpa %s6798, 1

</llo_original>
